<compile_context>
chip_gen: v7x
topology: tpu7x:2x2x1
jax: 0.10.0
libtpu: 0.0.40
codegen_flags: <defaults>
</compile_context>

<pallas_src>
import functools
import math

import jax
import jax.numpy as jnp
from jax.experimental import pallas as pl
from jax.experimental.pallas import tpu as pltpu


def _round_up(x, m):
    return ((x + m - 1) // m) * m


def _next_pow2(x):
    return 1 << max(0, int(x) - 1).bit_length()


# ----------------------------------------------------------------------------
# Fused stride-1 3x3 conv kernels: relu((sum_taps A_tap @ W_tap) + shift [+ r])
# ----------------------------------------------------------------------------
def _conv3x3_kernel(a0_ref, a1_ref, w_ref, t_ref, o_ref, xw_ref, *, row, hal, relu):
    tm = a0_ref.shape[0]
    # Assemble the flat input window [i*tm, i*tm + tm + hal) in VMEM.
    xw_ref[0:tm, :] = a0_ref[...]
    xw_ref[tm:tm + hal, :] = a1_ref[...]
    acc = None
    for k in range(9):                                # static unrolled taps
        off = (k // 3) * row + (k % 3)                # tap offset dy*row + dx
        part = jnp.dot(xw_ref[off:off + tm, :], w_ref[k],
                       preferred_element_type=jnp.float32)
        acc = part if acc is None else acc + part
    y = acc + t_ref[...]
    if relu:
        y = jnp.maximum(y, 0.0)
    o_ref[...] = y.astype(o_ref.dtype)


def _conv3x3_res_kernel(a0_ref, a1_ref, w_ref, t_ref, r_ref, o_ref, xw_ref, *,
                        row, hal):
    tm = a0_ref.shape[0]
    xw_ref[0:tm, :] = a0_ref[...]
    xw_ref[tm:tm + hal, :] = a1_ref[...]
    acc = None
    for k in range(9):
        off = (k // 3) * row + (k % 3)
        part = jnp.dot(xw_ref[off:off + tm, :], w_ref[k],
                       preferred_element_type=jnp.float32)
        acc = part if acc is None else acc + part
    y = acc + t_ref[...] + r_ref[...].astype(jnp.float32)   # bf16 residual
    o_ref[...] = jnp.maximum(y, 0.0).astype(o_ref.dtype)


def conv3x3_s1_fused(x, wpk, cout, *, relu=True, residual=None,
                     out_dtype=jnp.bfloat16):
    """Fused 3x3 stride-1 conv + folded BN (+ residual) (+ ReLU).

    x:        (N, H, W, Cin) activations (any float dtype; cast to bf16).
    wpk:      dict: 'w' (9, Cin, Cp) bf16 scale-folded taps, 't' (1, Cp) f32.
    residual: optional (N, H, W, Cr<=Cp), fused as relu(y + residual).
    Returns (N, H, W, cout) in out_dtype.
    """
    N, H, W, Cin = x.shape
    w_taps, shift = wpk["w"], wpk["t"]
    Cp = w_taps.shape[-1]

    row = W + 2                        # flat row stride of the padded image
    Q = H * row                        # flat output rows (incl. 2 garbage cols)
    maxoff = 2 * row + 2               # largest tap offset
    hal = _next_pow2(max(maxoff, 8))   # halo rows fetched from the next block
    tm = max(512 if Q >= 2048 else 256, hal)
    ratio = tm // hal
    Qp = _round_up(Q, tm)
    Pp = _round_up(max((H + 2) * row, Qp + tm), tm)

    # Single pad/flatten of the activation (replaces 9x im2col materialization).
    xp = jnp.pad(x.astype(jnp.bfloat16), ((0, 0), (1, 1), (1, 1), (0, 0)))
    xf = xp.reshape(N, (H + 2) * row, Cin)
    xf = jnp.pad(xf, ((0, 0), (0, Pp - (H + 2) * row), (0, 0)))

    in_specs = [
        pl.BlockSpec((None, tm, Cin), lambda n, i: (n, i, 0)),
        pl.BlockSpec((None, hal, Cin), lambda n, i: (n, (i + 1) * ratio, 0)),
        pl.BlockSpec((9, Cin, Cp), lambda n, i: (0, 0, 0)),   # resident weights
        pl.BlockSpec((1, Cp), lambda n, i: (0, 0)),           # resident shift
    ]
    args = [xf, xf, w_taps, shift]

    if residual is not None:
        Cr = residual.shape[-1]
        r = jnp.pad(residual.astype(jnp.bfloat16),
                    ((0, 0), (0, 0), (0, 2), (0, Cp - Cr)))
        r = jnp.pad(r.reshape(N, Q, Cp), ((0, 0), (0, Qp - Q), (0, 0)))
        in_specs.append(pl.BlockSpec((None, tm, Cp), lambda n, i: (n, i, 0)))
        args.append(r)
        kernel = functools.partial(_conv3x3_res_kernel, row=row, hal=hal)
    else:
        kernel = functools.partial(_conv3x3_kernel, row=row, hal=hal, relu=relu)

    out = pl.pallas_call(
        kernel,
        out_shape=jax.ShapeDtypeStruct((N, Qp, Cp), out_dtype),
        grid_spec=pltpu.PrefetchScalarGridSpec(
            num_scalar_prefetch=0,
            grid=(N, Qp // tm),
            in_specs=in_specs,
            out_specs=pl.BlockSpec((None, tm, Cp), lambda n, i: (n, i, 0)),
            scratch_shapes=[pltpu.VMEM((tm + hal, Cin), jnp.bfloat16)],
        ),
        compiler_params=pltpu.CompilerParams(
            dimension_semantics=("parallel", "parallel")),
    )(*args)
    return out[:, :Q, :].reshape(N, H, row, Cp)[:, :, :W, :cout]


# ----------------------------------------------------------------------------
# Fallback fused matmul path (stride-2 conv1 via im2col, 1x1 downsample conv)
# ----------------------------------------------------------------------------
def _mm_bn_kernel(a_ref, b_ref, t_ref, o_ref, *, relu):
    acc = jnp.dot(a_ref[...], b_ref[...], preferred_element_type=jnp.float32)
    y = acc + t_ref[...]
    if relu:
        y = jnp.maximum(y, 0.0)
    o_ref[...] = y.astype(o_ref.dtype)


def matmul_bn(a, wpk, *, relu=False, out_dtype=jnp.bfloat16):
    """relu((a @ B) + shift); B is scale-folded (Kp, Cp) bf16, VMEM-resident.

    Returns channel-padded (M, Cp)."""
    M, K = a.shape
    b, t = wpk["b"], wpk["t"]
    Kp, Cp = b.shape

    Mp = _round_up(max(M, 8), 8)
    tm = min(512, Mp)
    if Mp // tm < 2 and Mp >= 16:          # expose >=2 parallel blocks (v7x)
        tm = _round_up(-(-Mp // 2), 8)
    Mp = _round_up(Mp, tm)

    a_bf = a.astype(jnp.bfloat16)
    if (Mp, Kp) != (M, K):
        a_bf = jnp.pad(a_bf, ((0, Mp - M), (0, Kp - K)))

    out = pl.pallas_call(
        functools.partial(_mm_bn_kernel, relu=relu),
        out_shape=jax.ShapeDtypeStruct((Mp, Cp), out_dtype),
        grid_spec=pltpu.PrefetchScalarGridSpec(
            num_scalar_prefetch=0,
            grid=(Mp // tm,),
            in_specs=[pl.BlockSpec((tm, Kp), lambda i: (i, 0)),
                      pl.BlockSpec((Kp, Cp), lambda i: (0, 0)),
                      pl.BlockSpec((1, Cp), lambda i: (0, 0))],
            out_specs=pl.BlockSpec((tm, Cp), lambda i: (i, 0)),
        ),
        compiler_params=pltpu.CompilerParams(
            dimension_semantics=("parallel",)),
    )(a_bf, b, t)
    return out[:M]


def im2col(x, kh, kw, stride, padding):
    """NHWC -> (N*Ho*Wo, kh*kw*C).  stride/padding are Python ints."""
    N, H, W, C = x.shape
    xp = x
    if padding:
        xp = jnp.pad(x, ((0, 0), (padding, padding), (padding, padding), (0, 0)))
    Ho = (H + 2 * padding - kh) // stride + 1
    Wo = (W + 2 * padding - kw) // stride + 1
    cols = [xp[:, dy:dy + stride * Ho:stride, dx:dx + stride * Wo:stride, :]
            for dy in range(kh) for dx in range(kw)]
    patches = jnp.concatenate(cols, axis=-1)           # (N, Ho, Wo, kh*kw*C)
    return patches.reshape(N * Ho * Wo, kh * kw * C), (N, Ho, Wo)


# ----------------------------------------------------------------------------
# Parameter packing (BN scale folded into weights at build time)
# ----------------------------------------------------------------------------
def fold_bn(bn, eps=1e-5):
    scale = bn["gamma"] / jnp.sqrt(bn["var"] + eps)
    shift = bn["beta"] - bn["mean"] * scale
    return scale, shift


def pack_conv3x3_taps(w_hwio, bn):
    kh, kw, cin, cout = w_hwio.shape
    Cp = _round_up(cout, 128)
    scale, shift = fold_bn(bn)
    w = (w_hwio.astype(jnp.float32) * scale).reshape(kh * kw, cin, cout)
    w_taps = jnp.zeros((kh * kw, cin, Cp), jnp.float32).at[:, :, :cout].set(w)
    t = jnp.zeros((1, Cp), jnp.float32).at[0, :cout].set(shift)
    return dict(w=w_taps.astype(jnp.bfloat16), t=t)


def pack_conv_mm(w_hwio, bn):
    kh, kw, cin, cout = w_hwio.shape
    K = kh * kw * cin
    Kp = _round_up(K, 128)
    Cp = _round_up(cout, 128)
    scale, shift = fold_bn(bn)
    w = (w_hwio.astype(jnp.float32) * scale).reshape(K, cout)
    b = jnp.zeros((Kp, Cp), jnp.float32).at[:K, :cout].set(w)
    t = jnp.zeros((1, Cp), jnp.float32).at[0, :cout].set(shift)
    return dict(b=b.astype(jnp.bfloat16), t=t)


# ----------------------------------------------------------------------------
# Deterministic synthetic parameters
# ----------------------------------------------------------------------------
def kaiming(key, kh, kw, cin, cout):
    std = math.sqrt(2.0 / (kh * kw * cout))
    return std * jax.random.normal(key, (kh, kw, cin, cout), jnp.float32)


def make_bn(key, c):
    k1, k2, k3, k4 = jax.random.split(key, 4)
    return dict(gamma=1.0 + 0.2 * jax.random.normal(k1, (c,), jnp.float32),
                beta=0.1 * jax.random.normal(k2, (c,), jnp.float32),
                mean=0.1 * jax.random.normal(k3, (c,), jnp.float32),
                var=1.0 + 0.5 * jax.random.uniform(k4, (c,), jnp.float32))


def build_basicblock_params(key, inplanes, planes, stride):
    ks = jax.random.split(key, 6)
    raw = dict(conv1_w=kaiming(ks[0], 3, 3, inplanes, planes),
               bn1=make_bn(ks[1], planes),
               conv2_w=kaiming(ks[2], 3, 3, planes, planes),
               bn2=make_bn(ks[3], planes))
    has_ds = (stride != 1) or (inplanes != planes)
    if has_ds:
        raw["ds_w"] = kaiming(ks[4], 1, 1, inplanes, planes)
        raw["ds_bn"] = make_bn(ks[5], planes)
    packed = dict(conv2=pack_conv3x3_taps(raw["conv2_w"], raw["bn2"]))
    if stride == 1:
        packed["conv1"] = pack_conv3x3_taps(raw["conv1_w"], raw["bn1"])
    else:
        packed["conv1_mm"] = pack_conv_mm(raw["conv1_w"], raw["bn1"])
    if has_ds:
        packed["ds"] = pack_conv_mm(raw["ds_w"], raw["ds_bn"])
    return raw, packed, has_ds


# ----------------------------------------------------------------------------
# BasicBlock forward (Pallas) and pure-JAX reference
# ----------------------------------------------------------------------------
def basic_block_forward(packed, x_nchw, *, stride, has_downsample, planes):
    """BasicBlock: conv3x3-BN-ReLU -> conv3x3-BN -> (+identity) -> ReLU."""
    # TODO(synk): in a full ResNet stack keep activations NHWC/bf16 end-to-end
    #             and hoist these per-block layout transposes / casts.
    x = jnp.transpose(x_nchw, (0, 2, 3, 1))                  # NHWC
    N, H, W, Cin = x.shape
    x_bf = x.astype(jnp.bfloat16)

    # conv1 -> BN1 -> ReLU
    if stride == 1:
        h1 = conv3x3_s1_fused(x_bf, packed["conv1"], planes, relu=True)
        Ho, Wo = H, W
    else:
        A1, (_, Ho, Wo) = im2col(x_bf, 3, 3, stride, 1)
        h1 = matmul_bn(A1, packed["conv1_mm"], relu=True)[:, :planes]
        h1 = h1.reshape(N, Ho, Wo, planes)

    # identity branch (1x1 conv + BN when downsampling), streamed as bf16 into
    # conv2's epilogue
    if has_downsample:
        Ad = x_bf[:, ::stride, ::stride, :].reshape(N * Ho * Wo, Cin)
        ident = matmul_bn(Ad, packed["ds"], relu=False)       # (M, Cp) padded
        ident = ident.reshape(N, Ho, Wo, ident.shape[-1])
    else:
        ident = x_bf

    # conv2 -> BN2 -> (+identity) -> ReLU, all fused in one Pallas kernel
    y = conv3x3_s1_fused(h1, packed["conv2"], planes, residual=ident,
                         out_dtype=jnp.bfloat16)
    return jnp.transpose(y, (0, 3, 1, 2)).astype(jnp.float32)  # NCHW, f32


def _conv_ref(x, w, stride, padding):
    return jax.lax.conv_general_dilated(
        x, w, window_strides=(stride, stride),
        padding=((padding, padding), (padding, padding)),
        dimension_numbers=("NHWC", "HWIO", "NHWC"))


def basic_block_ref(raw, x_nchw, stride, has_downsample):
    x = jnp.transpose(x_nchw, (0, 2, 3, 1)).astype(jnp.float32)
    s1, t1 = fold_bn(raw["bn1"])
    out = jnp.maximum(_conv_ref(x, raw["conv1_w"], stride, 1) * s1 + t1, 0.0)
    s2, t2 = fold_bn(raw["bn2"])
    out = _conv_ref(out, raw["conv2_w"], 1, 1) * s2 + t2
    if has_downsample:
        sd, td = fold_bn(raw["ds_bn"])
        ident = _conv_ref(x, raw["ds_w"], stride, 0) * sd + td
    else:
        ident = x
    out = jnp.maximum(out + ident, 0.0)
    return jnp.transpose(out, (0, 3, 1, 2))


# ----------------------------------------------------------------------------
# Main
# ----------------------------------------------------------------------------
if __name__ == "__main__":
    key = jax.random.PRNGKey(0)
    kp1, kp2, kx = jax.random.split(key, 3)

    batch, cin, hw = 2, 64, 16
    x = jax.random.normal(kx, (batch, cin, hw, hw), jnp.float32)

    # Case 1: identity shortcut (stride=1, inplanes == planes == 64)
    raw1, packed1, ds1 = build_basicblock_params(kp1, cin, 64, stride=1)
    fwd1 = jax.jit(functools.partial(basic_block_forward,
                                     stride=1, has_downsample=ds1, planes=64))
    out1 = jax.block_until_ready(fwd1(packed1, x))
    ref1 = basic_block_ref(raw1, x, 1, ds1)
    assert out1.shape == (batch, 64, hw, hw)
    err1 = float(jnp.max(jnp.abs(out1 - ref1)))
    tol1 = 5e-2 * max(1.0, float(jnp.max(jnp.abs(ref1))))
    assert err1 <= tol1, f"case1 mismatch: {err1} > {tol1}"

    # Case 2: projection shortcut (stride=2, 64 -> 128 channels, downsample)
    raw2, packed2, ds2 = build_basicblock_params(kp2, cin, 128, stride=2)
    fwd2 = jax.jit(functools.partial(basic_block_forward,
                                     stride=2, has_downsample=ds2, planes=128))
    out2 = jax.block_until_ready(fwd2(packed2, x))
    ref2 = basic_block_ref(raw2, x, 2, ds2)
    assert out2.shape == (batch, 128, hw // 2, hw // 2)
    err2 = float(jnp.max(jnp.abs(out2 - ref2)))
    tol2 = 5e-2 * max(1.0, float(jnp.max(jnp.abs(ref2))))
    assert err2 <= tol2, f"case2 mismatch: {err2} > {tol2}"

    print("KERNEL_OK")
</pallas_src>

<mosaic_0001>
module attributes {stable_mosaic.version = 11 : i64} {
  func.func @_conv3x3_kernel(%arg0: i32, %arg1: i32, %arg2: memref<1x256x64xbf16, #tpu.memory_space<vmem>>, %arg3: memref<1x64x64xbf16, #tpu.memory_space<vmem>>, %arg4: memref<9x64x128xbf16, #tpu.memory_space<vmem>>, %arg5: memref<1x128xf32, #tpu.memory_space<vmem>>, %arg6: memref<1x256x128xbf16, #tpu.memory_space<vmem>>, %arg7: memref<320x64xbf16, #tpu.memory_space<vmem>>) attributes {dimension_semantics = [#tpu.dimension_semantics<parallel>, #tpu.dimension_semantics<parallel>], iteration_bounds = array<i64: 2, 2>, scalar_prefetch = 0 : i64, scratch_operands = 1 : i64, tpu.core_type = #tpu.core_type<tc>, window_params = [{transform_indices = @transform_0, window_bounds = array<i64: 1, 256, 64>}, {transform_indices = @transform_1, window_bounds = array<i64: 1, 64, 64>}, {pipeline_mode = #tpu.pipeline_mode<synchronous>, transform_indices = @transform_2, window_bounds = array<i64: 9, 64, 128>}, {pipeline_mode = #tpu.pipeline_mode<synchronous>, transform_indices = @transform_3, window_bounds = array<i64: 1, 128>}, {transform_indices = @transform_4, window_bounds = array<i64: 1, 256, 128>}]} {
    %c0 = arith.constant 0 : index
    %c0_0 = arith.constant 0 : index
    %c0_1 = arith.constant 0 : index
    %0 = vector.load %arg2[%c0, %c0_0, %c0_1] : memref<1x256x64xbf16, #tpu.memory_space<vmem>>, vector<1x256x64xbf16>
    %1 = vector.shape_cast %0 : vector<1x256x64xbf16> to vector<256x64xbf16>
    %c0_2 = arith.constant 0 : index
    %c0_3 = arith.constant 0 : index
    %2 = vector.load %arg7[%c0_2, %c0_3] : memref<320x64xbf16, #tpu.memory_space<vmem>>, vector<256x64xbf16>
    tpu.vector_store %arg7[%c0_2, %c0_3], %1 {strides = array<i32>} : memref<320x64xbf16, #tpu.memory_space<vmem>>, vector<256x64xbf16>,
    %c0_4 = arith.constant 0 : index
    %c0_5 = arith.constant 0 : index
    %c0_6 = arith.constant 0 : index
    %3 = vector.load %arg3[%c0_4, %c0_5, %c0_6] : memref<1x64x64xbf16, #tpu.memory_space<vmem>>, vector<1x64x64xbf16>
    %4 = vector.shape_cast %3 : vector<1x64x64xbf16> to vector<64x64xbf16>
    %c256 = arith.constant 256 : index
    %c0_7 = arith.constant 0 : index
    %5 = vector.load %arg7[%c256, %c0_7] : memref<320x64xbf16, #tpu.memory_space<vmem>>, vector<64x64xbf16>
    tpu.vector_store %arg7[%c256, %c0_7], %4 {strides = array<i32>} : memref<320x64xbf16, #tpu.memory_space<vmem>>, vector<64x64xbf16>,
    %c0_8 = arith.constant 0 : index
    %c0_9 = arith.constant 0 : index
    %6 = vector.load %arg7[%c0_8, %c0_9] : memref<320x64xbf16, #tpu.memory_space<vmem>>, vector<256x64xbf16>
    %c0_10 = arith.constant 0 : index
    %c0_11 = arith.constant 0 : index
    %c0_12 = arith.constant 0 : index
    %7 = vector.load %arg4[%c0_10, %c0_11, %c0_12] : memref<9x64x128xbf16, #tpu.memory_space<vmem>>, vector<1x64x128xbf16>
    %8 = vector.shape_cast %7 : vector<1x64x128xbf16> to vector<64x128xbf16>
    %cst = arith.constant dense<0.000000e+00> : vector<256x128xf32>
    %9 = tpu.matmul %6, %8, %cst {dimension_numbers = #tpu.dot_dimension_numbers<[1], [0], [0], [1], [0, 0, 1, 1], [], []>} : vector<256x64xbf16>, vector<64x128xbf16>, vector<256x128xf32> -> vector<256x128xf32>
    %c1 = arith.constant 1 : index
    %c0_13 = arith.constant 0 : index
    %10 = vector.load %arg7[%c1, %c0_13] : memref<320x64xbf16, #tpu.memory_space<vmem>>, vector<256x64xbf16>
    %c1_14 = arith.constant 1 : index
    %c0_15 = arith.constant 0 : index
    %c0_16 = arith.constant 0 : index
    %11 = vector.load %arg4[%c1_14, %c0_15, %c0_16] : memref<9x64x128xbf16, #tpu.memory_space<vmem>>, vector<1x64x128xbf16>
    %12 = vector.shape_cast %11 : vector<1x64x128xbf16> to vector<64x128xbf16>
    %cst_17 = arith.constant dense<0.000000e+00> : vector<256x128xf32>
    %13 = tpu.matmul %10, %12, %cst_17 {dimension_numbers = #tpu.dot_dimension_numbers<[1], [0], [0], [1], [0, 0, 1, 1], [], []>} : vector<256x64xbf16>, vector<64x128xbf16>, vector<256x128xf32> -> vector<256x128xf32>
    %14 = arith.addf %9, %13 : vector<256x128xf32>
    %c2 = arith.constant 2 : index
    %c0_18 = arith.constant 0 : index
    %15 = vector.load %arg7[%c2, %c0_18] : memref<320x64xbf16, #tpu.memory_space<vmem>>, vector<256x64xbf16>
    %c2_19 = arith.constant 2 : index
    %c0_20 = arith.constant 0 : index
    %c0_21 = arith.constant 0 : index
    %16 = vector.load %arg4[%c2_19, %c0_20, %c0_21] : memref<9x64x128xbf16, #tpu.memory_space<vmem>>, vector<1x64x128xbf16>
    %17 = vector.shape_cast %16 : vector<1x64x128xbf16> to vector<64x128xbf16>
    %cst_22 = arith.constant dense<0.000000e+00> : vector<256x128xf32>
    %18 = tpu.matmul %15, %17, %cst_22 {dimension_numbers = #tpu.dot_dimension_numbers<[1], [0], [0], [1], [0, 0, 1, 1], [], []>} : vector<256x64xbf16>, vector<64x128xbf16>, vector<256x128xf32> -> vector<256x128xf32>
    %19 = arith.addf %14, %18 : vector<256x128xf32>
    %c18 = arith.constant 18 : index
    %c0_23 = arith.constant 0 : index
    %20 = vector.load %arg7[%c18, %c0_23] : memref<320x64xbf16, #tpu.memory_space<vmem>>, vector<256x64xbf16>
    %c3 = arith.constant 3 : index
    %c0_24 = arith.constant 0 : index
    %c0_25 = arith.constant 0 : index
    %21 = vector.load %arg4[%c3, %c0_24, %c0_25] : memref<9x64x128xbf16, #tpu.memory_space<vmem>>, vector<1x64x128xbf16>
    %22 = vector.shape_cast %21 : vector<1x64x128xbf16> to vector<64x128xbf16>
    %cst_26 = arith.constant dense<0.000000e+00> : vector<256x128xf32>
    %23 = tpu.matmul %20, %22, %cst_26 {dimension_numbers = #tpu.dot_dimension_numbers<[1], [0], [0], [1], [0, 0, 1, 1], [], []>} : vector<256x64xbf16>, vector<64x128xbf16>, vector<256x128xf32> -> vector<256x128xf32>
    %24 = arith.addf %19, %23 : vector<256x128xf32>
    %c19 = arith.constant 19 : index
    %c0_27 = arith.constant 0 : index
    %25 = vector.load %arg7[%c19, %c0_27] : memref<320x64xbf16, #tpu.memory_space<vmem>>, vector<256x64xbf16>
    %c4 = arith.constant 4 : index
    %c0_28 = arith.constant 0 : index
    %c0_29 = arith.constant 0 : index
    %26 = vector.load %arg4[%c4, %c0_28, %c0_29] : memref<9x64x128xbf16, #tpu.memory_space<vmem>>, vector<1x64x128xbf16>
    %27 = vector.shape_cast %26 : vector<1x64x128xbf16> to vector<64x128xbf16>
    %cst_30 = arith.constant dense<0.000000e+00> : vector<256x128xf32>
    %28 = tpu.matmul %25, %27, %cst_30 {dimension_numbers = #tpu.dot_dimension_numbers<[1], [0], [0], [1], [0, 0, 1, 1], [], []>} : vector<256x64xbf16>, vector<64x128xbf16>, vector<256x128xf32> -> vector<256x128xf32>
    %29 = arith.addf %24, %28 : vector<256x128xf32>
    %c20 = arith.constant 20 : index
    %c0_31 = arith.constant 0 : index
    %30 = vector.load %arg7[%c20, %c0_31] : memref<320x64xbf16, #tpu.memory_space<vmem>>, vector<256x64xbf16>
    %c5 = arith.constant 5 : index
    %c0_32 = arith.constant 0 : index
    %c0_33 = arith.constant 0 : index
    %31 = vector.load %arg4[%c5, %c0_32, %c0_33] : memref<9x64x128xbf16, #tpu.memory_space<vmem>>, vector<1x64x128xbf16>
    %32 = vector.shape_cast %31 : vector<1x64x128xbf16> to vector<64x128xbf16>
    %cst_34 = arith.constant dense<0.000000e+00> : vector<256x128xf32>
    %33 = tpu.matmul %30, %32, %cst_34 {dimension_numbers = #tpu.dot_dimension_numbers<[1], [0], [0], [1], [0, 0, 1, 1], [], []>} : vector<256x64xbf16>, vector<64x128xbf16>, vector<256x128xf32> -> vector<256x128xf32>
    %34 = arith.addf %29, %33 : vector<256x128xf32>
    %c36 = arith.constant 36 : index
    %c0_35 = arith.constant 0 : index
    %35 = vector.load %arg7[%c36, %c0_35] : memref<320x64xbf16, #tpu.memory_space<vmem>>, vector<256x64xbf16>
    %c6 = arith.constant 6 : index
    %c0_36 = arith.constant 0 : index
    %c0_37 = arith.constant 0 : index
    %36 = vector.load %arg4[%c6, %c0_36, %c0_37] : memref<9x64x128xbf16, #tpu.memory_space<vmem>>, vector<1x64x128xbf16>
    %37 = vector.shape_cast %36 : vector<1x64x128xbf16> to vector<64x128xbf16>
    %cst_38 = arith.constant dense<0.000000e+00> : vector<256x128xf32>
    %38 = tpu.matmul %35, %37, %cst_38 {dimension_numbers = #tpu.dot_dimension_numbers<[1], [0], [0], [1], [0, 0, 1, 1], [], []>} : vector<256x64xbf16>, vector<64x128xbf16>, vector<256x128xf32> -> vector<256x128xf32>
    %39 = arith.addf %34, %38 : vector<256x128xf32>
    %c37 = arith.constant 37 : index
    %c0_39 = arith.constant 0 : index
    %40 = vector.load %arg7[%c37, %c0_39] : memref<320x64xbf16, #tpu.memory_space<vmem>>, vector<256x64xbf16>
    %c7 = arith.constant 7 : index
    %c0_40 = arith.constant 0 : index
    %c0_41 = arith.constant 0 : index
    %41 = vector.load %arg4[%c7, %c0_40, %c0_41] : memref<9x64x128xbf16, #tpu.memory_space<vmem>>, vector<1x64x128xbf16>
    %42 = vector.shape_cast %41 : vector<1x64x128xbf16> to vector<64x128xbf16>
    %cst_42 = arith.constant dense<0.000000e+00> : vector<256x128xf32>
    %43 = tpu.matmul %40, %42, %cst_42 {dimension_numbers = #tpu.dot_dimension_numbers<[1], [0], [0], [1], [0, 0, 1, 1], [], []>} : vector<256x64xbf16>, vector<64x128xbf16>, vector<256x128xf32> -> vector<256x128xf32>
    %44 = arith.addf %39, %43 : vector<256x128xf32>
    %c38 = arith.constant 38 : index
    %c0_43 = arith.constant 0 : index
    %45 = vector.load %arg7[%c38, %c0_43] : memref<320x64xbf16, #tpu.memory_space<vmem>>, vector<256x64xbf16>
    %c8 = arith.constant 8 : index
    %c0_44 = arith.constant 0 : index
    %c0_45 = arith.constant 0 : index
    %46 = vector.load %arg4[%c8, %c0_44, %c0_45] : memref<9x64x128xbf16, #tpu.memory_space<vmem>>, vector<1x64x128xbf16>
    %47 = vector.shape_cast %46 : vector<1x64x128xbf16> to vector<64x128xbf16>
    %cst_46 = arith.constant dense<0.000000e+00> : vector<256x128xf32>
    %48 = tpu.matmul %45, %47, %cst_46 {dimension_numbers = #tpu.dot_dimension_numbers<[1], [0], [0], [1], [0, 0, 1, 1], [], []>} : vector<256x64xbf16>, vector<64x128xbf16>, vector<256x128xf32> -> vector<256x128xf32>
    %49 = arith.addf %44, %48 : vector<256x128xf32>
    %c0_47 = arith.constant 0 : index
    %c0_48 = arith.constant 0 : index
    %50 = vector.load %arg5[%c0_47, %c0_48] : memref<1x128xf32, #tpu.memory_space<vmem>>, vector<1x128xf32>
    %51 = vector.broadcast %50 : vector<1x128xf32> to vector<256x128xf32>
    %52 = arith.addf %49, %51 : vector<256x128xf32>
    %cst_49 = arith.constant 0.000000e+00 : f32
    %53 = vector.broadcast %cst_49 : f32 to vector<256x128xf32>
    %54 = arith.maximumf %52, %53 : vector<256x128xf32>
    %55 = arith.truncf %54 : vector<256x128xf32> to vector<256x128xbf16>
    %c0_50 = arith.constant 0 : index
    %c0_51 = arith.constant 0 : index
    %c0_52 = arith.constant 0 : index
    %56 = vector.load %arg6[%c0_50, %c0_51, %c0_52] : memref<1x256x128xbf16, #tpu.memory_space<vmem>>, vector<1x256x128xbf16>
    %57 = vector.shape_cast %56 : vector<1x256x128xbf16> to vector<256x128xbf16>
    %58 = vector.shape_cast %55 : vector<256x128xbf16> to vector<1x256x128xbf16>
    tpu.vector_store %arg6[%c0_50, %c0_51, %c0_52], %58 {strides = array<i32>} : memref<1x256x128xbf16, #tpu.memory_space<vmem>>, vector<1x256x128xbf16>,
    return
  }
  func.func @transform_0(%arg0: i32, %arg1: i32) -> (i32, i32, i32) {
    %c0_i32 = arith.constant 0 : i32
    %c0_i32_0 = arith.constant 0 : i32
    return %arg0, %arg1, %c0_i32 : i32, i32, i32
  }
  func.func @transform_1(%arg0: i32, %arg1: i32) -> (i32, i32, i32) {
    %c1_i32 = arith.constant 1 : i32
    %0 = arith.addi %arg1, %c1_i32 : i32
    %c4_i32 = arith.constant 4 : i32
    %1 = arith.muli %0, %c4_i32 : i32
    %c0_i32 = arith.constant 0 : i32
    %c0_i32_0 = arith.constant 0 : i32
    return %arg0, %1, %c0_i32 : i32, i32, i32
  }
  func.func @transform_2(%arg0: i32, %arg1: i32) -> (i32, i32, i32) {
    %c0_i32 = arith.constant 0 : i32
    %c0_i32_0 = arith.constant 0 : i32
    %c0_i32_1 = arith.constant 0 : i32
    %c0_i32_2 = arith.constant 0 : i32
    return %c0_i32, %c0_i32_0, %c0_i32_1 : i32, i32, i32
  }
  func.func @transform_3(%arg0: i32, %arg1: i32) -> (i32, i32) {
    %c0_i32 = arith.constant 0 : i32
    %c0_i32_0 = arith.constant 0 : i32
    %c0_i32_1 = arith.constant 0 : i32
    return %c0_i32, %c0_i32_0 : i32, i32
  }
  func.func @transform_4(%arg0: i32, %arg1: i32) -> (i32, i32, i32) {
    %c0_i32 = arith.constant 0 : i32
    %c0_i32_0 = arith.constant 0 : i32
    return %arg0, %arg1, %c0_i32 : i32, i32, i32
  }
}

module attributes {stable_mosaic.version = 11 : i64} {
  func.func @_conv3x3_res_kernel(%arg0: i32, %arg1: i32, %arg2: memref<1x256x64xbf16, #tpu.memory_space<vmem>>, %arg3: memref<1x64x64xbf16, #tpu.memory_space<vmem>>, %arg4: memref<9x64x128xbf16, #tpu.memory_space<vmem>>, %arg5: memref<1x128xf32, #tpu.memory_space<vmem>>, %arg6: memref<1x256x128xbf16, #tpu.memory_space<vmem>>, %arg7: memref<1x256x128xbf16, #tpu.memory_space<vmem>>, %arg8: memref<320x64xbf16, #tpu.memory_space<vmem>>) attributes {dimension_semantics = [#tpu.dimension_semantics<parallel>, #tpu.dimension_semantics<parallel>], iteration_bounds = array<i64: 2, 2>, scalar_prefetch = 0 : i64, scratch_operands = 1 : i64, tpu.core_type = #tpu.core_type<tc>, window_params = [{transform_indices = @transform_0, window_bounds = array<i64: 1, 256, 64>}, {transform_indices = @transform_1, window_bounds = array<i64: 1, 64, 64>}, {pipeline_mode = #tpu.pipeline_mode<synchronous>, transform_indices = @transform_2, window_bounds = array<i64: 9, 64, 128>}, {pipeline_mode = #tpu.pipeline_mode<synchronous>, transform_indices = @transform_3, window_bounds = array<i64: 1, 128>}, {transform_indices = @transform_4, window_bounds = array<i64: 1, 256, 128>}, {transform_indices = @transform_5, window_bounds = array<i64: 1, 256, 128>}]} {
    %c0 = arith.constant 0 : index
    %c0_0 = arith.constant 0 : index
    %c0_1 = arith.constant 0 : index
    %0 = vector.load %arg2[%c0, %c0_0, %c0_1] : memref<1x256x64xbf16, #tpu.memory_space<vmem>>, vector<1x256x64xbf16>
    %1 = vector.shape_cast %0 : vector<1x256x64xbf16> to vector<256x64xbf16>
    %c0_2 = arith.constant 0 : index
    %c0_3 = arith.constant 0 : index
    %2 = vector.load %arg8[%c0_2, %c0_3] : memref<320x64xbf16, #tpu.memory_space<vmem>>, vector<256x64xbf16>
    tpu.vector_store %arg8[%c0_2, %c0_3], %1 {strides = array<i32>} : memref<320x64xbf16, #tpu.memory_space<vmem>>, vector<256x64xbf16>,
    %c0_4 = arith.constant 0 : index
    %c0_5 = arith.constant 0 : index
    %c0_6 = arith.constant 0 : index
    %3 = vector.load %arg3[%c0_4, %c0_5, %c0_6] : memref<1x64x64xbf16, #tpu.memory_space<vmem>>, vector<1x64x64xbf16>
    %4 = vector.shape_cast %3 : vector<1x64x64xbf16> to vector<64x64xbf16>
    %c256 = arith.constant 256 : index
    %c0_7 = arith.constant 0 : index
    %5 = vector.load %arg8[%c256, %c0_7] : memref<320x64xbf16, #tpu.memory_space<vmem>>, vector<64x64xbf16>
    tpu.vector_store %arg8[%c256, %c0_7], %4 {strides = array<i32>} : memref<320x64xbf16, #tpu.memory_space<vmem>>, vector<64x64xbf16>,
    %c0_8 = arith.constant 0 : index
    %c0_9 = arith.constant 0 : index
    %6 = vector.load %arg8[%c0_8, %c0_9] : memref<320x64xbf16, #tpu.memory_space<vmem>>, vector<256x64xbf16>
    %c0_10 = arith.constant 0 : index
    %c0_11 = arith.constant 0 : index
    %c0_12 = arith.constant 0 : index
    %7 = vector.load %arg4[%c0_10, %c0_11, %c0_12] : memref<9x64x128xbf16, #tpu.memory_space<vmem>>, vector<1x64x128xbf16>
    %8 = vector.shape_cast %7 : vector<1x64x128xbf16> to vector<64x128xbf16>
    %cst = arith.constant dense<0.000000e+00> : vector<256x128xf32>
    %9 = tpu.matmul %6, %8, %cst {dimension_numbers = #tpu.dot_dimension_numbers<[1], [0], [0], [1], [0, 0, 1, 1], [], []>} : vector<256x64xbf16>, vector<64x128xbf16>, vector<256x128xf32> -> vector<256x128xf32>
    %c1 = arith.constant 1 : index
    %c0_13 = arith.constant 0 : index
    %10 = vector.load %arg8[%c1, %c0_13] : memref<320x64xbf16, #tpu.memory_space<vmem>>, vector<256x64xbf16>
    %c1_14 = arith.constant 1 : index
    %c0_15 = arith.constant 0 : index
    %c0_16 = arith.constant 0 : index
    %11 = vector.load %arg4[%c1_14, %c0_15, %c0_16] : memref<9x64x128xbf16, #tpu.memory_space<vmem>>, vector<1x64x128xbf16>
    %12 = vector.shape_cast %11 : vector<1x64x128xbf16> to vector<64x128xbf16>
    %cst_17 = arith.constant dense<0.000000e+00> : vector<256x128xf32>
    %13 = tpu.matmul %10, %12, %cst_17 {dimension_numbers = #tpu.dot_dimension_numbers<[1], [0], [0], [1], [0, 0, 1, 1], [], []>} : vector<256x64xbf16>, vector<64x128xbf16>, vector<256x128xf32> -> vector<256x128xf32>
    %14 = arith.addf %9, %13 : vector<256x128xf32>
    %c2 = arith.constant 2 : index
    %c0_18 = arith.constant 0 : index
    %15 = vector.load %arg8[%c2, %c0_18] : memref<320x64xbf16, #tpu.memory_space<vmem>>, vector<256x64xbf16>
    %c2_19 = arith.constant 2 : index
    %c0_20 = arith.constant 0 : index
    %c0_21 = arith.constant 0 : index
    %16 = vector.load %arg4[%c2_19, %c0_20, %c0_21] : memref<9x64x128xbf16, #tpu.memory_space<vmem>>, vector<1x64x128xbf16>
    %17 = vector.shape_cast %16 : vector<1x64x128xbf16> to vector<64x128xbf16>
    %cst_22 = arith.constant dense<0.000000e+00> : vector<256x128xf32>
    %18 = tpu.matmul %15, %17, %cst_22 {dimension_numbers = #tpu.dot_dimension_numbers<[1], [0], [0], [1], [0, 0, 1, 1], [], []>} : vector<256x64xbf16>, vector<64x128xbf16>, vector<256x128xf32> -> vector<256x128xf32>
    %19 = arith.addf %14, %18 : vector<256x128xf32>
    %c18 = arith.constant 18 : index
    %c0_23 = arith.constant 0 : index
    %20 = vector.load %arg8[%c18, %c0_23] : memref<320x64xbf16, #tpu.memory_space<vmem>>, vector<256x64xbf16>
    %c3 = arith.constant 3 : index
    %c0_24 = arith.constant 0 : index
    %c0_25 = arith.constant 0 : index
    %21 = vector.load %arg4[%c3, %c0_24, %c0_25] : memref<9x64x128xbf16, #tpu.memory_space<vmem>>, vector<1x64x128xbf16>
    %22 = vector.shape_cast %21 : vector<1x64x128xbf16> to vector<64x128xbf16>
    %cst_26 = arith.constant dense<0.000000e+00> : vector<256x128xf32>
    %23 = tpu.matmul %20, %22, %cst_26 {dimension_numbers = #tpu.dot_dimension_numbers<[1], [0], [0], [1], [0, 0, 1, 1], [], []>} : vector<256x64xbf16>, vector<64x128xbf16>, vector<256x128xf32> -> vector<256x128xf32>
    %24 = arith.addf %19, %23 : vector<256x128xf32>
    %c19 = arith.constant 19 : index
    %c0_27 = arith.constant 0 : index
    %25 = vector.load %arg8[%c19, %c0_27] : memref<320x64xbf16, #tpu.memory_space<vmem>>, vector<256x64xbf16>
    %c4 = arith.constant 4 : index
    %c0_28 = arith.constant 0 : index
    %c0_29 = arith.constant 0 : index
    %26 = vector.load %arg4[%c4, %c0_28, %c0_29] : memref<9x64x128xbf16, #tpu.memory_space<vmem>>, vector<1x64x128xbf16>
    %27 = vector.shape_cast %26 : vector<1x64x128xbf16> to vector<64x128xbf16>
    %cst_30 = arith.constant dense<0.000000e+00> : vector<256x128xf32>
    %28 = tpu.matmul %25, %27, %cst_30 {dimension_numbers = #tpu.dot_dimension_numbers<[1], [0], [0], [1], [0, 0, 1, 1], [], []>} : vector<256x64xbf16>, vector<64x128xbf16>, vector<256x128xf32> -> vector<256x128xf32>
    %29 = arith.addf %24, %28 : vector<256x128xf32>
    %c20 = arith.constant 20 : index
    %c0_31 = arith.constant 0 : index
    %30 = vector.load %arg8[%c20, %c0_31] : memref<320x64xbf16, #tpu.memory_space<vmem>>, vector<256x64xbf16>
    %c5 = arith.constant 5 : index
    %c0_32 = arith.constant 0 : index
    %c0_33 = arith.constant 0 : index
    %31 = vector.load %arg4[%c5, %c0_32, %c0_33] : memref<9x64x128xbf16, #tpu.memory_space<vmem>>, vector<1x64x128xbf16>
    %32 = vector.shape_cast %31 : vector<1x64x128xbf16> to vector<64x128xbf16>
    %cst_34 = arith.constant dense<0.000000e+00> : vector<256x128xf32>
    %33 = tpu.matmul %30, %32, %cst_34 {dimension_numbers = #tpu.dot_dimension_numbers<[1], [0], [0], [1], [0, 0, 1, 1], [], []>} : vector<256x64xbf16>, vector<64x128xbf16>, vector<256x128xf32> -> vector<256x128xf32>
    %34 = arith.addf %29, %33 : vector<256x128xf32>
    %c36 = arith.constant 36 : index
    %c0_35 = arith.constant 0 : index
    %35 = vector.load %arg8[%c36, %c0_35] : memref<320x64xbf16, #tpu.memory_space<vmem>>, vector<256x64xbf16>
    %c6 = arith.constant 6 : index
    %c0_36 = arith.constant 0 : index
    %c0_37 = arith.constant 0 : index
    %36 = vector.load %arg4[%c6, %c0_36, %c0_37] : memref<9x64x128xbf16, #tpu.memory_space<vmem>>, vector<1x64x128xbf16>
    %37 = vector.shape_cast %36 : vector<1x64x128xbf16> to vector<64x128xbf16>
    %cst_38 = arith.constant dense<0.000000e+00> : vector<256x128xf32>
    %38 = tpu.matmul %35, %37, %cst_38 {dimension_numbers = #tpu.dot_dimension_numbers<[1], [0], [0], [1], [0, 0, 1, 1], [], []>} : vector<256x64xbf16>, vector<64x128xbf16>, vector<256x128xf32> -> vector<256x128xf32>
    %39 = arith.addf %34, %38 : vector<256x128xf32>
    %c37 = arith.constant 37 : index
    %c0_39 = arith.constant 0 : index
    %40 = vector.load %arg8[%c37, %c0_39] : memref<320x64xbf16, #tpu.memory_space<vmem>>, vector<256x64xbf16>
    %c7 = arith.constant 7 : index
    %c0_40 = arith.constant 0 : index
    %c0_41 = arith.constant 0 : index
    %41 = vector.load %arg4[%c7, %c0_40, %c0_41] : memref<9x64x128xbf16, #tpu.memory_space<vmem>>, vector<1x64x128xbf16>
    %42 = vector.shape_cast %41 : vector<1x64x128xbf16> to vector<64x128xbf16>
    %cst_42 = arith.constant dense<0.000000e+00> : vector<256x128xf32>
    %43 = tpu.matmul %40, %42, %cst_42 {dimension_numbers = #tpu.dot_dimension_numbers<[1], [0], [0], [1], [0, 0, 1, 1], [], []>} : vector<256x64xbf16>, vector<64x128xbf16>, vector<256x128xf32> -> vector<256x128xf32>
    %44 = arith.addf %39, %43 : vector<256x128xf32>
    %c38 = arith.constant 38 : index
    %c0_43 = arith.constant 0 : index
    %45 = vector.load %arg8[%c38, %c0_43] : memref<320x64xbf16, #tpu.memory_space<vmem>>, vector<256x64xbf16>
    %c8 = arith.constant 8 : index
    %c0_44 = arith.constant 0 : index
    %c0_45 = arith.constant 0 : index
    %46 = vector.load %arg4[%c8, %c0_44, %c0_45] : memref<9x64x128xbf16, #tpu.memory_space<vmem>>, vector<1x64x128xbf16>
    %47 = vector.shape_cast %46 : vector<1x64x128xbf16> to vector<64x128xbf16>
    %cst_46 = arith.constant dense<0.000000e+00> : vector<256x128xf32>
    %48 = tpu.matmul %45, %47, %cst_46 {dimension_numbers = #tpu.dot_dimension_numbers<[1], [0], [0], [1], [0, 0, 1, 1], [], []>} : vector<256x64xbf16>, vector<64x128xbf16>, vector<256x128xf32> -> vector<256x128xf32>
    %49 = arith.addf %44, %48 : vector<256x128xf32>
    %c0_47 = arith.constant 0 : index
    %c0_48 = arith.constant 0 : index
    %50 = vector.load %arg5[%c0_47, %c0_48] : memref<1x128xf32, #tpu.memory_space<vmem>>, vector<1x128xf32>
    %51 = vector.broadcast %50 : vector<1x128xf32> to vector<256x128xf32>
    %52 = arith.addf %49, %51 : vector<256x128xf32>
    %c0_49 = arith.constant 0 : index
    %c0_50 = arith.constant 0 : index
    %c0_51 = arith.constant 0 : index
    %53 = vector.load %arg6[%c0_49, %c0_50, %c0_51] : memref<1x256x128xbf16, #tpu.memory_space<vmem>>, vector<1x256x128xbf16>
    %54 = vector.shape_cast %53 : vector<1x256x128xbf16> to vector<256x128xbf16>
    %55 = arith.extf %54 : vector<256x128xbf16> to vector<256x128xf32>
    %56 = arith.addf %52, %55 : vector<256x128xf32>
    %cst_52 = arith.constant 0.000000e+00 : f32
    %57 = vector.broadcast %cst_52 : f32 to vector<256x128xf32>
    %58 = arith.maximumf %56, %57 : vector<256x128xf32>
    %59 = arith.truncf %58 : vector<256x128xf32> to vector<256x128xbf16>
    %c0_53 = arith.constant 0 : index
    %c0_54 = arith.constant 0 : index
    %c0_55 = arith.constant 0 : index
    %60 = vector.load %arg7[%c0_53, %c0_54, %c0_55] : memref<1x256x128xbf16, #tpu.memory_space<vmem>>, vector<1x256x128xbf16>
    %61 = vector.shape_cast %60 : vector<1x256x128xbf16> to vector<256x128xbf16>
    %62 = vector.shape_cast %59 : vector<256x128xbf16> to vector<1x256x128xbf16>
    tpu.vector_store %arg7[%c0_53, %c0_54, %c0_55], %62 {strides = array<i32>} : memref<1x256x128xbf16, #tpu.memory_space<vmem>>, vector<1x256x128xbf16>,
    return
  }
  func.func @transform_0(%arg0: i32, %arg1: i32) -> (i32, i32, i32) {
    %c0_i32 = arith.constant 0 : i32
    %c0_i32_0 = arith.constant 0 : i32
    return %arg0, %arg1, %c0_i32 : i32, i32, i32
  }
  func.func @transform_1(%arg0: i32, %arg1: i32) -> (i32, i32, i32) {
    %c1_i32 = arith.constant 1 : i32
    %0 = arith.addi %arg1, %c1_i32 : i32
    %c4_i32 = arith.constant 4 : i32
    %1 = arith.muli %0, %c4_i32 : i32
    %c0_i32 = arith.constant 0 : i32
    %c0_i32_0 = arith.constant 0 : i32
    return %arg0, %1, %c0_i32 : i32, i32, i32
  }
  func.func @transform_2(%arg0: i32, %arg1: i32) -> (i32, i32, i32) {
    %c0_i32 = arith.constant 0 : i32
    %c0_i32_0 = arith.constant 0 : i32
    %c0_i32_1 = arith.constant 0 : i32
    %c0_i32_2 = arith.constant 0 : i32
    return %c0_i32, %c0_i32_0, %c0_i32_1 : i32, i32, i32
  }
  func.func @transform_3(%arg0: i32, %arg1: i32) -> (i32, i32) {
    %c0_i32 = arith.constant 0 : i32
    %c0_i32_0 = arith.constant 0 : i32
    %c0_i32_1 = arith.constant 0 : i32
    return %c0_i32, %c0_i32_0 : i32, i32
  }
  func.func @transform_4(%arg0: i32, %arg1: i32) -> (i32, i32, i32) {
    %c0_i32 = arith.constant 0 : i32
    %c0_i32_0 = arith.constant 0 : i32
    return %arg0, %arg1, %c0_i32 : i32, i32, i32
  }
  func.func @transform_5(%arg0: i32, %arg1: i32) -> (i32, i32, i32) {
    %c0_i32 = arith.constant 0 : i32
    %c0_i32_0 = arith.constant 0 : i32
    return %arg0, %arg1, %c0_i32 : i32, i32, i32
  }
}

</mosaic_0001>

<llo_original>
// kernel: basic_block_forward.2
$region0: #{basic_block_forward.2}
  #allocation0 [shape = 'u32[]', space=smem, size = 0x4, offset = 0x4, fixed_abs, tag = 'smem constant byte address 0x4 - core index']
  #allocation1 [shape = 'u32[144,128]{1,0:T(1,128)}', space=vmem, size = 0x12000, scoped, tag = 'internal scratch']
  #allocation2 [shape = 'bf16[320,64]{1,0:T(16,128)(2,1)}', space=vmem, size = 0x14000, scoped, tag = 'scratch operand']
  %s0 = inlined_call_operand.vmem [shape: bf16[2,768,64], index: 0, kind: input, shape index: {}, may-alias: {0,1}]
  %s1 = inlined_call_operand.vmem [shape: bf16[2,768,64], index: 1, kind: input, shape index: {}, may-alias: {0,1}]
  %s2 = inlined_call_operand.vmem [shape: bf16[9,64,128], index: 2, kind: input, shape index: {}]
  %s3 = inlined_call_operand.vmem [shape: f32[1,128], index: 3, kind: input, shape index: {}]
  %s4 = inlined_call_operand.vmem [shape: bf16[2,512,128], index: 4, kind: output, shape index: {}]
  %s5 = sld [smem:[#allocation0]]
  $region49: #{basic_block_forward.2} parent=0
    _
  %s7 = ssub.s32 1, %s5
  %s8 = scalar_select 0, %s7, %s5
  loop: start=0, step=1, limit=6
  $region2: #{basic_block_forward.2} parent=0 // loop_pre_header
    _
  $region3: #{basic_block_forward.2} parent=0 // loop_header
    %s10 = sphi 0, %s14
    %p11 = scmp.ge.s32.totalorder %s10, 6
    %s17 = sphi 0, %s29
    %s18 = sphi 0, %s25
    %s19 = sphi 0, %s17
    %s20 = sphi 0, %s18
    %s21 = sphi 0, %s19
    %s22 = sphi 0, %s20
    %s34 = sphi 0, %s36
    %s37 = sphi 0, %s34
    %s38 = sphi 0, %s37
    %s54 = sphi 0, %s38
    %s66 = sphi 0, %s68
    %s69 = sphi 0, %s66
    %s70 = sphi 0, %s69
    %s86 = sphi 0, %s70
    %s90 = sphi 0, %s90
    %s92 = sphi 0, %s90
    %s93 = sphi 0, %s92
    %s107 = sphi 0, %s93
    %s111 = sphi 0, %s111
    %s113 = sphi 0, %s111
    %s114 = sphi 0, %s113
    %s128 = sphi 0, %s114
    %s136 = sphi 0, %s138
    %s139 = sphi 0, %s136
    %s140 = sphi 0, %s139
    %s156 = sphi 0, %s140
  $region4: #{basic_block_forward.2} parent=0 // loop_header_branch
    %13 = sbr.rel (%p11) target = $region8
  $region5: #{basic_block_forward.2} parent=0 // loop_body
    %s15 = ssub.s32 %s10, 1
    %s16 = ssub.s32 %s10, 2
    %s23 = sadd.s32 1, %s18
    %p24 = scmp.ge.s32.totalorder %s23, 2
    %s25 = scalar_select %p24, 0, %s23
    %s26 = sadd.s32 1, %s17
    %s27 = scalar_select %p24, %s26, %s17
    %p28 = scmp.ge.s32.totalorder %s27, 2
    %s29 = scalar_select %p28, 0, %s27
    %s30 = ssub.s32 %s17, %s29
    %s31 = ssub.s32 %s18, %s25
    %s32 = sor.u32 %s30, %s31
    %p33 = scmp.eq.s32.totalorder %s32, 0
    %s35 = sadd.s32 %s34, 1
    %s36 = scalar_select %p33, %s34, %s35
    %p39 = pneg %p33
    %p40 = scmp.eq.s32.totalorder %s10, 3
    %p41 = por %p39, %p40
    %p42 = scmp.ne.s32.totalorder %s34, %s37
    %p43 = scmp.eq.s32.totalorder %s10, 0
    %p44 = por %p42, %p43
    %p45 = scmp.ne.s32.totalorder %s34, %s37
    %p46 = scmp.eq.s32.totalorder %s15, 3
    %p47 = por %p45, %p46
    %p48 = scmp.ne.s32.totalorder %s37, %s38
    %p49 = scmp.eq.s32.totalorder %s15, 0
    %p50 = por %p48, %p49
    %p51 = scmp.ne.s32.totalorder %s37, %s38
    %p52 = scmp.eq.s32.totalorder %s16, 3
    %p53 = por %p51, %p52
    %p55 = scmp.ne.s32.totalorder %s38, %s54
    %p56 = scmp.eq.s32.totalorder %s16, 0
    %p57 = por %p55, %p56
    %s58 = sadd.s32 %s18, 1
    %s59 = smul.u32 %s58, 4
    %s60 = sadd.s32 %s25, 1
    %s61 = smul.u32 %s60, 4
    %s62 = ssub.s32 %s17, %s29
    %s63 = ssub.s32 %s59, %s61
    %s64 = sor.u32 %s62, %s63
    %p65 = scmp.eq.s32.totalorder %s64, 0
    %s67 = sadd.s32 %s66, 1
    %s68 = scalar_select %p65, %s66, %s67
    %p71 = pneg %p65
    %p72 = scmp.eq.s32.totalorder %s10, 3
    %p73 = por %p71, %p72
    %p74 = scmp.ne.s32.totalorder %s66, %s69
    %p75 = scmp.eq.s32.totalorder %s10, 0
    %p76 = por %p74, %p75
    %p77 = scmp.ne.s32.totalorder %s66, %s69
    %p78 = scmp.eq.s32.totalorder %s15, 3
    %p79 = por %p77, %p78
    %p80 = scmp.ne.s32.totalorder %s69, %s70
    %p81 = scmp.eq.s32.totalorder %s15, 0
    %p82 = por %p80, %p81
    %p83 = scmp.ne.s32.totalorder %s69, %s70
    %p84 = scmp.eq.s32.totalorder %s16, 3
    %p85 = por %p83, %p84
    %p87 = scmp.ne.s32.totalorder %s70, %s86
    %p88 = scmp.eq.s32.totalorder %s16, 0
    %p89 = por %p87, %p88
    %s91 = sadd.s32 %s90, 1
    %p94 = scmp.eq.s32.totalorder %s10, 3
    %p95 = scmp.ne.s32.totalorder %s90, %s92
    %p96 = scmp.eq.s32.totalorder %s10, 0
    %p97 = por %p95, %p96
    %p98 = scmp.ne.s32.totalorder %s90, %s92
    %p99 = scmp.eq.s32.totalorder %s15, 3
    %p100 = por %p98, %p99
    %p101 = scmp.ne.s32.totalorder %s92, %s93
    %p102 = scmp.eq.s32.totalorder %s15, 0
    %p103 = por %p101, %p102
    %p104 = scmp.ne.s32.totalorder %s92, %s93
    %p105 = scmp.eq.s32.totalorder %s16, 3
    %p106 = por %p104, %p105
    %p108 = scmp.ne.s32.totalorder %s93, %s107
    %p109 = scmp.eq.s32.totalorder %s16, 0
    %p110 = por %p108, %p109
    %s112 = sadd.s32 %s111, 1
    %p115 = scmp.eq.s32.totalorder %s10, 3
    %p116 = scmp.ne.s32.totalorder %s111, %s113
    %p117 = scmp.eq.s32.totalorder %s10, 0
    %p118 = por %p116, %p117
    %p119 = scmp.ne.s32.totalorder %s111, %s113
    %p120 = scmp.eq.s32.totalorder %s15, 3
    %p121 = por %p119, %p120
    %p122 = scmp.ne.s32.totalorder %s113, %s114
    %p123 = scmp.eq.s32.totalorder %s15, 0
    %p124 = por %p122, %p123
    %p125 = scmp.ne.s32.totalorder %s113, %s114
    %p126 = scmp.eq.s32.totalorder %s16, 3
    %p127 = por %p125, %p126
    %p129 = scmp.ne.s32.totalorder %s114, %s128
    %p130 = scmp.eq.s32.totalorder %s16, 0
    %p131 = por %p129, %p130
    %s132 = ssub.s32 %s17, %s29
    %s133 = ssub.s32 %s18, %s25
    %s134 = sor.u32 %s132, %s133
    %p135 = scmp.eq.s32.totalorder %s134, 0
    %s137 = sadd.s32 %s136, 1
    %s138 = scalar_select %p135, %s136, %s137
    %p141 = pneg %p135
    %p142 = scmp.eq.s32.totalorder %s10, 3
    %p143 = por %p141, %p142
    %p144 = scmp.ne.s32.totalorder %s136, %s139
    %p145 = scmp.eq.s32.totalorder %s10, 0
    %p146 = por %p144, %p145
    %p147 = scmp.ne.s32.totalorder %s136, %s139
    %p148 = scmp.eq.s32.totalorder %s15, 3
    %p149 = por %p147, %p148
    %p150 = scmp.ne.s32.totalorder %s139, %s140
    %p151 = scmp.eq.s32.totalorder %s15, 0
    %p152 = por %p150, %p151
    %p153 = scmp.ne.s32.totalorder %s139, %s140
    %p154 = scmp.eq.s32.totalorder %s16, 3
    %p155 = por %p153, %p154
    %p157 = scmp.ne.s32.totalorder %s140, %s156
    %p158 = scmp.eq.s32.totalorder %s16, 0
    %p159 = por %p157, %p158
    %p160 = scmp.le.s32.totalorder 1, %s10
    %p161 = scmp.lt.s32.totalorder %s10, 5
    %p162 = pnand %p160, %p161
    %p163 = pneg %p162
    // Predicated region
    $region9: #{basic_block_forward.2} parent=5 // pred_check
      _
    $region10: #{basic_block_forward.2} parent=5 // pred_check_branch
      %165 = sbr.rel (%p162) target = $region12
    $region11: #{basic_block_forward.2} parent=5 // pred_region
      %s166 = ssub.s32 %s10, 1
      // Predicated region
      $region13: #{basic_block_forward.2} parent=11 // pred_check
        %p167 = pneg %p103
      $region14: #{basic_block_forward.2} parent=11 // pred_check_branch
        %169 = sbr.rel (%p167) target = $region16
      $region15: #{basic_block_forward.2} parent=11 // pred_region
        _
      $region16: #{basic_block_forward.2} parent=11 // pred_fallthru
        _
      // Predicated region
      $region17: #{basic_block_forward.2} parent=11 // pred_check
        %p170 = pneg %p124
      $region18: #{basic_block_forward.2} parent=11 // pred_check_branch
        %172 = sbr.rel (%p170) target = $region20
      $region19: #{basic_block_forward.2} parent=11 // pred_region
        _
      $region20: #{basic_block_forward.2} parent=11 // pred_fallthru
        _
    $region12: #{basic_block_forward.2} parent=5 // pred_fallthru
      _
    %p173 = scmp.lt.s32.totalorder %s10, 4
    // Predicated region
    $region21: #{basic_block_forward.2} parent=5 // pred_check
      %p174 = pneg %p173
    $region22: #{basic_block_forward.2} parent=5 // pred_check_branch
      %176 = sbr.rel (%p174) target = $region24
    $region23: #{basic_block_forward.2} parent=5 // pred_region
      // Predicated region
      $region25: #{basic_block_forward.2} parent=23 // pred_check
        %p177 = pneg %p44
      $region26: #{basic_block_forward.2} parent=23 // pred_check_branch
        %179 = sbr.rel (%p177) target = $region28
      $region27: #{basic_block_forward.2} parent=23 // pred_region
        %s180 = smul.u32 32, %s18
        %p181 = scmp.lt.s32.totalorder %s17, 1
        %s182 = scalar_select %p181, %s17, 1
        %p183 = scmp.lt.s32.totalorder %s180, 95
        %s184 = scalar_select %p183, %s180, 95
        %s185 = smul.addr %s182, 96
        %s186 = sadd.s32 %s184, %s185
        %s187 = smul.addr %s186, 4
        %s188 = scalar_lea.vmem %s0, %s187
        %s189 = smul.u32 32, %s18
      $region28: #{basic_block_forward.2} parent=23 // pred_fallthru
        _
      // Predicated region
      $region29: #{basic_block_forward.2} parent=23 // pred_check
        %p190 = pneg %p76
      $region30: #{basic_block_forward.2} parent=23 // pred_check_branch
        %192 = sbr.rel (%p190) target = $region32
      $region31: #{basic_block_forward.2} parent=23 // pred_region
        %s193 = sadd.s32 %s18, 1
        %s194 = smul.u32 %s193, 4
        %s195 = smul.u32 8, %s194
        %p196 = scmp.lt.s32.totalorder %s17, 1
        %s197 = scalar_select %p196, %s17, 1
        %p198 = scmp.lt.s32.totalorder %s195, 95
        %s199 = scalar_select %p198, %s195, 95
        %s200 = smul.addr %s197, 96
        %s201 = sadd.s32 %s199, %s200
        %s202 = smul.addr %s201, 4
        %s203 = scalar_lea.vmem %s1, %s202
        %s204 = sadd.s32 %s18, 1
        %s205 = smul.u32 %s204, 4
        %s206 = smul.u32 8, %s205
      $region32: #{basic_block_forward.2} parent=23 // pred_fallthru
        _
    $region24: #{basic_block_forward.2} parent=5 // pred_fallthru
      _
    %p207 = scmp.le.s32.totalorder 1, %s10
    %p208 = scmp.lt.s32.totalorder %s10, 5
    %p209 = pnand %p207, %p208
    %p210 = pneg %p209
    // Predicated region
    $region33: #{basic_block_forward.2} parent=5 // pred_check
      _
    $region34: #{basic_block_forward.2} parent=5 // pred_check_branch
      %212 = sbr.rel (%p209) target = $region36
    $region35: #{basic_block_forward.2} parent=5 // pred_region
      %s213 = ssub.s32 %s10, 1
      %s214 = smul.u32 32, %s20
      %p215 = scmp.lt.s32.totalorder %s19, 1
      %s216 = scalar_select %p215, %s19, 1
      %p217 = scmp.lt.s32.totalorder %s214, 95
      %s218 = scalar_select %p217, %s214, 95
      %s219 = smul.addr %s216, 96
      %s220 = sadd.s32 %s218, %s219
      %s221 = smul.addr %s220, 4
      %s222 = scalar_lea.vmem %s0, %s221
      %p223 = pneg %p50
      %p224 = pneg %p47
      %s225 = sadd.s32 %s20, 1
      %s226 = smul.u32 %s225, 4
      %s227 = smul.u32 8, %s226
      %p228 = scmp.lt.s32.totalorder %s19, 1
      %s229 = scalar_select %p228, %s19, 1
      %p230 = scmp.lt.s32.totalorder %s227, 95
      %s231 = scalar_select %p230, %s227, 95
      %s232 = smul.addr %s229, 96
      %s233 = sadd.s32 %s231, %s232
      %s234 = smul.addr %s233, 4
      %s235 = scalar_lea.vmem %s1, %s234
      %p236 = pneg %p82
      %p237 = pneg %p79
      %p238 = pneg %p103
      %p239 = pneg %p100
      %p240 = pneg %p124
      %p241 = pneg %p121
      %p242 = pneg %p152
      %p243 = pneg %p149
      %s244 = smul.u32 32, %s20
      %p245 = scmp.lt.s32.totalorder %s19, 1
      %s246 = scalar_select %p245, %s19, 1
      %p247 = scmp.lt.s32.totalorder %s244, 63
      %s248 = scalar_select %p247, %s244, 63
      %s249 = smul.addr %s246, 64
      %s250 = sadd.s32 %s248, %s249
      %s251 = smul.addr %s250, 4
      %s252 = scalar_lea.vmem %s4, %s251
      %s253 = smul.u32 32, %s20
      %p254 = scmp.lt.s32.totalorder %s19, 1
      %s255 = scalar_select %p254, %s19, 1
      %p256 = scmp.lt.s32.totalorder %s253, 95
      %s257 = scalar_select %p256, %s253, 95
      %s258 = smul.addr %s255, 96
      %s259 = sadd.s32 %s257, %s258
      %s260 = smul.addr %s259, 4
      %s261 = scalar_lea.vmem %s0, %s260
      %s262 = smul.u32 32, %s20
      %s263 = sadd.s32 %s20, 1
      %s264 = smul.u32 %s263, 4
      %s265 = smul.u32 8, %s264
      %p266 = scmp.lt.s32.totalorder %s19, 1
      %s267 = scalar_select %p266, %s19, 1
      %p268 = scmp.lt.s32.totalorder %s265, 95
      %s269 = scalar_select %p268, %s265, 95
      %s270 = smul.addr %s267, 96
      %s271 = sadd.s32 %s269, %s270
      %s272 = smul.addr %s271, 4
      %s273 = scalar_lea.vmem %s1, %s272
      %s274 = sadd.s32 %s20, 1
      %s275 = smul.u32 %s274, 4
      %s276 = smul.u32 8, %s275
      %s277 = smul.u32 32, %s20
      %p278 = scmp.lt.s32.totalorder %s19, 1
      %s279 = scalar_select %p278, %s19, 1
      %p280 = scmp.lt.s32.totalorder %s277, 63
      %s281 = scalar_select %p280, %s277, 63
      %s282 = smul.addr %s279, 64
      %s283 = sadd.s32 %s281, %s282
      %s284 = smul.addr %s283, 4
      %s285 = scalar_lea.vmem %s4, %s284
      %s286 = smul.u32 32, %s20
      %v288 = vld [vmem:[%s261] sm:$0xf]
      %v289 = vld [vmem:[%s261 + $0x4] sm:$0xf]
      %v290 = vld [vmem:[%s261 + $0x8] sm:$0xf]
      %v291 = vld [vmem:[%s261 + $0xc] sm:$0xf]
      %v292 = vld [vmem:[%s261 + $0x10] sm:$0xf]
      %v293 = vld [vmem:[%s261 + $0x14] sm:$0xf]
      %v294 = vld [vmem:[%s261 + $0x18] sm:$0xf]
      %v295 = vld [vmem:[%s261 + $0x1c] sm:$0xf]
      %v296 = vld [vmem:[%s261 + $0x20] sm:$0xf]
      %v297 = vld [vmem:[%s261 + $0x24] sm:$0xf]
      %v298 = vld [vmem:[%s261 + $0x28] sm:$0xf]
      %v299 = vld [vmem:[%s261 + $0x2c] sm:$0xf]
      %v300 = vld [vmem:[%s261 + $0x30] sm:$0xf]
      %v301 = vld [vmem:[%s261 + $0x34] sm:$0xf]
      %v302 = vld [vmem:[%s261 + $0x38] sm:$0xf]
      %v303 = vld [vmem:[%s261 + $0x3c] sm:$0xf]
      %v304 = vld [vmem:[%s261 + $0x40] sm:$0xf]
      %v305 = vld [vmem:[%s261 + $0x44] sm:$0xf]
      %v306 = vld [vmem:[%s261 + $0x48] sm:$0xf]
      %v307 = vld [vmem:[%s261 + $0x4c] sm:$0xf]
      %v308 = vld [vmem:[%s261 + $0x50] sm:$0xf]
      %v309 = vld [vmem:[%s261 + $0x54] sm:$0xf]
      %v310 = vld [vmem:[%s261 + $0x58] sm:$0xf]
      %v311 = vld [vmem:[%s261 + $0x5c] sm:$0xf]
      %v312 = vld [vmem:[%s261 + $0x60] sm:$0xf]
      %v313 = vld [vmem:[%s261 + $0x64] sm:$0xf]
      %v314 = vld [vmem:[%s261 + $0x68] sm:$0xf]
      %v315 = vld [vmem:[%s261 + $0x6c] sm:$0xf]
      %v316 = vld [vmem:[%s261 + $0x70] sm:$0xf]
      %v317 = vld [vmem:[%s261 + $0x74] sm:$0xf]
      %v318 = vld [vmem:[%s261 + $0x78] sm:$0xf]
      %v319 = vld [vmem:[%s261 + $0x7c] sm:$0xf]
      %v352 = vunpack.c.l.b16 %v288
      %v353 = vunpack.c.l.b16 %v289
      %v354 = vunpack.c.l.b16 %v290
      %v355 = vunpack.c.l.b16 %v291
      %v356 = vunpack.c.l.b16 %v292
      %v357 = vunpack.c.l.b16 %v293
      %v358 = vunpack.c.l.b16 %v294
      %v359 = vunpack.c.l.b16 %v295
      %v360 = vunpack.c.l.b16 %v296
      %v361 = vunpack.c.l.b16 %v297
      %v362 = vunpack.c.l.b16 %v298
      %v363 = vunpack.c.l.b16 %v299
      %v364 = vunpack.c.l.b16 %v300
      %v365 = vunpack.c.l.b16 %v301
      %v366 = vunpack.c.l.b16 %v302
      %v367 = vunpack.c.l.b16 %v303
      %v368 = vunpack.c.l.b16 %v304
      %v369 = vunpack.c.l.b16 %v305
      %v370 = vunpack.c.l.b16 %v306
      %v371 = vunpack.c.l.b16 %v307
      %v372 = vunpack.c.l.b16 %v308
      %v373 = vunpack.c.l.b16 %v309
      %v374 = vunpack.c.l.b16 %v310
      %v375 = vunpack.c.l.b16 %v311
      %v376 = vunpack.c.l.b16 %v312
      %v377 = vunpack.c.l.b16 %v313
      %v378 = vunpack.c.l.b16 %v314
      %v379 = vunpack.c.l.b16 %v315
      %v380 = vunpack.c.l.b16 %v316
      %v381 = vunpack.c.l.b16 %v317
      %v382 = vunpack.c.l.b16 %v318
      %v383 = vunpack.c.l.b16 %v319
      %v384 = vpack.c.b16 %v353, %v352
      %v385 = vpack.c.b16 %v355, %v354
      %v386 = vpack.c.b16 %v357, %v356
      %v387 = vpack.c.b16 %v359, %v358
      %v388 = vpack.c.b16 %v361, %v360
      %v389 = vpack.c.b16 %v363, %v362
      %v390 = vpack.c.b16 %v365, %v364
      %v391 = vpack.c.b16 %v367, %v366
      %v392 = vpack.c.b16 %v369, %v368
      %v393 = vpack.c.b16 %v371, %v370
      %v394 = vpack.c.b16 %v373, %v372
      %v395 = vpack.c.b16 %v375, %v374
      %v396 = vpack.c.b16 %v377, %v376
      %v397 = vpack.c.b16 %v379, %v378
      %v398 = vpack.c.b16 %v381, %v380
      %v399 = vpack.c.b16 %v383, %v382
      %vm416 = vcmask 523264
      %417 = vst.msk [vmem:[#allocation2] sm:$0xff] %vm416, %v384
      %418 = vst.msk [vmem:[#allocation2 + $0x8] sm:$0xff] %vm416, %v385
      %419 = vst.msk [vmem:[#allocation2 + $0x10] sm:$0xff] %vm416, %v386
      %420 = vst.msk [vmem:[#allocation2 + $0x18] sm:$0xff] %vm416, %v387
      %421 = vst.msk [vmem:[#allocation2 + $0x20] sm:$0xff] %vm416, %v388
      %422 = vst.msk [vmem:[#allocation2 + $0x28] sm:$0xff] %vm416, %v389
      %423 = vst.msk [vmem:[#allocation2 + $0x30] sm:$0xff] %vm416, %v390
      %424 = vst.msk [vmem:[#allocation2 + $0x38] sm:$0xff] %vm416, %v391
      %425 = vst.msk [vmem:[#allocation2 + $0x40] sm:$0xff] %vm416, %v392
      %426 = vst.msk [vmem:[#allocation2 + $0x48] sm:$0xff] %vm416, %v393
      %427 = vst.msk [vmem:[#allocation2 + $0x50] sm:$0xff] %vm416, %v394
      %428 = vst.msk [vmem:[#allocation2 + $0x58] sm:$0xff] %vm416, %v395
      %429 = vst.msk [vmem:[#allocation2 + $0x60] sm:$0xff] %vm416, %v396
      %430 = vst.msk [vmem:[#allocation2 + $0x68] sm:$0xff] %vm416, %v397
      %431 = vst.msk [vmem:[#allocation2 + $0x70] sm:$0xff] %vm416, %v398
      %432 = vst.msk [vmem:[#allocation2 + $0x78] sm:$0xff] %vm416, %v399
      %v433 = vld [vmem:[%s273] sm:$0xf]
      %v434 = vld [vmem:[%s273 + $0x4] sm:$0xf]
      %v435 = vld [vmem:[%s273 + $0x8] sm:$0xf]
      %v436 = vld [vmem:[%s273 + $0xc] sm:$0xf]
      %v437 = vld [vmem:[%s273 + $0x10] sm:$0xf]
      %v438 = vld [vmem:[%s273 + $0x14] sm:$0xf]
      %v439 = vld [vmem:[%s273 + $0x18] sm:$0xf]
      %v440 = vld [vmem:[%s273 + $0x1c] sm:$0xf]
      %v449 = vunpack.c.l.b16 %v433
      %v450 = vunpack.c.l.b16 %v434
      %v451 = vunpack.c.l.b16 %v435
      %v452 = vunpack.c.l.b16 %v436
      %v453 = vunpack.c.l.b16 %v437
      %v454 = vunpack.c.l.b16 %v438
      %v455 = vunpack.c.l.b16 %v439
      %v456 = vunpack.c.l.b16 %v440
      %v457 = vpack.c.b16 %v450, %v449
      %v458 = vpack.c.b16 %v452, %v451
      %v459 = vpack.c.b16 %v454, %v453
      %v460 = vpack.c.b16 %v456, %v455
      %465 = vst.msk [vmem:[#allocation2 + $0x80] sm:$0xff] %vm416, %v457
      %466 = vst.msk [vmem:[#allocation2 + $0x88] sm:$0xff] %vm416, %v458
      %467 = vst.msk [vmem:[#allocation2 + $0x90] sm:$0xff] %vm416, %v459
      %468 = vst.msk [vmem:[#allocation2 + $0x98] sm:$0xff] %vm416, %v460
      %v469 = vld [vmem:[#allocation2] sm:$0xff]
      %v470 = vld [vmem:[#allocation2 + $0x8] sm:$0xff]
      %v471 = vld [vmem:[#allocation2 + $0x10] sm:$0xff]
      %v472 = vld [vmem:[#allocation2 + $0x18] sm:$0xff]
      %v473 = vld [vmem:[#allocation2 + $0x20] sm:$0xff]
      %v474 = vld [vmem:[#allocation2 + $0x28] sm:$0xff]
      %v475 = vld [vmem:[#allocation2 + $0x30] sm:$0xff]
      %v476 = vld [vmem:[#allocation2 + $0x38] sm:$0xff]
      %v477 = vld [vmem:[#allocation2 + $0x40] sm:$0xff]
      %v478 = vld [vmem:[#allocation2 + $0x48] sm:$0xff]
      %v479 = vld [vmem:[#allocation2 + $0x50] sm:$0xff]
      %v480 = vld [vmem:[#allocation2 + $0x58] sm:$0xff]
      %v481 = vld [vmem:[#allocation2 + $0x60] sm:$0xff]
      %v482 = vld [vmem:[#allocation2 + $0x68] sm:$0xff]
      %v483 = vld [vmem:[#allocation2 + $0x70] sm:$0xff]
      %v484 = vld [vmem:[#allocation2 + $0x78] sm:$0xff]
      %v485 = vld [vmem:[%s2] sm:$0xf]
      %v486 = vld [vmem:[%s2 + $0x4] sm:$0xf]
      %v487 = vld [vmem:[%s2 + $0x8] sm:$0xf]
      %v488 = vld [vmem:[%s2 + $0xc] sm:$0xf]
      %v489 = vld [vmem:[%s2 + $0x10] sm:$0xf]
      %v490 = vld [vmem:[%s2 + $0x14] sm:$0xf]
      %v491 = vld [vmem:[%s2 + $0x18] sm:$0xf]
      %v492 = vld [vmem:[%s2 + $0x1c] sm:$0xf]
      %v493 = vld [vmem:[#allocation2 + $0x80] sm:$0x1]
      %s494 = scalar_lea.vmem %s2, 32
      %v495 = vld [vmem:[%s494] sm:$0xf]
      %v496 = vld [vmem:[%s494 + $0x4] sm:$0xf]
      %v497 = vld [vmem:[%s494 + $0x8] sm:$0xf]
      %v498 = vld [vmem:[%s494 + $0xc] sm:$0xf]
      %v499 = vld [vmem:[%s494 + $0x10] sm:$0xf]
      %v500 = vld [vmem:[%s494 + $0x14] sm:$0xf]
      %v501 = vld [vmem:[%s494 + $0x18] sm:$0xf]
      %v502 = vld [vmem:[%s494 + $0x1c] sm:$0xf]
      %vm503 = vsmask.f32 7424
      %v505 = vshrl.u32 %v469, 16
      %v507 = vshll.u32 %v469, 16
      %v509 = vrot.slane %v507, 1
      %v510 = vor.u32 %v505, %v509
      %v512 = vshll.u32 %v470, 16
      %v514 = vrot.slane %v512, 1
      %v515 = vsel %vm503, %v510, %v514
      %v516 = vshrl.u32 %v470, 16
      %v518 = vor.u32 %v516, %v514
      %v520 = vshll.u32 %v471, 16
      %v522 = vrot.slane %v520, 1
      %v523 = vsel %vm503, %v518, %v522
      %v524 = vshrl.u32 %v471, 16
      %v526 = vor.u32 %v524, %v522
      %v528 = vshll.u32 %v472, 16
      %v530 = vrot.slane %v528, 1
      %v531 = vsel %vm503, %v526, %v530
      %v532 = vshrl.u32 %v472, 16
      %v534 = vor.u32 %v532, %v530
      %v536 = vshll.u32 %v473, 16
      %v538 = vrot.slane %v536, 1
      %v539 = vsel %vm503, %v534, %v538
      %v540 = vshrl.u32 %v473, 16
      %v542 = vor.u32 %v540, %v538
      %v544 = vshll.u32 %v474, 16
      %v546 = vrot.slane %v544, 1
      %v547 = vsel %vm503, %v542, %v546
      %v548 = vshrl.u32 %v474, 16
      %v550 = vor.u32 %v548, %v546
      %v552 = vshll.u32 %v475, 16
      %v554 = vrot.slane %v552, 1
      %v555 = vsel %vm503, %v550, %v554
      %v556 = vshrl.u32 %v475, 16
      %v558 = vor.u32 %v556, %v554
      %v560 = vshll.u32 %v476, 16
      %v562 = vrot.slane %v560, 1
      %v563 = vsel %vm503, %v558, %v562
      %v564 = vshrl.u32 %v476, 16
      %v566 = vor.u32 %v564, %v562
      %v568 = vshll.u32 %v477, 16
      %v570 = vrot.slane %v568, 1
      %v571 = vsel %vm503, %v566, %v570
      %v572 = vshrl.u32 %v477, 16
      %v574 = vor.u32 %v572, %v570
      %v576 = vshll.u32 %v478, 16
      %v578 = vrot.slane %v576, 1
      %v579 = vsel %vm503, %v574, %v578
      %v580 = vshrl.u32 %v478, 16
      %v582 = vor.u32 %v580, %v578
      %v584 = vshll.u32 %v479, 16
      %v586 = vrot.slane %v584, 1
      %v587 = vsel %vm503, %v582, %v586
      %v588 = vshrl.u32 %v479, 16
      %v590 = vor.u32 %v588, %v586
      %v592 = vshll.u32 %v480, 16
      %v594 = vrot.slane %v592, 1
      %v595 = vsel %vm503, %v590, %v594
      %v596 = vshrl.u32 %v480, 16
      %v598 = vor.u32 %v596, %v594
      %v600 = vshll.u32 %v481, 16
      %v602 = vrot.slane %v600, 1
      %v603 = vsel %vm503, %v598, %v602
      %v604 = vshrl.u32 %v481, 16
      %v606 = vor.u32 %v604, %v602
      %v608 = vshll.u32 %v482, 16
      %v610 = vrot.slane %v608, 1
      %v611 = vsel %vm503, %v606, %v610
      %v612 = vshrl.u32 %v482, 16
      %v614 = vor.u32 %v612, %v610
      %v616 = vshll.u32 %v483, 16
      %v618 = vrot.slane %v616, 1
      %v619 = vsel %vm503, %v614, %v618
      %v620 = vshrl.u32 %v483, 16
      %v622 = vor.u32 %v620, %v618
      %v624 = vshll.u32 %v484, 16
      %v626 = vrot.slane %v624, 1
      %v627 = vsel %vm503, %v622, %v626
      %v628 = vshrl.u32 %v484, 16
      %v630 = vor.u32 %v628, %v626
      %v632 = vshll.u32 %v493, 16
      %v634 = vrot.slane %v632, 1
      %v635 = vsel %vm503, %v630, %v634
      %v644 = vunpack.c.l.b16 %v495
      %v645 = vunpack.c.l.b16 %v496
      %v646 = vunpack.c.l.b16 %v497
      %v647 = vunpack.c.l.b16 %v498
      %v648 = vunpack.c.l.b16 %v499
      %v649 = vunpack.c.l.b16 %v500
      %v650 = vunpack.c.l.b16 %v501
      %v651 = vunpack.c.l.b16 %v502
      %v652 = vpack.c.b16 %v645, %v644
      %v653 = vpack.c.b16 %v647, %v646
      %v654 = vpack.c.b16 %v649, %v648
      %v655 = vpack.c.b16 %v651, %v650
      %v661 = vsel %vm416, %v515, 0
      %v664 = vsel %vm416, %v523, 0
      %v667 = vsel %vm416, %v531, 0
      %v670 = vsel %vm416, %v539, 0
      %v673 = vsel %vm416, %v547, 0
      %v676 = vsel %vm416, %v555, 0
      %v679 = vsel %vm416, %v563, 0
      %v682 = vsel %vm416, %v571, 0
      %v685 = vsel %vm416, %v579, 0
      %v688 = vsel %vm416, %v587, 0
      %v691 = vsel %vm416, %v595, 0
      %v694 = vsel %vm416, %v603, 0
      %v697 = vsel %vm416, %v611, 0
      %v700 = vsel %vm416, %v619, 0
      %v703 = vsel %vm416, %v627, 0
      %v706 = vsel %vm416, %v635, 0
      %708 = vmatprep.subr.bf16.mxu0 0
      %709 = vmatpush1.bf16.msra.mxu0 %v652
      %710 = vmatprep.subr.bf16.mxu0 0
      %711 = vmatpush1.bf16.msra.mxu0 %v653
      %712 = vmatprep.subr.bf16.mxu0 0
      %713 = vmatpush1.bf16.msra.mxu0 %v654
      %714 = vmatprep.subr.bf16.mxu0 0
      %715 = vmatpush1.bf16.msra.mxu0 %v655
      %716 = vmatprep.subr.bf16.mxu0 0
      %717 = vmatpush1.bf16.msra.mxu0 0
      %718 = vmatprep.subr.bf16.mxu0 0
      %719 = vmatpush1.bf16.msra.mxu0 0
      %720 = vmatprep.subr.bf16.mxu0 0
      %721 = vmatpush1.bf16.msra.mxu0 0
      %722 = vmatprep.subr.bf16.mxu0 0
      %723 = vmatpush1.bf16.msra.mxu0 0
      %724 = vmatprep.subr.bf16.mxu0 0
      %725 = vmatpush1.bf16.msra.mxu0 0
      %726 = vmatprep.subr.bf16.mxu0 0
      %727 = vmatpush1.bf16.msra.mxu0 0
      %728 = vmatprep.subr.bf16.mxu0 0
      %729 = vmatpush1.bf16.msra.mxu0 0
      %730 = vmatprep.subr.bf16.mxu0 0
      %731 = vmatpush1.bf16.msra.mxu0 0
      %732 = vmatprep.subr.bf16.mxu0 0
      %733 = vmatpush1.bf16.msra.mxu0 0
      %734 = vmatprep.subr.bf16.mxu0 0
      %735 = vmatpush1.bf16.msra.mxu0 0
      %736 = vmatprep.subr.bf16.mxu0 0
      %737 = vmatpush1.bf16.msra.mxu0 0
      %738 = vmatprep.subr.bf16.mxu0 0
      %739 = vmatpush1.bf16.msra.mxu0 0
      %740 = vmatprep.mubr.bf16.mxu0 0
      %741 = vmatmul.mubr.bf16.gmra.mrb[0].mxu0 %v661
      %v742 = vpop.f32.mrb[0].mxu0
      %v743 = vadd.f32 0.0, %v742
      %v744 = vpop.f32.mrb[0].mxu0
      %v745 = vpop.f32.mrb[0].mxu0
      %v746 = vadd.f32 0.0, %v745
      %v747 = vpop.f32.mrb[0].mxu0
      %748 = vmatprep.mubr.bf16.mxu0 0
      %749 = vmatmul.mubr.bf16.gmra.mrb[0].mxu0 %v664
      %v750 = vpop.f32.mrb[0].mxu0
      %v751 = vadd.f32 0.0, %v750
      %v752 = vpop.f32.mrb[0].mxu0
      %v753 = vpop.f32.mrb[0].mxu0
      %v754 = vadd.f32 0.0, %v753
      %v755 = vpop.f32.mrb[0].mxu0
      %756 = vmatprep.mubr.bf16.mxu0 0
      %757 = vmatmul.mubr.bf16.gmra.mrb[0].mxu0 %v667
      %v758 = vpop.f32.mrb[0].mxu0
      %v759 = vadd.f32 0.0, %v758
      %v760 = vpop.f32.mrb[0].mxu0
      %v761 = vpop.f32.mrb[0].mxu0
      %v762 = vadd.f32 0.0, %v761
      %v763 = vpop.f32.mrb[0].mxu0
      %764 = vmatprep.mubr.bf16.mxu0 0
      %765 = vmatmul.mubr.bf16.gmra.mrb[0].mxu0 %v670
      %v766 = vpop.f32.mrb[0].mxu0
      %v767 = vadd.f32 0.0, %v766
      %v768 = vpop.f32.mrb[0].mxu0
      %v769 = vpop.f32.mrb[0].mxu0
      %v770 = vadd.f32 0.0, %v769
      %v771 = vpop.f32.mrb[0].mxu0
      %772 = vmatprep.mubr.bf16.mxu0 0
      %773 = vmatmul.mubr.bf16.gmra.mrb[0].mxu0 %v673
      %v774 = vpop.f32.mrb[0].mxu0
      %v775 = vadd.f32 0.0, %v774
      %v776 = vpop.f32.mrb[0].mxu0
      %v777 = vpop.f32.mrb[0].mxu0
      %v778 = vadd.f32 0.0, %v777
      %v779 = vpop.f32.mrb[0].mxu0
      %780 = vmatprep.mubr.bf16.mxu0 0
      %781 = vmatmul.mubr.bf16.gmra.mrb[0].mxu0 %v676
      %v782 = vpop.f32.mrb[0].mxu0
      %v783 = vadd.f32 0.0, %v782
      %v784 = vpop.f32.mrb[0].mxu0
      %v785 = vpop.f32.mrb[0].mxu0
      %v786 = vadd.f32 0.0, %v785
      %v787 = vpop.f32.mrb[0].mxu0
      %788 = vmatprep.mubr.bf16.mxu0 0
      %789 = vmatmul.mubr.bf16.gmra.mrb[0].mxu0 %v679
      %v790 = vpop.f32.mrb[0].mxu0
      %v791 = vadd.f32 0.0, %v790
      %v792 = vpop.f32.mrb[0].mxu0
      %v793 = vpop.f32.mrb[0].mxu0
      %v794 = vadd.f32 0.0, %v793
      %v795 = vpop.f32.mrb[0].mxu0
      %796 = vmatprep.mubr.bf16.mxu0 0
      %797 = vmatmul.mubr.bf16.gmra.mrb[0].mxu0 %v682
      %v798 = vpop.f32.mrb[0].mxu0
      %v799 = vadd.f32 0.0, %v798
      %v800 = vpop.f32.mrb[0].mxu0
      %v801 = vpop.f32.mrb[0].mxu0
      %v802 = vadd.f32 0.0, %v801
      %v803 = vpop.f32.mrb[0].mxu0
      %804 = vmatprep.mubr.bf16.mxu0 0
      %805 = vmatmul.mubr.bf16.gmra.mrb[0].mxu0 %v685
      %v806 = vpop.f32.mrb[0].mxu0
      %v807 = vadd.f32 0.0, %v806
      %v808 = vpop.f32.mrb[0].mxu0
      %v809 = vpop.f32.mrb[0].mxu0
      %v810 = vadd.f32 0.0, %v809
      %v811 = vpop.f32.mrb[0].mxu0
      %812 = vmatprep.mubr.bf16.mxu0 0
      %813 = vmatmul.mubr.bf16.gmra.mrb[0].mxu0 %v688
      %v814 = vpop.f32.mrb[0].mxu0
      %v815 = vadd.f32 0.0, %v814
      %v816 = vpop.f32.mrb[0].mxu0
      %v817 = vpop.f32.mrb[0].mxu0
      %v818 = vadd.f32 0.0, %v817
      %v819 = vpop.f32.mrb[0].mxu0
      %820 = vmatprep.mubr.bf16.mxu0 0
      %821 = vmatmul.mubr.bf16.gmra.mrb[0].mxu0 %v691
      %v822 = vpop.f32.mrb[0].mxu0
      %v823 = vadd.f32 0.0, %v822
      %v824 = vpop.f32.mrb[0].mxu0
      %v825 = vpop.f32.mrb[0].mxu0
      %v826 = vadd.f32 0.0, %v825
      %v827 = vpop.f32.mrb[0].mxu0
      %828 = vmatprep.mubr.bf16.mxu0 0
      %829 = vmatmul.mubr.bf16.gmra.mrb[0].mxu0 %v694
      %v830 = vpop.f32.mrb[0].mxu0
      %v831 = vadd.f32 0.0, %v830
      %v832 = vpop.f32.mrb[0].mxu0
      %v833 = vpop.f32.mrb[0].mxu0
      %v834 = vadd.f32 0.0, %v833
      %v835 = vpop.f32.mrb[0].mxu0
      %836 = vmatprep.mubr.bf16.mxu0 0
      %837 = vmatmul.mubr.bf16.gmra.mrb[0].mxu0 %v697
      %v838 = vpop.f32.mrb[0].mxu0
      %v839 = vadd.f32 0.0, %v838
      %v840 = vpop.f32.mrb[0].mxu0
      %v841 = vpop.f32.mrb[0].mxu0
      %v842 = vadd.f32 0.0, %v841
      %v843 = vpop.f32.mrb[0].mxu0
      %844 = vmatprep.mubr.bf16.mxu0 0
      %845 = vmatmul.mubr.bf16.gmra.mrb[0].mxu0 %v700
      %v846 = vpop.f32.mrb[0].mxu0
      %v847 = vadd.f32 0.0, %v846
      %v848 = vpop.f32.mrb[0].mxu0
      %v849 = vpop.f32.mrb[0].mxu0
      %v850 = vadd.f32 0.0, %v849
      %v851 = vpop.f32.mrb[0].mxu0
      %852 = vmatprep.mubr.bf16.mxu0 0
      %853 = vmatmul.mubr.bf16.gmra.mrb[0].mxu0 %v703
      %v854 = vpop.f32.mrb[0].mxu0
      %v855 = vadd.f32 0.0, %v854
      %v856 = vpop.f32.mrb[0].mxu0
      %v857 = vpop.f32.mrb[0].mxu0
      %v858 = vadd.f32 0.0, %v857
      %v859 = vpop.f32.mrb[0].mxu0
      %860 = vmatprep.mubr.bf16.mxu0 0
      %861 = vmatmul.mubr.bf16.gmra.mrb[0].mxu0 %v706
      %v862 = vpop.f32.mrb[0].mxu0
      %v863 = vadd.f32 0.0, %v862
      %v864 = vpop.f32.mrb[0].mxu0
      %v865 = vpop.f32.mrb[0].mxu0
      %v866 = vadd.f32 0.0, %v865
      %v867 = vpop.f32.mrb[0].mxu0
      %868 = vdwg.mxu0
      %v877 = vunpack.c.l.b16 %v485
      %v878 = vunpack.c.l.b16 %v486
      %v879 = vunpack.c.l.b16 %v487
      %v880 = vunpack.c.l.b16 %v488
      %v881 = vunpack.c.l.b16 %v489
      %v882 = vunpack.c.l.b16 %v490
      %v883 = vunpack.c.l.b16 %v491
      %v884 = vunpack.c.l.b16 %v492
      %v885 = vpack.c.b16 %v878, %v877
      %v886 = vpack.c.b16 %v880, %v879
      %v887 = vpack.c.b16 %v882, %v881
      %v888 = vpack.c.b16 %v884, %v883
      %v893 = vsel %vm416, %v469, 0
      %v895 = vsel %vm416, %v470, 0
      %v897 = vsel %vm416, %v471, 0
      %v899 = vsel %vm416, %v472, 0
      %v901 = vsel %vm416, %v473, 0
      %v903 = vsel %vm416, %v474, 0
      %v905 = vsel %vm416, %v475, 0
      %v907 = vsel %vm416, %v476, 0
      %v909 = vsel %vm416, %v477, 0
      %v911 = vsel %vm416, %v478, 0
      %v913 = vsel %vm416, %v479, 0
      %v915 = vsel %vm416, %v480, 0
      %v917 = vsel %vm416, %v481, 0
      %v919 = vsel %vm416, %v482, 0
      %v921 = vsel %vm416, %v483, 0
      %v923 = vsel %vm416, %v484, 0
      %925 = vmatprep.subr.bf16.mxu0 0
      %926 = vmatpush1.bf16.msra.mxu0 %v885
      %927 = vmatprep.subr.bf16.mxu0 0
      %928 = vmatpush1.bf16.msra.mxu0 %v886
      %929 = vmatprep.subr.bf16.mxu0 0
      %930 = vmatpush1.bf16.msra.mxu0 %v887
      %931 = vmatprep.subr.bf16.mxu0 0
      %932 = vmatpush1.bf16.msra.mxu0 %v888
      %933 = vmatprep.subr.bf16.mxu0 0
      %934 = vmatpush1.bf16.msra.mxu0 0
      %935 = vmatprep.subr.bf16.mxu0 0
      %936 = vmatpush1.bf16.msra.mxu0 0
      %937 = vmatprep.subr.bf16.mxu0 0
      %938 = vmatpush1.bf16.msra.mxu0 0
      %939 = vmatprep.subr.bf16.mxu0 0
      %940 = vmatpush1.bf16.msra.mxu0 0
      %941 = vmatprep.subr.bf16.mxu0 0
      %942 = vmatpush1.bf16.msra.mxu0 0
      %943 = vmatprep.subr.bf16.mxu0 0
      %944 = vmatpush1.bf16.msra.mxu0 0
      %945 = vmatprep.subr.bf16.mxu0 0
      %946 = vmatpush1.bf16.msra.mxu0 0
      %947 = vmatprep.subr.bf16.mxu0 0
      %948 = vmatpush1.bf16.msra.mxu0 0
      %949 = vmatprep.subr.bf16.mxu0 0
      %950 = vmatpush1.bf16.msra.mxu0 0
      %951 = vmatprep.subr.bf16.mxu0 0
      %952 = vmatpush1.bf16.msra.mxu0 0
      %953 = vmatprep.subr.bf16.mxu0 0
      %954 = vmatpush1.bf16.msra.mxu0 0
      %955 = vmatprep.subr.bf16.mxu0 0
      %956 = vmatpush1.bf16.msra.mxu0 0
      %957 = vmatprep.mubr.bf16.mxu0 0
      %958 = vmatmul.mubr.bf16.gmra.mrb[0].mxu0 %v893
      %v959 = vpop.f32.mrb[0].mxu0
      %v960 = vadd.f32 %v743, %v959
      %v961 = vpop.f32.mrb[0].mxu0
      %v962 = vpop.f32.mrb[0].mxu0
      %v963 = vadd.f32 %v746, %v962
      %v964 = vpop.f32.mrb[0].mxu0
      %965 = vmatprep.mubr.bf16.mxu0 0
      %966 = vmatmul.mubr.bf16.gmra.mrb[0].mxu0 %v895
      %v967 = vpop.f32.mrb[0].mxu0
      %v968 = vadd.f32 %v751, %v967
      %v969 = vpop.f32.mrb[0].mxu0
      %v970 = vpop.f32.mrb[0].mxu0
      %v971 = vadd.f32 %v754, %v970
      %v972 = vpop.f32.mrb[0].mxu0
      %973 = vmatprep.mubr.bf16.mxu0 0
      %974 = vmatmul.mubr.bf16.gmra.mrb[0].mxu0 %v897
      %v975 = vpop.f32.mrb[0].mxu0
      %v976 = vadd.f32 %v759, %v975
      %v977 = vpop.f32.mrb[0].mxu0
      %v978 = vpop.f32.mrb[0].mxu0
      %v979 = vadd.f32 %v762, %v978
      %v980 = vpop.f32.mrb[0].mxu0
      %981 = vmatprep.mubr.bf16.mxu0 0
      %982 = vmatmul.mubr.bf16.gmra.mrb[0].mxu0 %v899
      %v983 = vpop.f32.mrb[0].mxu0
      %v984 = vadd.f32 %v767, %v983
      %v985 = vpop.f32.mrb[0].mxu0
      %v986 = vpop.f32.mrb[0].mxu0
      %v987 = vadd.f32 %v770, %v986
      %v988 = vpop.f32.mrb[0].mxu0
      %989 = vmatprep.mubr.bf16.mxu0 0
      %990 = vmatmul.mubr.bf16.gmra.mrb[0].mxu0 %v901
      %v991 = vpop.f32.mrb[0].mxu0
      %v992 = vadd.f32 %v775, %v991
      %v993 = vpop.f32.mrb[0].mxu0
      %v994 = vpop.f32.mrb[0].mxu0
      %v995 = vadd.f32 %v778, %v994
      %v996 = vpop.f32.mrb[0].mxu0
      %997 = vmatprep.mubr.bf16.mxu0 0
      %998 = vmatmul.mubr.bf16.gmra.mrb[0].mxu0 %v903
      %v999 = vpop.f32.mrb[0].mxu0
      %v1000 = vadd.f32 %v783, %v999
      %v1001 = vpop.f32.mrb[0].mxu0
      %v1002 = vpop.f32.mrb[0].mxu0
      %v1003 = vadd.f32 %v786, %v1002
      %v1004 = vpop.f32.mrb[0].mxu0
      %1005 = vmatprep.mubr.bf16.mxu0 0
      %1006 = vmatmul.mubr.bf16.gmra.mrb[0].mxu0 %v905
      %v1007 = vpop.f32.mrb[0].mxu0
      %v1008 = vadd.f32 %v791, %v1007
      %v1009 = vpop.f32.mrb[0].mxu0
      %v1010 = vpop.f32.mrb[0].mxu0
      %v1011 = vadd.f32 %v794, %v1010
      %v1012 = vpop.f32.mrb[0].mxu0
      %1013 = vmatprep.mubr.bf16.mxu0 0
      %1014 = vmatmul.mubr.bf16.gmra.mrb[0].mxu0 %v907
      %v1015 = vpop.f32.mrb[0].mxu0
      %v1016 = vadd.f32 %v799, %v1015
      %v1017 = vpop.f32.mrb[0].mxu0
      %v1018 = vpop.f32.mrb[0].mxu0
      %v1019 = vadd.f32 %v802, %v1018
      %v1020 = vpop.f32.mrb[0].mxu0
      %1021 = vmatprep.mubr.bf16.mxu0 0
      %1022 = vmatmul.mubr.bf16.gmra.mrb[0].mxu0 %v909
      %v1023 = vpop.f32.mrb[0].mxu0
      %v1024 = vadd.f32 %v807, %v1023
      %v1025 = vpop.f32.mrb[0].mxu0
      %v1026 = vpop.f32.mrb[0].mxu0
      %v1027 = vadd.f32 %v810, %v1026
      %v1028 = vpop.f32.mrb[0].mxu0
      %1029 = vmatprep.mubr.bf16.mxu0 0
      %1030 = vmatmul.mubr.bf16.gmra.mrb[0].mxu0 %v911
      %v1031 = vpop.f32.mrb[0].mxu0
      %v1032 = vadd.f32 %v815, %v1031
      %v1033 = vpop.f32.mrb[0].mxu0
      %v1034 = vpop.f32.mrb[0].mxu0
      %v1035 = vadd.f32 %v818, %v1034
      %v1036 = vpop.f32.mrb[0].mxu0
      %1037 = vmatprep.mubr.bf16.mxu0 0
      %1038 = vmatmul.mubr.bf16.gmra.mrb[0].mxu0 %v913
      %v1039 = vpop.f32.mrb[0].mxu0
      %v1040 = vadd.f32 %v823, %v1039
      %v1041 = vpop.f32.mrb[0].mxu0
      %v1042 = vpop.f32.mrb[0].mxu0
      %v1043 = vadd.f32 %v826, %v1042
      %v1044 = vpop.f32.mrb[0].mxu0
      %1045 = vmatprep.mubr.bf16.mxu0 0
      %1046 = vmatmul.mubr.bf16.gmra.mrb[0].mxu0 %v915
      %v1047 = vpop.f32.mrb[0].mxu0
      %v1048 = vadd.f32 %v831, %v1047
      %v1049 = vpop.f32.mrb[0].mxu0
      %v1050 = vpop.f32.mrb[0].mxu0
      %v1051 = vadd.f32 %v834, %v1050
      %v1052 = vpop.f32.mrb[0].mxu0
      %1053 = vmatprep.mubr.bf16.mxu0 0
      %1054 = vmatmul.mubr.bf16.gmra.mrb[0].mxu0 %v917
      %v1055 = vpop.f32.mrb[0].mxu0
      %v1056 = vadd.f32 %v839, %v1055
      %v1057 = vpop.f32.mrb[0].mxu0
      %v1058 = vpop.f32.mrb[0].mxu0
      %v1059 = vadd.f32 %v842, %v1058
      %v1060 = vpop.f32.mrb[0].mxu0
      %1061 = vmatprep.mubr.bf16.mxu0 0
      %1062 = vmatmul.mubr.bf16.gmra.mrb[0].mxu0 %v919
      %v1063 = vpop.f32.mrb[0].mxu0
      %v1064 = vadd.f32 %v847, %v1063
      %v1065 = vpop.f32.mrb[0].mxu0
      %v1066 = vpop.f32.mrb[0].mxu0
      %v1067 = vadd.f32 %v850, %v1066
      %v1068 = vpop.f32.mrb[0].mxu0
      %1069 = vmatprep.mubr.bf16.mxu0 0
      %1070 = vmatmul.mubr.bf16.gmra.mrb[0].mxu0 %v921
      %v1071 = vpop.f32.mrb[0].mxu0
      %v1072 = vadd.f32 %v855, %v1071
      %v1073 = vpop.f32.mrb[0].mxu0
      %v1074 = vpop.f32.mrb[0].mxu0
      %v1075 = vadd.f32 %v858, %v1074
      %v1076 = vpop.f32.mrb[0].mxu0
      %1077 = vmatprep.mubr.bf16.mxu0 0
      %1078 = vmatmul.mubr.bf16.gmra.mrb[0].mxu0 %v923
      %v1079 = vpop.f32.mrb[0].mxu0
      %v1080 = vadd.f32 %v863, %v1079
      %v1081 = vpop.f32.mrb[0].mxu0
      %v1082 = vpop.f32.mrb[0].mxu0
      %v1083 = vadd.f32 %v866, %v1082
      %v1084 = vpop.f32.mrb[0].mxu0
      %1085 = vdwg.mxu0
      %v1086 = vld [vmem:[#allocation2] sm:$0xfe]
      %s1087 = scalar_lea.vmem %s2, 64
      %v1088 = vld [vmem:[%s1087] sm:$0xf]
      %v1089 = vld [vmem:[%s1087 + $0x4] sm:$0xf]
      %v1090 = vld [vmem:[%s1087 + $0x8] sm:$0xf]
      %v1091 = vld [vmem:[%s1087 + $0xc] sm:$0xf]
      %v1092 = vld [vmem:[%s1087 + $0x10] sm:$0xf]
      %v1093 = vld [vmem:[%s1087 + $0x14] sm:$0xf]
      %v1094 = vld [vmem:[%s1087 + $0x18] sm:$0xf]
      %v1095 = vld [vmem:[%s1087 + $0x1c] sm:$0xf]
      %vm1113 = vcmask 1046528
      %v1114 = vrot.slane %v1086, 1
      %v1115 = vrot.slane %v470, 1
      %v1116 = vsel %vm1113, %v1114, %v1115
      %v1117 = vrot.slane %v471, 1
      %v1118 = vsel %vm1113, %v1115, %v1117
      %v1119 = vrot.slane %v472, 1
      %v1120 = vsel %vm1113, %v1117, %v1119
      %v1121 = vrot.slane %v473, 1
      %v1122 = vsel %vm1113, %v1119, %v1121
      %v1123 = vrot.slane %v474, 1
      %v1124 = vsel %vm1113, %v1121, %v1123
      %v1125 = vrot.slane %v475, 1
      %v1126 = vsel %vm1113, %v1123, %v1125
      %v1127 = vrot.slane %v476, 1
      %v1128 = vsel %vm1113, %v1125, %v1127
      %v1129 = vrot.slane %v477, 1
      %v1130 = vsel %vm1113, %v1127, %v1129
      %v1131 = vrot.slane %v478, 1
      %v1132 = vsel %vm1113, %v1129, %v1131
      %v1133 = vrot.slane %v479, 1
      %v1134 = vsel %vm1113, %v1131, %v1133
      %v1135 = vrot.slane %v480, 1
      %v1136 = vsel %vm1113, %v1133, %v1135
      %v1137 = vrot.slane %v481, 1
      %v1138 = vsel %vm1113, %v1135, %v1137
      %v1139 = vrot.slane %v482, 1
      %v1140 = vsel %vm1113, %v1137, %v1139
      %v1141 = vrot.slane %v483, 1
      %v1142 = vsel %vm1113, %v1139, %v1141
      %v1143 = vrot.slane %v484, 1
      %v1144 = vsel %vm1113, %v1141, %v1143
      %v1145 = vrot.slane %v493, 1
      %v1146 = vsel %vm1113, %v1143, %v1145
      %v1155 = vunpack.c.l.b16 %v1088
      %v1156 = vunpack.c.l.b16 %v1089
      %v1157 = vunpack.c.l.b16 %v1090
      %v1158 = vunpack.c.l.b16 %v1091
      %v1159 = vunpack.c.l.b16 %v1092
      %v1160 = vunpack.c.l.b16 %v1093
      %v1161 = vunpack.c.l.b16 %v1094
      %v1162 = vunpack.c.l.b16 %v1095
      %v1163 = vpack.c.b16 %v1156, %v1155
      %v1164 = vpack.c.b16 %v1158, %v1157
      %v1165 = vpack.c.b16 %v1160, %v1159
      %v1166 = vpack.c.b16 %v1162, %v1161
      %v1172 = vsel %vm416, %v1116, 0
      %v1175 = vsel %vm416, %v1118, 0
      %v1178 = vsel %vm416, %v1120, 0
      %v1181 = vsel %vm416, %v1122, 0
      %v1184 = vsel %vm416, %v1124, 0
      %v1187 = vsel %vm416, %v1126, 0
      %v1190 = vsel %vm416, %v1128, 0
      %v1193 = vsel %vm416, %v1130, 0
      %v1196 = vsel %vm416, %v1132, 0
      %v1199 = vsel %vm416, %v1134, 0
      %v1202 = vsel %vm416, %v1136, 0
      %v1205 = vsel %vm416, %v1138, 0
      %v1208 = vsel %vm416, %v1140, 0
      %v1211 = vsel %vm416, %v1142, 0
      %v1214 = vsel %vm416, %v1144, 0
      %v1217 = vsel %vm416, %v1146, 0
      %1219 = vmatprep.subr.bf16.mxu0 0
      %1220 = vmatpush1.bf16.msra.mxu0 %v1163
      %1221 = vmatprep.subr.bf16.mxu0 0
      %1222 = vmatpush1.bf16.msra.mxu0 %v1164
      %1223 = vmatprep.subr.bf16.mxu0 0
      %1224 = vmatpush1.bf16.msra.mxu0 %v1165
      %1225 = vmatprep.subr.bf16.mxu0 0
      %1226 = vmatpush1.bf16.msra.mxu0 %v1166
      %1227 = vmatprep.subr.bf16.mxu0 0
      %1228 = vmatpush1.bf16.msra.mxu0 0
      %1229 = vmatprep.subr.bf16.mxu0 0
      %1230 = vmatpush1.bf16.msra.mxu0 0
      %1231 = vmatprep.subr.bf16.mxu0 0
      %1232 = vmatpush1.bf16.msra.mxu0 0
      %1233 = vmatprep.subr.bf16.mxu0 0
      %1234 = vmatpush1.bf16.msra.mxu0 0
      %1235 = vmatprep.subr.bf16.mxu0 0
      %1236 = vmatpush1.bf16.msra.mxu0 0
      %1237 = vmatprep.subr.bf16.mxu0 0
      %1238 = vmatpush1.bf16.msra.mxu0 0
      %1239 = vmatprep.subr.bf16.mxu0 0
      %1240 = vmatpush1.bf16.msra.mxu0 0
      %1241 = vmatprep.subr.bf16.mxu0 0
      %1242 = vmatpush1.bf16.msra.mxu0 0
      %1243 = vmatprep.subr.bf16.mxu0 0
      %1244 = vmatpush1.bf16.msra.mxu0 0
      %1245 = vmatprep.subr.bf16.mxu0 0
      %1246 = vmatpush1.bf16.msra.mxu0 0
      %1247 = vmatprep.subr.bf16.mxu0 0
      %1248 = vmatpush1.bf16.msra.mxu0 0
      %1249 = vmatprep.subr.bf16.mxu0 0
      %1250 = vmatpush1.bf16.msra.mxu0 0
      %1251 = vmatprep.mubr.bf16.mxu0 0
      %1252 = vmatmul.mubr.bf16.gmra.mrb[0].mxu0 %v1172
      %v1253 = vpop.f32.mrb[0].mxu0
      %v1254 = vadd.f32 0.0, %v1253
      %v1255 = vpop.f32.mrb[0].mxu0
      %v1256 = vpop.f32.mrb[0].mxu0
      %v1257 = vadd.f32 0.0, %v1256
      %v1258 = vpop.f32.mrb[0].mxu0
      %1259 = vmatprep.mubr.bf16.mxu0 0
      %1260 = vmatmul.mubr.bf16.gmra.mrb[0].mxu0 %v1175
      %v1261 = vpop.f32.mrb[0].mxu0
      %v1262 = vadd.f32 0.0, %v1261
      %v1263 = vpop.f32.mrb[0].mxu0
      %v1264 = vpop.f32.mrb[0].mxu0
      %v1265 = vadd.f32 0.0, %v1264
      %v1266 = vpop.f32.mrb[0].mxu0
      %1267 = vmatprep.mubr.bf16.mxu0 0
      %1268 = vmatmul.mubr.bf16.gmra.mrb[0].mxu0 %v1178
      %v1269 = vpop.f32.mrb[0].mxu0
      %v1270 = vadd.f32 0.0, %v1269
      %v1271 = vpop.f32.mrb[0].mxu0
      %v1272 = vpop.f32.mrb[0].mxu0
      %v1273 = vadd.f32 0.0, %v1272
      %v1274 = vpop.f32.mrb[0].mxu0
      %1275 = vmatprep.mubr.bf16.mxu0 0
      %1276 = vmatmul.mubr.bf16.gmra.mrb[0].mxu0 %v1181
      %v1277 = vpop.f32.mrb[0].mxu0
      %v1278 = vadd.f32 0.0, %v1277
      %v1279 = vpop.f32.mrb[0].mxu0
      %v1280 = vpop.f32.mrb[0].mxu0
      %v1281 = vadd.f32 0.0, %v1280
      %v1282 = vpop.f32.mrb[0].mxu0
      %1283 = vmatprep.mubr.bf16.mxu0 0
      %1284 = vmatmul.mubr.bf16.gmra.mrb[0].mxu0 %v1184
      %v1285 = vpop.f32.mrb[0].mxu0
      %v1286 = vadd.f32 0.0, %v1285
      %v1287 = vpop.f32.mrb[0].mxu0
      %v1288 = vpop.f32.mrb[0].mxu0
      %v1289 = vadd.f32 0.0, %v1288
      %v1290 = vpop.f32.mrb[0].mxu0
      %1291 = vmatprep.mubr.bf16.mxu0 0
      %1292 = vmatmul.mubr.bf16.gmra.mrb[0].mxu0 %v1187
      %v1293 = vpop.f32.mrb[0].mxu0
      %v1294 = vadd.f32 0.0, %v1293
      %v1295 = vpop.f32.mrb[0].mxu0
      %v1296 = vpop.f32.mrb[0].mxu0
      %v1297 = vadd.f32 0.0, %v1296
      %v1298 = vpop.f32.mrb[0].mxu0
      %1299 = vmatprep.mubr.bf16.mxu0 0
      %1300 = vmatmul.mubr.bf16.gmra.mrb[0].mxu0 %v1190
      %v1301 = vpop.f32.mrb[0].mxu0
      %v1302 = vadd.f32 0.0, %v1301
      %v1303 = vpop.f32.mrb[0].mxu0
      %v1304 = vpop.f32.mrb[0].mxu0
      %v1305 = vadd.f32 0.0, %v1304
      %v1306 = vpop.f32.mrb[0].mxu0
      %1307 = vmatprep.mubr.bf16.mxu0 0
      %1308 = vmatmul.mubr.bf16.gmra.mrb[0].mxu0 %v1193
      %v1309 = vpop.f32.mrb[0].mxu0
      %v1310 = vadd.f32 0.0, %v1309
      %v1311 = vpop.f32.mrb[0].mxu0
      %v1312 = vpop.f32.mrb[0].mxu0
      %v1313 = vadd.f32 0.0, %v1312
      %v1314 = vpop.f32.mrb[0].mxu0
      %1315 = vmatprep.mubr.bf16.mxu0 0
      %1316 = vmatmul.mubr.bf16.gmra.mrb[0].mxu0 %v1196
      %v1317 = vpop.f32.mrb[0].mxu0
      %v1318 = vadd.f32 0.0, %v1317
      %v1319 = vpop.f32.mrb[0].mxu0
      %v1320 = vpop.f32.mrb[0].mxu0
      %v1321 = vadd.f32 0.0, %v1320
      %v1322 = vpop.f32.mrb[0].mxu0
      %1323 = vmatprep.mubr.bf16.mxu0 0
      %1324 = vmatmul.mubr.bf16.gmra.mrb[0].mxu0 %v1199
      %v1325 = vpop.f32.mrb[0].mxu0
      %v1326 = vadd.f32 0.0, %v1325
      %v1327 = vpop.f32.mrb[0].mxu0
      %v1328 = vpop.f32.mrb[0].mxu0
      %v1329 = vadd.f32 0.0, %v1328
      %v1330 = vpop.f32.mrb[0].mxu0
      %1331 = vmatprep.mubr.bf16.mxu0 0
      %1332 = vmatmul.mubr.bf16.gmra.mrb[0].mxu0 %v1202
      %v1333 = vpop.f32.mrb[0].mxu0
      %v1334 = vadd.f32 0.0, %v1333
      %v1335 = vpop.f32.mrb[0].mxu0
      %v1336 = vpop.f32.mrb[0].mxu0
      %v1337 = vadd.f32 0.0, %v1336
      %v1338 = vpop.f32.mrb[0].mxu0
      %1339 = vmatprep.mubr.bf16.mxu0 0
      %1340 = vmatmul.mubr.bf16.gmra.mrb[0].mxu0 %v1205
      %v1341 = vpop.f32.mrb[0].mxu0
      %v1342 = vadd.f32 0.0, %v1341
      %v1343 = vpop.f32.mrb[0].mxu0
      %v1344 = vpop.f32.mrb[0].mxu0
      %v1345 = vadd.f32 0.0, %v1344
      %v1346 = vpop.f32.mrb[0].mxu0
      %1347 = vmatprep.mubr.bf16.mxu0 0
      %1348 = vmatmul.mubr.bf16.gmra.mrb[0].mxu0 %v1208
      %v1349 = vpop.f32.mrb[0].mxu0
      %v1350 = vadd.f32 0.0, %v1349
      %v1351 = vpop.f32.mrb[0].mxu0
      %v1352 = vpop.f32.mrb[0].mxu0
      %v1353 = vadd.f32 0.0, %v1352
      %v1354 = vpop.f32.mrb[0].mxu0
      %1355 = vmatprep.mubr.bf16.mxu0 0
      %1356 = vmatmul.mubr.bf16.gmra.mrb[0].mxu0 %v1211
      %v1357 = vpop.f32.mrb[0].mxu0
      %v1358 = vadd.f32 0.0, %v1357
      %v1359 = vpop.f32.mrb[0].mxu0
      %v1360 = vpop.f32.mrb[0].mxu0
      %v1361 = vadd.f32 0.0, %v1360
      %v1362 = vpop.f32.mrb[0].mxu0
      %1363 = vmatprep.mubr.bf16.mxu0 0
      %1364 = vmatmul.mubr.bf16.gmra.mrb[0].mxu0 %v1214
      %v1365 = vpop.f32.mrb[0].mxu0
      %v1366 = vadd.f32 0.0, %v1365
      %v1367 = vpop.f32.mrb[0].mxu0
      %v1368 = vpop.f32.mrb[0].mxu0
      %v1369 = vadd.f32 0.0, %v1368
      %v1370 = vpop.f32.mrb[0].mxu0
      %1371 = vmatprep.mubr.bf16.mxu0 0
      %1372 = vmatmul.mubr.bf16.gmra.mrb[0].mxu0 %v1217
      %v1373 = vpop.f32.mrb[0].mxu0
      %v1374 = vadd.f32 0.0, %v1373
      %v1375 = vpop.f32.mrb[0].mxu0
      %v1376 = vpop.f32.mrb[0].mxu0
      %v1377 = vadd.f32 0.0, %v1376
      %v1378 = vpop.f32.mrb[0].mxu0
      %1379 = vdwg.mxu0
      %v1380 = vadd.f32 %v960, %v1254
      %v1381 = vadd.f32 %v963, %v1257
      %v1382 = vadd.f32 %v968, %v1262
      %v1383 = vadd.f32 %v971, %v1265
      %v1384 = vadd.f32 %v976, %v1270
      %v1385 = vadd.f32 %v979, %v1273
      %v1386 = vadd.f32 %v984, %v1278
      %v1387 = vadd.f32 %v987, %v1281
      %v1388 = vadd.f32 %v992, %v1286
      %v1389 = vadd.f32 %v995, %v1289
      %v1390 = vadd.f32 %v1000, %v1294
      %v1391 = vadd.f32 %v1003, %v1297
      %v1392 = vadd.f32 %v1008, %v1302
      %v1393 = vadd.f32 %v1011, %v1305
      %v1394 = vadd.f32 %v1016, %v1310
      %v1395 = vadd.f32 %v1019, %v1313
      %v1396 = vadd.f32 %v1024, %v1318
      %v1397 = vadd.f32 %v1027, %v1321
      %v1398 = vadd.f32 %v1032, %v1326
      %v1399 = vadd.f32 %v1035, %v1329
      %v1400 = vadd.f32 %v1040, %v1334
      %v1401 = vadd.f32 %v1043, %v1337
      %v1402 = vadd.f32 %v1048, %v1342
      %v1403 = vadd.f32 %v1051, %v1345
      %v1404 = vadd.f32 %v1056, %v1350
      %v1405 = vadd.f32 %v1059, %v1353
      %v1406 = vadd.f32 %v1064, %v1358
      %v1407 = vadd.f32 %v1067, %v1361
      %v1408 = vadd.f32 %v1072, %v1366
      %v1409 = vadd.f32 %v1075, %v1369
      %v1410 = vadd.f32 %v1080, %v1374
      %v1411 = vadd.f32 %v1083, %v1377
      %v1412 = vld [vmem:[#allocation2 + $0x8] sm:$0xfe]
      %v1413 = vld [vmem:[#allocation2 + $0x10] sm:$0xff]
      %v1414 = vld [vmem:[#allocation2 + $0x18] sm:$0xff]
      %v1415 = vld [vmem:[#allocation2 + $0x20] sm:$0xff]
      %v1416 = vld [vmem:[#allocation2 + $0x28] sm:$0xff]
      %v1417 = vld [vmem:[#allocation2 + $0x30] sm:$0xff]
      %v1418 = vld [vmem:[#allocation2 + $0x38] sm:$0xff]
      %v1419 = vld [vmem:[#allocation2 + $0x40] sm:$0xff]
      %v1420 = vld [vmem:[#allocation2 + $0x48] sm:$0xff]
      %v1421 = vld [vmem:[#allocation2 + $0x50] sm:$0xff]
      %v1422 = vld [vmem:[#allocation2 + $0x58] sm:$0xff]
      %v1423 = vld [vmem:[#allocation2 + $0x60] sm:$0xff]
      %v1424 = vld [vmem:[#allocation2 + $0x68] sm:$0xff]
      %v1425 = vld [vmem:[#allocation2 + $0x70] sm:$0xff]
      %v1426 = vld [vmem:[#allocation2 + $0x78] sm:$0xff]
      %v1427 = vld [vmem:[#allocation2 + $0x80] sm:$0xff]
      %v1428 = vld [vmem:[#allocation2 + $0x88] sm:$0x1]
      %s1429 = scalar_lea.vmem %s2, 96
      %v1430 = vld [vmem:[%s1429] sm:$0xf]
      %v1431 = vld [vmem:[%s1429 + $0x4] sm:$0xf]
      %v1432 = vld [vmem:[%s1429 + $0x8] sm:$0xf]
      %v1433 = vld [vmem:[%s1429 + $0xc] sm:$0xf]
      %v1434 = vld [vmem:[%s1429 + $0x10] sm:$0xf]
      %v1435 = vld [vmem:[%s1429 + $0x14] sm:$0xf]
      %v1436 = vld [vmem:[%s1429 + $0x18] sm:$0xf]
      %v1437 = vld [vmem:[%s1429 + $0x1c] sm:$0xf]
      %v1455 = vrot.slane %v1412, 1
      %v1456 = vrot.slane %v1413, 1
      %v1457 = vsel %vm1113, %v1455, %v1456
      %v1458 = vrot.slane %v1414, 1
      %v1459 = vsel %vm1113, %v1456, %v1458
      %v1460 = vrot.slane %v1415, 1
      %v1461 = vsel %vm1113, %v1458, %v1460
      %v1462 = vrot.slane %v1416, 1
      %v1463 = vsel %vm1113, %v1460, %v1462
      %v1464 = vrot.slane %v1417, 1
      %v1465 = vsel %vm1113, %v1462, %v1464
      %v1466 = vrot.slane %v1418, 1
      %v1467 = vsel %vm1113, %v1464, %v1466
      %v1468 = vrot.slane %v1419, 1
      %v1469 = vsel %vm1113, %v1466, %v1468
      %v1470 = vrot.slane %v1420, 1
      %v1471 = vsel %vm1113, %v1468, %v1470
      %v1472 = vrot.slane %v1421, 1
      %v1473 = vsel %vm1113, %v1470, %v1472
      %v1474 = vrot.slane %v1422, 1
      %v1475 = vsel %vm1113, %v1472, %v1474
      %v1476 = vrot.slane %v1423, 1
      %v1477 = vsel %vm1113, %v1474, %v1476
      %v1478 = vrot.slane %v1424, 1
      %v1479 = vsel %vm1113, %v1476, %v1478
      %v1480 = vrot.slane %v1425, 1
      %v1481 = vsel %vm1113, %v1478, %v1480
      %v1482 = vrot.slane %v1426, 1
      %v1483 = vsel %vm1113, %v1480, %v1482
      %v1484 = vrot.slane %v1427, 1
      %v1485 = vsel %vm1113, %v1482, %v1484
      %v1486 = vrot.slane %v1428, 1
      %v1487 = vsel %vm1113, %v1484, %v1486
      %v1496 = vunpack.c.l.b16 %v1430
      %v1497 = vunpack.c.l.b16 %v1431
      %v1498 = vunpack.c.l.b16 %v1432
      %v1499 = vunpack.c.l.b16 %v1433
      %v1500 = vunpack.c.l.b16 %v1434
      %v1501 = vunpack.c.l.b16 %v1435
      %v1502 = vunpack.c.l.b16 %v1436
      %v1503 = vunpack.c.l.b16 %v1437
      %v1504 = vpack.c.b16 %v1497, %v1496
      %v1505 = vpack.c.b16 %v1499, %v1498
      %v1506 = vpack.c.b16 %v1501, %v1500
      %v1507 = vpack.c.b16 %v1503, %v1502
      %v1513 = vsel %vm416, %v1457, 0
      %v1516 = vsel %vm416, %v1459, 0
      %v1519 = vsel %vm416, %v1461, 0
      %v1522 = vsel %vm416, %v1463, 0
      %v1525 = vsel %vm416, %v1465, 0
      %v1528 = vsel %vm416, %v1467, 0
      %v1531 = vsel %vm416, %v1469, 0
      %v1534 = vsel %vm416, %v1471, 0
      %v1537 = vsel %vm416, %v1473, 0
      %v1540 = vsel %vm416, %v1475, 0
      %v1543 = vsel %vm416, %v1477, 0
      %v1546 = vsel %vm416, %v1479, 0
      %v1549 = vsel %vm416, %v1481, 0
      %v1552 = vsel %vm416, %v1483, 0
      %v1555 = vsel %vm416, %v1485, 0
      %v1558 = vsel %vm416, %v1487, 0
      %1560 = vmatprep.subr.bf16.mxu0 0
      %1561 = vmatpush1.bf16.msra.mxu0 %v1504
      %1562 = vmatprep.subr.bf16.mxu0 0
      %1563 = vmatpush1.bf16.msra.mxu0 %v1505
      %1564 = vmatprep.subr.bf16.mxu0 0
      %1565 = vmatpush1.bf16.msra.mxu0 %v1506
      %1566 = vmatprep.subr.bf16.mxu0 0
      %1567 = vmatpush1.bf16.msra.mxu0 %v1507
      %1568 = vmatprep.subr.bf16.mxu0 0
      %1569 = vmatpush1.bf16.msra.mxu0 0
      %1570 = vmatprep.subr.bf16.mxu0 0
      %1571 = vmatpush1.bf16.msra.mxu0 0
      %1572 = vmatprep.subr.bf16.mxu0 0
      %1573 = vmatpush1.bf16.msra.mxu0 0
      %1574 = vmatprep.subr.bf16.mxu0 0
      %1575 = vmatpush1.bf16.msra.mxu0 0
      %1576 = vmatprep.subr.bf16.mxu0 0
      %1577 = vmatpush1.bf16.msra.mxu0 0
      %1578 = vmatprep.subr.bf16.mxu0 0
      %1579 = vmatpush1.bf16.msra.mxu0 0
      %1580 = vmatprep.subr.bf16.mxu0 0
      %1581 = vmatpush1.bf16.msra.mxu0 0
      %1582 = vmatprep.subr.bf16.mxu0 0
      %1583 = vmatpush1.bf16.msra.mxu0 0
      %1584 = vmatprep.subr.bf16.mxu0 0
      %1585 = vmatpush1.bf16.msra.mxu0 0
      %1586 = vmatprep.subr.bf16.mxu0 0
      %1587 = vmatpush1.bf16.msra.mxu0 0
      %1588 = vmatprep.subr.bf16.mxu0 0
      %1589 = vmatpush1.bf16.msra.mxu0 0
      %1590 = vmatprep.subr.bf16.mxu0 0
      %1591 = vmatpush1.bf16.msra.mxu0 0
      %1592 = vmatprep.mubr.bf16.mxu0 0
      %1593 = vmatmul.mubr.bf16.gmra.mrb[0].mxu0 %v1513
      %v1594 = vpop.f32.mrb[0].mxu0
      %v1595 = vadd.f32 0.0, %v1594
      %v1596 = vpop.f32.mrb[0].mxu0
      %v1597 = vpop.f32.mrb[0].mxu0
      %v1598 = vadd.f32 0.0, %v1597
      %v1599 = vpop.f32.mrb[0].mxu0
      %1600 = vmatprep.mubr.bf16.mxu0 0
      %1601 = vmatmul.mubr.bf16.gmra.mrb[0].mxu0 %v1516
      %v1602 = vpop.f32.mrb[0].mxu0
      %v1603 = vadd.f32 0.0, %v1602
      %v1604 = vpop.f32.mrb[0].mxu0
      %v1605 = vpop.f32.mrb[0].mxu0
      %v1606 = vadd.f32 0.0, %v1605
      %v1607 = vpop.f32.mrb[0].mxu0
      %1608 = vmatprep.mubr.bf16.mxu0 0
      %1609 = vmatmul.mubr.bf16.gmra.mrb[0].mxu0 %v1519
      %v1610 = vpop.f32.mrb[0].mxu0
      %v1611 = vadd.f32 0.0, %v1610
      %v1612 = vpop.f32.mrb[0].mxu0
      %v1613 = vpop.f32.mrb[0].mxu0
      %v1614 = vadd.f32 0.0, %v1613
      %v1615 = vpop.f32.mrb[0].mxu0
      %1616 = vmatprep.mubr.bf16.mxu0 0
      %1617 = vmatmul.mubr.bf16.gmra.mrb[0].mxu0 %v1522
      %v1618 = vpop.f32.mrb[0].mxu0
      %v1619 = vadd.f32 0.0, %v1618
      %v1620 = vpop.f32.mrb[0].mxu0
      %v1621 = vpop.f32.mrb[0].mxu0
      %v1622 = vadd.f32 0.0, %v1621
      %v1623 = vpop.f32.mrb[0].mxu0
      %1624 = vmatprep.mubr.bf16.mxu0 0
      %1625 = vmatmul.mubr.bf16.gmra.mrb[0].mxu0 %v1525
      %v1626 = vpop.f32.mrb[0].mxu0
      %v1627 = vadd.f32 0.0, %v1626
      %v1628 = vpop.f32.mrb[0].mxu0
      %v1629 = vpop.f32.mrb[0].mxu0
      %v1630 = vadd.f32 0.0, %v1629
      %v1631 = vpop.f32.mrb[0].mxu0
      %1632 = vmatprep.mubr.bf16.mxu0 0
      %1633 = vmatmul.mubr.bf16.gmra.mrb[0].mxu0 %v1528
      %v1634 = vpop.f32.mrb[0].mxu0
      %v1635 = vadd.f32 0.0, %v1634
      %v1636 = vpop.f32.mrb[0].mxu0
      %v1637 = vpop.f32.mrb[0].mxu0
      %v1638 = vadd.f32 0.0, %v1637
      %v1639 = vpop.f32.mrb[0].mxu0
      %1640 = vmatprep.mubr.bf16.mxu0 0
      %1641 = vmatmul.mubr.bf16.gmra.mrb[0].mxu0 %v1531
      %v1642 = vpop.f32.mrb[0].mxu0
      %v1643 = vadd.f32 0.0, %v1642
      %v1644 = vpop.f32.mrb[0].mxu0
      %v1645 = vpop.f32.mrb[0].mxu0
      %v1646 = vadd.f32 0.0, %v1645
      %v1647 = vpop.f32.mrb[0].mxu0
      %1648 = vmatprep.mubr.bf16.mxu0 0
      %1649 = vmatmul.mubr.bf16.gmra.mrb[0].mxu0 %v1534
      %v1650 = vpop.f32.mrb[0].mxu0
      %v1651 = vadd.f32 0.0, %v1650
      %v1652 = vpop.f32.mrb[0].mxu0
      %v1653 = vpop.f32.mrb[0].mxu0
      %v1654 = vadd.f32 0.0, %v1653
      %v1655 = vpop.f32.mrb[0].mxu0
      %1656 = vmatprep.mubr.bf16.mxu0 0
      %1657 = vmatmul.mubr.bf16.gmra.mrb[0].mxu0 %v1537
      %v1658 = vpop.f32.mrb[0].mxu0
      %v1659 = vadd.f32 0.0, %v1658
      %v1660 = vpop.f32.mrb[0].mxu0
      %v1661 = vpop.f32.mrb[0].mxu0
      %v1662 = vadd.f32 0.0, %v1661
      %v1663 = vpop.f32.mrb[0].mxu0
      %1664 = vmatprep.mubr.bf16.mxu0 0
      %1665 = vmatmul.mubr.bf16.gmra.mrb[0].mxu0 %v1540
      %v1666 = vpop.f32.mrb[0].mxu0
      %v1667 = vadd.f32 0.0, %v1666
      %v1668 = vpop.f32.mrb[0].mxu0
      %v1669 = vpop.f32.mrb[0].mxu0
      %v1670 = vadd.f32 0.0, %v1669
      %v1671 = vpop.f32.mrb[0].mxu0
      %1672 = vmatprep.mubr.bf16.mxu0 0
      %1673 = vmatmul.mubr.bf16.gmra.mrb[0].mxu0 %v1543
      %v1674 = vpop.f32.mrb[0].mxu0
      %v1675 = vadd.f32 0.0, %v1674
      %v1676 = vpop.f32.mrb[0].mxu0
      %v1677 = vpop.f32.mrb[0].mxu0
      %v1678 = vadd.f32 0.0, %v1677
      %v1679 = vpop.f32.mrb[0].mxu0
      %1680 = vmatprep.mubr.bf16.mxu0 0
      %1681 = vmatmul.mubr.bf16.gmra.mrb[0].mxu0 %v1546
      %v1682 = vpop.f32.mrb[0].mxu0
      %v1683 = vadd.f32 0.0, %v1682
      %v1684 = vpop.f32.mrb[0].mxu0
      %v1685 = vpop.f32.mrb[0].mxu0
      %v1686 = vadd.f32 0.0, %v1685
      %v1687 = vpop.f32.mrb[0].mxu0
      %1688 = vmatprep.mubr.bf16.mxu0 0
      %1689 = vmatmul.mubr.bf16.gmra.mrb[0].mxu0 %v1549
      %v1690 = vpop.f32.mrb[0].mxu0
      %v1691 = vadd.f32 0.0, %v1690
      %v1692 = vpop.f32.mrb[0].mxu0
      %v1693 = vpop.f32.mrb[0].mxu0
      %v1694 = vadd.f32 0.0, %v1693
      %v1695 = vpop.f32.mrb[0].mxu0
      %1696 = vmatprep.mubr.bf16.mxu0 0
      %1697 = vmatmul.mubr.bf16.gmra.mrb[0].mxu0 %v1552
      %v1698 = vpop.f32.mrb[0].mxu0
      %v1699 = vadd.f32 0.0, %v1698
      %v1700 = vpop.f32.mrb[0].mxu0
      %v1701 = vpop.f32.mrb[0].mxu0
      %v1702 = vadd.f32 0.0, %v1701
      %v1703 = vpop.f32.mrb[0].mxu0
      %1704 = vmatprep.mubr.bf16.mxu0 0
      %1705 = vmatmul.mubr.bf16.gmra.mrb[0].mxu0 %v1555
      %v1706 = vpop.f32.mrb[0].mxu0
      %v1707 = vadd.f32 0.0, %v1706
      %v1708 = vpop.f32.mrb[0].mxu0
      %v1709 = vpop.f32.mrb[0].mxu0
      %v1710 = vadd.f32 0.0, %v1709
      %v1711 = vpop.f32.mrb[0].mxu0
      %1712 = vmatprep.mubr.bf16.mxu0 0
      %1713 = vmatmul.mubr.bf16.gmra.mrb[0].mxu0 %v1558
      %v1714 = vpop.f32.mrb[0].mxu0
      %v1715 = vadd.f32 0.0, %v1714
      %v1716 = vpop.f32.mrb[0].mxu0
      %v1717 = vpop.f32.mrb[0].mxu0
      %v1718 = vadd.f32 0.0, %v1717
      %v1719 = vpop.f32.mrb[0].mxu0
      %1720 = vdwg.mxu0
      %v1721 = vadd.f32 %v1380, %v1595
      %v1722 = vadd.f32 %v1381, %v1598
      %v1723 = vadd.f32 %v1382, %v1603
      %v1724 = vadd.f32 %v1383, %v1606
      %v1725 = vadd.f32 %v1384, %v1611
      %v1726 = vadd.f32 %v1385, %v1614
      %v1727 = vadd.f32 %v1386, %v1619
      %v1728 = vadd.f32 %v1387, %v1622
      %v1729 = vadd.f32 %v1388, %v1627
      %v1730 = vadd.f32 %v1389, %v1630
      %v1731 = vadd.f32 %v1390, %v1635
      %v1732 = vadd.f32 %v1391, %v1638
      %v1733 = vadd.f32 %v1392, %v1643
      %v1734 = vadd.f32 %v1393, %v1646
      %v1735 = vadd.f32 %v1394, %v1651
      %v1736 = vadd.f32 %v1395, %v1654
      %v1737 = vadd.f32 %v1396, %v1659
      %v1738 = vadd.f32 %v1397, %v1662
      %v1739 = vadd.f32 %v1398, %v1667
      %v1740 = vadd.f32 %v1399, %v1670
      %v1741 = vadd.f32 %v1400, %v1675
      %v1742 = vadd.f32 %v1401, %v1678
      %v1743 = vadd.f32 %v1402, %v1683
      %v1744 = vadd.f32 %v1403, %v1686
      %v1745 = vadd.f32 %v1404, %v1691
      %v1746 = vadd.f32 %v1405, %v1694
      %v1747 = vadd.f32 %v1406, %v1699
      %v1748 = vadd.f32 %v1407, %v1702
      %v1749 = vadd.f32 %v1408, %v1707
      %v1750 = vadd.f32 %v1409, %v1710
      %v1751 = vadd.f32 %v1410, %v1715
      %v1752 = vadd.f32 %v1411, %v1718
      %v1753 = vld [vmem:[#allocation2 + $0x88] sm:$0x3]
      %s1754 = scalar_lea.vmem %s2, 128
      %v1755 = vld [vmem:[%s1754] sm:$0xf]
      %v1756 = vld [vmem:[%s1754 + $0x4] sm:$0xf]
      %v1757 = vld [vmem:[%s1754 + $0x8] sm:$0xf]
      %v1758 = vld [vmem:[%s1754 + $0xc] sm:$0xf]
      %v1759 = vld [vmem:[%s1754 + $0x10] sm:$0xf]
      %v1760 = vld [vmem:[%s1754 + $0x14] sm:$0xf]
      %v1761 = vld [vmem:[%s1754 + $0x18] sm:$0xf]
      %v1762 = vld [vmem:[%s1754 + $0x1c] sm:$0xf]
      %vm1763 = vsmask.f32 6400
      %v1765 = vshrl.u32 %v1412, 16
      %v1767 = vrot.slane %v1765, 1
      %v1768 = vshll.u32 %v1412, 16
      %v1770 = vrot.slane %v1768, 2
      %v1771 = vor.u32 %v1767, %v1770
      %v1773 = vshrl.u32 %v1413, 16
      %v1775 = vrot.slane %v1773, 1
      %v1776 = vshll.u32 %v1413, 16
      %v1778 = vrot.slane %v1776, 2
      %v1779 = vor.u32 %v1775, %v1778
      %v1780 = vsel %vm1763, %v1771, %v1779
      %v1782 = vshrl.u32 %v1414, 16
      %v1784 = vrot.slane %v1782, 1
      %v1785 = vshll.u32 %v1414, 16
      %v1787 = vrot.slane %v1785, 2
      %v1788 = vor.u32 %v1784, %v1787
      %v1789 = vsel %vm1763, %v1779, %v1788
      %v1791 = vshrl.u32 %v1415, 16
      %v1793 = vrot.slane %v1791, 1
      %v1794 = vshll.u32 %v1415, 16
      %v1796 = vrot.slane %v1794, 2
      %v1797 = vor.u32 %v1793, %v1796
      %v1798 = vsel %vm1763, %v1788, %v1797
      %v1800 = vshrl.u32 %v1416, 16
      %v1802 = vrot.slane %v1800, 1
      %v1803 = vshll.u32 %v1416, 16
      %v1805 = vrot.slane %v1803, 2
      %v1806 = vor.u32 %v1802, %v1805
      %v1807 = vsel %vm1763, %v1797, %v1806
      %v1809 = vshrl.u32 %v1417, 16
      %v1811 = vrot.slane %v1809, 1
      %v1812 = vshll.u32 %v1417, 16
      %v1814 = vrot.slane %v1812, 2
      %v1815 = vor.u32 %v1811, %v1814
      %v1816 = vsel %vm1763, %v1806, %v1815
      %v1818 = vshrl.u32 %v1418, 16
      %v1820 = vrot.slane %v1818, 1
      %v1821 = vshll.u32 %v1418, 16
      %v1823 = vrot.slane %v1821, 2
      %v1824 = vor.u32 %v1820, %v1823
      %v1825 = vsel %vm1763, %v1815, %v1824
      %v1827 = vshrl.u32 %v1419, 16
      %v1829 = vrot.slane %v1827, 1
      %v1830 = vshll.u32 %v1419, 16
      %v1832 = vrot.slane %v1830, 2
      %v1833 = vor.u32 %v1829, %v1832
      %v1834 = vsel %vm1763, %v1824, %v1833
      %v1836 = vshrl.u32 %v1420, 16
      %v1838 = vrot.slane %v1836, 1
      %v1839 = vshll.u32 %v1420, 16
      %v1841 = vrot.slane %v1839, 2
      %v1842 = vor.u32 %v1838, %v1841
      %v1843 = vsel %vm1763, %v1833, %v1842
      %v1845 = vshrl.u32 %v1421, 16
      %v1847 = vrot.slane %v1845, 1
      %v1848 = vshll.u32 %v1421, 16
      %v1850 = vrot.slane %v1848, 2
      %v1851 = vor.u32 %v1847, %v1850
      %v1852 = vsel %vm1763, %v1842, %v1851
      %v1854 = vshrl.u32 %v1422, 16
      %v1856 = vrot.slane %v1854, 1
      %v1857 = vshll.u32 %v1422, 16
      %v1859 = vrot.slane %v1857, 2
      %v1860 = vor.u32 %v1856, %v1859
      %v1861 = vsel %vm1763, %v1851, %v1860
      %v1863 = vshrl.u32 %v1423, 16
      %v1865 = vrot.slane %v1863, 1
      %v1866 = vshll.u32 %v1423, 16
      %v1868 = vrot.slane %v1866, 2
      %v1869 = vor.u32 %v1865, %v1868
      %v1870 = vsel %vm1763, %v1860, %v1869
      %v1872 = vshrl.u32 %v1424, 16
      %v1874 = vrot.slane %v1872, 1
      %v1875 = vshll.u32 %v1424, 16
      %v1877 = vrot.slane %v1875, 2
      %v1878 = vor.u32 %v1874, %v1877
      %v1879 = vsel %vm1763, %v1869, %v1878
      %v1881 = vshrl.u32 %v1425, 16
      %v1883 = vrot.slane %v1881, 1
      %v1884 = vshll.u32 %v1425, 16
      %v1886 = vrot.slane %v1884, 2
      %v1887 = vor.u32 %v1883, %v1886
      %v1888 = vsel %vm1763, %v1878, %v1887
      %v1890 = vshrl.u32 %v1426, 16
      %v1892 = vrot.slane %v1890, 1
      %v1893 = vshll.u32 %v1426, 16
      %v1895 = vrot.slane %v1893, 2
      %v1896 = vor.u32 %v1892, %v1895
      %v1897 = vsel %vm1763, %v1887, %v1896
      %v1899 = vshrl.u32 %v1427, 16
      %v1901 = vrot.slane %v1899, 1
      %v1902 = vshll.u32 %v1427, 16
      %v1904 = vrot.slane %v1902, 2
      %v1905 = vor.u32 %v1901, %v1904
      %v1906 = vsel %vm1763, %v1896, %v1905
      %v1908 = vshrl.u32 %v1753, 16
      %v1910 = vrot.slane %v1908, 1
      %v1911 = vshll.u32 %v1753, 16
      %v1913 = vrot.slane %v1911, 2
      %v1914 = vor.u32 %v1910, %v1913
      %v1915 = vsel %vm1763, %v1905, %v1914
      %v1924 = vunpack.c.l.b16 %v1755
      %v1925 = vunpack.c.l.b16 %v1756
      %v1926 = vunpack.c.l.b16 %v1757
      %v1927 = vunpack.c.l.b16 %v1758
      %v1928 = vunpack.c.l.b16 %v1759
      %v1929 = vunpack.c.l.b16 %v1760
      %v1930 = vunpack.c.l.b16 %v1761
      %v1931 = vunpack.c.l.b16 %v1762
      %v1932 = vpack.c.b16 %v1925, %v1924
      %v1933 = vpack.c.b16 %v1927, %v1926
      %v1934 = vpack.c.b16 %v1929, %v1928
      %v1935 = vpack.c.b16 %v1931, %v1930
      %v1941 = vsel %vm416, %v1780, 0
      %v1944 = vsel %vm416, %v1789, 0
      %v1947 = vsel %vm416, %v1798, 0
      %v1950 = vsel %vm416, %v1807, 0
      %v1953 = vsel %vm416, %v1816, 0
      %v1956 = vsel %vm416, %v1825, 0
      %v1959 = vsel %vm416, %v1834, 0
      %v1962 = vsel %vm416, %v1843, 0
      %v1965 = vsel %vm416, %v1852, 0
      %v1968 = vsel %vm416, %v1861, 0
      %v1971 = vsel %vm416, %v1870, 0
      %v1974 = vsel %vm416, %v1879, 0
      %v1977 = vsel %vm416, %v1888, 0
      %v1980 = vsel %vm416, %v1897, 0
      %v1983 = vsel %vm416, %v1906, 0
      %v1986 = vsel %vm416, %v1915, 0
      %1988 = vmatprep.subr.bf16.mxu0 0
      %1989 = vmatpush1.bf16.msra.mxu0 %v1932
      %1990 = vmatprep.subr.bf16.mxu0 0
      %1991 = vmatpush1.bf16.msra.mxu0 %v1933
      %1992 = vmatprep.subr.bf16.mxu0 0
      %1993 = vmatpush1.bf16.msra.mxu0 %v1934
      %1994 = vmatprep.subr.bf16.mxu0 0
      %1995 = vmatpush1.bf16.msra.mxu0 %v1935
      %1996 = vmatprep.subr.bf16.mxu0 0
      %1997 = vmatpush1.bf16.msra.mxu0 0
      %1998 = vmatprep.subr.bf16.mxu0 0
      %1999 = vmatpush1.bf16.msra.mxu0 0
      %2000 = vmatprep.subr.bf16.mxu0 0
      %2001 = vmatpush1.bf16.msra.mxu0 0
      %2002 = vmatprep.subr.bf16.mxu0 0
      %2003 = vmatpush1.bf16.msra.mxu0 0
      %2004 = vmatprep.subr.bf16.mxu0 0
      %2005 = vmatpush1.bf16.msra.mxu0 0
      %2006 = vmatprep.subr.bf16.mxu0 0
      %2007 = vmatpush1.bf16.msra.mxu0 0
      %2008 = vmatprep.subr.bf16.mxu0 0
      %2009 = vmatpush1.bf16.msra.mxu0 0
      %2010 = vmatprep.subr.bf16.mxu0 0
      %2011 = vmatpush1.bf16.msra.mxu0 0
      %2012 = vmatprep.subr.bf16.mxu0 0
      %2013 = vmatpush1.bf16.msra.mxu0 0
      %2014 = vmatprep.subr.bf16.mxu0 0
      %2015 = vmatpush1.bf16.msra.mxu0 0
      %2016 = vmatprep.subr.bf16.mxu0 0
      %2017 = vmatpush1.bf16.msra.mxu0 0
      %2018 = vmatprep.subr.bf16.mxu0 0
      %2019 = vmatpush1.bf16.msra.mxu0 0
      %2020 = vmatprep.mubr.bf16.mxu0 0
      %2021 = vmatmul.mubr.bf16.gmra.mrb[0].mxu0 %v1941
      %v2022 = vpop.f32.mrb[0].mxu0
      %v2023 = vadd.f32 0.0, %v2022
      %v2024 = vpop.f32.mrb[0].mxu0
      %v2025 = vpop.f32.mrb[0].mxu0
      %v2026 = vadd.f32 0.0, %v2025
      %v2027 = vpop.f32.mrb[0].mxu0
      %2028 = vmatprep.mubr.bf16.mxu0 0
      %2029 = vmatmul.mubr.bf16.gmra.mrb[0].mxu0 %v1944
      %v2030 = vpop.f32.mrb[0].mxu0
      %v2031 = vadd.f32 0.0, %v2030
      %v2032 = vpop.f32.mrb[0].mxu0
      %v2033 = vpop.f32.mrb[0].mxu0
      %v2034 = vadd.f32 0.0, %v2033
      %v2035 = vpop.f32.mrb[0].mxu0
      %2036 = vmatprep.mubr.bf16.mxu0 0
      %2037 = vmatmul.mubr.bf16.gmra.mrb[0].mxu0 %v1947
      %v2038 = vpop.f32.mrb[0].mxu0
      %v2039 = vadd.f32 0.0, %v2038
      %v2040 = vpop.f32.mrb[0].mxu0
      %v2041 = vpop.f32.mrb[0].mxu0
      %v2042 = vadd.f32 0.0, %v2041
      %v2043 = vpop.f32.mrb[0].mxu0
      %2044 = vmatprep.mubr.bf16.mxu0 0
      %2045 = vmatmul.mubr.bf16.gmra.mrb[0].mxu0 %v1950
      %v2046 = vpop.f32.mrb[0].mxu0
      %v2047 = vadd.f32 0.0, %v2046
      %v2048 = vpop.f32.mrb[0].mxu0
      %v2049 = vpop.f32.mrb[0].mxu0
      %v2050 = vadd.f32 0.0, %v2049
      %v2051 = vpop.f32.mrb[0].mxu0
      %2052 = vmatprep.mubr.bf16.mxu0 0
      %2053 = vmatmul.mubr.bf16.gmra.mrb[0].mxu0 %v1953
      %v2054 = vpop.f32.mrb[0].mxu0
      %v2055 = vadd.f32 0.0, %v2054
      %v2056 = vpop.f32.mrb[0].mxu0
      %v2057 = vpop.f32.mrb[0].mxu0
      %v2058 = vadd.f32 0.0, %v2057
      %v2059 = vpop.f32.mrb[0].mxu0
      %2060 = vmatprep.mubr.bf16.mxu0 0
      %2061 = vmatmul.mubr.bf16.gmra.mrb[0].mxu0 %v1956
      %v2062 = vpop.f32.mrb[0].mxu0
      %v2063 = vadd.f32 0.0, %v2062
      %v2064 = vpop.f32.mrb[0].mxu0
      %v2065 = vpop.f32.mrb[0].mxu0
      %v2066 = vadd.f32 0.0, %v2065
      %v2067 = vpop.f32.mrb[0].mxu0
      %2068 = vmatprep.mubr.bf16.mxu0 0
      %2069 = vmatmul.mubr.bf16.gmra.mrb[0].mxu0 %v1959
      %v2070 = vpop.f32.mrb[0].mxu0
      %v2071 = vadd.f32 0.0, %v2070
      %v2072 = vpop.f32.mrb[0].mxu0
      %v2073 = vpop.f32.mrb[0].mxu0
      %v2074 = vadd.f32 0.0, %v2073
      %v2075 = vpop.f32.mrb[0].mxu0
      %2076 = vmatprep.mubr.bf16.mxu0 0
      %2077 = vmatmul.mubr.bf16.gmra.mrb[0].mxu0 %v1962
      %v2078 = vpop.f32.mrb[0].mxu0
      %v2079 = vadd.f32 0.0, %v2078
      %v2080 = vpop.f32.mrb[0].mxu0
      %v2081 = vpop.f32.mrb[0].mxu0
      %v2082 = vadd.f32 0.0, %v2081
      %v2083 = vpop.f32.mrb[0].mxu0
      %2084 = vmatprep.mubr.bf16.mxu0 0
      %2085 = vmatmul.mubr.bf16.gmra.mrb[0].mxu0 %v1965
      %v2086 = vpop.f32.mrb[0].mxu0
      %v2087 = vadd.f32 0.0, %v2086
      %v2088 = vpop.f32.mrb[0].mxu0
      %v2089 = vpop.f32.mrb[0].mxu0
      %v2090 = vadd.f32 0.0, %v2089
      %v2091 = vpop.f32.mrb[0].mxu0
      %2092 = vmatprep.mubr.bf16.mxu0 0
      %2093 = vmatmul.mubr.bf16.gmra.mrb[0].mxu0 %v1968
      %v2094 = vpop.f32.mrb[0].mxu0
      %v2095 = vadd.f32 0.0, %v2094
      %v2096 = vpop.f32.mrb[0].mxu0
      %v2097 = vpop.f32.mrb[0].mxu0
      %v2098 = vadd.f32 0.0, %v2097
      %v2099 = vpop.f32.mrb[0].mxu0
      %2100 = vmatprep.mubr.bf16.mxu0 0
      %2101 = vmatmul.mubr.bf16.gmra.mrb[0].mxu0 %v1971
      %v2102 = vpop.f32.mrb[0].mxu0
      %v2103 = vadd.f32 0.0, %v2102
      %v2104 = vpop.f32.mrb[0].mxu0
      %v2105 = vpop.f32.mrb[0].mxu0
      %v2106 = vadd.f32 0.0, %v2105
      %v2107 = vpop.f32.mrb[0].mxu0
      %2108 = vmatprep.mubr.bf16.mxu0 0
      %2109 = vmatmul.mubr.bf16.gmra.mrb[0].mxu0 %v1974
      %v2110 = vpop.f32.mrb[0].mxu0
      %v2111 = vadd.f32 0.0, %v2110
      %v2112 = vpop.f32.mrb[0].mxu0
      %v2113 = vpop.f32.mrb[0].mxu0
      %v2114 = vadd.f32 0.0, %v2113
      %v2115 = vpop.f32.mrb[0].mxu0
      %2116 = vmatprep.mubr.bf16.mxu0 0
      %2117 = vmatmul.mubr.bf16.gmra.mrb[0].mxu0 %v1977
      %v2118 = vpop.f32.mrb[0].mxu0
      %v2119 = vadd.f32 0.0, %v2118
      %v2120 = vpop.f32.mrb[0].mxu0
      %v2121 = vpop.f32.mrb[0].mxu0
      %v2122 = vadd.f32 0.0, %v2121
      %v2123 = vpop.f32.mrb[0].mxu0
      %2124 = vmatprep.mubr.bf16.mxu0 0
      %2125 = vmatmul.mubr.bf16.gmra.mrb[0].mxu0 %v1980
      %v2126 = vpop.f32.mrb[0].mxu0
      %v2127 = vadd.f32 0.0, %v2126
      %v2128 = vpop.f32.mrb[0].mxu0
      %v2129 = vpop.f32.mrb[0].mxu0
      %v2130 = vadd.f32 0.0, %v2129
      %v2131 = vpop.f32.mrb[0].mxu0
      %2132 = vmatprep.mubr.bf16.mxu0 0
      %2133 = vmatmul.mubr.bf16.gmra.mrb[0].mxu0 %v1983
      %v2134 = vpop.f32.mrb[0].mxu0
      %v2135 = vadd.f32 0.0, %v2134
      %v2136 = vpop.f32.mrb[0].mxu0
      %v2137 = vpop.f32.mrb[0].mxu0
      %v2138 = vadd.f32 0.0, %v2137
      %v2139 = vpop.f32.mrb[0].mxu0
      %2140 = vmatprep.mubr.bf16.mxu0 0
      %2141 = vmatmul.mubr.bf16.gmra.mrb[0].mxu0 %v1986
      %v2142 = vpop.f32.mrb[0].mxu0
      %v2143 = vadd.f32 0.0, %v2142
      %v2144 = vpop.f32.mrb[0].mxu0
      %v2145 = vpop.f32.mrb[0].mxu0
      %v2146 = vadd.f32 0.0, %v2145
      %v2147 = vpop.f32.mrb[0].mxu0
      %2148 = vdwg.mxu0
      %v2149 = vadd.f32 %v1721, %v2023
      %v2150 = vadd.f32 %v1722, %v2026
      %v2151 = vadd.f32 %v1723, %v2031
      %v2152 = vadd.f32 %v1724, %v2034
      %v2153 = vadd.f32 %v1725, %v2039
      %v2154 = vadd.f32 %v1726, %v2042
      %v2155 = vadd.f32 %v1727, %v2047
      %v2156 = vadd.f32 %v1728, %v2050
      %v2157 = vadd.f32 %v1729, %v2055
      %v2158 = vadd.f32 %v1730, %v2058
      %v2159 = vadd.f32 %v1731, %v2063
      %v2160 = vadd.f32 %v1732, %v2066
      %v2161 = vadd.f32 %v1733, %v2071
      %v2162 = vadd.f32 %v1734, %v2074
      %v2163 = vadd.f32 %v1735, %v2079
      %v2164 = vadd.f32 %v1736, %v2082
      %v2165 = vadd.f32 %v1737, %v2087
      %v2166 = vadd.f32 %v1738, %v2090
      %v2167 = vadd.f32 %v1739, %v2095
      %v2168 = vadd.f32 %v1740, %v2098
      %v2169 = vadd.f32 %v1741, %v2103
      %v2170 = vadd.f32 %v1742, %v2106
      %v2171 = vadd.f32 %v1743, %v2111
      %v2172 = vadd.f32 %v1744, %v2114
      %v2173 = vadd.f32 %v1745, %v2119
      %v2174 = vadd.f32 %v1746, %v2122
      %v2175 = vadd.f32 %v1747, %v2127
      %v2176 = vadd.f32 %v1748, %v2130
      %v2177 = vadd.f32 %v1749, %v2135
      %v2178 = vadd.f32 %v1750, %v2138
      %v2179 = vadd.f32 %v1751, %v2143
      %v2180 = vadd.f32 %v1752, %v2146
      %v2181 = vld [vmem:[#allocation2 + $0x8] sm:$0xfc]
      %s2182 = scalar_lea.vmem %s2, 160
      %v2183 = vld [vmem:[%s2182] sm:$0xf]
      %v2184 = vld [vmem:[%s2182 + $0x4] sm:$0xf]
      %v2185 = vld [vmem:[%s2182 + $0x8] sm:$0xf]
      %v2186 = vld [vmem:[%s2182 + $0xc] sm:$0xf]
      %v2187 = vld [vmem:[%s2182 + $0x10] sm:$0xf]
      %v2188 = vld [vmem:[%s2182 + $0x14] sm:$0xf]
      %v2189 = vld [vmem:[%s2182 + $0x18] sm:$0xf]
      %v2190 = vld [vmem:[%s2182 + $0x1c] sm:$0xf]
      %vm2193 = vcmask 1045504
      %v2194 = vrot.slane %v2181, 2
      %v2195 = vrot.slane %v1413, 2
      %v2196 = vsel %vm2193, %v2194, %v2195
      %v2197 = vrot.slane %v1414, 2
      %v2198 = vsel %vm2193, %v2195, %v2197
      %v2199 = vrot.slane %v1415, 2
      %v2200 = vsel %vm2193, %v2197, %v2199
      %v2201 = vrot.slane %v1416, 2
      %v2202 = vsel %vm2193, %v2199, %v2201
      %v2203 = vrot.slane %v1417, 2
      %v2204 = vsel %vm2193, %v2201, %v2203
      %v2205 = vrot.slane %v1418, 2
      %v2206 = vsel %vm2193, %v2203, %v2205
      %v2207 = vrot.slane %v1419, 2
      %v2208 = vsel %vm2193, %v2205, %v2207
      %v2209 = vrot.slane %v1420, 2
      %v2210 = vsel %vm2193, %v2207, %v2209
      %v2211 = vrot.slane %v1421, 2
      %v2212 = vsel %vm2193, %v2209, %v2211
      %v2213 = vrot.slane %v1422, 2
      %v2214 = vsel %vm2193, %v2211, %v2213
      %v2215 = vrot.slane %v1423, 2
      %v2216 = vsel %vm2193, %v2213, %v2215
      %v2217 = vrot.slane %v1424, 2
      %v2218 = vsel %vm2193, %v2215, %v2217
      %v2219 = vrot.slane %v1425, 2
      %v2220 = vsel %vm2193, %v2217, %v2219
      %v2221 = vrot.slane %v1426, 2
      %v2222 = vsel %vm2193, %v2219, %v2221
      %v2223 = vrot.slane %v1427, 2
      %v2224 = vsel %vm2193, %v2221, %v2223
      %v2225 = vrot.slane %v1753, 2
      %v2226 = vsel %vm2193, %v2223, %v2225
      %v2235 = vunpack.c.l.b16 %v2183
      %v2236 = vunpack.c.l.b16 %v2184
      %v2237 = vunpack.c.l.b16 %v2185
      %v2238 = vunpack.c.l.b16 %v2186
      %v2239 = vunpack.c.l.b16 %v2187
      %v2240 = vunpack.c.l.b16 %v2188
      %v2241 = vunpack.c.l.b16 %v2189
      %v2242 = vunpack.c.l.b16 %v2190
      %v2243 = vpack.c.b16 %v2236, %v2235
      %v2244 = vpack.c.b16 %v2238, %v2237
      %v2245 = vpack.c.b16 %v2240, %v2239
      %v2246 = vpack.c.b16 %v2242, %v2241
      %v2252 = vsel %vm416, %v2196, 0
      %v2255 = vsel %vm416, %v2198, 0
      %v2258 = vsel %vm416, %v2200, 0
      %v2261 = vsel %vm416, %v2202, 0
      %v2264 = vsel %vm416, %v2204, 0
      %v2267 = vsel %vm416, %v2206, 0
      %v2270 = vsel %vm416, %v2208, 0
      %v2273 = vsel %vm416, %v2210, 0
      %v2276 = vsel %vm416, %v2212, 0
      %v2279 = vsel %vm416, %v2214, 0
      %v2282 = vsel %vm416, %v2216, 0
      %v2285 = vsel %vm416, %v2218, 0
      %v2288 = vsel %vm416, %v2220, 0
      %v2291 = vsel %vm416, %v2222, 0
      %v2294 = vsel %vm416, %v2224, 0
      %v2297 = vsel %vm416, %v2226, 0
      %2299 = vmatprep.subr.bf16.mxu0 0
      %2300 = vmatpush1.bf16.msra.mxu0 %v2243
      %2301 = vmatprep.subr.bf16.mxu0 0
      %2302 = vmatpush1.bf16.msra.mxu0 %v2244
      %2303 = vmatprep.subr.bf16.mxu0 0
      %2304 = vmatpush1.bf16.msra.mxu0 %v2245
      %2305 = vmatprep.subr.bf16.mxu0 0
      %2306 = vmatpush1.bf16.msra.mxu0 %v2246
      %2307 = vmatprep.subr.bf16.mxu0 0
      %2308 = vmatpush1.bf16.msra.mxu0 0
      %2309 = vmatprep.subr.bf16.mxu0 0
      %2310 = vmatpush1.bf16.msra.mxu0 0
      %2311 = vmatprep.subr.bf16.mxu0 0
      %2312 = vmatpush1.bf16.msra.mxu0 0
      %2313 = vmatprep.subr.bf16.mxu0 0
      %2314 = vmatpush1.bf16.msra.mxu0 0
      %2315 = vmatprep.subr.bf16.mxu0 0
      %2316 = vmatpush1.bf16.msra.mxu0 0
      %2317 = vmatprep.subr.bf16.mxu0 0
      %2318 = vmatpush1.bf16.msra.mxu0 0
      %2319 = vmatprep.subr.bf16.mxu0 0
      %2320 = vmatpush1.bf16.msra.mxu0 0
      %2321 = vmatprep.subr.bf16.mxu0 0
      %2322 = vmatpush1.bf16.msra.mxu0 0
      %2323 = vmatprep.subr.bf16.mxu0 0
      %2324 = vmatpush1.bf16.msra.mxu0 0
      %2325 = vmatprep.subr.bf16.mxu0 0
      %2326 = vmatpush1.bf16.msra.mxu0 0
      %2327 = vmatprep.subr.bf16.mxu0 0
      %2328 = vmatpush1.bf16.msra.mxu0 0
      %2329 = vmatprep.subr.bf16.mxu0 0
      %2330 = vmatpush1.bf16.msra.mxu0 0
      %2331 = vmatprep.mubr.bf16.mxu0 0
      %2332 = vmatmul.mubr.bf16.gmra.mrb[0].mxu0 %v2252
      %v2333 = vpop.f32.mrb[0].mxu0
      %v2334 = vadd.f32 0.0, %v2333
      %v2335 = vpop.f32.mrb[0].mxu0
      %v2336 = vpop.f32.mrb[0].mxu0
      %v2337 = vadd.f32 0.0, %v2336
      %v2338 = vpop.f32.mrb[0].mxu0
      %2339 = vmatprep.mubr.bf16.mxu0 0
      %2340 = vmatmul.mubr.bf16.gmra.mrb[0].mxu0 %v2255
      %v2341 = vpop.f32.mrb[0].mxu0
      %v2342 = vadd.f32 0.0, %v2341
      %v2343 = vpop.f32.mrb[0].mxu0
      %v2344 = vpop.f32.mrb[0].mxu0
      %v2345 = vadd.f32 0.0, %v2344
      %v2346 = vpop.f32.mrb[0].mxu0
      %2347 = vmatprep.mubr.bf16.mxu0 0
      %2348 = vmatmul.mubr.bf16.gmra.mrb[0].mxu0 %v2258
      %v2349 = vpop.f32.mrb[0].mxu0
      %v2350 = vadd.f32 0.0, %v2349
      %v2351 = vpop.f32.mrb[0].mxu0
      %v2352 = vpop.f32.mrb[0].mxu0
      %v2353 = vadd.f32 0.0, %v2352
      %v2354 = vpop.f32.mrb[0].mxu0
      %2355 = vmatprep.mubr.bf16.mxu0 0
      %2356 = vmatmul.mubr.bf16.gmra.mrb[0].mxu0 %v2261
      %v2357 = vpop.f32.mrb[0].mxu0
      %v2358 = vadd.f32 0.0, %v2357
      %v2359 = vpop.f32.mrb[0].mxu0
      %v2360 = vpop.f32.mrb[0].mxu0
      %v2361 = vadd.f32 0.0, %v2360
      %v2362 = vpop.f32.mrb[0].mxu0
      %2363 = vmatprep.mubr.bf16.mxu0 0
      %2364 = vmatmul.mubr.bf16.gmra.mrb[0].mxu0 %v2264
      %v2365 = vpop.f32.mrb[0].mxu0
      %v2366 = vadd.f32 0.0, %v2365
      %v2367 = vpop.f32.mrb[0].mxu0
      %v2368 = vpop.f32.mrb[0].mxu0
      %v2369 = vadd.f32 0.0, %v2368
      %v2370 = vpop.f32.mrb[0].mxu0
      %2371 = vmatprep.mubr.bf16.mxu0 0
      %2372 = vmatmul.mubr.bf16.gmra.mrb[0].mxu0 %v2267
      %v2373 = vpop.f32.mrb[0].mxu0
      %v2374 = vadd.f32 0.0, %v2373
      %v2375 = vpop.f32.mrb[0].mxu0
      %v2376 = vpop.f32.mrb[0].mxu0
      %v2377 = vadd.f32 0.0, %v2376
      %v2378 = vpop.f32.mrb[0].mxu0
      %2379 = vmatprep.mubr.bf16.mxu0 0
      %2380 = vmatmul.mubr.bf16.gmra.mrb[0].mxu0 %v2270
      %v2381 = vpop.f32.mrb[0].mxu0
      %v2382 = vadd.f32 0.0, %v2381
      %v2383 = vpop.f32.mrb[0].mxu0
      %v2384 = vpop.f32.mrb[0].mxu0
      %v2385 = vadd.f32 0.0, %v2384
      %v2386 = vpop.f32.mrb[0].mxu0
      %2387 = vmatprep.mubr.bf16.mxu0 0
      %2388 = vmatmul.mubr.bf16.gmra.mrb[0].mxu0 %v2273
      %v2389 = vpop.f32.mrb[0].mxu0
      %v2390 = vadd.f32 0.0, %v2389
      %v2391 = vpop.f32.mrb[0].mxu0
      %v2392 = vpop.f32.mrb[0].mxu0
      %v2393 = vadd.f32 0.0, %v2392
      %v2394 = vpop.f32.mrb[0].mxu0
      %2395 = vmatprep.mubr.bf16.mxu0 0
      %2396 = vmatmul.mubr.bf16.gmra.mrb[0].mxu0 %v2276
      %v2397 = vpop.f32.mrb[0].mxu0
      %v2398 = vadd.f32 0.0, %v2397
      %v2399 = vpop.f32.mrb[0].mxu0
      %v2400 = vpop.f32.mrb[0].mxu0
      %v2401 = vadd.f32 0.0, %v2400
      %v2402 = vpop.f32.mrb[0].mxu0
      %2403 = vmatprep.mubr.bf16.mxu0 0
      %2404 = vmatmul.mubr.bf16.gmra.mrb[0].mxu0 %v2279
      %v2405 = vpop.f32.mrb[0].mxu0
      %v2406 = vadd.f32 0.0, %v2405
      %v2407 = vpop.f32.mrb[0].mxu0
      %v2408 = vpop.f32.mrb[0].mxu0
      %v2409 = vadd.f32 0.0, %v2408
      %v2410 = vpop.f32.mrb[0].mxu0
      %2411 = vmatprep.mubr.bf16.mxu0 0
      %2412 = vmatmul.mubr.bf16.gmra.mrb[0].mxu0 %v2282
      %v2413 = vpop.f32.mrb[0].mxu0
      %v2414 = vadd.f32 0.0, %v2413
      %v2415 = vpop.f32.mrb[0].mxu0
      %v2416 = vpop.f32.mrb[0].mxu0
      %v2417 = vadd.f32 0.0, %v2416
      %v2418 = vpop.f32.mrb[0].mxu0
      %2419 = vmatprep.mubr.bf16.mxu0 0
      %2420 = vmatmul.mubr.bf16.gmra.mrb[0].mxu0 %v2285
      %v2421 = vpop.f32.mrb[0].mxu0
      %v2422 = vadd.f32 0.0, %v2421
      %v2423 = vpop.f32.mrb[0].mxu0
      %v2424 = vpop.f32.mrb[0].mxu0
      %v2425 = vadd.f32 0.0, %v2424
      %v2426 = vpop.f32.mrb[0].mxu0
      %2427 = vmatprep.mubr.bf16.mxu0 0
      %2428 = vmatmul.mubr.bf16.gmra.mrb[0].mxu0 %v2288
      %v2429 = vpop.f32.mrb[0].mxu0
      %v2430 = vadd.f32 0.0, %v2429
      %v2431 = vpop.f32.mrb[0].mxu0
      %v2432 = vpop.f32.mrb[0].mxu0
      %v2433 = vadd.f32 0.0, %v2432
      %v2434 = vpop.f32.mrb[0].mxu0
      %2435 = vmatprep.mubr.bf16.mxu0 0
      %2436 = vmatmul.mubr.bf16.gmra.mrb[0].mxu0 %v2291
      %v2437 = vpop.f32.mrb[0].mxu0
      %v2438 = vadd.f32 0.0, %v2437
      %v2439 = vpop.f32.mrb[0].mxu0
      %v2440 = vpop.f32.mrb[0].mxu0
      %v2441 = vadd.f32 0.0, %v2440
      %v2442 = vpop.f32.mrb[0].mxu0
      %2443 = vmatprep.mubr.bf16.mxu0 0
      %2444 = vmatmul.mubr.bf16.gmra.mrb[0].mxu0 %v2294
      %v2445 = vpop.f32.mrb[0].mxu0
      %v2446 = vadd.f32 0.0, %v2445
      %v2447 = vpop.f32.mrb[0].mxu0
      %v2448 = vpop.f32.mrb[0].mxu0
      %v2449 = vadd.f32 0.0, %v2448
      %v2450 = vpop.f32.mrb[0].mxu0
      %2451 = vmatprep.mubr.bf16.mxu0 0
      %2452 = vmatmul.mubr.bf16.gmra.mrb[0].mxu0 %v2297
      %v2453 = vpop.f32.mrb[0].mxu0
      %v2454 = vadd.f32 0.0, %v2453
      %v2455 = vpop.f32.mrb[0].mxu0
      %v2456 = vpop.f32.mrb[0].mxu0
      %v2457 = vadd.f32 0.0, %v2456
      %v2458 = vpop.f32.mrb[0].mxu0
      %2459 = vdwg.mxu0
      %v2460 = vadd.f32 %v2149, %v2334
      %v2461 = vadd.f32 %v2150, %v2337
      %v2462 = vadd.f32 %v2151, %v2342
      %v2463 = vadd.f32 %v2152, %v2345
      %v2464 = vadd.f32 %v2153, %v2350
      %v2465 = vadd.f32 %v2154, %v2353
      %v2466 = vadd.f32 %v2155, %v2358
      %v2467 = vadd.f32 %v2156, %v2361
      %v2468 = vadd.f32 %v2157, %v2366
      %v2469 = vadd.f32 %v2158, %v2369
      %v2470 = vadd.f32 %v2159, %v2374
      %v2471 = vadd.f32 %v2160, %v2377
      %v2472 = vadd.f32 %v2161, %v2382
      %v2473 = vadd.f32 %v2162, %v2385
      %v2474 = vadd.f32 %v2163, %v2390
      %v2475 = vadd.f32 %v2164, %v2393
      %v2476 = vadd.f32 %v2165, %v2398
      %v2477 = vadd.f32 %v2166, %v2401
      %v2478 = vadd.f32 %v2167, %v2406
      %v2479 = vadd.f32 %v2168, %v2409
      %v2480 = vadd.f32 %v2169, %v2414
      %v2481 = vadd.f32 %v2170, %v2417
      %v2482 = vadd.f32 %v2171, %v2422
      %v2483 = vadd.f32 %v2172, %v2425
      %v2484 = vadd.f32 %v2173, %v2430
      %v2485 = vadd.f32 %v2174, %v2433
      %v2486 = vadd.f32 %v2175, %v2438
      %v2487 = vadd.f32 %v2176, %v2441
      %v2488 = vadd.f32 %v2177, %v2446
      %v2489 = vadd.f32 %v2178, %v2449
      %v2490 = vadd.f32 %v2179, %v2454
      %v2491 = vadd.f32 %v2180, %v2457
      %v2492 = vld [vmem:[#allocation2 + $0x10] sm:$0xfc]
      %v2493 = vld [vmem:[#allocation2 + $0x18] sm:$0xff]
      %v2494 = vld [vmem:[#allocation2 + $0x20] sm:$0xff]
      %v2495 = vld [vmem:[#allocation2 + $0x28] sm:$0xff]
      %v2496 = vld [vmem:[#allocation2 + $0x30] sm:$0xff]
      %v2497 = vld [vmem:[#allocation2 + $0x38] sm:$0xff]
      %v2498 = vld [vmem:[#allocation2 + $0x40] sm:$0xff]
      %v2499 = vld [vmem:[#allocation2 + $0x48] sm:$0xff]
      %v2500 = vld [vmem:[#allocation2 + $0x50] sm:$0xff]
      %v2501 = vld [vmem:[#allocation2 + $0x58] sm:$0xff]
      %v2502 = vld [vmem:[#allocation2 + $0x60] sm:$0xff]
      %v2503 = vld [vmem:[#allocation2 + $0x68] sm:$0xff]
      %v2504 = vld [vmem:[#allocation2 + $0x70] sm:$0xff]
      %v2505 = vld [vmem:[#allocation2 + $0x78] sm:$0xff]
      %v2506 = vld [vmem:[#allocation2 + $0x80] sm:$0xff]
      %v2507 = vld [vmem:[#allocation2 + $0x88] sm:$0xff]
      %v2508 = vld [vmem:[#allocation2 + $0x90] sm:$0x3]
      %s2509 = scalar_lea.vmem %s2, 192
      %v2510 = vld [vmem:[%s2509] sm:$0xf]
      %v2511 = vld [vmem:[%s2509 + $0x4] sm:$0xf]
      %v2512 = vld [vmem:[%s2509 + $0x8] sm:$0xf]
      %v2513 = vld [vmem:[%s2509 + $0xc] sm:$0xf]
      %v2514 = vld [vmem:[%s2509 + $0x10] sm:$0xf]
      %v2515 = vld [vmem:[%s2509 + $0x14] sm:$0xf]
      %v2516 = vld [vmem:[%s2509 + $0x18] sm:$0xf]
      %v2517 = vld [vmem:[%s2509 + $0x1c] sm:$0xf]
      %v2535 = vrot.slane %v2492, 2
      %v2536 = vrot.slane %v2493, 2
      %v2537 = vsel %vm2193, %v2535, %v2536
      %v2538 = vrot.slane %v2494, 2
      %v2539 = vsel %vm2193, %v2536, %v2538
      %v2540 = vrot.slane %v2495, 2
      %v2541 = vsel %vm2193, %v2538, %v2540
      %v2542 = vrot.slane %v2496, 2
      %v2543 = vsel %vm2193, %v2540, %v2542
      %v2544 = vrot.slane %v2497, 2
      %v2545 = vsel %vm2193, %v2542, %v2544
      %v2546 = vrot.slane %v2498, 2
      %v2547 = vsel %vm2193, %v2544, %v2546
      %v2548 = vrot.slane %v2499, 2
      %v2549 = vsel %vm2193, %v2546, %v2548
      %v2550 = vrot.slane %v2500, 2
      %v2551 = vsel %vm2193, %v2548, %v2550
      %v2552 = vrot.slane %v2501, 2
      %v2553 = vsel %vm2193, %v2550, %v2552
      %v2554 = vrot.slane %v2502, 2
      %v2555 = vsel %vm2193, %v2552, %v2554
      %v2556 = vrot.slane %v2503, 2
      %v2557 = vsel %vm2193, %v2554, %v2556
      %v2558 = vrot.slane %v2504, 2
      %v2559 = vsel %vm2193, %v2556, %v2558
      %v2560 = vrot.slane %v2505, 2
      %v2561 = vsel %vm2193, %v2558, %v2560
      %v2562 = vrot.slane %v2506, 2
      %v2563 = vsel %vm2193, %v2560, %v2562
      %v2564 = vrot.slane %v2507, 2
      %v2565 = vsel %vm2193, %v2562, %v2564
      %v2566 = vrot.slane %v2508, 2
      %v2567 = vsel %vm2193, %v2564, %v2566
      %v2576 = vunpack.c.l.b16 %v2510
      %v2577 = vunpack.c.l.b16 %v2511
      %v2578 = vunpack.c.l.b16 %v2512
      %v2579 = vunpack.c.l.b16 %v2513
      %v2580 = vunpack.c.l.b16 %v2514
      %v2581 = vunpack.c.l.b16 %v2515
      %v2582 = vunpack.c.l.b16 %v2516
      %v2583 = vunpack.c.l.b16 %v2517
      %v2584 = vpack.c.b16 %v2577, %v2576
      %v2585 = vpack.c.b16 %v2579, %v2578
      %v2586 = vpack.c.b16 %v2581, %v2580
      %v2587 = vpack.c.b16 %v2583, %v2582
      %v2593 = vsel %vm416, %v2537, 0
      %v2596 = vsel %vm416, %v2539, 0
      %v2599 = vsel %vm416, %v2541, 0
      %v2602 = vsel %vm416, %v2543, 0
      %v2605 = vsel %vm416, %v2545, 0
      %v2608 = vsel %vm416, %v2547, 0
      %v2611 = vsel %vm416, %v2549, 0
      %v2614 = vsel %vm416, %v2551, 0
      %v2617 = vsel %vm416, %v2553, 0
      %v2620 = vsel %vm416, %v2555, 0
      %v2623 = vsel %vm416, %v2557, 0
      %v2626 = vsel %vm416, %v2559, 0
      %v2629 = vsel %vm416, %v2561, 0
      %v2632 = vsel %vm416, %v2563, 0
      %v2635 = vsel %vm416, %v2565, 0
      %v2638 = vsel %vm416, %v2567, 0
      %2640 = vmatprep.subr.bf16.mxu0 0
      %2641 = vmatpush1.bf16.msra.mxu0 %v2584
      %2642 = vmatprep.subr.bf16.mxu0 0
      %2643 = vmatpush1.bf16.msra.mxu0 %v2585
      %2644 = vmatprep.subr.bf16.mxu0 0
      %2645 = vmatpush1.bf16.msra.mxu0 %v2586
      %2646 = vmatprep.subr.bf16.mxu0 0
      %2647 = vmatpush1.bf16.msra.mxu0 %v2587
      %2648 = vmatprep.subr.bf16.mxu0 0
      %2649 = vmatpush1.bf16.msra.mxu0 0
      %2650 = vmatprep.subr.bf16.mxu0 0
      %2651 = vmatpush1.bf16.msra.mxu0 0
      %2652 = vmatprep.subr.bf16.mxu0 0
      %2653 = vmatpush1.bf16.msra.mxu0 0
      %2654 = vmatprep.subr.bf16.mxu0 0
      %2655 = vmatpush1.bf16.msra.mxu0 0
      %2656 = vmatprep.subr.bf16.mxu0 0
      %2657 = vmatpush1.bf16.msra.mxu0 0
      %2658 = vmatprep.subr.bf16.mxu0 0
      %2659 = vmatpush1.bf16.msra.mxu0 0
      %2660 = vmatprep.subr.bf16.mxu0 0
      %2661 = vmatpush1.bf16.msra.mxu0 0
      %2662 = vmatprep.subr.bf16.mxu0 0
      %2663 = vmatpush1.bf16.msra.mxu0 0
      %2664 = vmatprep.subr.bf16.mxu0 0
      %2665 = vmatpush1.bf16.msra.mxu0 0
      %2666 = vmatprep.subr.bf16.mxu0 0
      %2667 = vmatpush1.bf16.msra.mxu0 0
      %2668 = vmatprep.subr.bf16.mxu0 0
      %2669 = vmatpush1.bf16.msra.mxu0 0
      %2670 = vmatprep.subr.bf16.mxu0 0
      %2671 = vmatpush1.bf16.msra.mxu0 0
      %2672 = vmatprep.mubr.bf16.mxu0 0
      %2673 = vmatmul.mubr.bf16.gmra.mrb[0].mxu0 %v2593
      %v2674 = vpop.f32.mrb[0].mxu0
      %v2675 = vadd.f32 0.0, %v2674
      %v2676 = vpop.f32.mrb[0].mxu0
      %v2677 = vpop.f32.mrb[0].mxu0
      %v2678 = vadd.f32 0.0, %v2677
      %v2679 = vpop.f32.mrb[0].mxu0
      %2680 = vmatprep.mubr.bf16.mxu0 0
      %2681 = vmatmul.mubr.bf16.gmra.mrb[0].mxu0 %v2596
      %v2682 = vpop.f32.mrb[0].mxu0
      %v2683 = vadd.f32 0.0, %v2682
      %v2684 = vpop.f32.mrb[0].mxu0
      %v2685 = vpop.f32.mrb[0].mxu0
      %v2686 = vadd.f32 0.0, %v2685
      %v2687 = vpop.f32.mrb[0].mxu0
      %2688 = vmatprep.mubr.bf16.mxu0 0
      %2689 = vmatmul.mubr.bf16.gmra.mrb[0].mxu0 %v2599
      %v2690 = vpop.f32.mrb[0].mxu0
      %v2691 = vadd.f32 0.0, %v2690
      %v2692 = vpop.f32.mrb[0].mxu0
      %v2693 = vpop.f32.mrb[0].mxu0
      %v2694 = vadd.f32 0.0, %v2693
      %v2695 = vpop.f32.mrb[0].mxu0
      %2696 = vmatprep.mubr.bf16.mxu0 0
      %2697 = vmatmul.mubr.bf16.gmra.mrb[0].mxu0 %v2602
      %v2698 = vpop.f32.mrb[0].mxu0
      %v2699 = vadd.f32 0.0, %v2698
      %v2700 = vpop.f32.mrb[0].mxu0
      %v2701 = vpop.f32.mrb[0].mxu0
      %v2702 = vadd.f32 0.0, %v2701
      %v2703 = vpop.f32.mrb[0].mxu0
      %2704 = vmatprep.mubr.bf16.mxu0 0
      %2705 = vmatmul.mubr.bf16.gmra.mrb[0].mxu0 %v2605
      %v2706 = vpop.f32.mrb[0].mxu0
      %v2707 = vadd.f32 0.0, %v2706
      %v2708 = vpop.f32.mrb[0].mxu0
      %v2709 = vpop.f32.mrb[0].mxu0
      %v2710 = vadd.f32 0.0, %v2709
      %v2711 = vpop.f32.mrb[0].mxu0
      %2712 = vmatprep.mubr.bf16.mxu0 0
      %2713 = vmatmul.mubr.bf16.gmra.mrb[0].mxu0 %v2608
      %v2714 = vpop.f32.mrb[0].mxu0
      %v2715 = vadd.f32 0.0, %v2714
      %v2716 = vpop.f32.mrb[0].mxu0
      %v2717 = vpop.f32.mrb[0].mxu0
      %v2718 = vadd.f32 0.0, %v2717
      %v2719 = vpop.f32.mrb[0].mxu0
      %2720 = vmatprep.mubr.bf16.mxu0 0
      %2721 = vmatmul.mubr.bf16.gmra.mrb[0].mxu0 %v2611
      %v2722 = vpop.f32.mrb[0].mxu0
      %v2723 = vadd.f32 0.0, %v2722
      %v2724 = vpop.f32.mrb[0].mxu0
      %v2725 = vpop.f32.mrb[0].mxu0
      %v2726 = vadd.f32 0.0, %v2725
      %v2727 = vpop.f32.mrb[0].mxu0
      %2728 = vmatprep.mubr.bf16.mxu0 0
      %2729 = vmatmul.mubr.bf16.gmra.mrb[0].mxu0 %v2614
      %v2730 = vpop.f32.mrb[0].mxu0
      %v2731 = vadd.f32 0.0, %v2730
      %v2732 = vpop.f32.mrb[0].mxu0
      %v2733 = vpop.f32.mrb[0].mxu0
      %v2734 = vadd.f32 0.0, %v2733
      %v2735 = vpop.f32.mrb[0].mxu0
      %2736 = vmatprep.mubr.bf16.mxu0 0
      %2737 = vmatmul.mubr.bf16.gmra.mrb[0].mxu0 %v2617
      %v2738 = vpop.f32.mrb[0].mxu0
      %v2739 = vadd.f32 0.0, %v2738
      %v2740 = vpop.f32.mrb[0].mxu0
      %v2741 = vpop.f32.mrb[0].mxu0
      %v2742 = vadd.f32 0.0, %v2741
      %v2743 = vpop.f32.mrb[0].mxu0
      %2744 = vmatprep.mubr.bf16.mxu0 0
      %2745 = vmatmul.mubr.bf16.gmra.mrb[0].mxu0 %v2620
      %v2746 = vpop.f32.mrb[0].mxu0
      %v2747 = vadd.f32 0.0, %v2746
      %v2748 = vpop.f32.mrb[0].mxu0
      %v2749 = vpop.f32.mrb[0].mxu0
      %v2750 = vadd.f32 0.0, %v2749
      %v2751 = vpop.f32.mrb[0].mxu0
      %2752 = vmatprep.mubr.bf16.mxu0 0
      %2753 = vmatmul.mubr.bf16.gmra.mrb[0].mxu0 %v2623
      %v2754 = vpop.f32.mrb[0].mxu0
      %v2755 = vadd.f32 0.0, %v2754
      %v2756 = vpop.f32.mrb[0].mxu0
      %v2757 = vpop.f32.mrb[0].mxu0
      %v2758 = vadd.f32 0.0, %v2757
      %v2759 = vpop.f32.mrb[0].mxu0
      %2760 = vmatprep.mubr.bf16.mxu0 0
      %2761 = vmatmul.mubr.bf16.gmra.mrb[0].mxu0 %v2626
      %v2762 = vpop.f32.mrb[0].mxu0
      %v2763 = vadd.f32 0.0, %v2762
      %v2764 = vpop.f32.mrb[0].mxu0
      %v2765 = vpop.f32.mrb[0].mxu0
      %v2766 = vadd.f32 0.0, %v2765
      %v2767 = vpop.f32.mrb[0].mxu0
      %2768 = vmatprep.mubr.bf16.mxu0 0
      %2769 = vmatmul.mubr.bf16.gmra.mrb[0].mxu0 %v2629
      %v2770 = vpop.f32.mrb[0].mxu0
      %v2771 = vadd.f32 0.0, %v2770
      %v2772 = vpop.f32.mrb[0].mxu0
      %v2773 = vpop.f32.mrb[0].mxu0
      %v2774 = vadd.f32 0.0, %v2773
      %v2775 = vpop.f32.mrb[0].mxu0
      %2776 = vmatprep.mubr.bf16.mxu0 0
      %2777 = vmatmul.mubr.bf16.gmra.mrb[0].mxu0 %v2632
      %v2778 = vpop.f32.mrb[0].mxu0
      %v2779 = vadd.f32 0.0, %v2778
      %v2780 = vpop.f32.mrb[0].mxu0
      %v2781 = vpop.f32.mrb[0].mxu0
      %v2782 = vadd.f32 0.0, %v2781
      %v2783 = vpop.f32.mrb[0].mxu0
      %2784 = vmatprep.mubr.bf16.mxu0 0
      %2785 = vmatmul.mubr.bf16.gmra.mrb[0].mxu0 %v2635
      %v2786 = vpop.f32.mrb[0].mxu0
      %v2787 = vadd.f32 0.0, %v2786
      %v2788 = vpop.f32.mrb[0].mxu0
      %v2789 = vpop.f32.mrb[0].mxu0
      %v2790 = vadd.f32 0.0, %v2789
      %v2791 = vpop.f32.mrb[0].mxu0
      %2792 = vmatprep.mubr.bf16.mxu0 0
      %2793 = vmatmul.mubr.bf16.gmra.mrb[0].mxu0 %v2638
      %v2794 = vpop.f32.mrb[0].mxu0
      %v2795 = vadd.f32 0.0, %v2794
      %v2796 = vpop.f32.mrb[0].mxu0
      %v2797 = vpop.f32.mrb[0].mxu0
      %v2798 = vadd.f32 0.0, %v2797
      %v2799 = vpop.f32.mrb[0].mxu0
      %2800 = vdwg.mxu0
      %v2801 = vadd.f32 %v2460, %v2675
      %v2802 = vadd.f32 %v2461, %v2678
      %v2803 = vadd.f32 %v2462, %v2683
      %v2804 = vadd.f32 %v2463, %v2686
      %v2805 = vadd.f32 %v2464, %v2691
      %v2806 = vadd.f32 %v2465, %v2694
      %v2807 = vadd.f32 %v2466, %v2699
      %v2808 = vadd.f32 %v2467, %v2702
      %v2809 = vadd.f32 %v2468, %v2707
      %v2810 = vadd.f32 %v2469, %v2710
      %v2811 = vadd.f32 %v2470, %v2715
      %v2812 = vadd.f32 %v2471, %v2718
      %v2813 = vadd.f32 %v2472, %v2723
      %v2814 = vadd.f32 %v2473, %v2726
      %v2815 = vadd.f32 %v2474, %v2731
      %v2816 = vadd.f32 %v2475, %v2734
      %v2817 = vadd.f32 %v2476, %v2739
      %v2818 = vadd.f32 %v2477, %v2742
      %v2819 = vadd.f32 %v2478, %v2747
      %v2820 = vadd.f32 %v2479, %v2750
      %v2821 = vadd.f32 %v2480, %v2755
      %v2822 = vadd.f32 %v2481, %v2758
      %v2823 = vadd.f32 %v2482, %v2763
      %v2824 = vadd.f32 %v2483, %v2766
      %v2825 = vadd.f32 %v2484, %v2771
      %v2826 = vadd.f32 %v2485, %v2774
      %v2827 = vadd.f32 %v2486, %v2779
      %v2828 = vadd.f32 %v2487, %v2782
      %v2829 = vadd.f32 %v2488, %v2787
      %v2830 = vadd.f32 %v2489, %v2790
      %v2831 = vadd.f32 %v2490, %v2795
      %v2832 = vadd.f32 %v2491, %v2798
      %v2833 = vld [vmem:[#allocation2 + $0x90] sm:$0x7]
      %s2834 = scalar_lea.vmem %s2, 224
      %v2835 = vld [vmem:[%s2834] sm:$0xf]
      %v2836 = vld [vmem:[%s2834 + $0x4] sm:$0xf]
      %v2837 = vld [vmem:[%s2834 + $0x8] sm:$0xf]
      %v2838 = vld [vmem:[%s2834 + $0xc] sm:$0xf]
      %v2839 = vld [vmem:[%s2834 + $0x10] sm:$0xf]
      %v2840 = vld [vmem:[%s2834 + $0x14] sm:$0xf]
      %v2841 = vld [vmem:[%s2834 + $0x18] sm:$0xf]
      %v2842 = vld [vmem:[%s2834 + $0x1c] sm:$0xf]
      %vm2843 = vsmask.f32 5376
      %v2845 = vshrl.u32 %v2492, 16
      %v2847 = vrot.slane %v2845, 2
      %v2848 = vshll.u32 %v2492, 16
      %v2850 = vrot.slane %v2848, 3
      %v2851 = vor.u32 %v2847, %v2850
      %v2853 = vshrl.u32 %v2493, 16
      %v2855 = vrot.slane %v2853, 2
      %v2856 = vshll.u32 %v2493, 16
      %v2858 = vrot.slane %v2856, 3
      %v2859 = vor.u32 %v2855, %v2858
      %v2860 = vsel %vm2843, %v2851, %v2859
      %v2862 = vshrl.u32 %v2494, 16
      %v2864 = vrot.slane %v2862, 2
      %v2865 = vshll.u32 %v2494, 16
      %v2867 = vrot.slane %v2865, 3
      %v2868 = vor.u32 %v2864, %v2867
      %v2869 = vsel %vm2843, %v2859, %v2868
      %v2871 = vshrl.u32 %v2495, 16
      %v2873 = vrot.slane %v2871, 2
      %v2874 = vshll.u32 %v2495, 16
      %v2876 = vrot.slane %v2874, 3
      %v2877 = vor.u32 %v2873, %v2876
      %v2878 = vsel %vm2843, %v2868, %v2877
      %v2880 = vshrl.u32 %v2496, 16
      %v2882 = vrot.slane %v2880, 2
      %v2883 = vshll.u32 %v2496, 16
      %v2885 = vrot.slane %v2883, 3
      %v2886 = vor.u32 %v2882, %v2885
      %v2887 = vsel %vm2843, %v2877, %v2886
      %v2889 = vshrl.u32 %v2497, 16
      %v2891 = vrot.slane %v2889, 2
      %v2892 = vshll.u32 %v2497, 16
      %v2894 = vrot.slane %v2892, 3
      %v2895 = vor.u32 %v2891, %v2894
      %v2896 = vsel %vm2843, %v2886, %v2895
      %v2898 = vshrl.u32 %v2498, 16
      %v2900 = vrot.slane %v2898, 2
      %v2901 = vshll.u32 %v2498, 16
      %v2903 = vrot.slane %v2901, 3
      %v2904 = vor.u32 %v2900, %v2903
      %v2905 = vsel %vm2843, %v2895, %v2904
      %v2907 = vshrl.u32 %v2499, 16
      %v2909 = vrot.slane %v2907, 2
      %v2910 = vshll.u32 %v2499, 16
      %v2912 = vrot.slane %v2910, 3
      %v2913 = vor.u32 %v2909, %v2912
      %v2914 = vsel %vm2843, %v2904, %v2913
      %v2916 = vshrl.u32 %v2500, 16
      %v2918 = vrot.slane %v2916, 2
      %v2919 = vshll.u32 %v2500, 16
      %v2921 = vrot.slane %v2919, 3
      %v2922 = vor.u32 %v2918, %v2921
      %v2923 = vsel %vm2843, %v2913, %v2922
      %v2925 = vshrl.u32 %v2501, 16
      %v2927 = vrot.slane %v2925, 2
      %v2928 = vshll.u32 %v2501, 16
      %v2930 = vrot.slane %v2928, 3
      %v2931 = vor.u32 %v2927, %v2930
      %v2932 = vsel %vm2843, %v2922, %v2931
      %v2934 = vshrl.u32 %v2502, 16
      %v2936 = vrot.slane %v2934, 2
      %v2937 = vshll.u32 %v2502, 16
      %v2939 = vrot.slane %v2937, 3
      %v2940 = vor.u32 %v2936, %v2939
      %v2941 = vsel %vm2843, %v2931, %v2940
      %v2943 = vshrl.u32 %v2503, 16
      %v2945 = vrot.slane %v2943, 2
      %v2946 = vshll.u32 %v2503, 16
      %v2948 = vrot.slane %v2946, 3
      %v2949 = vor.u32 %v2945, %v2948
      %v2950 = vsel %vm2843, %v2940, %v2949
      %v2952 = vshrl.u32 %v2504, 16
      %v2954 = vrot.slane %v2952, 2
      %v2955 = vshll.u32 %v2504, 16
      %v2957 = vrot.slane %v2955, 3
      %v2958 = vor.u32 %v2954, %v2957
      %v2959 = vsel %vm2843, %v2949, %v2958
      %v2961 = vshrl.u32 %v2505, 16
      %v2963 = vrot.slane %v2961, 2
      %v2964 = vshll.u32 %v2505, 16
      %v2966 = vrot.slane %v2964, 3
      %v2967 = vor.u32 %v2963, %v2966
      %v2968 = vsel %vm2843, %v2958, %v2967
      %v2970 = vshrl.u32 %v2506, 16
      %v2972 = vrot.slane %v2970, 2
      %v2973 = vshll.u32 %v2506, 16
      %v2975 = vrot.slane %v2973, 3
      %v2976 = vor.u32 %v2972, %v2975
      %v2977 = vsel %vm2843, %v2967, %v2976
      %v2979 = vshrl.u32 %v2507, 16
      %v2981 = vrot.slane %v2979, 2
      %v2982 = vshll.u32 %v2507, 16
      %v2984 = vrot.slane %v2982, 3
      %v2985 = vor.u32 %v2981, %v2984
      %v2986 = vsel %vm2843, %v2976, %v2985
      %v2988 = vshrl.u32 %v2833, 16
      %v2990 = vrot.slane %v2988, 2
      %v2991 = vshll.u32 %v2833, 16
      %v2993 = vrot.slane %v2991, 3
      %v2994 = vor.u32 %v2990, %v2993
      %v2995 = vsel %vm2843, %v2985, %v2994
      %v3004 = vunpack.c.l.b16 %v2835
      %v3005 = vunpack.c.l.b16 %v2836
      %v3006 = vunpack.c.l.b16 %v2837
      %v3007 = vunpack.c.l.b16 %v2838
      %v3008 = vunpack.c.l.b16 %v2839
      %v3009 = vunpack.c.l.b16 %v2840
      %v3010 = vunpack.c.l.b16 %v2841
      %v3011 = vunpack.c.l.b16 %v2842
      %v3012 = vpack.c.b16 %v3005, %v3004
      %v3013 = vpack.c.b16 %v3007, %v3006
      %v3014 = vpack.c.b16 %v3009, %v3008
      %v3015 = vpack.c.b16 %v3011, %v3010
      %v3021 = vsel %vm416, %v2860, 0
      %v3024 = vsel %vm416, %v2869, 0
      %v3027 = vsel %vm416, %v2878, 0
      %v3030 = vsel %vm416, %v2887, 0
      %v3033 = vsel %vm416, %v2896, 0
      %v3036 = vsel %vm416, %v2905, 0
      %v3039 = vsel %vm416, %v2914, 0
      %v3042 = vsel %vm416, %v2923, 0
      %v3045 = vsel %vm416, %v2932, 0
      %v3048 = vsel %vm416, %v2941, 0
      %v3051 = vsel %vm416, %v2950, 0
      %v3054 = vsel %vm416, %v2959, 0
      %v3057 = vsel %vm416, %v2968, 0
      %v3060 = vsel %vm416, %v2977, 0
      %v3063 = vsel %vm416, %v2986, 0
      %v3066 = vsel %vm416, %v2995, 0
      %3068 = vmatprep.subr.bf16.mxu0 0
      %3069 = vmatpush1.bf16.msra.mxu0 %v3012
      %3070 = vmatprep.subr.bf16.mxu0 0
      %3071 = vmatpush1.bf16.msra.mxu0 %v3013
      %3072 = vmatprep.subr.bf16.mxu0 0
      %3073 = vmatpush1.bf16.msra.mxu0 %v3014
      %3074 = vmatprep.subr.bf16.mxu0 0
      %3075 = vmatpush1.bf16.msra.mxu0 %v3015
      %3076 = vmatprep.subr.bf16.mxu0 0
      %3077 = vmatpush1.bf16.msra.mxu0 0
      %3078 = vmatprep.subr.bf16.mxu0 0
      %3079 = vmatpush1.bf16.msra.mxu0 0
      %3080 = vmatprep.subr.bf16.mxu0 0
      %3081 = vmatpush1.bf16.msra.mxu0 0
      %3082 = vmatprep.subr.bf16.mxu0 0
      %3083 = vmatpush1.bf16.msra.mxu0 0
      %3084 = vmatprep.subr.bf16.mxu0 0
      %3085 = vmatpush1.bf16.msra.mxu0 0
      %3086 = vmatprep.subr.bf16.mxu0 0
      %3087 = vmatpush1.bf16.msra.mxu0 0
      %3088 = vmatprep.subr.bf16.mxu0 0
      %3089 = vmatpush1.bf16.msra.mxu0 0
      %3090 = vmatprep.subr.bf16.mxu0 0
      %3091 = vmatpush1.bf16.msra.mxu0 0
      %3092 = vmatprep.subr.bf16.mxu0 0
      %3093 = vmatpush1.bf16.msra.mxu0 0
      %3094 = vmatprep.subr.bf16.mxu0 0
      %3095 = vmatpush1.bf16.msra.mxu0 0
      %3096 = vmatprep.subr.bf16.mxu0 0
      %3097 = vmatpush1.bf16.msra.mxu0 0
      %3098 = vmatprep.subr.bf16.mxu0 0
      %3099 = vmatpush1.bf16.msra.mxu0 0
      %3100 = vmatprep.mubr.bf16.mxu0 0
      %3101 = vmatmul.mubr.bf16.gmra.mrb[0].mxu0 %v3021
      %v3102 = vpop.f32.mrb[0].mxu0
      %v3103 = vadd.f32 0.0, %v3102
      %v3104 = vpop.f32.mrb[0].mxu0
      %v3105 = vpop.f32.mrb[0].mxu0
      %v3106 = vadd.f32 0.0, %v3105
      %v3107 = vpop.f32.mrb[0].mxu0
      %3108 = vmatprep.mubr.bf16.mxu0 0
      %3109 = vmatmul.mubr.bf16.gmra.mrb[0].mxu0 %v3024
      %v3110 = vpop.f32.mrb[0].mxu0
      %v3111 = vadd.f32 0.0, %v3110
      %v3112 = vpop.f32.mrb[0].mxu0
      %v3113 = vpop.f32.mrb[0].mxu0
      %v3114 = vadd.f32 0.0, %v3113
      %v3115 = vpop.f32.mrb[0].mxu0
      %3116 = vmatprep.mubr.bf16.mxu0 0
      %3117 = vmatmul.mubr.bf16.gmra.mrb[0].mxu0 %v3027
      %v3118 = vpop.f32.mrb[0].mxu0
      %v3119 = vadd.f32 0.0, %v3118
      %v3120 = vpop.f32.mrb[0].mxu0
      %v3121 = vpop.f32.mrb[0].mxu0
      %v3122 = vadd.f32 0.0, %v3121
      %v3123 = vpop.f32.mrb[0].mxu0
      %3124 = vmatprep.mubr.bf16.mxu0 0
      %3125 = vmatmul.mubr.bf16.gmra.mrb[0].mxu0 %v3030
      %v3126 = vpop.f32.mrb[0].mxu0
      %v3127 = vadd.f32 0.0, %v3126
      %v3128 = vpop.f32.mrb[0].mxu0
      %v3129 = vpop.f32.mrb[0].mxu0
      %v3130 = vadd.f32 0.0, %v3129
      %v3131 = vpop.f32.mrb[0].mxu0
      %3132 = vmatprep.mubr.bf16.mxu0 0
      %3133 = vmatmul.mubr.bf16.gmra.mrb[0].mxu0 %v3033
      %v3134 = vpop.f32.mrb[0].mxu0
      %v3135 = vadd.f32 0.0, %v3134
      %v3136 = vpop.f32.mrb[0].mxu0
      %v3137 = vpop.f32.mrb[0].mxu0
      %v3138 = vadd.f32 0.0, %v3137
      %v3139 = vpop.f32.mrb[0].mxu0
      %3140 = vmatprep.mubr.bf16.mxu0 0
      %3141 = vmatmul.mubr.bf16.gmra.mrb[0].mxu0 %v3036
      %v3142 = vpop.f32.mrb[0].mxu0
      %v3143 = vadd.f32 0.0, %v3142
      %v3144 = vpop.f32.mrb[0].mxu0
      %v3145 = vpop.f32.mrb[0].mxu0
      %v3146 = vadd.f32 0.0, %v3145
      %v3147 = vpop.f32.mrb[0].mxu0
      %3148 = vmatprep.mubr.bf16.mxu0 0
      %3149 = vmatmul.mubr.bf16.gmra.mrb[0].mxu0 %v3039
      %v3150 = vpop.f32.mrb[0].mxu0
      %v3151 = vadd.f32 0.0, %v3150
      %v3152 = vpop.f32.mrb[0].mxu0
      %v3153 = vpop.f32.mrb[0].mxu0
      %v3154 = vadd.f32 0.0, %v3153
      %v3155 = vpop.f32.mrb[0].mxu0
      %3156 = vmatprep.mubr.bf16.mxu0 0
      %3157 = vmatmul.mubr.bf16.gmra.mrb[0].mxu0 %v3042
      %v3158 = vpop.f32.mrb[0].mxu0
      %v3159 = vadd.f32 0.0, %v3158
      %v3160 = vpop.f32.mrb[0].mxu0
      %v3161 = vpop.f32.mrb[0].mxu0
      %v3162 = vadd.f32 0.0, %v3161
      %v3163 = vpop.f32.mrb[0].mxu0
      %3164 = vmatprep.mubr.bf16.mxu0 0
      %3165 = vmatmul.mubr.bf16.gmra.mrb[0].mxu0 %v3045
      %v3166 = vpop.f32.mrb[0].mxu0
      %v3167 = vadd.f32 0.0, %v3166
      %v3168 = vpop.f32.mrb[0].mxu0
      %v3169 = vpop.f32.mrb[0].mxu0
      %v3170 = vadd.f32 0.0, %v3169
      %v3171 = vpop.f32.mrb[0].mxu0
      %3172 = vmatprep.mubr.bf16.mxu0 0
      %3173 = vmatmul.mubr.bf16.gmra.mrb[0].mxu0 %v3048
      %v3174 = vpop.f32.mrb[0].mxu0
      %v3175 = vadd.f32 0.0, %v3174
      %v3176 = vpop.f32.mrb[0].mxu0
      %v3177 = vpop.f32.mrb[0].mxu0
      %v3178 = vadd.f32 0.0, %v3177
      %v3179 = vpop.f32.mrb[0].mxu0
      %3180 = vmatprep.mubr.bf16.mxu0 0
      %3181 = vmatmul.mubr.bf16.gmra.mrb[0].mxu0 %v3051
      %v3182 = vpop.f32.mrb[0].mxu0
      %v3183 = vadd.f32 0.0, %v3182
      %v3184 = vpop.f32.mrb[0].mxu0
      %v3185 = vpop.f32.mrb[0].mxu0
      %v3186 = vadd.f32 0.0, %v3185
      %v3187 = vpop.f32.mrb[0].mxu0
      %3188 = vmatprep.mubr.bf16.mxu0 0
      %3189 = vmatmul.mubr.bf16.gmra.mrb[0].mxu0 %v3054
      %v3190 = vpop.f32.mrb[0].mxu0
      %v3191 = vadd.f32 0.0, %v3190
      %v3192 = vpop.f32.mrb[0].mxu0
      %v3193 = vpop.f32.mrb[0].mxu0
      %v3194 = vadd.f32 0.0, %v3193
      %v3195 = vpop.f32.mrb[0].mxu0
      %3196 = vmatprep.mubr.bf16.mxu0 0
      %3197 = vmatmul.mubr.bf16.gmra.mrb[0].mxu0 %v3057
      %v3198 = vpop.f32.mrb[0].mxu0
      %v3199 = vadd.f32 0.0, %v3198
      %v3200 = vpop.f32.mrb[0].mxu0
      %v3201 = vpop.f32.mrb[0].mxu0
      %v3202 = vadd.f32 0.0, %v3201
      %v3203 = vpop.f32.mrb[0].mxu0
      %3204 = vmatprep.mubr.bf16.mxu0 0
      %3205 = vmatmul.mubr.bf16.gmra.mrb[0].mxu0 %v3060
      %v3206 = vpop.f32.mrb[0].mxu0
      %v3207 = vadd.f32 0.0, %v3206
      %v3208 = vpop.f32.mrb[0].mxu0
      %v3209 = vpop.f32.mrb[0].mxu0
      %v3210 = vadd.f32 0.0, %v3209
      %v3211 = vpop.f32.mrb[0].mxu0
      %3212 = vmatprep.mubr.bf16.mxu0 0
      %3213 = vmatmul.mubr.bf16.gmra.mrb[0].mxu0 %v3063
      %v3214 = vpop.f32.mrb[0].mxu0
      %v3215 = vadd.f32 0.0, %v3214
      %v3216 = vpop.f32.mrb[0].mxu0
      %v3217 = vpop.f32.mrb[0].mxu0
      %v3218 = vadd.f32 0.0, %v3217
      %v3219 = vpop.f32.mrb[0].mxu0
      %3220 = vmatprep.mubr.bf16.mxu0 0
      %3221 = vmatmul.mubr.bf16.gmra.mrb[0].mxu0 %v3066
      %v3222 = vpop.f32.mrb[0].mxu0
      %v3223 = vadd.f32 0.0, %v3222
      %v3224 = vpop.f32.mrb[0].mxu0
      %v3225 = vpop.f32.mrb[0].mxu0
      %v3226 = vadd.f32 0.0, %v3225
      %v3227 = vpop.f32.mrb[0].mxu0
      %3228 = vdwg.mxu0
      %v3229 = vadd.f32 %v2801, %v3103
      %v3230 = vadd.f32 %v2802, %v3106
      %v3231 = vadd.f32 %v2803, %v3111
      %v3232 = vadd.f32 %v2804, %v3114
      %v3233 = vadd.f32 %v2805, %v3119
      %v3234 = vadd.f32 %v2806, %v3122
      %v3235 = vadd.f32 %v2807, %v3127
      %v3236 = vadd.f32 %v2808, %v3130
      %v3237 = vadd.f32 %v2809, %v3135
      %v3238 = vadd.f32 %v2810, %v3138
      %v3239 = vadd.f32 %v2811, %v3143
      %v3240 = vadd.f32 %v2812, %v3146
      %v3241 = vadd.f32 %v2813, %v3151
      %v3242 = vadd.f32 %v2814, %v3154
      %v3243 = vadd.f32 %v2815, %v3159
      %v3244 = vadd.f32 %v2816, %v3162
      %v3245 = vadd.f32 %v2817, %v3167
      %v3246 = vadd.f32 %v2818, %v3170
      %v3247 = vadd.f32 %v2819, %v3175
      %v3248 = vadd.f32 %v2820, %v3178
      %v3249 = vadd.f32 %v2821, %v3183
      %v3250 = vadd.f32 %v2822, %v3186
      %v3251 = vadd.f32 %v2823, %v3191
      %v3252 = vadd.f32 %v2824, %v3194
      %v3253 = vadd.f32 %v2825, %v3199
      %v3254 = vadd.f32 %v2826, %v3202
      %v3255 = vadd.f32 %v2827, %v3207
      %v3256 = vadd.f32 %v2828, %v3210
      %v3257 = vadd.f32 %v2829, %v3215
      %v3258 = vadd.f32 %v2830, %v3218
      %v3259 = vadd.f32 %v2831, %v3223
      %v3260 = vadd.f32 %v2832, %v3226
      %v3261 = vld [vmem:[#allocation2 + $0x10] sm:$0xf8]
      %s3262 = scalar_lea.vmem %s2, 256
      %v3263 = vld [vmem:[%s3262] sm:$0xf]
      %v3264 = vld [vmem:[%s3262 + $0x4] sm:$0xf]
      %v3265 = vld [vmem:[%s3262 + $0x8] sm:$0xf]
      %v3266 = vld [vmem:[%s3262 + $0xc] sm:$0xf]
      %v3267 = vld [vmem:[%s3262 + $0x10] sm:$0xf]
      %v3268 = vld [vmem:[%s3262 + $0x14] sm:$0xf]
      %v3269 = vld [vmem:[%s3262 + $0x18] sm:$0xf]
      %v3270 = vld [vmem:[%s3262 + $0x1c] sm:$0xf]
      %vm3273 = vcmask 1044480
      %v3274 = vrot.slane %v3261, 3
      %v3275 = vrot.slane %v2493, 3
      %v3276 = vsel %vm3273, %v3274, %v3275
      %v3277 = vrot.slane %v2494, 3
      %v3278 = vsel %vm3273, %v3275, %v3277
      %v3279 = vrot.slane %v2495, 3
      %v3280 = vsel %vm3273, %v3277, %v3279
      %v3281 = vrot.slane %v2496, 3
      %v3282 = vsel %vm3273, %v3279, %v3281
      %v3283 = vrot.slane %v2497, 3
      %v3284 = vsel %vm3273, %v3281, %v3283
      %v3285 = vrot.slane %v2498, 3
      %v3286 = vsel %vm3273, %v3283, %v3285
      %v3287 = vrot.slane %v2499, 3
      %v3288 = vsel %vm3273, %v3285, %v3287
      %v3289 = vrot.slane %v2500, 3
      %v3290 = vsel %vm3273, %v3287, %v3289
      %v3291 = vrot.slane %v2501, 3
      %v3292 = vsel %vm3273, %v3289, %v3291
      %v3293 = vrot.slane %v2502, 3
      %v3294 = vsel %vm3273, %v3291, %v3293
      %v3295 = vrot.slane %v2503, 3
      %v3296 = vsel %vm3273, %v3293, %v3295
      %v3297 = vrot.slane %v2504, 3
      %v3298 = vsel %vm3273, %v3295, %v3297
      %v3299 = vrot.slane %v2505, 3
      %v3300 = vsel %vm3273, %v3297, %v3299
      %v3301 = vrot.slane %v2506, 3
      %v3302 = vsel %vm3273, %v3299, %v3301
      %v3303 = vrot.slane %v2507, 3
      %v3304 = vsel %vm3273, %v3301, %v3303
      %v3305 = vrot.slane %v2833, 3
      %v3306 = vsel %vm3273, %v3303, %v3305
      %v3315 = vunpack.c.l.b16 %v3263
      %v3316 = vunpack.c.l.b16 %v3264
      %v3317 = vunpack.c.l.b16 %v3265
      %v3318 = vunpack.c.l.b16 %v3266
      %v3319 = vunpack.c.l.b16 %v3267
      %v3320 = vunpack.c.l.b16 %v3268
      %v3321 = vunpack.c.l.b16 %v3269
      %v3322 = vunpack.c.l.b16 %v3270
      %v3323 = vpack.c.b16 %v3316, %v3315
      %v3324 = vpack.c.b16 %v3318, %v3317
      %v3325 = vpack.c.b16 %v3320, %v3319
      %v3326 = vpack.c.b16 %v3322, %v3321
      %v3332 = vsel %vm416, %v3276, 0
      %v3335 = vsel %vm416, %v3278, 0
      %v3338 = vsel %vm416, %v3280, 0
      %v3341 = vsel %vm416, %v3282, 0
      %v3344 = vsel %vm416, %v3284, 0
      %v3347 = vsel %vm416, %v3286, 0
      %v3350 = vsel %vm416, %v3288, 0
      %v3353 = vsel %vm416, %v3290, 0
      %v3356 = vsel %vm416, %v3292, 0
      %v3359 = vsel %vm416, %v3294, 0
      %v3362 = vsel %vm416, %v3296, 0
      %v3365 = vsel %vm416, %v3298, 0
      %v3368 = vsel %vm416, %v3300, 0
      %v3371 = vsel %vm416, %v3302, 0
      %v3374 = vsel %vm416, %v3304, 0
      %v3377 = vsel %vm416, %v3306, 0
      %3379 = vmatprep.subr.bf16.mxu0 0
      %3380 = vmatpush1.bf16.msra.mxu0 %v3323
      %3381 = vmatprep.subr.bf16.mxu0 0
      %3382 = vmatpush1.bf16.msra.mxu0 %v3324
      %3383 = vmatprep.subr.bf16.mxu0 0
      %3384 = vmatpush1.bf16.msra.mxu0 %v3325
      %3385 = vmatprep.subr.bf16.mxu0 0
      %3386 = vmatpush1.bf16.msra.mxu0 %v3326
      %3387 = vmatprep.subr.bf16.mxu0 0
      %3388 = vmatpush1.bf16.msra.mxu0 0
      %3389 = vmatprep.subr.bf16.mxu0 0
      %3390 = vmatpush1.bf16.msra.mxu0 0
      %3391 = vmatprep.subr.bf16.mxu0 0
      %3392 = vmatpush1.bf16.msra.mxu0 0
      %3393 = vmatprep.subr.bf16.mxu0 0
      %3394 = vmatpush1.bf16.msra.mxu0 0
      %3395 = vmatprep.subr.bf16.mxu0 0
      %3396 = vmatpush1.bf16.msra.mxu0 0
      %3397 = vmatprep.subr.bf16.mxu0 0
      %3398 = vmatpush1.bf16.msra.mxu0 0
      %3399 = vmatprep.subr.bf16.mxu0 0
      %3400 = vmatpush1.bf16.msra.mxu0 0
      %3401 = vmatprep.subr.bf16.mxu0 0
      %3402 = vmatpush1.bf16.msra.mxu0 0
      %3403 = vmatprep.subr.bf16.mxu0 0
      %3404 = vmatpush1.bf16.msra.mxu0 0
      %3405 = vmatprep.subr.bf16.mxu0 0
      %3406 = vmatpush1.bf16.msra.mxu0 0
      %3407 = vmatprep.subr.bf16.mxu0 0
      %3408 = vmatpush1.bf16.msra.mxu0 0
      %3409 = vmatprep.subr.bf16.mxu0 0
      %3410 = vmatpush1.bf16.msra.mxu0 0
      %3411 = vmatprep.mubr.bf16.mxu0 0
      %3412 = vmatmul.mubr.bf16.gmra.mrb[0].mxu0 %v3332
      %v3413 = vpop.f32.mrb[0].mxu0
      %v3414 = vadd.f32 0.0, %v3413
      %v3415 = vpop.f32.mrb[0].mxu0
      %v3416 = vpop.f32.mrb[0].mxu0
      %v3417 = vadd.f32 0.0, %v3416
      %v3418 = vpop.f32.mrb[0].mxu0
      %3419 = vmatprep.mubr.bf16.mxu0 0
      %3420 = vmatmul.mubr.bf16.gmra.mrb[0].mxu0 %v3335
      %v3421 = vpop.f32.mrb[0].mxu0
      %v3422 = vadd.f32 0.0, %v3421
      %v3423 = vpop.f32.mrb[0].mxu0
      %v3424 = vpop.f32.mrb[0].mxu0
      %v3425 = vadd.f32 0.0, %v3424
      %v3426 = vpop.f32.mrb[0].mxu0
      %3427 = vmatprep.mubr.bf16.mxu0 0
      %3428 = vmatmul.mubr.bf16.gmra.mrb[0].mxu0 %v3338
      %v3429 = vpop.f32.mrb[0].mxu0
      %v3430 = vadd.f32 0.0, %v3429
      %v3431 = vpop.f32.mrb[0].mxu0
      %v3432 = vpop.f32.mrb[0].mxu0
      %v3433 = vadd.f32 0.0, %v3432
      %v3434 = vpop.f32.mrb[0].mxu0
      %3435 = vmatprep.mubr.bf16.mxu0 0
      %3436 = vmatmul.mubr.bf16.gmra.mrb[0].mxu0 %v3341
      %v3437 = vpop.f32.mrb[0].mxu0
      %v3438 = vadd.f32 0.0, %v3437
      %v3439 = vpop.f32.mrb[0].mxu0
      %v3440 = vpop.f32.mrb[0].mxu0
      %v3441 = vadd.f32 0.0, %v3440
      %v3442 = vpop.f32.mrb[0].mxu0
      %3443 = vmatprep.mubr.bf16.mxu0 0
      %3444 = vmatmul.mubr.bf16.gmra.mrb[0].mxu0 %v3344
      %v3445 = vpop.f32.mrb[0].mxu0
      %v3446 = vadd.f32 0.0, %v3445
      %v3447 = vpop.f32.mrb[0].mxu0
      %v3448 = vpop.f32.mrb[0].mxu0
      %v3449 = vadd.f32 0.0, %v3448
      %v3450 = vpop.f32.mrb[0].mxu0
      %3451 = vmatprep.mubr.bf16.mxu0 0
      %3452 = vmatmul.mubr.bf16.gmra.mrb[0].mxu0 %v3347
      %v3453 = vpop.f32.mrb[0].mxu0
      %v3454 = vadd.f32 0.0, %v3453
      %v3455 = vpop.f32.mrb[0].mxu0
      %v3456 = vpop.f32.mrb[0].mxu0
      %v3457 = vadd.f32 0.0, %v3456
      %v3458 = vpop.f32.mrb[0].mxu0
      %3459 = vmatprep.mubr.bf16.mxu0 0
      %3460 = vmatmul.mubr.bf16.gmra.mrb[0].mxu0 %v3350
      %v3461 = vpop.f32.mrb[0].mxu0
      %v3462 = vadd.f32 0.0, %v3461
      %v3463 = vpop.f32.mrb[0].mxu0
      %v3464 = vpop.f32.mrb[0].mxu0
      %v3465 = vadd.f32 0.0, %v3464
      %v3466 = vpop.f32.mrb[0].mxu0
      %3467 = vmatprep.mubr.bf16.mxu0 0
      %3468 = vmatmul.mubr.bf16.gmra.mrb[0].mxu0 %v3353
      %v3469 = vpop.f32.mrb[0].mxu0
      %v3470 = vadd.f32 0.0, %v3469
      %v3471 = vpop.f32.mrb[0].mxu0
      %v3472 = vpop.f32.mrb[0].mxu0
      %v3473 = vadd.f32 0.0, %v3472
      %v3474 = vpop.f32.mrb[0].mxu0
      %3475 = vmatprep.mubr.bf16.mxu0 0
      %3476 = vmatmul.mubr.bf16.gmra.mrb[0].mxu0 %v3356
      %v3477 = vpop.f32.mrb[0].mxu0
      %v3478 = vadd.f32 0.0, %v3477
      %v3479 = vpop.f32.mrb[0].mxu0
      %v3480 = vpop.f32.mrb[0].mxu0
      %v3481 = vadd.f32 0.0, %v3480
      %v3482 = vpop.f32.mrb[0].mxu0
      %3483 = vmatprep.mubr.bf16.mxu0 0
      %3484 = vmatmul.mubr.bf16.gmra.mrb[0].mxu0 %v3359
      %v3485 = vpop.f32.mrb[0].mxu0
      %v3486 = vadd.f32 0.0, %v3485
      %v3487 = vpop.f32.mrb[0].mxu0
      %v3488 = vpop.f32.mrb[0].mxu0
      %v3489 = vadd.f32 0.0, %v3488
      %v3490 = vpop.f32.mrb[0].mxu0
      %3491 = vmatprep.mubr.bf16.mxu0 0
      %3492 = vmatmul.mubr.bf16.gmra.mrb[0].mxu0 %v3362
      %v3493 = vpop.f32.mrb[0].mxu0
      %v3494 = vadd.f32 0.0, %v3493
      %v3495 = vpop.f32.mrb[0].mxu0
      %v3496 = vpop.f32.mrb[0].mxu0
      %v3497 = vadd.f32 0.0, %v3496
      %v3498 = vpop.f32.mrb[0].mxu0
      %3499 = vmatprep.mubr.bf16.mxu0 0
      %3500 = vmatmul.mubr.bf16.gmra.mrb[0].mxu0 %v3365
      %v3501 = vpop.f32.mrb[0].mxu0
      %v3502 = vadd.f32 0.0, %v3501
      %v3503 = vpop.f32.mrb[0].mxu0
      %v3504 = vpop.f32.mrb[0].mxu0
      %v3505 = vadd.f32 0.0, %v3504
      %v3506 = vpop.f32.mrb[0].mxu0
      %3507 = vmatprep.mubr.bf16.mxu0 0
      %3508 = vmatmul.mubr.bf16.gmra.mrb[0].mxu0 %v3368
      %v3509 = vpop.f32.mrb[0].mxu0
      %v3510 = vadd.f32 0.0, %v3509
      %v3511 = vpop.f32.mrb[0].mxu0
      %v3512 = vpop.f32.mrb[0].mxu0
      %v3513 = vadd.f32 0.0, %v3512
      %v3514 = vpop.f32.mrb[0].mxu0
      %3515 = vmatprep.mubr.bf16.mxu0 0
      %3516 = vmatmul.mubr.bf16.gmra.mrb[0].mxu0 %v3371
      %v3517 = vpop.f32.mrb[0].mxu0
      %v3518 = vadd.f32 0.0, %v3517
      %v3519 = vpop.f32.mrb[0].mxu0
      %v3520 = vpop.f32.mrb[0].mxu0
      %v3521 = vadd.f32 0.0, %v3520
      %v3522 = vpop.f32.mrb[0].mxu0
      %3523 = vmatprep.mubr.bf16.mxu0 0
      %3524 = vmatmul.mubr.bf16.gmra.mrb[0].mxu0 %v3374
      %v3525 = vpop.f32.mrb[0].mxu0
      %v3526 = vadd.f32 0.0, %v3525
      %v3527 = vpop.f32.mrb[0].mxu0
      %v3528 = vpop.f32.mrb[0].mxu0
      %v3529 = vadd.f32 0.0, %v3528
      %v3530 = vpop.f32.mrb[0].mxu0
      %3531 = vmatprep.mubr.bf16.mxu0 0
      %3532 = vmatmul.mubr.bf16.gmra.mrb[0].mxu0 %v3377
      %v3533 = vpop.f32.mrb[0].mxu0
      %v3534 = vadd.f32 0.0, %v3533
      %v3535 = vpop.f32.mrb[0].mxu0
      %v3536 = vpop.f32.mrb[0].mxu0
      %v3537 = vadd.f32 0.0, %v3536
      %v3538 = vpop.f32.mrb[0].mxu0
      %3539 = vdwg.mxu0
      %v3540 = vadd.f32 %v3229, %v3414
      %v3541 = vadd.f32 %v3230, %v3417
      %v3542 = vadd.f32 %v3231, %v3422
      %v3543 = vadd.f32 %v3232, %v3425
      %v3544 = vadd.f32 %v3233, %v3430
      %v3545 = vadd.f32 %v3234, %v3433
      %v3546 = vadd.f32 %v3235, %v3438
      %v3547 = vadd.f32 %v3236, %v3441
      %v3548 = vadd.f32 %v3237, %v3446
      %v3549 = vadd.f32 %v3238, %v3449
      %v3550 = vadd.f32 %v3239, %v3454
      %v3551 = vadd.f32 %v3240, %v3457
      %v3552 = vadd.f32 %v3241, %v3462
      %v3553 = vadd.f32 %v3242, %v3465
      %v3554 = vadd.f32 %v3243, %v3470
      %v3555 = vadd.f32 %v3244, %v3473
      %v3556 = vadd.f32 %v3245, %v3478
      %v3557 = vadd.f32 %v3246, %v3481
      %v3558 = vadd.f32 %v3247, %v3486
      %v3559 = vadd.f32 %v3248, %v3489
      %v3560 = vadd.f32 %v3249, %v3494
      %v3561 = vadd.f32 %v3250, %v3497
      %v3562 = vadd.f32 %v3251, %v3502
      %v3563 = vadd.f32 %v3252, %v3505
      %v3564 = vadd.f32 %v3253, %v3510
      %v3565 = vadd.f32 %v3254, %v3513
      %v3566 = vadd.f32 %v3255, %v3518
      %v3567 = vadd.f32 %v3256, %v3521
      %v3568 = vadd.f32 %v3257, %v3526
      %v3569 = vadd.f32 %v3258, %v3529
      %v3570 = vadd.f32 %v3259, %v3534
      %v3571 = vadd.f32 %v3260, %v3537
      %v3572 = vld [vmem:[%s3] sm:$0x1]
      %v3574 = vlaneseq
      %v3575 = vshrl.u32 %v3574, 7
      %v3576 = vsub.s32 0, %v3575
      %v3577 = vrot.slane %v3572, %v3576
      %v3579 = vadd.f32 %v3540, %v3577
      %v3580 = vadd.f32 %v3541, %v3577
      %v3581 = vadd.f32 %v3542, %v3577
      %v3582 = vadd.f32 %v3543, %v3577
      %v3583 = vadd.f32 %v3544, %v3577
      %v3584 = vadd.f32 %v3545, %v3577
      %v3585 = vadd.f32 %v3546, %v3577
      %v3586 = vadd.f32 %v3547, %v3577
      %v3587 = vadd.f32 %v3548, %v3577
      %v3588 = vadd.f32 %v3549, %v3577
      %v3589 = vadd.f32 %v3550, %v3577
      %v3590 = vadd.f32 %v3551, %v3577
      %v3591 = vadd.f32 %v3552, %v3577
      %v3592 = vadd.f32 %v3553, %v3577
      %v3593 = vadd.f32 %v3554, %v3577
      %v3594 = vadd.f32 %v3555, %v3577
      %v3595 = vadd.f32 %v3556, %v3577
      %v3596 = vadd.f32 %v3557, %v3577
      %v3597 = vadd.f32 %v3558, %v3577
      %v3598 = vadd.f32 %v3559, %v3577
      %v3599 = vadd.f32 %v3560, %v3577
      %v3600 = vadd.f32 %v3561, %v3577
      %v3601 = vadd.f32 %v3562, %v3577
      %v3602 = vadd.f32 %v3563, %v3577
      %v3603 = vadd.f32 %v3564, %v3577
      %v3604 = vadd.f32 %v3565, %v3577
      %v3605 = vadd.f32 %v3566, %v3577
      %v3606 = vadd.f32 %v3567, %v3577
      %v3607 = vadd.f32 %v3568, %v3577
      %v3608 = vadd.f32 %v3569, %v3577
      %v3609 = vadd.f32 %v3570, %v3577
      %v3610 = vadd.f32 %v3571, %v3577
      %v3611 = vmax.f32 %v3579, 0.0
      %v3612 = vmax.f32 %v3580, 0.0
      %v3613 = vmax.f32 %v3581, 0.0
      %v3614 = vmax.f32 %v3582, 0.0
      %v3615 = vmax.f32 %v3583, 0.0
      %v3616 = vmax.f32 %v3584, 0.0
      %v3617 = vmax.f32 %v3585, 0.0
      %v3618 = vmax.f32 %v3586, 0.0
      %v3619 = vmax.f32 %v3587, 0.0
      %v3620 = vmax.f32 %v3588, 0.0
      %v3621 = vmax.f32 %v3589, 0.0
      %v3622 = vmax.f32 %v3590, 0.0
      %v3623 = vmax.f32 %v3591, 0.0
      %v3624 = vmax.f32 %v3592, 0.0
      %v3625 = vmax.f32 %v3593, 0.0
      %v3626 = vmax.f32 %v3594, 0.0
      %v3627 = vmax.f32 %v3595, 0.0
      %v3628 = vmax.f32 %v3596, 0.0
      %v3629 = vmax.f32 %v3597, 0.0
      %v3630 = vmax.f32 %v3598, 0.0
      %v3631 = vmax.f32 %v3599, 0.0
      %v3632 = vmax.f32 %v3600, 0.0
      %v3633 = vmax.f32 %v3601, 0.0
      %v3634 = vmax.f32 %v3602, 0.0
      %v3635 = vmax.f32 %v3603, 0.0
      %v3636 = vmax.f32 %v3604, 0.0
      %v3637 = vmax.f32 %v3605, 0.0
      %v3638 = vmax.f32 %v3606, 0.0
      %v3639 = vmax.f32 %v3607, 0.0
      %v3640 = vmax.f32 %v3608, 0.0
      %v3641 = vmax.f32 %v3609, 0.0
      %v3642 = vmax.f32 %v3610, 0.0
      %v3643 = vpack.c.bf16 %v3612, %v3611
      %v3644 = vpack.c.bf16 %v3614, %v3613
      %v3645 = vpack.c.bf16 %v3616, %v3615
      %v3646 = vpack.c.bf16 %v3618, %v3617
      %v3647 = vpack.c.bf16 %v3620, %v3619
      %v3648 = vpack.c.bf16 %v3622, %v3621
      %v3649 = vpack.c.bf16 %v3624, %v3623
      %v3650 = vpack.c.bf16 %v3626, %v3625
      %v3651 = vpack.c.bf16 %v3628, %v3627
      %v3652 = vpack.c.bf16 %v3630, %v3629
      %v3653 = vpack.c.bf16 %v3632, %v3631
      %v3654 = vpack.c.bf16 %v3634, %v3633
      %v3655 = vpack.c.bf16 %v3636, %v3635
      %v3656 = vpack.c.bf16 %v3638, %v3637
      %v3657 = vpack.c.bf16 %v3640, %v3639
      %v3658 = vpack.c.bf16 %v3642, %v3641
      %v3675 = vunpack.c.l.b16 %v3643
      %v3676 = vunpack.c.h.b16 %v3643
      %v3677 = vunpack.c.l.b16 %v3644
      %v3678 = vunpack.c.h.b16 %v3644
      %v3679 = vunpack.c.l.b16 %v3645
      %v3680 = vunpack.c.h.b16 %v3645
      %v3681 = vunpack.c.l.b16 %v3646
      %v3682 = vunpack.c.h.b16 %v3646
      %v3683 = vunpack.c.l.b16 %v3647
      %v3684 = vunpack.c.h.b16 %v3647
      %v3685 = vunpack.c.l.b16 %v3648
      %v3686 = vunpack.c.h.b16 %v3648
      %v3687 = vunpack.c.l.b16 %v3649
      %v3688 = vunpack.c.h.b16 %v3649
      %v3689 = vunpack.c.l.b16 %v3650
      %v3690 = vunpack.c.h.b16 %v3650
      %v3691 = vunpack.c.l.b16 %v3651
      %v3692 = vunpack.c.h.b16 %v3651
      %v3693 = vunpack.c.l.b16 %v3652
      %v3694 = vunpack.c.h.b16 %v3652
      %v3695 = vunpack.c.l.b16 %v3653
      %v3696 = vunpack.c.h.b16 %v3653
      %v3697 = vunpack.c.l.b16 %v3654
      %v3698 = vunpack.c.h.b16 %v3654
      %v3699 = vunpack.c.l.b16 %v3655
      %v3700 = vunpack.c.h.b16 %v3655
      %v3701 = vunpack.c.l.b16 %v3656
      %v3702 = vunpack.c.h.b16 %v3656
      %v3703 = vunpack.c.l.b16 %v3657
      %v3704 = vunpack.c.h.b16 %v3657
      %v3705 = vunpack.c.l.b16 %v3658
      %v3706 = vunpack.c.h.b16 %v3658
      %v3707 = vpack.c.b16 %v3675, %v3675
      %v3708 = vpack.c.b16 %v3676, %v3676
      %v3709 = vpack.c.b16 %v3677, %v3677
      %v3710 = vpack.c.b16 %v3678, %v3678
      %v3711 = vpack.c.b16 %v3679, %v3679
      %v3712 = vpack.c.b16 %v3680, %v3680
      %v3713 = vpack.c.b16 %v3681, %v3681
      %v3714 = vpack.c.b16 %v3682, %v3682
      %v3715 = vpack.c.b16 %v3683, %v3683
      %v3716 = vpack.c.b16 %v3684, %v3684
      %v3717 = vpack.c.b16 %v3685, %v3685
      %v3718 = vpack.c.b16 %v3686, %v3686
      %v3719 = vpack.c.b16 %v3687, %v3687
      %v3720 = vpack.c.b16 %v3688, %v3688
      %v3721 = vpack.c.b16 %v3689, %v3689
      %v3722 = vpack.c.b16 %v3690, %v3690
      %v3723 = vpack.c.b16 %v3691, %v3691
      %v3724 = vpack.c.b16 %v3692, %v3692
      %v3725 = vpack.c.b16 %v3693, %v3693
      %v3726 = vpack.c.b16 %v3694, %v3694
      %v3727 = vpack.c.b16 %v3695, %v3695
      %v3728 = vpack.c.b16 %v3696, %v3696
      %v3729 = vpack.c.b16 %v3697, %v3697
      %v3730 = vpack.c.b16 %v3698, %v3698
      %v3731 = vpack.c.b16 %v3699, %v3699
      %v3732 = vpack.c.b16 %v3700, %v3700
      %v3733 = vpack.c.b16 %v3701, %v3701
      %v3734 = vpack.c.b16 %v3702, %v3702
      %v3735 = vpack.c.b16 %v3703, %v3703
      %v3736 = vpack.c.b16 %v3704, %v3704
      %v3737 = vpack.c.b16 %v3705, %v3705
      %v3738 = vpack.c.b16 %v3706, %v3706
      %3771 = vst [vmem:[%s285] sm:$0xf] %v3707
      %3772 = vst [vmem:[%s285 + $0x4] sm:$0xf] %v3708
      %3773 = vst [vmem:[%s285 + $0x8] sm:$0xf] %v3709
      %3774 = vst [vmem:[%s285 + $0xc] sm:$0xf] %v3710
      %3775 = vst [vmem:[%s285 + $0x10] sm:$0xf] %v3711
      %3776 = vst [vmem:[%s285 + $0x14] sm:$0xf] %v3712
      %3777 = vst [vmem:[%s285 + $0x18] sm:$0xf] %v3713
      %3778 = vst [vmem:[%s285 + $0x1c] sm:$0xf] %v3714
      %3779 = vst [vmem:[%s285 + $0x20] sm:$0xf] %v3715
      %3780 = vst [vmem:[%s285 + $0x24] sm:$0xf] %v3716
      %3781 = vst [vmem:[%s285 + $0x28] sm:$0xf] %v3717
      %3782 = vst [vmem:[%s285 + $0x2c] sm:$0xf] %v3718
      %3783 = vst [vmem:[%s285 + $0x30] sm:$0xf] %v3719
      %3784 = vst [vmem:[%s285 + $0x34] sm:$0xf] %v3720
      %3785 = vst [vmem:[%s285 + $0x38] sm:$0xf] %v3721
      %3786 = vst [vmem:[%s285 + $0x3c] sm:$0xf] %v3722
      %3787 = vst [vmem:[%s285 + $0x40] sm:$0xf] %v3723
      %3788 = vst [vmem:[%s285 + $0x44] sm:$0xf] %v3724
      %3789 = vst [vmem:[%s285 + $0x48] sm:$0xf] %v3725
      %3790 = vst [vmem:[%s285 + $0x4c] sm:$0xf] %v3726
      %3791 = vst [vmem:[%s285 + $0x50] sm:$0xf] %v3727
      %3792 = vst [vmem:[%s285 + $0x54] sm:$0xf] %v3728
      %3793 = vst [vmem:[%s285 + $0x58] sm:$0xf] %v3729
      %3794 = vst [vmem:[%s285 + $0x5c] sm:$0xf] %v3730
      %3795 = vst [vmem:[%s285 + $0x60] sm:$0xf] %v3731
      %3796 = vst [vmem:[%s285 + $0x64] sm:$0xf] %v3732
      %3797 = vst [vmem:[%s285 + $0x68] sm:$0xf] %v3733
      %3798 = vst [vmem:[%s285 + $0x6c] sm:$0xf] %v3734
      %3799 = vst [vmem:[%s285 + $0x70] sm:$0xf] %v3735
      %3800 = vst [vmem:[%s285 + $0x74] sm:$0xf] %v3736
      %3801 = vst [vmem:[%s285 + $0x78] sm:$0xf] %v3737
      %3802 = vst [vmem:[%s285 + $0x7c] sm:$0xf] %v3738
      %s3803 = smul.u32 32, %s20
      %p3804 = scmp.lt.s32.totalorder %s19, 1
      %s3805 = scalar_select %p3804, %s19, 1
      %p3806 = scmp.lt.s32.totalorder %s3803, 63
      %s3807 = scalar_select %p3806, %s3803, 63
      %s3808 = smul.addr %s3805, 64
      %s3809 = sadd.s32 %s3807, %s3808
      %s3810 = smul.addr %s3809, 4
      %s3811 = scalar_lea.vmem %s4, %s3810
      // Predicated region
      $region37: #{basic_block_forward.2} parent=35 // pred_check
        %p3812 = pneg %p149
      $region38: #{basic_block_forward.2} parent=35 // pred_check_branch
        %3814 = sbr.rel (%p3812) target = $region40
      $region39: #{basic_block_forward.2} parent=35 // pred_region
        %s3815 = smul.u32 32, %s20
      $region40: #{basic_block_forward.2} parent=35 // pred_fallthru
        _
    $region36: #{basic_block_forward.2} parent=5 // pred_fallthru
      _
    %p3816 = scmp.le.s32.totalorder 2, %s10
    // Predicated region
    $region41: #{basic_block_forward.2} parent=5 // pred_check
      %p3817 = pneg %p3816
    $region42: #{basic_block_forward.2} parent=5 // pred_check_branch
      %3819 = sbr.rel (%p3817) target = $region44
    $region43: #{basic_block_forward.2} parent=5 // pred_region
      %s3820 = ssub.s32 %s10, 2
      // Predicated region
      $region45: #{basic_block_forward.2} parent=43 // pred_check
        %p3821 = pneg %p155
      $region46: #{basic_block_forward.2} parent=43 // pred_check_branch
        %3823 = sbr.rel (%p3821) target = $region48
      $region47: #{basic_block_forward.2} parent=43 // pred_region
        %s3824 = smul.u32 32, %s22
        %p3825 = scmp.lt.s32.totalorder %s21, 1
        %s3826 = scalar_select %p3825, %s21, 1
        %p3827 = scmp.lt.s32.totalorder %s3824, 63
        %s3828 = scalar_select %p3827, %s3824, 63
        %s3829 = smul.addr %s3826, 64
        %s3830 = sadd.s32 %s3828, %s3829
        %s3831 = smul.addr %s3830, 4
        %s3832 = scalar_lea.vmem %s4, %s3831
      $region48: #{basic_block_forward.2} parent=43 // pred_fallthru
        _
    $region44: #{basic_block_forward.2} parent=5 // pred_fallthru
      _
  $region6: #{basic_block_forward.2} parent=0 // loop_footer
    %s14 = sadd.s32 1, %s10
  $region7: #{basic_block_forward.2} parent=0 // loop_footer_branch
    %9 = sbr.rel target = $region3
  $region8: #{basic_block_forward.2} parent=0 // loop_exit
    _

// kernel: basic_block_forward.3
$region0: #{basic_block_forward.3}
  #allocation0 [shape = 'u32[]', space=smem, size = 0x4, offset = 0x4, fixed_abs, tag = 'smem constant byte address 0x4 - core index']
  #allocation1 [shape = 'u32[144,128]{1,0:T(1,128)}', space=vmem, size = 0x12000, scoped, tag = 'internal scratch']
  #allocation2 [shape = 'bf16[320,64]{1,0:T(16,128)(2,1)}', space=vmem, size = 0x14000, scoped, tag = 'scratch operand']
  %s0 = inlined_call_operand.vmem [shape: bf16[2,768,64], index: 0, kind: input, shape index: {}, may-alias: {0,1}]
  %s1 = inlined_call_operand.vmem [shape: bf16[2,768,64], index: 1, kind: input, shape index: {}, may-alias: {0,1}]
  %s2 = inlined_call_operand.vmem [shape: bf16[9,64,128], index: 2, kind: input, shape index: {}]
  %s3 = inlined_call_operand.vmem [shape: f32[1,128], index: 3, kind: input, shape index: {}]
  %s4 = inlined_call_operand.vmem [shape: bf16[2,512,128], index: 4, kind: input, shape index: {}]
  %s5 = inlined_call_operand.vmem [shape: bf16[2,512,128], index: 5, kind: output, shape index: {}]
  %s6 = sld [smem:[#allocation0]]
  $region53: #{basic_block_forward.3} parent=0
    _
  %s8 = ssub.s32 1, %s6
  %s9 = scalar_select 0, %s8, %s6
  loop: start=0, step=1, limit=6
  $region2: #{basic_block_forward.3} parent=0 // loop_pre_header
    _
  $region3: #{basic_block_forward.3} parent=0 // loop_header
    %s11 = sphi 0, %s15
    %p12 = scmp.ge.s32.totalorder %s11, 6
    %s18 = sphi 0, %s30
    %s19 = sphi 0, %s26
    %s20 = sphi 0, %s18
    %s21 = sphi 0, %s19
    %s22 = sphi 0, %s20
    %s23 = sphi 0, %s21
    %s35 = sphi 0, %s37
    %s38 = sphi 0, %s35
    %s39 = sphi 0, %s38
    %s55 = sphi 0, %s39
    %s67 = sphi 0, %s69
    %s70 = sphi 0, %s67
    %s71 = sphi 0, %s70
    %s87 = sphi 0, %s71
    %s91 = sphi 0, %s91
    %s93 = sphi 0, %s91
    %s94 = sphi 0, %s93
    %s108 = sphi 0, %s94
    %s112 = sphi 0, %s112
    %s114 = sphi 0, %s112
    %s115 = sphi 0, %s114
    %s129 = sphi 0, %s115
    %s137 = sphi 0, %s139
    %s140 = sphi 0, %s137
    %s141 = sphi 0, %s140
    %s157 = sphi 0, %s141
    %s165 = sphi 0, %s167
    %s168 = sphi 0, %s165
    %s169 = sphi 0, %s168
    %s185 = sphi 0, %s169
  $region4: #{basic_block_forward.3} parent=0 // loop_header_branch
    %14 = sbr.rel (%p12) target = $region8
  $region5: #{basic_block_forward.3} parent=0 // loop_body
    %s16 = ssub.s32 %s11, 1
    %s17 = ssub.s32 %s11, 2
    %s24 = sadd.s32 1, %s19
    %p25 = scmp.ge.s32.totalorder %s24, 2
    %s26 = scalar_select %p25, 0, %s24
    %s27 = sadd.s32 1, %s18
    %s28 = scalar_select %p25, %s27, %s18
    %p29 = scmp.ge.s32.totalorder %s28, 2
    %s30 = scalar_select %p29, 0, %s28
    %s31 = ssub.s32 %s18, %s30
    %s32 = ssub.s32 %s19, %s26
    %s33 = sor.u32 %s31, %s32
    %p34 = scmp.eq.s32.totalorder %s33, 0
    %s36 = sadd.s32 %s35, 1
    %s37 = scalar_select %p34, %s35, %s36
    %p40 = pneg %p34
    %p41 = scmp.eq.s32.totalorder %s11, 3
    %p42 = por %p40, %p41
    %p43 = scmp.ne.s32.totalorder %s35, %s38
    %p44 = scmp.eq.s32.totalorder %s11, 0
    %p45 = por %p43, %p44
    %p46 = scmp.ne.s32.totalorder %s35, %s38
    %p47 = scmp.eq.s32.totalorder %s16, 3
    %p48 = por %p46, %p47
    %p49 = scmp.ne.s32.totalorder %s38, %s39
    %p50 = scmp.eq.s32.totalorder %s16, 0
    %p51 = por %p49, %p50
    %p52 = scmp.ne.s32.totalorder %s38, %s39
    %p53 = scmp.eq.s32.totalorder %s17, 3
    %p54 = por %p52, %p53
    %p56 = scmp.ne.s32.totalorder %s39, %s55
    %p57 = scmp.eq.s32.totalorder %s17, 0
    %p58 = por %p56, %p57
    %s59 = sadd.s32 %s19, 1
    %s60 = smul.u32 %s59, 4
    %s61 = sadd.s32 %s26, 1
    %s62 = smul.u32 %s61, 4
    %s63 = ssub.s32 %s18, %s30
    %s64 = ssub.s32 %s60, %s62
    %s65 = sor.u32 %s63, %s64
    %p66 = scmp.eq.s32.totalorder %s65, 0
    %s68 = sadd.s32 %s67, 1
    %s69 = scalar_select %p66, %s67, %s68
    %p72 = pneg %p66
    %p73 = scmp.eq.s32.totalorder %s11, 3
    %p74 = por %p72, %p73
    %p75 = scmp.ne.s32.totalorder %s67, %s70
    %p76 = scmp.eq.s32.totalorder %s11, 0
    %p77 = por %p75, %p76
    %p78 = scmp.ne.s32.totalorder %s67, %s70
    %p79 = scmp.eq.s32.totalorder %s16, 3
    %p80 = por %p78, %p79
    %p81 = scmp.ne.s32.totalorder %s70, %s71
    %p82 = scmp.eq.s32.totalorder %s16, 0
    %p83 = por %p81, %p82
    %p84 = scmp.ne.s32.totalorder %s70, %s71
    %p85 = scmp.eq.s32.totalorder %s17, 3
    %p86 = por %p84, %p85
    %p88 = scmp.ne.s32.totalorder %s71, %s87
    %p89 = scmp.eq.s32.totalorder %s17, 0
    %p90 = por %p88, %p89
    %s92 = sadd.s32 %s91, 1
    %p95 = scmp.eq.s32.totalorder %s11, 3
    %p96 = scmp.ne.s32.totalorder %s91, %s93
    %p97 = scmp.eq.s32.totalorder %s11, 0
    %p98 = por %p96, %p97
    %p99 = scmp.ne.s32.totalorder %s91, %s93
    %p100 = scmp.eq.s32.totalorder %s16, 3
    %p101 = por %p99, %p100
    %p102 = scmp.ne.s32.totalorder %s93, %s94
    %p103 = scmp.eq.s32.totalorder %s16, 0
    %p104 = por %p102, %p103
    %p105 = scmp.ne.s32.totalorder %s93, %s94
    %p106 = scmp.eq.s32.totalorder %s17, 3
    %p107 = por %p105, %p106
    %p109 = scmp.ne.s32.totalorder %s94, %s108
    %p110 = scmp.eq.s32.totalorder %s17, 0
    %p111 = por %p109, %p110
    %s113 = sadd.s32 %s112, 1
    %p116 = scmp.eq.s32.totalorder %s11, 3
    %p117 = scmp.ne.s32.totalorder %s112, %s114
    %p118 = scmp.eq.s32.totalorder %s11, 0
    %p119 = por %p117, %p118
    %p120 = scmp.ne.s32.totalorder %s112, %s114
    %p121 = scmp.eq.s32.totalorder %s16, 3
    %p122 = por %p120, %p121
    %p123 = scmp.ne.s32.totalorder %s114, %s115
    %p124 = scmp.eq.s32.totalorder %s16, 0
    %p125 = por %p123, %p124
    %p126 = scmp.ne.s32.totalorder %s114, %s115
    %p127 = scmp.eq.s32.totalorder %s17, 3
    %p128 = por %p126, %p127
    %p130 = scmp.ne.s32.totalorder %s115, %s129
    %p131 = scmp.eq.s32.totalorder %s17, 0
    %p132 = por %p130, %p131
    %s133 = ssub.s32 %s18, %s30
    %s134 = ssub.s32 %s19, %s26
    %s135 = sor.u32 %s133, %s134
    %p136 = scmp.eq.s32.totalorder %s135, 0
    %s138 = sadd.s32 %s137, 1
    %s139 = scalar_select %p136, %s137, %s138
    %p142 = pneg %p136
    %p143 = scmp.eq.s32.totalorder %s11, 3
    %p144 = por %p142, %p143
    %p145 = scmp.ne.s32.totalorder %s137, %s140
    %p146 = scmp.eq.s32.totalorder %s11, 0
    %p147 = por %p145, %p146
    %p148 = scmp.ne.s32.totalorder %s137, %s140
    %p149 = scmp.eq.s32.totalorder %s16, 3
    %p150 = por %p148, %p149
    %p151 = scmp.ne.s32.totalorder %s140, %s141
    %p152 = scmp.eq.s32.totalorder %s16, 0
    %p153 = por %p151, %p152
    %p154 = scmp.ne.s32.totalorder %s140, %s141
    %p155 = scmp.eq.s32.totalorder %s17, 3
    %p156 = por %p154, %p155
    %p158 = scmp.ne.s32.totalorder %s141, %s157
    %p159 = scmp.eq.s32.totalorder %s17, 0
    %p160 = por %p158, %p159
    %s161 = ssub.s32 %s18, %s30
    %s162 = ssub.s32 %s19, %s26
    %s163 = sor.u32 %s161, %s162
    %p164 = scmp.eq.s32.totalorder %s163, 0
    %s166 = sadd.s32 %s165, 1
    %s167 = scalar_select %p164, %s165, %s166
    %p170 = pneg %p164
    %p171 = scmp.eq.s32.totalorder %s11, 3
    %p172 = por %p170, %p171
    %p173 = scmp.ne.s32.totalorder %s165, %s168
    %p174 = scmp.eq.s32.totalorder %s11, 0
    %p175 = por %p173, %p174
    %p176 = scmp.ne.s32.totalorder %s165, %s168
    %p177 = scmp.eq.s32.totalorder %s16, 3
    %p178 = por %p176, %p177
    %p179 = scmp.ne.s32.totalorder %s168, %s169
    %p180 = scmp.eq.s32.totalorder %s16, 0
    %p181 = por %p179, %p180
    %p182 = scmp.ne.s32.totalorder %s168, %s169
    %p183 = scmp.eq.s32.totalorder %s17, 3
    %p184 = por %p182, %p183
    %p186 = scmp.ne.s32.totalorder %s169, %s185
    %p187 = scmp.eq.s32.totalorder %s17, 0
    %p188 = por %p186, %p187
    %p189 = scmp.le.s32.totalorder 1, %s11
    %p190 = scmp.lt.s32.totalorder %s11, 5
    %p191 = pnand %p189, %p190
    %p192 = pneg %p191
    // Predicated region
    $region9: #{basic_block_forward.3} parent=5 // pred_check
      _
    $region10: #{basic_block_forward.3} parent=5 // pred_check_branch
      %194 = sbr.rel (%p191) target = $region12
    $region11: #{basic_block_forward.3} parent=5 // pred_region
      %s195 = ssub.s32 %s11, 1
      // Predicated region
      $region13: #{basic_block_forward.3} parent=11 // pred_check
        %p196 = pneg %p104
      $region14: #{basic_block_forward.3} parent=11 // pred_check_branch
        %198 = sbr.rel (%p196) target = $region16
      $region15: #{basic_block_forward.3} parent=11 // pred_region
        _
      $region16: #{basic_block_forward.3} parent=11 // pred_fallthru
        _
      // Predicated region
      $region17: #{basic_block_forward.3} parent=11 // pred_check
        %p199 = pneg %p125
      $region18: #{basic_block_forward.3} parent=11 // pred_check_branch
        %201 = sbr.rel (%p199) target = $region20
      $region19: #{basic_block_forward.3} parent=11 // pred_region
        _
      $region20: #{basic_block_forward.3} parent=11 // pred_fallthru
        _
    $region12: #{basic_block_forward.3} parent=5 // pred_fallthru
      _
    %p202 = scmp.lt.s32.totalorder %s11, 4
    // Predicated region
    $region21: #{basic_block_forward.3} parent=5 // pred_check
      %p203 = pneg %p202
    $region22: #{basic_block_forward.3} parent=5 // pred_check_branch
      %205 = sbr.rel (%p203) target = $region24
    $region23: #{basic_block_forward.3} parent=5 // pred_region
      // Predicated region
      $region25: #{basic_block_forward.3} parent=23 // pred_check
        %p206 = pneg %p45
      $region26: #{basic_block_forward.3} parent=23 // pred_check_branch
        %208 = sbr.rel (%p206) target = $region28
      $region27: #{basic_block_forward.3} parent=23 // pred_region
        %s209 = smul.u32 32, %s19
        %p210 = scmp.lt.s32.totalorder %s18, 1
        %s211 = scalar_select %p210, %s18, 1
        %p212 = scmp.lt.s32.totalorder %s209, 95
        %s213 = scalar_select %p212, %s209, 95
        %s214 = smul.addr %s211, 96
        %s215 = sadd.s32 %s213, %s214
        %s216 = smul.addr %s215, 4
        %s217 = scalar_lea.vmem %s0, %s216
        %s218 = smul.u32 32, %s19
      $region28: #{basic_block_forward.3} parent=23 // pred_fallthru
        _
      // Predicated region
      $region29: #{basic_block_forward.3} parent=23 // pred_check
        %p219 = pneg %p77
      $region30: #{basic_block_forward.3} parent=23 // pred_check_branch
        %221 = sbr.rel (%p219) target = $region32
      $region31: #{basic_block_forward.3} parent=23 // pred_region
        %s222 = sadd.s32 %s19, 1
        %s223 = smul.u32 %s222, 4
        %s224 = smul.u32 8, %s223
        %p225 = scmp.lt.s32.totalorder %s18, 1
        %s226 = scalar_select %p225, %s18, 1
        %p227 = scmp.lt.s32.totalorder %s224, 95
        %s228 = scalar_select %p227, %s224, 95
        %s229 = smul.addr %s226, 96
        %s230 = sadd.s32 %s228, %s229
        %s231 = smul.addr %s230, 4
        %s232 = scalar_lea.vmem %s1, %s231
        %s233 = sadd.s32 %s19, 1
        %s234 = smul.u32 %s233, 4
        %s235 = smul.u32 8, %s234
      $region32: #{basic_block_forward.3} parent=23 // pred_fallthru
        _
      // Predicated region
      $region33: #{basic_block_forward.3} parent=23 // pred_check
        %p236 = pneg %p147
      $region34: #{basic_block_forward.3} parent=23 // pred_check_branch
        %238 = sbr.rel (%p236) target = $region36
      $region35: #{basic_block_forward.3} parent=23 // pred_region
        %s239 = smul.u32 32, %s19
        %p240 = scmp.lt.s32.totalorder %s18, 1
        %s241 = scalar_select %p240, %s18, 1
        %p242 = scmp.lt.s32.totalorder %s239, 63
        %s243 = scalar_select %p242, %s239, 63
        %s244 = smul.addr %s241, 64
        %s245 = sadd.s32 %s243, %s244
        %s246 = smul.addr %s245, 4
        %s247 = scalar_lea.vmem %s4, %s246
        %s248 = smul.u32 32, %s19
      $region36: #{basic_block_forward.3} parent=23 // pred_fallthru
        _
    $region24: #{basic_block_forward.3} parent=5 // pred_fallthru
      _
    %p249 = scmp.le.s32.totalorder 1, %s11
    %p250 = scmp.lt.s32.totalorder %s11, 5
    %p251 = pnand %p249, %p250
    %p252 = pneg %p251
    // Predicated region
    $region37: #{basic_block_forward.3} parent=5 // pred_check
      _
    $region38: #{basic_block_forward.3} parent=5 // pred_check_branch
      %254 = sbr.rel (%p251) target = $region40
    $region39: #{basic_block_forward.3} parent=5 // pred_region
      %s255 = ssub.s32 %s11, 1
      %s256 = smul.u32 32, %s21
      %p257 = scmp.lt.s32.totalorder %s20, 1
      %s258 = scalar_select %p257, %s20, 1
      %p259 = scmp.lt.s32.totalorder %s256, 95
      %s260 = scalar_select %p259, %s256, 95
      %s261 = smul.addr %s258, 96
      %s262 = sadd.s32 %s260, %s261
      %s263 = smul.addr %s262, 4
      %s264 = scalar_lea.vmem %s0, %s263
      %p265 = pneg %p51
      %p266 = pneg %p48
      %s267 = sadd.s32 %s21, 1
      %s268 = smul.u32 %s267, 4
      %s269 = smul.u32 8, %s268
      %p270 = scmp.lt.s32.totalorder %s20, 1
      %s271 = scalar_select %p270, %s20, 1
      %p272 = scmp.lt.s32.totalorder %s269, 95
      %s273 = scalar_select %p272, %s269, 95
      %s274 = smul.addr %s271, 96
      %s275 = sadd.s32 %s273, %s274
      %s276 = smul.addr %s275, 4
      %s277 = scalar_lea.vmem %s1, %s276
      %p278 = pneg %p83
      %p279 = pneg %p80
      %p280 = pneg %p104
      %p281 = pneg %p101
      %p282 = pneg %p125
      %p283 = pneg %p122
      %s284 = smul.u32 32, %s21
      %p285 = scmp.lt.s32.totalorder %s20, 1
      %s286 = scalar_select %p285, %s20, 1
      %p287 = scmp.lt.s32.totalorder %s284, 63
      %s288 = scalar_select %p287, %s284, 63
      %s289 = smul.addr %s286, 64
      %s290 = sadd.s32 %s288, %s289
      %s291 = smul.addr %s290, 4
      %s292 = scalar_lea.vmem %s4, %s291
      %p293 = pneg %p153
      %p294 = pneg %p150
      %p295 = pneg %p181
      %p296 = pneg %p178
      %s297 = smul.u32 32, %s21
      %p298 = scmp.lt.s32.totalorder %s20, 1
      %s299 = scalar_select %p298, %s20, 1
      %p300 = scmp.lt.s32.totalorder %s297, 63
      %s301 = scalar_select %p300, %s297, 63
      %s302 = smul.addr %s299, 64
      %s303 = sadd.s32 %s301, %s302
      %s304 = smul.addr %s303, 4
      %s305 = scalar_lea.vmem %s5, %s304
      %s306 = smul.u32 32, %s21
      %p307 = scmp.lt.s32.totalorder %s20, 1
      %s308 = scalar_select %p307, %s20, 1
      %p309 = scmp.lt.s32.totalorder %s306, 95
      %s310 = scalar_select %p309, %s306, 95
      %s311 = smul.addr %s308, 96
      %s312 = sadd.s32 %s310, %s311
      %s313 = smul.addr %s312, 4
      %s314 = scalar_lea.vmem %s0, %s313
      %s315 = smul.u32 32, %s21
      %s316 = sadd.s32 %s21, 1
      %s317 = smul.u32 %s316, 4
      %s318 = smul.u32 8, %s317
      %p319 = scmp.lt.s32.totalorder %s20, 1
      %s320 = scalar_select %p319, %s20, 1
      %p321 = scmp.lt.s32.totalorder %s318, 95
      %s322 = scalar_select %p321, %s318, 95
      %s323 = smul.addr %s320, 96
      %s324 = sadd.s32 %s322, %s323
      %s325 = smul.addr %s324, 4
      %s326 = scalar_lea.vmem %s1, %s325
      %s327 = sadd.s32 %s21, 1
      %s328 = smul.u32 %s327, 4
      %s329 = smul.u32 8, %s328
      %s330 = smul.u32 32, %s21
      %p331 = scmp.lt.s32.totalorder %s20, 1
      %s332 = scalar_select %p331, %s20, 1
      %p333 = scmp.lt.s32.totalorder %s330, 63
      %s334 = scalar_select %p333, %s330, 63
      %s335 = smul.addr %s332, 64
      %s336 = sadd.s32 %s334, %s335
      %s337 = smul.addr %s336, 4
      %s338 = scalar_lea.vmem %s4, %s337
      %s339 = smul.u32 32, %s21
      %s340 = smul.u32 32, %s21
      %p341 = scmp.lt.s32.totalorder %s20, 1
      %s342 = scalar_select %p341, %s20, 1
      %p343 = scmp.lt.s32.totalorder %s340, 63
      %s344 = scalar_select %p343, %s340, 63
      %s345 = smul.addr %s342, 64
      %s346 = sadd.s32 %s344, %s345
      %s347 = smul.addr %s346, 4
      %s348 = scalar_lea.vmem %s5, %s347
      %s349 = smul.u32 32, %s21
      %v351 = vld [vmem:[%s314] sm:$0xf]
      %v352 = vld [vmem:[%s314 + $0x4] sm:$0xf]
      %v353 = vld [vmem:[%s314 + $0x8] sm:$0xf]
      %v354 = vld [vmem:[%s314 + $0xc] sm:$0xf]
      %v355 = vld [vmem:[%s314 + $0x10] sm:$0xf]
      %v356 = vld [vmem:[%s314 + $0x14] sm:$0xf]
      %v357 = vld [vmem:[%s314 + $0x18] sm:$0xf]
      %v358 = vld [vmem:[%s314 + $0x1c] sm:$0xf]
      %v359 = vld [vmem:[%s314 + $0x20] sm:$0xf]
      %v360 = vld [vmem:[%s314 + $0x24] sm:$0xf]
      %v361 = vld [vmem:[%s314 + $0x28] sm:$0xf]
      %v362 = vld [vmem:[%s314 + $0x2c] sm:$0xf]
      %v363 = vld [vmem:[%s314 + $0x30] sm:$0xf]
      %v364 = vld [vmem:[%s314 + $0x34] sm:$0xf]
      %v365 = vld [vmem:[%s314 + $0x38] sm:$0xf]
      %v366 = vld [vmem:[%s314 + $0x3c] sm:$0xf]
      %v367 = vld [vmem:[%s314 + $0x40] sm:$0xf]
      %v368 = vld [vmem:[%s314 + $0x44] sm:$0xf]
      %v369 = vld [vmem:[%s314 + $0x48] sm:$0xf]
      %v370 = vld [vmem:[%s314 + $0x4c] sm:$0xf]
      %v371 = vld [vmem:[%s314 + $0x50] sm:$0xf]
      %v372 = vld [vmem:[%s314 + $0x54] sm:$0xf]
      %v373 = vld [vmem:[%s314 + $0x58] sm:$0xf]
      %v374 = vld [vmem:[%s314 + $0x5c] sm:$0xf]
      %v375 = vld [vmem:[%s314 + $0x60] sm:$0xf]
      %v376 = vld [vmem:[%s314 + $0x64] sm:$0xf]
      %v377 = vld [vmem:[%s314 + $0x68] sm:$0xf]
      %v378 = vld [vmem:[%s314 + $0x6c] sm:$0xf]
      %v379 = vld [vmem:[%s314 + $0x70] sm:$0xf]
      %v380 = vld [vmem:[%s314 + $0x74] sm:$0xf]
      %v381 = vld [vmem:[%s314 + $0x78] sm:$0xf]
      %v382 = vld [vmem:[%s314 + $0x7c] sm:$0xf]
      %v415 = vunpack.c.l.b16 %v351
      %v416 = vunpack.c.l.b16 %v352
      %v417 = vunpack.c.l.b16 %v353
      %v418 = vunpack.c.l.b16 %v354
      %v419 = vunpack.c.l.b16 %v355
      %v420 = vunpack.c.l.b16 %v356
      %v421 = vunpack.c.l.b16 %v357
      %v422 = vunpack.c.l.b16 %v358
      %v423 = vunpack.c.l.b16 %v359
      %v424 = vunpack.c.l.b16 %v360
      %v425 = vunpack.c.l.b16 %v361
      %v426 = vunpack.c.l.b16 %v362
      %v427 = vunpack.c.l.b16 %v363
      %v428 = vunpack.c.l.b16 %v364
      %v429 = vunpack.c.l.b16 %v365
      %v430 = vunpack.c.l.b16 %v366
      %v431 = vunpack.c.l.b16 %v367
      %v432 = vunpack.c.l.b16 %v368
      %v433 = vunpack.c.l.b16 %v369
      %v434 = vunpack.c.l.b16 %v370
      %v435 = vunpack.c.l.b16 %v371
      %v436 = vunpack.c.l.b16 %v372
      %v437 = vunpack.c.l.b16 %v373
      %v438 = vunpack.c.l.b16 %v374
      %v439 = vunpack.c.l.b16 %v375
      %v440 = vunpack.c.l.b16 %v376
      %v441 = vunpack.c.l.b16 %v377
      %v442 = vunpack.c.l.b16 %v378
      %v443 = vunpack.c.l.b16 %v379
      %v444 = vunpack.c.l.b16 %v380
      %v445 = vunpack.c.l.b16 %v381
      %v446 = vunpack.c.l.b16 %v382
      %v447 = vpack.c.b16 %v416, %v415
      %v448 = vpack.c.b16 %v418, %v417
      %v449 = vpack.c.b16 %v420, %v419
      %v450 = vpack.c.b16 %v422, %v421
      %v451 = vpack.c.b16 %v424, %v423
      %v452 = vpack.c.b16 %v426, %v425
      %v453 = vpack.c.b16 %v428, %v427
      %v454 = vpack.c.b16 %v430, %v429
      %v455 = vpack.c.b16 %v432, %v431
      %v456 = vpack.c.b16 %v434, %v433
      %v457 = vpack.c.b16 %v436, %v435
      %v458 = vpack.c.b16 %v438, %v437
      %v459 = vpack.c.b16 %v440, %v439
      %v460 = vpack.c.b16 %v442, %v441
      %v461 = vpack.c.b16 %v444, %v443
      %v462 = vpack.c.b16 %v446, %v445
      %vm479 = vcmask 523264
      %480 = vst.msk [vmem:[#allocation2] sm:$0xff] %vm479, %v447
      %481 = vst.msk [vmem:[#allocation2 + $0x8] sm:$0xff] %vm479, %v448
      %482 = vst.msk [vmem:[#allocation2 + $0x10] sm:$0xff] %vm479, %v449
      %483 = vst.msk [vmem:[#allocation2 + $0x18] sm:$0xff] %vm479, %v450
      %484 = vst.msk [vmem:[#allocation2 + $0x20] sm:$0xff] %vm479, %v451
      %485 = vst.msk [vmem:[#allocation2 + $0x28] sm:$0xff] %vm479, %v452
      %486 = vst.msk [vmem:[#allocation2 + $0x30] sm:$0xff] %vm479, %v453
      %487 = vst.msk [vmem:[#allocation2 + $0x38] sm:$0xff] %vm479, %v454
      %488 = vst.msk [vmem:[#allocation2 + $0x40] sm:$0xff] %vm479, %v455
      %489 = vst.msk [vmem:[#allocation2 + $0x48] sm:$0xff] %vm479, %v456
      %490 = vst.msk [vmem:[#allocation2 + $0x50] sm:$0xff] %vm479, %v457
      %491 = vst.msk [vmem:[#allocation2 + $0x58] sm:$0xff] %vm479, %v458
      %492 = vst.msk [vmem:[#allocation2 + $0x60] sm:$0xff] %vm479, %v459
      %493 = vst.msk [vmem:[#allocation2 + $0x68] sm:$0xff] %vm479, %v460
      %494 = vst.msk [vmem:[#allocation2 + $0x70] sm:$0xff] %vm479, %v461
      %495 = vst.msk [vmem:[#allocation2 + $0x78] sm:$0xff] %vm479, %v462
      %v496 = vld [vmem:[%s326] sm:$0xf]
      %v497 = vld [vmem:[%s326 + $0x4] sm:$0xf]
      %v498 = vld [vmem:[%s326 + $0x8] sm:$0xf]
      %v499 = vld [vmem:[%s326 + $0xc] sm:$0xf]
      %v500 = vld [vmem:[%s326 + $0x10] sm:$0xf]
      %v501 = vld [vmem:[%s326 + $0x14] sm:$0xf]
      %v502 = vld [vmem:[%s326 + $0x18] sm:$0xf]
      %v503 = vld [vmem:[%s326 + $0x1c] sm:$0xf]
      %v512 = vunpack.c.l.b16 %v496
      %v513 = vunpack.c.l.b16 %v497
      %v514 = vunpack.c.l.b16 %v498
      %v515 = vunpack.c.l.b16 %v499
      %v516 = vunpack.c.l.b16 %v500
      %v517 = vunpack.c.l.b16 %v501
      %v518 = vunpack.c.l.b16 %v502
      %v519 = vunpack.c.l.b16 %v503
      %v520 = vpack.c.b16 %v513, %v512
      %v521 = vpack.c.b16 %v515, %v514
      %v522 = vpack.c.b16 %v517, %v516
      %v523 = vpack.c.b16 %v519, %v518
      %528 = vst.msk [vmem:[#allocation2 + $0x80] sm:$0xff] %vm479, %v520
      %529 = vst.msk [vmem:[#allocation2 + $0x88] sm:$0xff] %vm479, %v521
      %530 = vst.msk [vmem:[#allocation2 + $0x90] sm:$0xff] %vm479, %v522
      %531 = vst.msk [vmem:[#allocation2 + $0x98] sm:$0xff] %vm479, %v523
      %v532 = vld [vmem:[#allocation2] sm:$0xff]
      %v533 = vld [vmem:[#allocation2 + $0x8] sm:$0xff]
      %v534 = vld [vmem:[#allocation2 + $0x10] sm:$0xff]
      %v535 = vld [vmem:[#allocation2 + $0x18] sm:$0xff]
      %v536 = vld [vmem:[#allocation2 + $0x20] sm:$0xff]
      %v537 = vld [vmem:[#allocation2 + $0x28] sm:$0xff]
      %v538 = vld [vmem:[#allocation2 + $0x30] sm:$0xff]
      %v539 = vld [vmem:[#allocation2 + $0x38] sm:$0xff]
      %v540 = vld [vmem:[#allocation2 + $0x40] sm:$0xff]
      %v541 = vld [vmem:[#allocation2 + $0x48] sm:$0xff]
      %v542 = vld [vmem:[#allocation2 + $0x50] sm:$0xff]
      %v543 = vld [vmem:[#allocation2 + $0x58] sm:$0xff]
      %v544 = vld [vmem:[#allocation2 + $0x60] sm:$0xff]
      %v545 = vld [vmem:[#allocation2 + $0x68] sm:$0xff]
      %v546 = vld [vmem:[#allocation2 + $0x70] sm:$0xff]
      %v547 = vld [vmem:[#allocation2 + $0x78] sm:$0xff]
      %v548 = vld [vmem:[%s2] sm:$0xf]
      %v549 = vld [vmem:[%s2 + $0x4] sm:$0xf]
      %v550 = vld [vmem:[%s2 + $0x8] sm:$0xf]
      %v551 = vld [vmem:[%s2 + $0xc] sm:$0xf]
      %v552 = vld [vmem:[%s2 + $0x10] sm:$0xf]
      %v553 = vld [vmem:[%s2 + $0x14] sm:$0xf]
      %v554 = vld [vmem:[%s2 + $0x18] sm:$0xf]
      %v555 = vld [vmem:[%s2 + $0x1c] sm:$0xf]
      %v556 = vld [vmem:[#allocation2 + $0x80] sm:$0x1]
      %s557 = scalar_lea.vmem %s2, 32
      %v558 = vld [vmem:[%s557] sm:$0xf]
      %v559 = vld [vmem:[%s557 + $0x4] sm:$0xf]
      %v560 = vld [vmem:[%s557 + $0x8] sm:$0xf]
      %v561 = vld [vmem:[%s557 + $0xc] sm:$0xf]
      %v562 = vld [vmem:[%s557 + $0x10] sm:$0xf]
      %v563 = vld [vmem:[%s557 + $0x14] sm:$0xf]
      %v564 = vld [vmem:[%s557 + $0x18] sm:$0xf]
      %v565 = vld [vmem:[%s557 + $0x1c] sm:$0xf]
      %vm566 = vsmask.f32 7424
      %v568 = vshrl.u32 %v532, 16
      %v570 = vshll.u32 %v532, 16
      %v572 = vrot.slane %v570, 1
      %v573 = vor.u32 %v568, %v572
      %v575 = vshll.u32 %v533, 16
      %v577 = vrot.slane %v575, 1
      %v578 = vsel %vm566, %v573, %v577
      %v579 = vshrl.u32 %v533, 16
      %v581 = vor.u32 %v579, %v577
      %v583 = vshll.u32 %v534, 16
      %v585 = vrot.slane %v583, 1
      %v586 = vsel %vm566, %v581, %v585
      %v587 = vshrl.u32 %v534, 16
      %v589 = vor.u32 %v587, %v585
      %v591 = vshll.u32 %v535, 16
      %v593 = vrot.slane %v591, 1
      %v594 = vsel %vm566, %v589, %v593
      %v595 = vshrl.u32 %v535, 16
      %v597 = vor.u32 %v595, %v593
      %v599 = vshll.u32 %v536, 16
      %v601 = vrot.slane %v599, 1
      %v602 = vsel %vm566, %v597, %v601
      %v603 = vshrl.u32 %v536, 16
      %v605 = vor.u32 %v603, %v601
      %v607 = vshll.u32 %v537, 16
      %v609 = vrot.slane %v607, 1
      %v610 = vsel %vm566, %v605, %v609
      %v611 = vshrl.u32 %v537, 16
      %v613 = vor.u32 %v611, %v609
      %v615 = vshll.u32 %v538, 16
      %v617 = vrot.slane %v615, 1
      %v618 = vsel %vm566, %v613, %v617
      %v619 = vshrl.u32 %v538, 16
      %v621 = vor.u32 %v619, %v617
      %v623 = vshll.u32 %v539, 16
      %v625 = vrot.slane %v623, 1
      %v626 = vsel %vm566, %v621, %v625
      %v627 = vshrl.u32 %v539, 16
      %v629 = vor.u32 %v627, %v625
      %v631 = vshll.u32 %v540, 16
      %v633 = vrot.slane %v631, 1
      %v634 = vsel %vm566, %v629, %v633
      %v635 = vshrl.u32 %v540, 16
      %v637 = vor.u32 %v635, %v633
      %v639 = vshll.u32 %v541, 16
      %v641 = vrot.slane %v639, 1
      %v642 = vsel %vm566, %v637, %v641
      %v643 = vshrl.u32 %v541, 16
      %v645 = vor.u32 %v643, %v641
      %v647 = vshll.u32 %v542, 16
      %v649 = vrot.slane %v647, 1
      %v650 = vsel %vm566, %v645, %v649
      %v651 = vshrl.u32 %v542, 16
      %v653 = vor.u32 %v651, %v649
      %v655 = vshll.u32 %v543, 16
      %v657 = vrot.slane %v655, 1
      %v658 = vsel %vm566, %v653, %v657
      %v659 = vshrl.u32 %v543, 16
      %v661 = vor.u32 %v659, %v657
      %v663 = vshll.u32 %v544, 16
      %v665 = vrot.slane %v663, 1
      %v666 = vsel %vm566, %v661, %v665
      %v667 = vshrl.u32 %v544, 16
      %v669 = vor.u32 %v667, %v665
      %v671 = vshll.u32 %v545, 16
      %v673 = vrot.slane %v671, 1
      %v674 = vsel %vm566, %v669, %v673
      %v675 = vshrl.u32 %v545, 16
      %v677 = vor.u32 %v675, %v673
      %v679 = vshll.u32 %v546, 16
      %v681 = vrot.slane %v679, 1
      %v682 = vsel %vm566, %v677, %v681
      %v683 = vshrl.u32 %v546, 16
      %v685 = vor.u32 %v683, %v681
      %v687 = vshll.u32 %v547, 16
      %v689 = vrot.slane %v687, 1
      %v690 = vsel %vm566, %v685, %v689
      %v691 = vshrl.u32 %v547, 16
      %v693 = vor.u32 %v691, %v689
      %v695 = vshll.u32 %v556, 16
      %v697 = vrot.slane %v695, 1
      %v698 = vsel %vm566, %v693, %v697
      %v707 = vunpack.c.l.b16 %v558
      %v708 = vunpack.c.l.b16 %v559
      %v709 = vunpack.c.l.b16 %v560
      %v710 = vunpack.c.l.b16 %v561
      %v711 = vunpack.c.l.b16 %v562
      %v712 = vunpack.c.l.b16 %v563
      %v713 = vunpack.c.l.b16 %v564
      %v714 = vunpack.c.l.b16 %v565
      %v715 = vpack.c.b16 %v708, %v707
      %v716 = vpack.c.b16 %v710, %v709
      %v717 = vpack.c.b16 %v712, %v711
      %v718 = vpack.c.b16 %v714, %v713
      %v724 = vsel %vm479, %v578, 0
      %v727 = vsel %vm479, %v586, 0
      %v730 = vsel %vm479, %v594, 0
      %v733 = vsel %vm479, %v602, 0
      %v736 = vsel %vm479, %v610, 0
      %v739 = vsel %vm479, %v618, 0
      %v742 = vsel %vm479, %v626, 0
      %v745 = vsel %vm479, %v634, 0
      %v748 = vsel %vm479, %v642, 0
      %v751 = vsel %vm479, %v650, 0
      %v754 = vsel %vm479, %v658, 0
      %v757 = vsel %vm479, %v666, 0
      %v760 = vsel %vm479, %v674, 0
      %v763 = vsel %vm479, %v682, 0
      %v766 = vsel %vm479, %v690, 0
      %v769 = vsel %vm479, %v698, 0
      %771 = vmatprep.subr.bf16.mxu0 0
      %772 = vmatpush1.bf16.msra.mxu0 %v715
      %773 = vmatprep.subr.bf16.mxu0 0
      %774 = vmatpush1.bf16.msra.mxu0 %v716
      %775 = vmatprep.subr.bf16.mxu0 0
      %776 = vmatpush1.bf16.msra.mxu0 %v717
      %777 = vmatprep.subr.bf16.mxu0 0
      %778 = vmatpush1.bf16.msra.mxu0 %v718
      %779 = vmatprep.subr.bf16.mxu0 0
      %780 = vmatpush1.bf16.msra.mxu0 0
      %781 = vmatprep.subr.bf16.mxu0 0
      %782 = vmatpush1.bf16.msra.mxu0 0
      %783 = vmatprep.subr.bf16.mxu0 0
      %784 = vmatpush1.bf16.msra.mxu0 0
      %785 = vmatprep.subr.bf16.mxu0 0
      %786 = vmatpush1.bf16.msra.mxu0 0
      %787 = vmatprep.subr.bf16.mxu0 0
      %788 = vmatpush1.bf16.msra.mxu0 0
      %789 = vmatprep.subr.bf16.mxu0 0
      %790 = vmatpush1.bf16.msra.mxu0 0
      %791 = vmatprep.subr.bf16.mxu0 0
      %792 = vmatpush1.bf16.msra.mxu0 0
      %793 = vmatprep.subr.bf16.mxu0 0
      %794 = vmatpush1.bf16.msra.mxu0 0
      %795 = vmatprep.subr.bf16.mxu0 0
      %796 = vmatpush1.bf16.msra.mxu0 0
      %797 = vmatprep.subr.bf16.mxu0 0
      %798 = vmatpush1.bf16.msra.mxu0 0
      %799 = vmatprep.subr.bf16.mxu0 0
      %800 = vmatpush1.bf16.msra.mxu0 0
      %801 = vmatprep.subr.bf16.mxu0 0
      %802 = vmatpush1.bf16.msra.mxu0 0
      %803 = vmatprep.mubr.bf16.mxu0 0
      %804 = vmatmul.mubr.bf16.gmra.mrb[0].mxu0 %v724
      %v805 = vpop.f32.mrb[0].mxu0
      %v806 = vadd.f32 0.0, %v805
      %v807 = vpop.f32.mrb[0].mxu0
      %v808 = vpop.f32.mrb[0].mxu0
      %v809 = vadd.f32 0.0, %v808
      %v810 = vpop.f32.mrb[0].mxu0
      %811 = vmatprep.mubr.bf16.mxu0 0
      %812 = vmatmul.mubr.bf16.gmra.mrb[0].mxu0 %v727
      %v813 = vpop.f32.mrb[0].mxu0
      %v814 = vadd.f32 0.0, %v813
      %v815 = vpop.f32.mrb[0].mxu0
      %v816 = vpop.f32.mrb[0].mxu0
      %v817 = vadd.f32 0.0, %v816
      %v818 = vpop.f32.mrb[0].mxu0
      %819 = vmatprep.mubr.bf16.mxu0 0
      %820 = vmatmul.mubr.bf16.gmra.mrb[0].mxu0 %v730
      %v821 = vpop.f32.mrb[0].mxu0
      %v822 = vadd.f32 0.0, %v821
      %v823 = vpop.f32.mrb[0].mxu0
      %v824 = vpop.f32.mrb[0].mxu0
      %v825 = vadd.f32 0.0, %v824
      %v826 = vpop.f32.mrb[0].mxu0
      %827 = vmatprep.mubr.bf16.mxu0 0
      %828 = vmatmul.mubr.bf16.gmra.mrb[0].mxu0 %v733
      %v829 = vpop.f32.mrb[0].mxu0
      %v830 = vadd.f32 0.0, %v829
      %v831 = vpop.f32.mrb[0].mxu0
      %v832 = vpop.f32.mrb[0].mxu0
      %v833 = vadd.f32 0.0, %v832
      %v834 = vpop.f32.mrb[0].mxu0
      %835 = vmatprep.mubr.bf16.mxu0 0
      %836 = vmatmul.mubr.bf16.gmra.mrb[0].mxu0 %v736
      %v837 = vpop.f32.mrb[0].mxu0
      %v838 = vadd.f32 0.0, %v837
      %v839 = vpop.f32.mrb[0].mxu0
      %v840 = vpop.f32.mrb[0].mxu0
      %v841 = vadd.f32 0.0, %v840
      %v842 = vpop.f32.mrb[0].mxu0
      %843 = vmatprep.mubr.bf16.mxu0 0
      %844 = vmatmul.mubr.bf16.gmra.mrb[0].mxu0 %v739
      %v845 = vpop.f32.mrb[0].mxu0
      %v846 = vadd.f32 0.0, %v845
      %v847 = vpop.f32.mrb[0].mxu0
      %v848 = vpop.f32.mrb[0].mxu0
      %v849 = vadd.f32 0.0, %v848
      %v850 = vpop.f32.mrb[0].mxu0
      %851 = vmatprep.mubr.bf16.mxu0 0
      %852 = vmatmul.mubr.bf16.gmra.mrb[0].mxu0 %v742
      %v853 = vpop.f32.mrb[0].mxu0
      %v854 = vadd.f32 0.0, %v853
      %v855 = vpop.f32.mrb[0].mxu0
      %v856 = vpop.f32.mrb[0].mxu0
      %v857 = vadd.f32 0.0, %v856
      %v858 = vpop.f32.mrb[0].mxu0
      %859 = vmatprep.mubr.bf16.mxu0 0
      %860 = vmatmul.mubr.bf16.gmra.mrb[0].mxu0 %v745
      %v861 = vpop.f32.mrb[0].mxu0
      %v862 = vadd.f32 0.0, %v861
      %v863 = vpop.f32.mrb[0].mxu0
      %v864 = vpop.f32.mrb[0].mxu0
      %v865 = vadd.f32 0.0, %v864
      %v866 = vpop.f32.mrb[0].mxu0
      %867 = vmatprep.mubr.bf16.mxu0 0
      %868 = vmatmul.mubr.bf16.gmra.mrb[0].mxu0 %v748
      %v869 = vpop.f32.mrb[0].mxu0
      %v870 = vadd.f32 0.0, %v869
      %v871 = vpop.f32.mrb[0].mxu0
      %v872 = vpop.f32.mrb[0].mxu0
      %v873 = vadd.f32 0.0, %v872
      %v874 = vpop.f32.mrb[0].mxu0
      %875 = vmatprep.mubr.bf16.mxu0 0
      %876 = vmatmul.mubr.bf16.gmra.mrb[0].mxu0 %v751
      %v877 = vpop.f32.mrb[0].mxu0
      %v878 = vadd.f32 0.0, %v877
      %v879 = vpop.f32.mrb[0].mxu0
      %v880 = vpop.f32.mrb[0].mxu0
      %v881 = vadd.f32 0.0, %v880
      %v882 = vpop.f32.mrb[0].mxu0
      %883 = vmatprep.mubr.bf16.mxu0 0
      %884 = vmatmul.mubr.bf16.gmra.mrb[0].mxu0 %v754
      %v885 = vpop.f32.mrb[0].mxu0
      %v886 = vadd.f32 0.0, %v885
      %v887 = vpop.f32.mrb[0].mxu0
      %v888 = vpop.f32.mrb[0].mxu0
      %v889 = vadd.f32 0.0, %v888
      %v890 = vpop.f32.mrb[0].mxu0
      %891 = vmatprep.mubr.bf16.mxu0 0
      %892 = vmatmul.mubr.bf16.gmra.mrb[0].mxu0 %v757
      %v893 = vpop.f32.mrb[0].mxu0
      %v894 = vadd.f32 0.0, %v893
      %v895 = vpop.f32.mrb[0].mxu0
      %v896 = vpop.f32.mrb[0].mxu0
      %v897 = vadd.f32 0.0, %v896
      %v898 = vpop.f32.mrb[0].mxu0
      %899 = vmatprep.mubr.bf16.mxu0 0
      %900 = vmatmul.mubr.bf16.gmra.mrb[0].mxu0 %v760
      %v901 = vpop.f32.mrb[0].mxu0
      %v902 = vadd.f32 0.0, %v901
      %v903 = vpop.f32.mrb[0].mxu0
      %v904 = vpop.f32.mrb[0].mxu0
      %v905 = vadd.f32 0.0, %v904
      %v906 = vpop.f32.mrb[0].mxu0
      %907 = vmatprep.mubr.bf16.mxu0 0
      %908 = vmatmul.mubr.bf16.gmra.mrb[0].mxu0 %v763
      %v909 = vpop.f32.mrb[0].mxu0
      %v910 = vadd.f32 0.0, %v909
      %v911 = vpop.f32.mrb[0].mxu0
      %v912 = vpop.f32.mrb[0].mxu0
      %v913 = vadd.f32 0.0, %v912
      %v914 = vpop.f32.mrb[0].mxu0
      %915 = vmatprep.mubr.bf16.mxu0 0
      %916 = vmatmul.mubr.bf16.gmra.mrb[0].mxu0 %v766
      %v917 = vpop.f32.mrb[0].mxu0
      %v918 = vadd.f32 0.0, %v917
      %v919 = vpop.f32.mrb[0].mxu0
      %v920 = vpop.f32.mrb[0].mxu0
      %v921 = vadd.f32 0.0, %v920
      %v922 = vpop.f32.mrb[0].mxu0
      %923 = vmatprep.mubr.bf16.mxu0 0
      %924 = vmatmul.mubr.bf16.gmra.mrb[0].mxu0 %v769
      %v925 = vpop.f32.mrb[0].mxu0
      %v926 = vadd.f32 0.0, %v925
      %v927 = vpop.f32.mrb[0].mxu0
      %v928 = vpop.f32.mrb[0].mxu0
      %v929 = vadd.f32 0.0, %v928
      %v930 = vpop.f32.mrb[0].mxu0
      %931 = vdwg.mxu0
      %v940 = vunpack.c.l.b16 %v548
      %v941 = vunpack.c.l.b16 %v549
      %v942 = vunpack.c.l.b16 %v550
      %v943 = vunpack.c.l.b16 %v551
      %v944 = vunpack.c.l.b16 %v552
      %v945 = vunpack.c.l.b16 %v553
      %v946 = vunpack.c.l.b16 %v554
      %v947 = vunpack.c.l.b16 %v555
      %v948 = vpack.c.b16 %v941, %v940
      %v949 = vpack.c.b16 %v943, %v942
      %v950 = vpack.c.b16 %v945, %v944
      %v951 = vpack.c.b16 %v947, %v946
      %v956 = vsel %vm479, %v532, 0
      %v958 = vsel %vm479, %v533, 0
      %v960 = vsel %vm479, %v534, 0
      %v962 = vsel %vm479, %v535, 0
      %v964 = vsel %vm479, %v536, 0
      %v966 = vsel %vm479, %v537, 0
      %v968 = vsel %vm479, %v538, 0
      %v970 = vsel %vm479, %v539, 0
      %v972 = vsel %vm479, %v540, 0
      %v974 = vsel %vm479, %v541, 0
      %v976 = vsel %vm479, %v542, 0
      %v978 = vsel %vm479, %v543, 0
      %v980 = vsel %vm479, %v544, 0
      %v982 = vsel %vm479, %v545, 0
      %v984 = vsel %vm479, %v546, 0
      %v986 = vsel %vm479, %v547, 0
      %988 = vmatprep.subr.bf16.mxu0 0
      %989 = vmatpush1.bf16.msra.mxu0 %v948
      %990 = vmatprep.subr.bf16.mxu0 0
      %991 = vmatpush1.bf16.msra.mxu0 %v949
      %992 = vmatprep.subr.bf16.mxu0 0
      %993 = vmatpush1.bf16.msra.mxu0 %v950
      %994 = vmatprep.subr.bf16.mxu0 0
      %995 = vmatpush1.bf16.msra.mxu0 %v951
      %996 = vmatprep.subr.bf16.mxu0 0
      %997 = vmatpush1.bf16.msra.mxu0 0
      %998 = vmatprep.subr.bf16.mxu0 0
      %999 = vmatpush1.bf16.msra.mxu0 0
      %1000 = vmatprep.subr.bf16.mxu0 0
      %1001 = vmatpush1.bf16.msra.mxu0 0
      %1002 = vmatprep.subr.bf16.mxu0 0
      %1003 = vmatpush1.bf16.msra.mxu0 0
      %1004 = vmatprep.subr.bf16.mxu0 0
      %1005 = vmatpush1.bf16.msra.mxu0 0
      %1006 = vmatprep.subr.bf16.mxu0 0
      %1007 = vmatpush1.bf16.msra.mxu0 0
      %1008 = vmatprep.subr.bf16.mxu0 0
      %1009 = vmatpush1.bf16.msra.mxu0 0
      %1010 = vmatprep.subr.bf16.mxu0 0
      %1011 = vmatpush1.bf16.msra.mxu0 0
      %1012 = vmatprep.subr.bf16.mxu0 0
      %1013 = vmatpush1.bf16.msra.mxu0 0
      %1014 = vmatprep.subr.bf16.mxu0 0
      %1015 = vmatpush1.bf16.msra.mxu0 0
      %1016 = vmatprep.subr.bf16.mxu0 0
      %1017 = vmatpush1.bf16.msra.mxu0 0
      %1018 = vmatprep.subr.bf16.mxu0 0
      %1019 = vmatpush1.bf16.msra.mxu0 0
      %1020 = vmatprep.mubr.bf16.mxu0 0
      %1021 = vmatmul.mubr.bf16.gmra.mrb[0].mxu0 %v956
      %v1022 = vpop.f32.mrb[0].mxu0
      %v1023 = vadd.f32 %v806, %v1022
      %v1024 = vpop.f32.mrb[0].mxu0
      %v1025 = vpop.f32.mrb[0].mxu0
      %v1026 = vadd.f32 %v809, %v1025
      %v1027 = vpop.f32.mrb[0].mxu0
      %1028 = vmatprep.mubr.bf16.mxu0 0
      %1029 = vmatmul.mubr.bf16.gmra.mrb[0].mxu0 %v958
      %v1030 = vpop.f32.mrb[0].mxu0
      %v1031 = vadd.f32 %v814, %v1030
      %v1032 = vpop.f32.mrb[0].mxu0
      %v1033 = vpop.f32.mrb[0].mxu0
      %v1034 = vadd.f32 %v817, %v1033
      %v1035 = vpop.f32.mrb[0].mxu0
      %1036 = vmatprep.mubr.bf16.mxu0 0
      %1037 = vmatmul.mubr.bf16.gmra.mrb[0].mxu0 %v960
      %v1038 = vpop.f32.mrb[0].mxu0
      %v1039 = vadd.f32 %v822, %v1038
      %v1040 = vpop.f32.mrb[0].mxu0
      %v1041 = vpop.f32.mrb[0].mxu0
      %v1042 = vadd.f32 %v825, %v1041
      %v1043 = vpop.f32.mrb[0].mxu0
      %1044 = vmatprep.mubr.bf16.mxu0 0
      %1045 = vmatmul.mubr.bf16.gmra.mrb[0].mxu0 %v962
      %v1046 = vpop.f32.mrb[0].mxu0
      %v1047 = vadd.f32 %v830, %v1046
      %v1048 = vpop.f32.mrb[0].mxu0
      %v1049 = vpop.f32.mrb[0].mxu0
      %v1050 = vadd.f32 %v833, %v1049
      %v1051 = vpop.f32.mrb[0].mxu0
      %1052 = vmatprep.mubr.bf16.mxu0 0
      %1053 = vmatmul.mubr.bf16.gmra.mrb[0].mxu0 %v964
      %v1054 = vpop.f32.mrb[0].mxu0
      %v1055 = vadd.f32 %v838, %v1054
      %v1056 = vpop.f32.mrb[0].mxu0
      %v1057 = vpop.f32.mrb[0].mxu0
      %v1058 = vadd.f32 %v841, %v1057
      %v1059 = vpop.f32.mrb[0].mxu0
      %1060 = vmatprep.mubr.bf16.mxu0 0
      %1061 = vmatmul.mubr.bf16.gmra.mrb[0].mxu0 %v966
      %v1062 = vpop.f32.mrb[0].mxu0
      %v1063 = vadd.f32 %v846, %v1062
      %v1064 = vpop.f32.mrb[0].mxu0
      %v1065 = vpop.f32.mrb[0].mxu0
      %v1066 = vadd.f32 %v849, %v1065
      %v1067 = vpop.f32.mrb[0].mxu0
      %1068 = vmatprep.mubr.bf16.mxu0 0
      %1069 = vmatmul.mubr.bf16.gmra.mrb[0].mxu0 %v968
      %v1070 = vpop.f32.mrb[0].mxu0
      %v1071 = vadd.f32 %v854, %v1070
      %v1072 = vpop.f32.mrb[0].mxu0
      %v1073 = vpop.f32.mrb[0].mxu0
      %v1074 = vadd.f32 %v857, %v1073
      %v1075 = vpop.f32.mrb[0].mxu0
      %1076 = vmatprep.mubr.bf16.mxu0 0
      %1077 = vmatmul.mubr.bf16.gmra.mrb[0].mxu0 %v970
      %v1078 = vpop.f32.mrb[0].mxu0
      %v1079 = vadd.f32 %v862, %v1078
      %v1080 = vpop.f32.mrb[0].mxu0
      %v1081 = vpop.f32.mrb[0].mxu0
      %v1082 = vadd.f32 %v865, %v1081
      %v1083 = vpop.f32.mrb[0].mxu0
      %1084 = vmatprep.mubr.bf16.mxu0 0
      %1085 = vmatmul.mubr.bf16.gmra.mrb[0].mxu0 %v972
      %v1086 = vpop.f32.mrb[0].mxu0
      %v1087 = vadd.f32 %v870, %v1086
      %v1088 = vpop.f32.mrb[0].mxu0
      %v1089 = vpop.f32.mrb[0].mxu0
      %v1090 = vadd.f32 %v873, %v1089
      %v1091 = vpop.f32.mrb[0].mxu0
      %1092 = vmatprep.mubr.bf16.mxu0 0
      %1093 = vmatmul.mubr.bf16.gmra.mrb[0].mxu0 %v974
      %v1094 = vpop.f32.mrb[0].mxu0
      %v1095 = vadd.f32 %v878, %v1094
      %v1096 = vpop.f32.mrb[0].mxu0
      %v1097 = vpop.f32.mrb[0].mxu0
      %v1098 = vadd.f32 %v881, %v1097
      %v1099 = vpop.f32.mrb[0].mxu0
      %1100 = vmatprep.mubr.bf16.mxu0 0
      %1101 = vmatmul.mubr.bf16.gmra.mrb[0].mxu0 %v976
      %v1102 = vpop.f32.mrb[0].mxu0
      %v1103 = vadd.f32 %v886, %v1102
      %v1104 = vpop.f32.mrb[0].mxu0
      %v1105 = vpop.f32.mrb[0].mxu0
      %v1106 = vadd.f32 %v889, %v1105
      %v1107 = vpop.f32.mrb[0].mxu0
      %1108 = vmatprep.mubr.bf16.mxu0 0
      %1109 = vmatmul.mubr.bf16.gmra.mrb[0].mxu0 %v978
      %v1110 = vpop.f32.mrb[0].mxu0
      %v1111 = vadd.f32 %v894, %v1110
      %v1112 = vpop.f32.mrb[0].mxu0
      %v1113 = vpop.f32.mrb[0].mxu0
      %v1114 = vadd.f32 %v897, %v1113
      %v1115 = vpop.f32.mrb[0].mxu0
      %1116 = vmatprep.mubr.bf16.mxu0 0
      %1117 = vmatmul.mubr.bf16.gmra.mrb[0].mxu0 %v980
      %v1118 = vpop.f32.mrb[0].mxu0
      %v1119 = vadd.f32 %v902, %v1118
      %v1120 = vpop.f32.mrb[0].mxu0
      %v1121 = vpop.f32.mrb[0].mxu0
      %v1122 = vadd.f32 %v905, %v1121
      %v1123 = vpop.f32.mrb[0].mxu0
      %1124 = vmatprep.mubr.bf16.mxu0 0
      %1125 = vmatmul.mubr.bf16.gmra.mrb[0].mxu0 %v982
      %v1126 = vpop.f32.mrb[0].mxu0
      %v1127 = vadd.f32 %v910, %v1126
      %v1128 = vpop.f32.mrb[0].mxu0
      %v1129 = vpop.f32.mrb[0].mxu0
      %v1130 = vadd.f32 %v913, %v1129
      %v1131 = vpop.f32.mrb[0].mxu0
      %1132 = vmatprep.mubr.bf16.mxu0 0
      %1133 = vmatmul.mubr.bf16.gmra.mrb[0].mxu0 %v984
      %v1134 = vpop.f32.mrb[0].mxu0
      %v1135 = vadd.f32 %v918, %v1134
      %v1136 = vpop.f32.mrb[0].mxu0
      %v1137 = vpop.f32.mrb[0].mxu0
      %v1138 = vadd.f32 %v921, %v1137
      %v1139 = vpop.f32.mrb[0].mxu0
      %1140 = vmatprep.mubr.bf16.mxu0 0
      %1141 = vmatmul.mubr.bf16.gmra.mrb[0].mxu0 %v986
      %v1142 = vpop.f32.mrb[0].mxu0
      %v1143 = vadd.f32 %v926, %v1142
      %v1144 = vpop.f32.mrb[0].mxu0
      %v1145 = vpop.f32.mrb[0].mxu0
      %v1146 = vadd.f32 %v929, %v1145
      %v1147 = vpop.f32.mrb[0].mxu0
      %1148 = vdwg.mxu0
      %v1149 = vld [vmem:[#allocation2] sm:$0xfe]
      %s1150 = scalar_lea.vmem %s2, 64
      %v1151 = vld [vmem:[%s1150] sm:$0xf]
      %v1152 = vld [vmem:[%s1150 + $0x4] sm:$0xf]
      %v1153 = vld [vmem:[%s1150 + $0x8] sm:$0xf]
      %v1154 = vld [vmem:[%s1150 + $0xc] sm:$0xf]
      %v1155 = vld [vmem:[%s1150 + $0x10] sm:$0xf]
      %v1156 = vld [vmem:[%s1150 + $0x14] sm:$0xf]
      %v1157 = vld [vmem:[%s1150 + $0x18] sm:$0xf]
      %v1158 = vld [vmem:[%s1150 + $0x1c] sm:$0xf]
      %vm1176 = vcmask 1046528
      %v1177 = vrot.slane %v1149, 1
      %v1178 = vrot.slane %v533, 1
      %v1179 = vsel %vm1176, %v1177, %v1178
      %v1180 = vrot.slane %v534, 1
      %v1181 = vsel %vm1176, %v1178, %v1180
      %v1182 = vrot.slane %v535, 1
      %v1183 = vsel %vm1176, %v1180, %v1182
      %v1184 = vrot.slane %v536, 1
      %v1185 = vsel %vm1176, %v1182, %v1184
      %v1186 = vrot.slane %v537, 1
      %v1187 = vsel %vm1176, %v1184, %v1186
      %v1188 = vrot.slane %v538, 1
      %v1189 = vsel %vm1176, %v1186, %v1188
      %v1190 = vrot.slane %v539, 1
      %v1191 = vsel %vm1176, %v1188, %v1190
      %v1192 = vrot.slane %v540, 1
      %v1193 = vsel %vm1176, %v1190, %v1192
      %v1194 = vrot.slane %v541, 1
      %v1195 = vsel %vm1176, %v1192, %v1194
      %v1196 = vrot.slane %v542, 1
      %v1197 = vsel %vm1176, %v1194, %v1196
      %v1198 = vrot.slane %v543, 1
      %v1199 = vsel %vm1176, %v1196, %v1198
      %v1200 = vrot.slane %v544, 1
      %v1201 = vsel %vm1176, %v1198, %v1200
      %v1202 = vrot.slane %v545, 1
      %v1203 = vsel %vm1176, %v1200, %v1202
      %v1204 = vrot.slane %v546, 1
      %v1205 = vsel %vm1176, %v1202, %v1204
      %v1206 = vrot.slane %v547, 1
      %v1207 = vsel %vm1176, %v1204, %v1206
      %v1208 = vrot.slane %v556, 1
      %v1209 = vsel %vm1176, %v1206, %v1208
      %v1218 = vunpack.c.l.b16 %v1151
      %v1219 = vunpack.c.l.b16 %v1152
      %v1220 = vunpack.c.l.b16 %v1153
      %v1221 = vunpack.c.l.b16 %v1154
      %v1222 = vunpack.c.l.b16 %v1155
      %v1223 = vunpack.c.l.b16 %v1156
      %v1224 = vunpack.c.l.b16 %v1157
      %v1225 = vunpack.c.l.b16 %v1158
      %v1226 = vpack.c.b16 %v1219, %v1218
      %v1227 = vpack.c.b16 %v1221, %v1220
      %v1228 = vpack.c.b16 %v1223, %v1222
      %v1229 = vpack.c.b16 %v1225, %v1224
      %v1235 = vsel %vm479, %v1179, 0
      %v1238 = vsel %vm479, %v1181, 0
      %v1241 = vsel %vm479, %v1183, 0
      %v1244 = vsel %vm479, %v1185, 0
      %v1247 = vsel %vm479, %v1187, 0
      %v1250 = vsel %vm479, %v1189, 0
      %v1253 = vsel %vm479, %v1191, 0
      %v1256 = vsel %vm479, %v1193, 0
      %v1259 = vsel %vm479, %v1195, 0
      %v1262 = vsel %vm479, %v1197, 0
      %v1265 = vsel %vm479, %v1199, 0
      %v1268 = vsel %vm479, %v1201, 0
      %v1271 = vsel %vm479, %v1203, 0
      %v1274 = vsel %vm479, %v1205, 0
      %v1277 = vsel %vm479, %v1207, 0
      %v1280 = vsel %vm479, %v1209, 0
      %1282 = vmatprep.subr.bf16.mxu0 0
      %1283 = vmatpush1.bf16.msra.mxu0 %v1226
      %1284 = vmatprep.subr.bf16.mxu0 0
      %1285 = vmatpush1.bf16.msra.mxu0 %v1227
      %1286 = vmatprep.subr.bf16.mxu0 0
      %1287 = vmatpush1.bf16.msra.mxu0 %v1228
      %1288 = vmatprep.subr.bf16.mxu0 0
      %1289 = vmatpush1.bf16.msra.mxu0 %v1229
      %1290 = vmatprep.subr.bf16.mxu0 0
      %1291 = vmatpush1.bf16.msra.mxu0 0
      %1292 = vmatprep.subr.bf16.mxu0 0
      %1293 = vmatpush1.bf16.msra.mxu0 0
      %1294 = vmatprep.subr.bf16.mxu0 0
      %1295 = vmatpush1.bf16.msra.mxu0 0
      %1296 = vmatprep.subr.bf16.mxu0 0
      %1297 = vmatpush1.bf16.msra.mxu0 0
      %1298 = vmatprep.subr.bf16.mxu0 0
      %1299 = vmatpush1.bf16.msra.mxu0 0
      %1300 = vmatprep.subr.bf16.mxu0 0
      %1301 = vmatpush1.bf16.msra.mxu0 0
      %1302 = vmatprep.subr.bf16.mxu0 0
      %1303 = vmatpush1.bf16.msra.mxu0 0
      %1304 = vmatprep.subr.bf16.mxu0 0
      %1305 = vmatpush1.bf16.msra.mxu0 0
      %1306 = vmatprep.subr.bf16.mxu0 0
      %1307 = vmatpush1.bf16.msra.mxu0 0
      %1308 = vmatprep.subr.bf16.mxu0 0
      %1309 = vmatpush1.bf16.msra.mxu0 0
      %1310 = vmatprep.subr.bf16.mxu0 0
      %1311 = vmatpush1.bf16.msra.mxu0 0
      %1312 = vmatprep.subr.bf16.mxu0 0
      %1313 = vmatpush1.bf16.msra.mxu0 0
      %1314 = vmatprep.mubr.bf16.mxu0 0
      %1315 = vmatmul.mubr.bf16.gmra.mrb[0].mxu0 %v1235
      %v1316 = vpop.f32.mrb[0].mxu0
      %v1317 = vadd.f32 0.0, %v1316
      %v1318 = vpop.f32.mrb[0].mxu0
      %v1319 = vpop.f32.mrb[0].mxu0
      %v1320 = vadd.f32 0.0, %v1319
      %v1321 = vpop.f32.mrb[0].mxu0
      %1322 = vmatprep.mubr.bf16.mxu0 0
      %1323 = vmatmul.mubr.bf16.gmra.mrb[0].mxu0 %v1238
      %v1324 = vpop.f32.mrb[0].mxu0
      %v1325 = vadd.f32 0.0, %v1324
      %v1326 = vpop.f32.mrb[0].mxu0
      %v1327 = vpop.f32.mrb[0].mxu0
      %v1328 = vadd.f32 0.0, %v1327
      %v1329 = vpop.f32.mrb[0].mxu0
      %1330 = vmatprep.mubr.bf16.mxu0 0
      %1331 = vmatmul.mubr.bf16.gmra.mrb[0].mxu0 %v1241
      %v1332 = vpop.f32.mrb[0].mxu0
      %v1333 = vadd.f32 0.0, %v1332
      %v1334 = vpop.f32.mrb[0].mxu0
      %v1335 = vpop.f32.mrb[0].mxu0
      %v1336 = vadd.f32 0.0, %v1335
      %v1337 = vpop.f32.mrb[0].mxu0
      %1338 = vmatprep.mubr.bf16.mxu0 0
      %1339 = vmatmul.mubr.bf16.gmra.mrb[0].mxu0 %v1244
      %v1340 = vpop.f32.mrb[0].mxu0
      %v1341 = vadd.f32 0.0, %v1340
      %v1342 = vpop.f32.mrb[0].mxu0
      %v1343 = vpop.f32.mrb[0].mxu0
      %v1344 = vadd.f32 0.0, %v1343
      %v1345 = vpop.f32.mrb[0].mxu0
      %1346 = vmatprep.mubr.bf16.mxu0 0
      %1347 = vmatmul.mubr.bf16.gmra.mrb[0].mxu0 %v1247
      %v1348 = vpop.f32.mrb[0].mxu0
      %v1349 = vadd.f32 0.0, %v1348
      %v1350 = vpop.f32.mrb[0].mxu0
      %v1351 = vpop.f32.mrb[0].mxu0
      %v1352 = vadd.f32 0.0, %v1351
      %v1353 = vpop.f32.mrb[0].mxu0
      %1354 = vmatprep.mubr.bf16.mxu0 0
      %1355 = vmatmul.mubr.bf16.gmra.mrb[0].mxu0 %v1250
      %v1356 = vpop.f32.mrb[0].mxu0
      %v1357 = vadd.f32 0.0, %v1356
      %v1358 = vpop.f32.mrb[0].mxu0
      %v1359 = vpop.f32.mrb[0].mxu0
      %v1360 = vadd.f32 0.0, %v1359
      %v1361 = vpop.f32.mrb[0].mxu0
      %1362 = vmatprep.mubr.bf16.mxu0 0
      %1363 = vmatmul.mubr.bf16.gmra.mrb[0].mxu0 %v1253
      %v1364 = vpop.f32.mrb[0].mxu0
      %v1365 = vadd.f32 0.0, %v1364
      %v1366 = vpop.f32.mrb[0].mxu0
      %v1367 = vpop.f32.mrb[0].mxu0
      %v1368 = vadd.f32 0.0, %v1367
      %v1369 = vpop.f32.mrb[0].mxu0
      %1370 = vmatprep.mubr.bf16.mxu0 0
      %1371 = vmatmul.mubr.bf16.gmra.mrb[0].mxu0 %v1256
      %v1372 = vpop.f32.mrb[0].mxu0
      %v1373 = vadd.f32 0.0, %v1372
      %v1374 = vpop.f32.mrb[0].mxu0
      %v1375 = vpop.f32.mrb[0].mxu0
      %v1376 = vadd.f32 0.0, %v1375
      %v1377 = vpop.f32.mrb[0].mxu0
      %1378 = vmatprep.mubr.bf16.mxu0 0
      %1379 = vmatmul.mubr.bf16.gmra.mrb[0].mxu0 %v1259
      %v1380 = vpop.f32.mrb[0].mxu0
      %v1381 = vadd.f32 0.0, %v1380
      %v1382 = vpop.f32.mrb[0].mxu0
      %v1383 = vpop.f32.mrb[0].mxu0
      %v1384 = vadd.f32 0.0, %v1383
      %v1385 = vpop.f32.mrb[0].mxu0
      %1386 = vmatprep.mubr.bf16.mxu0 0
      %1387 = vmatmul.mubr.bf16.gmra.mrb[0].mxu0 %v1262
      %v1388 = vpop.f32.mrb[0].mxu0
      %v1389 = vadd.f32 0.0, %v1388
      %v1390 = vpop.f32.mrb[0].mxu0
      %v1391 = vpop.f32.mrb[0].mxu0
      %v1392 = vadd.f32 0.0, %v1391
      %v1393 = vpop.f32.mrb[0].mxu0
      %1394 = vmatprep.mubr.bf16.mxu0 0
      %1395 = vmatmul.mubr.bf16.gmra.mrb[0].mxu0 %v1265
      %v1396 = vpop.f32.mrb[0].mxu0
      %v1397 = vadd.f32 0.0, %v1396
      %v1398 = vpop.f32.mrb[0].mxu0
      %v1399 = vpop.f32.mrb[0].mxu0
      %v1400 = vadd.f32 0.0, %v1399
      %v1401 = vpop.f32.mrb[0].mxu0
      %1402 = vmatprep.mubr.bf16.mxu0 0
      %1403 = vmatmul.mubr.bf16.gmra.mrb[0].mxu0 %v1268
      %v1404 = vpop.f32.mrb[0].mxu0
      %v1405 = vadd.f32 0.0, %v1404
      %v1406 = vpop.f32.mrb[0].mxu0
      %v1407 = vpop.f32.mrb[0].mxu0
      %v1408 = vadd.f32 0.0, %v1407
      %v1409 = vpop.f32.mrb[0].mxu0
      %1410 = vmatprep.mubr.bf16.mxu0 0
      %1411 = vmatmul.mubr.bf16.gmra.mrb[0].mxu0 %v1271
      %v1412 = vpop.f32.mrb[0].mxu0
      %v1413 = vadd.f32 0.0, %v1412
      %v1414 = vpop.f32.mrb[0].mxu0
      %v1415 = vpop.f32.mrb[0].mxu0
      %v1416 = vadd.f32 0.0, %v1415
      %v1417 = vpop.f32.mrb[0].mxu0
      %1418 = vmatprep.mubr.bf16.mxu0 0
      %1419 = vmatmul.mubr.bf16.gmra.mrb[0].mxu0 %v1274
      %v1420 = vpop.f32.mrb[0].mxu0
      %v1421 = vadd.f32 0.0, %v1420
      %v1422 = vpop.f32.mrb[0].mxu0
      %v1423 = vpop.f32.mrb[0].mxu0
      %v1424 = vadd.f32 0.0, %v1423
      %v1425 = vpop.f32.mrb[0].mxu0
      %1426 = vmatprep.mubr.bf16.mxu0 0
      %1427 = vmatmul.mubr.bf16.gmra.mrb[0].mxu0 %v1277
      %v1428 = vpop.f32.mrb[0].mxu0
      %v1429 = vadd.f32 0.0, %v1428
      %v1430 = vpop.f32.mrb[0].mxu0
      %v1431 = vpop.f32.mrb[0].mxu0
      %v1432 = vadd.f32 0.0, %v1431
      %v1433 = vpop.f32.mrb[0].mxu0
      %1434 = vmatprep.mubr.bf16.mxu0 0
      %1435 = vmatmul.mubr.bf16.gmra.mrb[0].mxu0 %v1280
      %v1436 = vpop.f32.mrb[0].mxu0
      %v1437 = vadd.f32 0.0, %v1436
      %v1438 = vpop.f32.mrb[0].mxu0
      %v1439 = vpop.f32.mrb[0].mxu0
      %v1440 = vadd.f32 0.0, %v1439
      %v1441 = vpop.f32.mrb[0].mxu0
      %1442 = vdwg.mxu0
      %v1443 = vadd.f32 %v1023, %v1317
      %v1444 = vadd.f32 %v1026, %v1320
      %v1445 = vadd.f32 %v1031, %v1325
      %v1446 = vadd.f32 %v1034, %v1328
      %v1447 = vadd.f32 %v1039, %v1333
      %v1448 = vadd.f32 %v1042, %v1336
      %v1449 = vadd.f32 %v1047, %v1341
      %v1450 = vadd.f32 %v1050, %v1344
      %v1451 = vadd.f32 %v1055, %v1349
      %v1452 = vadd.f32 %v1058, %v1352
      %v1453 = vadd.f32 %v1063, %v1357
      %v1454 = vadd.f32 %v1066, %v1360
      %v1455 = vadd.f32 %v1071, %v1365
      %v1456 = vadd.f32 %v1074, %v1368
      %v1457 = vadd.f32 %v1079, %v1373
      %v1458 = vadd.f32 %v1082, %v1376
      %v1459 = vadd.f32 %v1087, %v1381
      %v1460 = vadd.f32 %v1090, %v1384
      %v1461 = vadd.f32 %v1095, %v1389
      %v1462 = vadd.f32 %v1098, %v1392
      %v1463 = vadd.f32 %v1103, %v1397
      %v1464 = vadd.f32 %v1106, %v1400
      %v1465 = vadd.f32 %v1111, %v1405
      %v1466 = vadd.f32 %v1114, %v1408
      %v1467 = vadd.f32 %v1119, %v1413
      %v1468 = vadd.f32 %v1122, %v1416
      %v1469 = vadd.f32 %v1127, %v1421
      %v1470 = vadd.f32 %v1130, %v1424
      %v1471 = vadd.f32 %v1135, %v1429
      %v1472 = vadd.f32 %v1138, %v1432
      %v1473 = vadd.f32 %v1143, %v1437
      %v1474 = vadd.f32 %v1146, %v1440
      %v1475 = vld [vmem:[#allocation2 + $0x8] sm:$0xfe]
      %v1476 = vld [vmem:[#allocation2 + $0x10] sm:$0xff]
      %v1477 = vld [vmem:[#allocation2 + $0x18] sm:$0xff]
      %v1478 = vld [vmem:[#allocation2 + $0x20] sm:$0xff]
      %v1479 = vld [vmem:[#allocation2 + $0x28] sm:$0xff]
      %v1480 = vld [vmem:[#allocation2 + $0x30] sm:$0xff]
      %v1481 = vld [vmem:[#allocation2 + $0x38] sm:$0xff]
      %v1482 = vld [vmem:[#allocation2 + $0x40] sm:$0xff]
      %v1483 = vld [vmem:[#allocation2 + $0x48] sm:$0xff]
      %v1484 = vld [vmem:[#allocation2 + $0x50] sm:$0xff]
      %v1485 = vld [vmem:[#allocation2 + $0x58] sm:$0xff]
      %v1486 = vld [vmem:[#allocation2 + $0x60] sm:$0xff]
      %v1487 = vld [vmem:[#allocation2 + $0x68] sm:$0xff]
      %v1488 = vld [vmem:[#allocation2 + $0x70] sm:$0xff]
      %v1489 = vld [vmem:[#allocation2 + $0x78] sm:$0xff]
      %v1490 = vld [vmem:[#allocation2 + $0x80] sm:$0xff]
      %v1491 = vld [vmem:[#allocation2 + $0x88] sm:$0x1]
      %s1492 = scalar_lea.vmem %s2, 96
      %v1493 = vld [vmem:[%s1492] sm:$0xf]
      %v1494 = vld [vmem:[%s1492 + $0x4] sm:$0xf]
      %v1495 = vld [vmem:[%s1492 + $0x8] sm:$0xf]
      %v1496 = vld [vmem:[%s1492 + $0xc] sm:$0xf]
      %v1497 = vld [vmem:[%s1492 + $0x10] sm:$0xf]
      %v1498 = vld [vmem:[%s1492 + $0x14] sm:$0xf]
      %v1499 = vld [vmem:[%s1492 + $0x18] sm:$0xf]
      %v1500 = vld [vmem:[%s1492 + $0x1c] sm:$0xf]
      %v1518 = vrot.slane %v1475, 1
      %v1519 = vrot.slane %v1476, 1
      %v1520 = vsel %vm1176, %v1518, %v1519
      %v1521 = vrot.slane %v1477, 1
      %v1522 = vsel %vm1176, %v1519, %v1521
      %v1523 = vrot.slane %v1478, 1
      %v1524 = vsel %vm1176, %v1521, %v1523
      %v1525 = vrot.slane %v1479, 1
      %v1526 = vsel %vm1176, %v1523, %v1525
      %v1527 = vrot.slane %v1480, 1
      %v1528 = vsel %vm1176, %v1525, %v1527
      %v1529 = vrot.slane %v1481, 1
      %v1530 = vsel %vm1176, %v1527, %v1529
      %v1531 = vrot.slane %v1482, 1
      %v1532 = vsel %vm1176, %v1529, %v1531
      %v1533 = vrot.slane %v1483, 1
      %v1534 = vsel %vm1176, %v1531, %v1533
      %v1535 = vrot.slane %v1484, 1
      %v1536 = vsel %vm1176, %v1533, %v1535
      %v1537 = vrot.slane %v1485, 1
      %v1538 = vsel %vm1176, %v1535, %v1537
      %v1539 = vrot.slane %v1486, 1
      %v1540 = vsel %vm1176, %v1537, %v1539
      %v1541 = vrot.slane %v1487, 1
      %v1542 = vsel %vm1176, %v1539, %v1541
      %v1543 = vrot.slane %v1488, 1
      %v1544 = vsel %vm1176, %v1541, %v1543
      %v1545 = vrot.slane %v1489, 1
      %v1546 = vsel %vm1176, %v1543, %v1545
      %v1547 = vrot.slane %v1490, 1
      %v1548 = vsel %vm1176, %v1545, %v1547
      %v1549 = vrot.slane %v1491, 1
      %v1550 = vsel %vm1176, %v1547, %v1549
      %v1559 = vunpack.c.l.b16 %v1493
      %v1560 = vunpack.c.l.b16 %v1494
      %v1561 = vunpack.c.l.b16 %v1495
      %v1562 = vunpack.c.l.b16 %v1496
      %v1563 = vunpack.c.l.b16 %v1497
      %v1564 = vunpack.c.l.b16 %v1498
      %v1565 = vunpack.c.l.b16 %v1499
      %v1566 = vunpack.c.l.b16 %v1500
      %v1567 = vpack.c.b16 %v1560, %v1559
      %v1568 = vpack.c.b16 %v1562, %v1561
      %v1569 = vpack.c.b16 %v1564, %v1563
      %v1570 = vpack.c.b16 %v1566, %v1565
      %v1576 = vsel %vm479, %v1520, 0
      %v1579 = vsel %vm479, %v1522, 0
      %v1582 = vsel %vm479, %v1524, 0
      %v1585 = vsel %vm479, %v1526, 0
      %v1588 = vsel %vm479, %v1528, 0
      %v1591 = vsel %vm479, %v1530, 0
      %v1594 = vsel %vm479, %v1532, 0
      %v1597 = vsel %vm479, %v1534, 0
      %v1600 = vsel %vm479, %v1536, 0
      %v1603 = vsel %vm479, %v1538, 0
      %v1606 = vsel %vm479, %v1540, 0
      %v1609 = vsel %vm479, %v1542, 0
      %v1612 = vsel %vm479, %v1544, 0
      %v1615 = vsel %vm479, %v1546, 0
      %v1618 = vsel %vm479, %v1548, 0
      %v1621 = vsel %vm479, %v1550, 0
      %1623 = vmatprep.subr.bf16.mxu0 0
      %1624 = vmatpush1.bf16.msra.mxu0 %v1567
      %1625 = vmatprep.subr.bf16.mxu0 0
      %1626 = vmatpush1.bf16.msra.mxu0 %v1568
      %1627 = vmatprep.subr.bf16.mxu0 0
      %1628 = vmatpush1.bf16.msra.mxu0 %v1569
      %1629 = vmatprep.subr.bf16.mxu0 0
      %1630 = vmatpush1.bf16.msra.mxu0 %v1570
      %1631 = vmatprep.subr.bf16.mxu0 0
      %1632 = vmatpush1.bf16.msra.mxu0 0
      %1633 = vmatprep.subr.bf16.mxu0 0
      %1634 = vmatpush1.bf16.msra.mxu0 0
      %1635 = vmatprep.subr.bf16.mxu0 0
      %1636 = vmatpush1.bf16.msra.mxu0 0
      %1637 = vmatprep.subr.bf16.mxu0 0
      %1638 = vmatpush1.bf16.msra.mxu0 0
      %1639 = vmatprep.subr.bf16.mxu0 0
      %1640 = vmatpush1.bf16.msra.mxu0 0
      %1641 = vmatprep.subr.bf16.mxu0 0
      %1642 = vmatpush1.bf16.msra.mxu0 0
      %1643 = vmatprep.subr.bf16.mxu0 0
      %1644 = vmatpush1.bf16.msra.mxu0 0
      %1645 = vmatprep.subr.bf16.mxu0 0
      %1646 = vmatpush1.bf16.msra.mxu0 0
      %1647 = vmatprep.subr.bf16.mxu0 0
      %1648 = vmatpush1.bf16.msra.mxu0 0
      %1649 = vmatprep.subr.bf16.mxu0 0
      %1650 = vmatpush1.bf16.msra.mxu0 0
      %1651 = vmatprep.subr.bf16.mxu0 0
      %1652 = vmatpush1.bf16.msra.mxu0 0
      %1653 = vmatprep.subr.bf16.mxu0 0
      %1654 = vmatpush1.bf16.msra.mxu0 0
      %1655 = vmatprep.mubr.bf16.mxu0 0
      %1656 = vmatmul.mubr.bf16.gmra.mrb[0].mxu0 %v1576
      %v1657 = vpop.f32.mrb[0].mxu0
      %v1658 = vadd.f32 0.0, %v1657
      %v1659 = vpop.f32.mrb[0].mxu0
      %v1660 = vpop.f32.mrb[0].mxu0
      %v1661 = vadd.f32 0.0, %v1660
      %v1662 = vpop.f32.mrb[0].mxu0
      %1663 = vmatprep.mubr.bf16.mxu0 0
      %1664 = vmatmul.mubr.bf16.gmra.mrb[0].mxu0 %v1579
      %v1665 = vpop.f32.mrb[0].mxu0
      %v1666 = vadd.f32 0.0, %v1665
      %v1667 = vpop.f32.mrb[0].mxu0
      %v1668 = vpop.f32.mrb[0].mxu0
      %v1669 = vadd.f32 0.0, %v1668
      %v1670 = vpop.f32.mrb[0].mxu0
      %1671 = vmatprep.mubr.bf16.mxu0 0
      %1672 = vmatmul.mubr.bf16.gmra.mrb[0].mxu0 %v1582
      %v1673 = vpop.f32.mrb[0].mxu0
      %v1674 = vadd.f32 0.0, %v1673
      %v1675 = vpop.f32.mrb[0].mxu0
      %v1676 = vpop.f32.mrb[0].mxu0
      %v1677 = vadd.f32 0.0, %v1676
      %v1678 = vpop.f32.mrb[0].mxu0
      %1679 = vmatprep.mubr.bf16.mxu0 0
      %1680 = vmatmul.mubr.bf16.gmra.mrb[0].mxu0 %v1585
      %v1681 = vpop.f32.mrb[0].mxu0
      %v1682 = vadd.f32 0.0, %v1681
      %v1683 = vpop.f32.mrb[0].mxu0
      %v1684 = vpop.f32.mrb[0].mxu0
      %v1685 = vadd.f32 0.0, %v1684
      %v1686 = vpop.f32.mrb[0].mxu0
      %1687 = vmatprep.mubr.bf16.mxu0 0
      %1688 = vmatmul.mubr.bf16.gmra.mrb[0].mxu0 %v1588
      %v1689 = vpop.f32.mrb[0].mxu0
      %v1690 = vadd.f32 0.0, %v1689
      %v1691 = vpop.f32.mrb[0].mxu0
      %v1692 = vpop.f32.mrb[0].mxu0
      %v1693 = vadd.f32 0.0, %v1692
      %v1694 = vpop.f32.mrb[0].mxu0
      %1695 = vmatprep.mubr.bf16.mxu0 0
      %1696 = vmatmul.mubr.bf16.gmra.mrb[0].mxu0 %v1591
      %v1697 = vpop.f32.mrb[0].mxu0
      %v1698 = vadd.f32 0.0, %v1697
      %v1699 = vpop.f32.mrb[0].mxu0
      %v1700 = vpop.f32.mrb[0].mxu0
      %v1701 = vadd.f32 0.0, %v1700
      %v1702 = vpop.f32.mrb[0].mxu0
      %1703 = vmatprep.mubr.bf16.mxu0 0
      %1704 = vmatmul.mubr.bf16.gmra.mrb[0].mxu0 %v1594
      %v1705 = vpop.f32.mrb[0].mxu0
      %v1706 = vadd.f32 0.0, %v1705
      %v1707 = vpop.f32.mrb[0].mxu0
      %v1708 = vpop.f32.mrb[0].mxu0
      %v1709 = vadd.f32 0.0, %v1708
      %v1710 = vpop.f32.mrb[0].mxu0
      %1711 = vmatprep.mubr.bf16.mxu0 0
      %1712 = vmatmul.mubr.bf16.gmra.mrb[0].mxu0 %v1597
      %v1713 = vpop.f32.mrb[0].mxu0
      %v1714 = vadd.f32 0.0, %v1713
      %v1715 = vpop.f32.mrb[0].mxu0
      %v1716 = vpop.f32.mrb[0].mxu0
      %v1717 = vadd.f32 0.0, %v1716
      %v1718 = vpop.f32.mrb[0].mxu0
      %1719 = vmatprep.mubr.bf16.mxu0 0
      %1720 = vmatmul.mubr.bf16.gmra.mrb[0].mxu0 %v1600
      %v1721 = vpop.f32.mrb[0].mxu0
      %v1722 = vadd.f32 0.0, %v1721
      %v1723 = vpop.f32.mrb[0].mxu0
      %v1724 = vpop.f32.mrb[0].mxu0
      %v1725 = vadd.f32 0.0, %v1724
      %v1726 = vpop.f32.mrb[0].mxu0
      %1727 = vmatprep.mubr.bf16.mxu0 0
      %1728 = vmatmul.mubr.bf16.gmra.mrb[0].mxu0 %v1603
      %v1729 = vpop.f32.mrb[0].mxu0
      %v1730 = vadd.f32 0.0, %v1729
      %v1731 = vpop.f32.mrb[0].mxu0
      %v1732 = vpop.f32.mrb[0].mxu0
      %v1733 = vadd.f32 0.0, %v1732
      %v1734 = vpop.f32.mrb[0].mxu0
      %1735 = vmatprep.mubr.bf16.mxu0 0
      %1736 = vmatmul.mubr.bf16.gmra.mrb[0].mxu0 %v1606
      %v1737 = vpop.f32.mrb[0].mxu0
      %v1738 = vadd.f32 0.0, %v1737
      %v1739 = vpop.f32.mrb[0].mxu0
      %v1740 = vpop.f32.mrb[0].mxu0
      %v1741 = vadd.f32 0.0, %v1740
      %v1742 = vpop.f32.mrb[0].mxu0
      %1743 = vmatprep.mubr.bf16.mxu0 0
      %1744 = vmatmul.mubr.bf16.gmra.mrb[0].mxu0 %v1609
      %v1745 = vpop.f32.mrb[0].mxu0
      %v1746 = vadd.f32 0.0, %v1745
      %v1747 = vpop.f32.mrb[0].mxu0
      %v1748 = vpop.f32.mrb[0].mxu0
      %v1749 = vadd.f32 0.0, %v1748
      %v1750 = vpop.f32.mrb[0].mxu0
      %1751 = vmatprep.mubr.bf16.mxu0 0
      %1752 = vmatmul.mubr.bf16.gmra.mrb[0].mxu0 %v1612
      %v1753 = vpop.f32.mrb[0].mxu0
      %v1754 = vadd.f32 0.0, %v1753
      %v1755 = vpop.f32.mrb[0].mxu0
      %v1756 = vpop.f32.mrb[0].mxu0
      %v1757 = vadd.f32 0.0, %v1756
      %v1758 = vpop.f32.mrb[0].mxu0
      %1759 = vmatprep.mubr.bf16.mxu0 0
      %1760 = vmatmul.mubr.bf16.gmra.mrb[0].mxu0 %v1615
      %v1761 = vpop.f32.mrb[0].mxu0
      %v1762 = vadd.f32 0.0, %v1761
      %v1763 = vpop.f32.mrb[0].mxu0
      %v1764 = vpop.f32.mrb[0].mxu0
      %v1765 = vadd.f32 0.0, %v1764
      %v1766 = vpop.f32.mrb[0].mxu0
      %1767 = vmatprep.mubr.bf16.mxu0 0
      %1768 = vmatmul.mubr.bf16.gmra.mrb[0].mxu0 %v1618
      %v1769 = vpop.f32.mrb[0].mxu0
      %v1770 = vadd.f32 0.0, %v1769
      %v1771 = vpop.f32.mrb[0].mxu0
      %v1772 = vpop.f32.mrb[0].mxu0
      %v1773 = vadd.f32 0.0, %v1772
      %v1774 = vpop.f32.mrb[0].mxu0
      %1775 = vmatprep.mubr.bf16.mxu0 0
      %1776 = vmatmul.mubr.bf16.gmra.mrb[0].mxu0 %v1621
      %v1777 = vpop.f32.mrb[0].mxu0
      %v1778 = vadd.f32 0.0, %v1777
      %v1779 = vpop.f32.mrb[0].mxu0
      %v1780 = vpop.f32.mrb[0].mxu0
      %v1781 = vadd.f32 0.0, %v1780
      %v1782 = vpop.f32.mrb[0].mxu0
      %1783 = vdwg.mxu0
      %v1784 = vadd.f32 %v1443, %v1658
      %v1785 = vadd.f32 %v1444, %v1661
      %v1786 = vadd.f32 %v1445, %v1666
      %v1787 = vadd.f32 %v1446, %v1669
      %v1788 = vadd.f32 %v1447, %v1674
      %v1789 = vadd.f32 %v1448, %v1677
      %v1790 = vadd.f32 %v1449, %v1682
      %v1791 = vadd.f32 %v1450, %v1685
      %v1792 = vadd.f32 %v1451, %v1690
      %v1793 = vadd.f32 %v1452, %v1693
      %v1794 = vadd.f32 %v1453, %v1698
      %v1795 = vadd.f32 %v1454, %v1701
      %v1796 = vadd.f32 %v1455, %v1706
      %v1797 = vadd.f32 %v1456, %v1709
      %v1798 = vadd.f32 %v1457, %v1714
      %v1799 = vadd.f32 %v1458, %v1717
      %v1800 = vadd.f32 %v1459, %v1722
      %v1801 = vadd.f32 %v1460, %v1725
      %v1802 = vadd.f32 %v1461, %v1730
      %v1803 = vadd.f32 %v1462, %v1733
      %v1804 = vadd.f32 %v1463, %v1738
      %v1805 = vadd.f32 %v1464, %v1741
      %v1806 = vadd.f32 %v1465, %v1746
      %v1807 = vadd.f32 %v1466, %v1749
      %v1808 = vadd.f32 %v1467, %v1754
      %v1809 = vadd.f32 %v1468, %v1757
      %v1810 = vadd.f32 %v1469, %v1762
      %v1811 = vadd.f32 %v1470, %v1765
      %v1812 = vadd.f32 %v1471, %v1770
      %v1813 = vadd.f32 %v1472, %v1773
      %v1814 = vadd.f32 %v1473, %v1778
      %v1815 = vadd.f32 %v1474, %v1781
      %v1816 = vld [vmem:[#allocation2 + $0x88] sm:$0x3]
      %s1817 = scalar_lea.vmem %s2, 128
      %v1818 = vld [vmem:[%s1817] sm:$0xf]
      %v1819 = vld [vmem:[%s1817 + $0x4] sm:$0xf]
      %v1820 = vld [vmem:[%s1817 + $0x8] sm:$0xf]
      %v1821 = vld [vmem:[%s1817 + $0xc] sm:$0xf]
      %v1822 = vld [vmem:[%s1817 + $0x10] sm:$0xf]
      %v1823 = vld [vmem:[%s1817 + $0x14] sm:$0xf]
      %v1824 = vld [vmem:[%s1817 + $0x18] sm:$0xf]
      %v1825 = vld [vmem:[%s1817 + $0x1c] sm:$0xf]
      %vm1826 = vsmask.f32 6400
      %v1828 = vshrl.u32 %v1475, 16
      %v1830 = vrot.slane %v1828, 1
      %v1831 = vshll.u32 %v1475, 16
      %v1833 = vrot.slane %v1831, 2
      %v1834 = vor.u32 %v1830, %v1833
      %v1836 = vshrl.u32 %v1476, 16
      %v1838 = vrot.slane %v1836, 1
      %v1839 = vshll.u32 %v1476, 16
      %v1841 = vrot.slane %v1839, 2
      %v1842 = vor.u32 %v1838, %v1841
      %v1843 = vsel %vm1826, %v1834, %v1842
      %v1845 = vshrl.u32 %v1477, 16
      %v1847 = vrot.slane %v1845, 1
      %v1848 = vshll.u32 %v1477, 16
      %v1850 = vrot.slane %v1848, 2
      %v1851 = vor.u32 %v1847, %v1850
      %v1852 = vsel %vm1826, %v1842, %v1851
      %v1854 = vshrl.u32 %v1478, 16
      %v1856 = vrot.slane %v1854, 1
      %v1857 = vshll.u32 %v1478, 16
      %v1859 = vrot.slane %v1857, 2
      %v1860 = vor.u32 %v1856, %v1859
      %v1861 = vsel %vm1826, %v1851, %v1860
      %v1863 = vshrl.u32 %v1479, 16
      %v1865 = vrot.slane %v1863, 1
      %v1866 = vshll.u32 %v1479, 16
      %v1868 = vrot.slane %v1866, 2
      %v1869 = vor.u32 %v1865, %v1868
      %v1870 = vsel %vm1826, %v1860, %v1869
      %v1872 = vshrl.u32 %v1480, 16
      %v1874 = vrot.slane %v1872, 1
      %v1875 = vshll.u32 %v1480, 16
      %v1877 = vrot.slane %v1875, 2
      %v1878 = vor.u32 %v1874, %v1877
      %v1879 = vsel %vm1826, %v1869, %v1878
      %v1881 = vshrl.u32 %v1481, 16
      %v1883 = vrot.slane %v1881, 1
      %v1884 = vshll.u32 %v1481, 16
      %v1886 = vrot.slane %v1884, 2
      %v1887 = vor.u32 %v1883, %v1886
      %v1888 = vsel %vm1826, %v1878, %v1887
      %v1890 = vshrl.u32 %v1482, 16
      %v1892 = vrot.slane %v1890, 1
      %v1893 = vshll.u32 %v1482, 16
      %v1895 = vrot.slane %v1893, 2
      %v1896 = vor.u32 %v1892, %v1895
      %v1897 = vsel %vm1826, %v1887, %v1896
      %v1899 = vshrl.u32 %v1483, 16
      %v1901 = vrot.slane %v1899, 1
      %v1902 = vshll.u32 %v1483, 16
      %v1904 = vrot.slane %v1902, 2
      %v1905 = vor.u32 %v1901, %v1904
      %v1906 = vsel %vm1826, %v1896, %v1905
      %v1908 = vshrl.u32 %v1484, 16
      %v1910 = vrot.slane %v1908, 1
      %v1911 = vshll.u32 %v1484, 16
      %v1913 = vrot.slane %v1911, 2
      %v1914 = vor.u32 %v1910, %v1913
      %v1915 = vsel %vm1826, %v1905, %v1914
      %v1917 = vshrl.u32 %v1485, 16
      %v1919 = vrot.slane %v1917, 1
      %v1920 = vshll.u32 %v1485, 16
      %v1922 = vrot.slane %v1920, 2
      %v1923 = vor.u32 %v1919, %v1922
      %v1924 = vsel %vm1826, %v1914, %v1923
      %v1926 = vshrl.u32 %v1486, 16
      %v1928 = vrot.slane %v1926, 1
      %v1929 = vshll.u32 %v1486, 16
      %v1931 = vrot.slane %v1929, 2
      %v1932 = vor.u32 %v1928, %v1931
      %v1933 = vsel %vm1826, %v1923, %v1932
      %v1935 = vshrl.u32 %v1487, 16
      %v1937 = vrot.slane %v1935, 1
      %v1938 = vshll.u32 %v1487, 16
      %v1940 = vrot.slane %v1938, 2
      %v1941 = vor.u32 %v1937, %v1940
      %v1942 = vsel %vm1826, %v1932, %v1941
      %v1944 = vshrl.u32 %v1488, 16
      %v1946 = vrot.slane %v1944, 1
      %v1947 = vshll.u32 %v1488, 16
      %v1949 = vrot.slane %v1947, 2
      %v1950 = vor.u32 %v1946, %v1949
      %v1951 = vsel %vm1826, %v1941, %v1950
      %v1953 = vshrl.u32 %v1489, 16
      %v1955 = vrot.slane %v1953, 1
      %v1956 = vshll.u32 %v1489, 16
      %v1958 = vrot.slane %v1956, 2
      %v1959 = vor.u32 %v1955, %v1958
      %v1960 = vsel %vm1826, %v1950, %v1959
      %v1962 = vshrl.u32 %v1490, 16
      %v1964 = vrot.slane %v1962, 1
      %v1965 = vshll.u32 %v1490, 16
      %v1967 = vrot.slane %v1965, 2
      %v1968 = vor.u32 %v1964, %v1967
      %v1969 = vsel %vm1826, %v1959, %v1968
      %v1971 = vshrl.u32 %v1816, 16
      %v1973 = vrot.slane %v1971, 1
      %v1974 = vshll.u32 %v1816, 16
      %v1976 = vrot.slane %v1974, 2
      %v1977 = vor.u32 %v1973, %v1976
      %v1978 = vsel %vm1826, %v1968, %v1977
      %v1987 = vunpack.c.l.b16 %v1818
      %v1988 = vunpack.c.l.b16 %v1819
      %v1989 = vunpack.c.l.b16 %v1820
      %v1990 = vunpack.c.l.b16 %v1821
      %v1991 = vunpack.c.l.b16 %v1822
      %v1992 = vunpack.c.l.b16 %v1823
      %v1993 = vunpack.c.l.b16 %v1824
      %v1994 = vunpack.c.l.b16 %v1825
      %v1995 = vpack.c.b16 %v1988, %v1987
      %v1996 = vpack.c.b16 %v1990, %v1989
      %v1997 = vpack.c.b16 %v1992, %v1991
      %v1998 = vpack.c.b16 %v1994, %v1993
      %v2004 = vsel %vm479, %v1843, 0
      %v2007 = vsel %vm479, %v1852, 0
      %v2010 = vsel %vm479, %v1861, 0
      %v2013 = vsel %vm479, %v1870, 0
      %v2016 = vsel %vm479, %v1879, 0
      %v2019 = vsel %vm479, %v1888, 0
      %v2022 = vsel %vm479, %v1897, 0
      %v2025 = vsel %vm479, %v1906, 0
      %v2028 = vsel %vm479, %v1915, 0
      %v2031 = vsel %vm479, %v1924, 0
      %v2034 = vsel %vm479, %v1933, 0
      %v2037 = vsel %vm479, %v1942, 0
      %v2040 = vsel %vm479, %v1951, 0
      %v2043 = vsel %vm479, %v1960, 0
      %v2046 = vsel %vm479, %v1969, 0
      %v2049 = vsel %vm479, %v1978, 0
      %2051 = vmatprep.subr.bf16.mxu0 0
      %2052 = vmatpush1.bf16.msra.mxu0 %v1995
      %2053 = vmatprep.subr.bf16.mxu0 0
      %2054 = vmatpush1.bf16.msra.mxu0 %v1996
      %2055 = vmatprep.subr.bf16.mxu0 0
      %2056 = vmatpush1.bf16.msra.mxu0 %v1997
      %2057 = vmatprep.subr.bf16.mxu0 0
      %2058 = vmatpush1.bf16.msra.mxu0 %v1998
      %2059 = vmatprep.subr.bf16.mxu0 0
      %2060 = vmatpush1.bf16.msra.mxu0 0
      %2061 = vmatprep.subr.bf16.mxu0 0
      %2062 = vmatpush1.bf16.msra.mxu0 0
      %2063 = vmatprep.subr.bf16.mxu0 0
      %2064 = vmatpush1.bf16.msra.mxu0 0
      %2065 = vmatprep.subr.bf16.mxu0 0
      %2066 = vmatpush1.bf16.msra.mxu0 0
      %2067 = vmatprep.subr.bf16.mxu0 0
      %2068 = vmatpush1.bf16.msra.mxu0 0
      %2069 = vmatprep.subr.bf16.mxu0 0
      %2070 = vmatpush1.bf16.msra.mxu0 0
      %2071 = vmatprep.subr.bf16.mxu0 0
      %2072 = vmatpush1.bf16.msra.mxu0 0
      %2073 = vmatprep.subr.bf16.mxu0 0
      %2074 = vmatpush1.bf16.msra.mxu0 0
      %2075 = vmatprep.subr.bf16.mxu0 0
      %2076 = vmatpush1.bf16.msra.mxu0 0
      %2077 = vmatprep.subr.bf16.mxu0 0
      %2078 = vmatpush1.bf16.msra.mxu0 0
      %2079 = vmatprep.subr.bf16.mxu0 0
      %2080 = vmatpush1.bf16.msra.mxu0 0
      %2081 = vmatprep.subr.bf16.mxu0 0
      %2082 = vmatpush1.bf16.msra.mxu0 0
      %2083 = vmatprep.mubr.bf16.mxu0 0
      %2084 = vmatmul.mubr.bf16.gmra.mrb[0].mxu0 %v2004
      %v2085 = vpop.f32.mrb[0].mxu0
      %v2086 = vadd.f32 0.0, %v2085
      %v2087 = vpop.f32.mrb[0].mxu0
      %v2088 = vpop.f32.mrb[0].mxu0
      %v2089 = vadd.f32 0.0, %v2088
      %v2090 = vpop.f32.mrb[0].mxu0
      %2091 = vmatprep.mubr.bf16.mxu0 0
      %2092 = vmatmul.mubr.bf16.gmra.mrb[0].mxu0 %v2007
      %v2093 = vpop.f32.mrb[0].mxu0
      %v2094 = vadd.f32 0.0, %v2093
      %v2095 = vpop.f32.mrb[0].mxu0
      %v2096 = vpop.f32.mrb[0].mxu0
      %v2097 = vadd.f32 0.0, %v2096
      %v2098 = vpop.f32.mrb[0].mxu0
      %2099 = vmatprep.mubr.bf16.mxu0 0
      %2100 = vmatmul.mubr.bf16.gmra.mrb[0].mxu0 %v2010
      %v2101 = vpop.f32.mrb[0].mxu0
      %v2102 = vadd.f32 0.0, %v2101
      %v2103 = vpop.f32.mrb[0].mxu0
      %v2104 = vpop.f32.mrb[0].mxu0
      %v2105 = vadd.f32 0.0, %v2104
      %v2106 = vpop.f32.mrb[0].mxu0
      %2107 = vmatprep.mubr.bf16.mxu0 0
      %2108 = vmatmul.mubr.bf16.gmra.mrb[0].mxu0 %v2013
      %v2109 = vpop.f32.mrb[0].mxu0
      %v2110 = vadd.f32 0.0, %v2109
      %v2111 = vpop.f32.mrb[0].mxu0
      %v2112 = vpop.f32.mrb[0].mxu0
      %v2113 = vadd.f32 0.0, %v2112
      %v2114 = vpop.f32.mrb[0].mxu0
      %2115 = vmatprep.mubr.bf16.mxu0 0
      %2116 = vmatmul.mubr.bf16.gmra.mrb[0].mxu0 %v2016
      %v2117 = vpop.f32.mrb[0].mxu0
      %v2118 = vadd.f32 0.0, %v2117
      %v2119 = vpop.f32.mrb[0].mxu0
      %v2120 = vpop.f32.mrb[0].mxu0
      %v2121 = vadd.f32 0.0, %v2120
      %v2122 = vpop.f32.mrb[0].mxu0
      %2123 = vmatprep.mubr.bf16.mxu0 0
      %2124 = vmatmul.mubr.bf16.gmra.mrb[0].mxu0 %v2019
      %v2125 = vpop.f32.mrb[0].mxu0
      %v2126 = vadd.f32 0.0, %v2125
      %v2127 = vpop.f32.mrb[0].mxu0
      %v2128 = vpop.f32.mrb[0].mxu0
      %v2129 = vadd.f32 0.0, %v2128
      %v2130 = vpop.f32.mrb[0].mxu0
      %2131 = vmatprep.mubr.bf16.mxu0 0
      %2132 = vmatmul.mubr.bf16.gmra.mrb[0].mxu0 %v2022
      %v2133 = vpop.f32.mrb[0].mxu0
      %v2134 = vadd.f32 0.0, %v2133
      %v2135 = vpop.f32.mrb[0].mxu0
      %v2136 = vpop.f32.mrb[0].mxu0
      %v2137 = vadd.f32 0.0, %v2136
      %v2138 = vpop.f32.mrb[0].mxu0
      %2139 = vmatprep.mubr.bf16.mxu0 0
      %2140 = vmatmul.mubr.bf16.gmra.mrb[0].mxu0 %v2025
      %v2141 = vpop.f32.mrb[0].mxu0
      %v2142 = vadd.f32 0.0, %v2141
      %v2143 = vpop.f32.mrb[0].mxu0
      %v2144 = vpop.f32.mrb[0].mxu0
      %v2145 = vadd.f32 0.0, %v2144
      %v2146 = vpop.f32.mrb[0].mxu0
      %2147 = vmatprep.mubr.bf16.mxu0 0
      %2148 = vmatmul.mubr.bf16.gmra.mrb[0].mxu0 %v2028
      %v2149 = vpop.f32.mrb[0].mxu0
      %v2150 = vadd.f32 0.0, %v2149
      %v2151 = vpop.f32.mrb[0].mxu0
      %v2152 = vpop.f32.mrb[0].mxu0
      %v2153 = vadd.f32 0.0, %v2152
      %v2154 = vpop.f32.mrb[0].mxu0
      %2155 = vmatprep.mubr.bf16.mxu0 0
      %2156 = vmatmul.mubr.bf16.gmra.mrb[0].mxu0 %v2031
      %v2157 = vpop.f32.mrb[0].mxu0
      %v2158 = vadd.f32 0.0, %v2157
      %v2159 = vpop.f32.mrb[0].mxu0
      %v2160 = vpop.f32.mrb[0].mxu0
      %v2161 = vadd.f32 0.0, %v2160
      %v2162 = vpop.f32.mrb[0].mxu0
      %2163 = vmatprep.mubr.bf16.mxu0 0
      %2164 = vmatmul.mubr.bf16.gmra.mrb[0].mxu0 %v2034
      %v2165 = vpop.f32.mrb[0].mxu0
      %v2166 = vadd.f32 0.0, %v2165
      %v2167 = vpop.f32.mrb[0].mxu0
      %v2168 = vpop.f32.mrb[0].mxu0
      %v2169 = vadd.f32 0.0, %v2168
      %v2170 = vpop.f32.mrb[0].mxu0
      %2171 = vmatprep.mubr.bf16.mxu0 0
      %2172 = vmatmul.mubr.bf16.gmra.mrb[0].mxu0 %v2037
      %v2173 = vpop.f32.mrb[0].mxu0
      %v2174 = vadd.f32 0.0, %v2173
      %v2175 = vpop.f32.mrb[0].mxu0
      %v2176 = vpop.f32.mrb[0].mxu0
      %v2177 = vadd.f32 0.0, %v2176
      %v2178 = vpop.f32.mrb[0].mxu0
      %2179 = vmatprep.mubr.bf16.mxu0 0
      %2180 = vmatmul.mubr.bf16.gmra.mrb[0].mxu0 %v2040
      %v2181 = vpop.f32.mrb[0].mxu0
      %v2182 = vadd.f32 0.0, %v2181
      %v2183 = vpop.f32.mrb[0].mxu0
      %v2184 = vpop.f32.mrb[0].mxu0
      %v2185 = vadd.f32 0.0, %v2184
      %v2186 = vpop.f32.mrb[0].mxu0
      %2187 = vmatprep.mubr.bf16.mxu0 0
      %2188 = vmatmul.mubr.bf16.gmra.mrb[0].mxu0 %v2043
      %v2189 = vpop.f32.mrb[0].mxu0
      %v2190 = vadd.f32 0.0, %v2189
      %v2191 = vpop.f32.mrb[0].mxu0
      %v2192 = vpop.f32.mrb[0].mxu0
      %v2193 = vadd.f32 0.0, %v2192
      %v2194 = vpop.f32.mrb[0].mxu0
      %2195 = vmatprep.mubr.bf16.mxu0 0
      %2196 = vmatmul.mubr.bf16.gmra.mrb[0].mxu0 %v2046
      %v2197 = vpop.f32.mrb[0].mxu0
      %v2198 = vadd.f32 0.0, %v2197
      %v2199 = vpop.f32.mrb[0].mxu0
      %v2200 = vpop.f32.mrb[0].mxu0
      %v2201 = vadd.f32 0.0, %v2200
      %v2202 = vpop.f32.mrb[0].mxu0
      %2203 = vmatprep.mubr.bf16.mxu0 0
      %2204 = vmatmul.mubr.bf16.gmra.mrb[0].mxu0 %v2049
      %v2205 = vpop.f32.mrb[0].mxu0
      %v2206 = vadd.f32 0.0, %v2205
      %v2207 = vpop.f32.mrb[0].mxu0
      %v2208 = vpop.f32.mrb[0].mxu0
      %v2209 = vadd.f32 0.0, %v2208
      %v2210 = vpop.f32.mrb[0].mxu0
      %2211 = vdwg.mxu0
      %v2212 = vadd.f32 %v1784, %v2086
      %v2213 = vadd.f32 %v1785, %v2089
      %v2214 = vadd.f32 %v1786, %v2094
      %v2215 = vadd.f32 %v1787, %v2097
      %v2216 = vadd.f32 %v1788, %v2102
      %v2217 = vadd.f32 %v1789, %v2105
      %v2218 = vadd.f32 %v1790, %v2110
      %v2219 = vadd.f32 %v1791, %v2113
      %v2220 = vadd.f32 %v1792, %v2118
      %v2221 = vadd.f32 %v1793, %v2121
      %v2222 = vadd.f32 %v1794, %v2126
      %v2223 = vadd.f32 %v1795, %v2129
      %v2224 = vadd.f32 %v1796, %v2134
      %v2225 = vadd.f32 %v1797, %v2137
      %v2226 = vadd.f32 %v1798, %v2142
      %v2227 = vadd.f32 %v1799, %v2145
      %v2228 = vadd.f32 %v1800, %v2150
      %v2229 = vadd.f32 %v1801, %v2153
      %v2230 = vadd.f32 %v1802, %v2158
      %v2231 = vadd.f32 %v1803, %v2161
      %v2232 = vadd.f32 %v1804, %v2166
      %v2233 = vadd.f32 %v1805, %v2169
      %v2234 = vadd.f32 %v1806, %v2174
      %v2235 = vadd.f32 %v1807, %v2177
      %v2236 = vadd.f32 %v1808, %v2182
      %v2237 = vadd.f32 %v1809, %v2185
      %v2238 = vadd.f32 %v1810, %v2190
      %v2239 = vadd.f32 %v1811, %v2193
      %v2240 = vadd.f32 %v1812, %v2198
      %v2241 = vadd.f32 %v1813, %v2201
      %v2242 = vadd.f32 %v1814, %v2206
      %v2243 = vadd.f32 %v1815, %v2209
      %v2244 = vld [vmem:[#allocation2 + $0x8] sm:$0xfc]
      %s2245 = scalar_lea.vmem %s2, 160
      %v2246 = vld [vmem:[%s2245] sm:$0xf]
      %v2247 = vld [vmem:[%s2245 + $0x4] sm:$0xf]
      %v2248 = vld [vmem:[%s2245 + $0x8] sm:$0xf]
      %v2249 = vld [vmem:[%s2245 + $0xc] sm:$0xf]
      %v2250 = vld [vmem:[%s2245 + $0x10] sm:$0xf]
      %v2251 = vld [vmem:[%s2245 + $0x14] sm:$0xf]
      %v2252 = vld [vmem:[%s2245 + $0x18] sm:$0xf]
      %v2253 = vld [vmem:[%s2245 + $0x1c] sm:$0xf]
      %vm2256 = vcmask 1045504
      %v2257 = vrot.slane %v2244, 2
      %v2258 = vrot.slane %v1476, 2
      %v2259 = vsel %vm2256, %v2257, %v2258
      %v2260 = vrot.slane %v1477, 2
      %v2261 = vsel %vm2256, %v2258, %v2260
      %v2262 = vrot.slane %v1478, 2
      %v2263 = vsel %vm2256, %v2260, %v2262
      %v2264 = vrot.slane %v1479, 2
      %v2265 = vsel %vm2256, %v2262, %v2264
      %v2266 = vrot.slane %v1480, 2
      %v2267 = vsel %vm2256, %v2264, %v2266
      %v2268 = vrot.slane %v1481, 2
      %v2269 = vsel %vm2256, %v2266, %v2268
      %v2270 = vrot.slane %v1482, 2
      %v2271 = vsel %vm2256, %v2268, %v2270
      %v2272 = vrot.slane %v1483, 2
      %v2273 = vsel %vm2256, %v2270, %v2272
      %v2274 = vrot.slane %v1484, 2
      %v2275 = vsel %vm2256, %v2272, %v2274
      %v2276 = vrot.slane %v1485, 2
      %v2277 = vsel %vm2256, %v2274, %v2276
      %v2278 = vrot.slane %v1486, 2
      %v2279 = vsel %vm2256, %v2276, %v2278
      %v2280 = vrot.slane %v1487, 2
      %v2281 = vsel %vm2256, %v2278, %v2280
      %v2282 = vrot.slane %v1488, 2
      %v2283 = vsel %vm2256, %v2280, %v2282
      %v2284 = vrot.slane %v1489, 2
      %v2285 = vsel %vm2256, %v2282, %v2284
      %v2286 = vrot.slane %v1490, 2
      %v2287 = vsel %vm2256, %v2284, %v2286
      %v2288 = vrot.slane %v1816, 2
      %v2289 = vsel %vm2256, %v2286, %v2288
      %v2298 = vunpack.c.l.b16 %v2246
      %v2299 = vunpack.c.l.b16 %v2247
      %v2300 = vunpack.c.l.b16 %v2248
      %v2301 = vunpack.c.l.b16 %v2249
      %v2302 = vunpack.c.l.b16 %v2250
      %v2303 = vunpack.c.l.b16 %v2251
      %v2304 = vunpack.c.l.b16 %v2252
      %v2305 = vunpack.c.l.b16 %v2253
      %v2306 = vpack.c.b16 %v2299, %v2298
      %v2307 = vpack.c.b16 %v2301, %v2300
      %v2308 = vpack.c.b16 %v2303, %v2302
      %v2309 = vpack.c.b16 %v2305, %v2304
      %v2315 = vsel %vm479, %v2259, 0
      %v2318 = vsel %vm479, %v2261, 0
      %v2321 = vsel %vm479, %v2263, 0
      %v2324 = vsel %vm479, %v2265, 0
      %v2327 = vsel %vm479, %v2267, 0
      %v2330 = vsel %vm479, %v2269, 0
      %v2333 = vsel %vm479, %v2271, 0
      %v2336 = vsel %vm479, %v2273, 0
      %v2339 = vsel %vm479, %v2275, 0
      %v2342 = vsel %vm479, %v2277, 0
      %v2345 = vsel %vm479, %v2279, 0
      %v2348 = vsel %vm479, %v2281, 0
      %v2351 = vsel %vm479, %v2283, 0
      %v2354 = vsel %vm479, %v2285, 0
      %v2357 = vsel %vm479, %v2287, 0
      %v2360 = vsel %vm479, %v2289, 0
      %2362 = vmatprep.subr.bf16.mxu0 0
      %2363 = vmatpush1.bf16.msra.mxu0 %v2306
      %2364 = vmatprep.subr.bf16.mxu0 0
      %2365 = vmatpush1.bf16.msra.mxu0 %v2307
      %2366 = vmatprep.subr.bf16.mxu0 0
      %2367 = vmatpush1.bf16.msra.mxu0 %v2308
      %2368 = vmatprep.subr.bf16.mxu0 0
      %2369 = vmatpush1.bf16.msra.mxu0 %v2309
      %2370 = vmatprep.subr.bf16.mxu0 0
      %2371 = vmatpush1.bf16.msra.mxu0 0
      %2372 = vmatprep.subr.bf16.mxu0 0
      %2373 = vmatpush1.bf16.msra.mxu0 0
      %2374 = vmatprep.subr.bf16.mxu0 0
      %2375 = vmatpush1.bf16.msra.mxu0 0
      %2376 = vmatprep.subr.bf16.mxu0 0
      %2377 = vmatpush1.bf16.msra.mxu0 0
      %2378 = vmatprep.subr.bf16.mxu0 0
      %2379 = vmatpush1.bf16.msra.mxu0 0
      %2380 = vmatprep.subr.bf16.mxu0 0
      %2381 = vmatpush1.bf16.msra.mxu0 0
      %2382 = vmatprep.subr.bf16.mxu0 0
      %2383 = vmatpush1.bf16.msra.mxu0 0
      %2384 = vmatprep.subr.bf16.mxu0 0
      %2385 = vmatpush1.bf16.msra.mxu0 0
      %2386 = vmatprep.subr.bf16.mxu0 0
      %2387 = vmatpush1.bf16.msra.mxu0 0
      %2388 = vmatprep.subr.bf16.mxu0 0
      %2389 = vmatpush1.bf16.msra.mxu0 0
      %2390 = vmatprep.subr.bf16.mxu0 0
      %2391 = vmatpush1.bf16.msra.mxu0 0
      %2392 = vmatprep.subr.bf16.mxu0 0
      %2393 = vmatpush1.bf16.msra.mxu0 0
      %2394 = vmatprep.mubr.bf16.mxu0 0
      %2395 = vmatmul.mubr.bf16.gmra.mrb[0].mxu0 %v2315
      %v2396 = vpop.f32.mrb[0].mxu0
      %v2397 = vadd.f32 0.0, %v2396
      %v2398 = vpop.f32.mrb[0].mxu0
      %v2399 = vpop.f32.mrb[0].mxu0
      %v2400 = vadd.f32 0.0, %v2399
      %v2401 = vpop.f32.mrb[0].mxu0
      %2402 = vmatprep.mubr.bf16.mxu0 0
      %2403 = vmatmul.mubr.bf16.gmra.mrb[0].mxu0 %v2318
      %v2404 = vpop.f32.mrb[0].mxu0
      %v2405 = vadd.f32 0.0, %v2404
      %v2406 = vpop.f32.mrb[0].mxu0
      %v2407 = vpop.f32.mrb[0].mxu0
      %v2408 = vadd.f32 0.0, %v2407
      %v2409 = vpop.f32.mrb[0].mxu0
      %2410 = vmatprep.mubr.bf16.mxu0 0
      %2411 = vmatmul.mubr.bf16.gmra.mrb[0].mxu0 %v2321
      %v2412 = vpop.f32.mrb[0].mxu0
      %v2413 = vadd.f32 0.0, %v2412
      %v2414 = vpop.f32.mrb[0].mxu0
      %v2415 = vpop.f32.mrb[0].mxu0
      %v2416 = vadd.f32 0.0, %v2415
      %v2417 = vpop.f32.mrb[0].mxu0
      %2418 = vmatprep.mubr.bf16.mxu0 0
      %2419 = vmatmul.mubr.bf16.gmra.mrb[0].mxu0 %v2324
      %v2420 = vpop.f32.mrb[0].mxu0
      %v2421 = vadd.f32 0.0, %v2420
      %v2422 = vpop.f32.mrb[0].mxu0
      %v2423 = vpop.f32.mrb[0].mxu0
      %v2424 = vadd.f32 0.0, %v2423
      %v2425 = vpop.f32.mrb[0].mxu0
      %2426 = vmatprep.mubr.bf16.mxu0 0
      %2427 = vmatmul.mubr.bf16.gmra.mrb[0].mxu0 %v2327
      %v2428 = vpop.f32.mrb[0].mxu0
      %v2429 = vadd.f32 0.0, %v2428
      %v2430 = vpop.f32.mrb[0].mxu0
      %v2431 = vpop.f32.mrb[0].mxu0
      %v2432 = vadd.f32 0.0, %v2431
      %v2433 = vpop.f32.mrb[0].mxu0
      %2434 = vmatprep.mubr.bf16.mxu0 0
      %2435 = vmatmul.mubr.bf16.gmra.mrb[0].mxu0 %v2330
      %v2436 = vpop.f32.mrb[0].mxu0
      %v2437 = vadd.f32 0.0, %v2436
      %v2438 = vpop.f32.mrb[0].mxu0
      %v2439 = vpop.f32.mrb[0].mxu0
      %v2440 = vadd.f32 0.0, %v2439
      %v2441 = vpop.f32.mrb[0].mxu0
      %2442 = vmatprep.mubr.bf16.mxu0 0
      %2443 = vmatmul.mubr.bf16.gmra.mrb[0].mxu0 %v2333
      %v2444 = vpop.f32.mrb[0].mxu0
      %v2445 = vadd.f32 0.0, %v2444
      %v2446 = vpop.f32.mrb[0].mxu0
      %v2447 = vpop.f32.mrb[0].mxu0
      %v2448 = vadd.f32 0.0, %v2447
      %v2449 = vpop.f32.mrb[0].mxu0
      %2450 = vmatprep.mubr.bf16.mxu0 0
      %2451 = vmatmul.mubr.bf16.gmra.mrb[0].mxu0 %v2336
      %v2452 = vpop.f32.mrb[0].mxu0
      %v2453 = vadd.f32 0.0, %v2452
      %v2454 = vpop.f32.mrb[0].mxu0
      %v2455 = vpop.f32.mrb[0].mxu0
      %v2456 = vadd.f32 0.0, %v2455
      %v2457 = vpop.f32.mrb[0].mxu0
      %2458 = vmatprep.mubr.bf16.mxu0 0
      %2459 = vmatmul.mubr.bf16.gmra.mrb[0].mxu0 %v2339
      %v2460 = vpop.f32.mrb[0].mxu0
      %v2461 = vadd.f32 0.0, %v2460
      %v2462 = vpop.f32.mrb[0].mxu0
      %v2463 = vpop.f32.mrb[0].mxu0
      %v2464 = vadd.f32 0.0, %v2463
      %v2465 = vpop.f32.mrb[0].mxu0
      %2466 = vmatprep.mubr.bf16.mxu0 0
      %2467 = vmatmul.mubr.bf16.gmra.mrb[0].mxu0 %v2342
      %v2468 = vpop.f32.mrb[0].mxu0
      %v2469 = vadd.f32 0.0, %v2468
      %v2470 = vpop.f32.mrb[0].mxu0
      %v2471 = vpop.f32.mrb[0].mxu0
      %v2472 = vadd.f32 0.0, %v2471
      %v2473 = vpop.f32.mrb[0].mxu0
      %2474 = vmatprep.mubr.bf16.mxu0 0
      %2475 = vmatmul.mubr.bf16.gmra.mrb[0].mxu0 %v2345
      %v2476 = vpop.f32.mrb[0].mxu0
      %v2477 = vadd.f32 0.0, %v2476
      %v2478 = vpop.f32.mrb[0].mxu0
      %v2479 = vpop.f32.mrb[0].mxu0
      %v2480 = vadd.f32 0.0, %v2479
      %v2481 = vpop.f32.mrb[0].mxu0
      %2482 = vmatprep.mubr.bf16.mxu0 0
      %2483 = vmatmul.mubr.bf16.gmra.mrb[0].mxu0 %v2348
      %v2484 = vpop.f32.mrb[0].mxu0
      %v2485 = vadd.f32 0.0, %v2484
      %v2486 = vpop.f32.mrb[0].mxu0
      %v2487 = vpop.f32.mrb[0].mxu0
      %v2488 = vadd.f32 0.0, %v2487
      %v2489 = vpop.f32.mrb[0].mxu0
      %2490 = vmatprep.mubr.bf16.mxu0 0
      %2491 = vmatmul.mubr.bf16.gmra.mrb[0].mxu0 %v2351
      %v2492 = vpop.f32.mrb[0].mxu0
      %v2493 = vadd.f32 0.0, %v2492
      %v2494 = vpop.f32.mrb[0].mxu0
      %v2495 = vpop.f32.mrb[0].mxu0
      %v2496 = vadd.f32 0.0, %v2495
      %v2497 = vpop.f32.mrb[0].mxu0
      %2498 = vmatprep.mubr.bf16.mxu0 0
      %2499 = vmatmul.mubr.bf16.gmra.mrb[0].mxu0 %v2354
      %v2500 = vpop.f32.mrb[0].mxu0
      %v2501 = vadd.f32 0.0, %v2500
      %v2502 = vpop.f32.mrb[0].mxu0
      %v2503 = vpop.f32.mrb[0].mxu0
      %v2504 = vadd.f32 0.0, %v2503
      %v2505 = vpop.f32.mrb[0].mxu0
      %2506 = vmatprep.mubr.bf16.mxu0 0
      %2507 = vmatmul.mubr.bf16.gmra.mrb[0].mxu0 %v2357
      %v2508 = vpop.f32.mrb[0].mxu0
      %v2509 = vadd.f32 0.0, %v2508
      %v2510 = vpop.f32.mrb[0].mxu0
      %v2511 = vpop.f32.mrb[0].mxu0
      %v2512 = vadd.f32 0.0, %v2511
      %v2513 = vpop.f32.mrb[0].mxu0
      %2514 = vmatprep.mubr.bf16.mxu0 0
      %2515 = vmatmul.mubr.bf16.gmra.mrb[0].mxu0 %v2360
      %v2516 = vpop.f32.mrb[0].mxu0
      %v2517 = vadd.f32 0.0, %v2516
      %v2518 = vpop.f32.mrb[0].mxu0
      %v2519 = vpop.f32.mrb[0].mxu0
      %v2520 = vadd.f32 0.0, %v2519
      %v2521 = vpop.f32.mrb[0].mxu0
      %2522 = vdwg.mxu0
      %v2523 = vadd.f32 %v2212, %v2397
      %v2524 = vadd.f32 %v2213, %v2400
      %v2525 = vadd.f32 %v2214, %v2405
      %v2526 = vadd.f32 %v2215, %v2408
      %v2527 = vadd.f32 %v2216, %v2413
      %v2528 = vadd.f32 %v2217, %v2416
      %v2529 = vadd.f32 %v2218, %v2421
      %v2530 = vadd.f32 %v2219, %v2424
      %v2531 = vadd.f32 %v2220, %v2429
      %v2532 = vadd.f32 %v2221, %v2432
      %v2533 = vadd.f32 %v2222, %v2437
      %v2534 = vadd.f32 %v2223, %v2440
      %v2535 = vadd.f32 %v2224, %v2445
      %v2536 = vadd.f32 %v2225, %v2448
      %v2537 = vadd.f32 %v2226, %v2453
      %v2538 = vadd.f32 %v2227, %v2456
      %v2539 = vadd.f32 %v2228, %v2461
      %v2540 = vadd.f32 %v2229, %v2464
      %v2541 = vadd.f32 %v2230, %v2469
      %v2542 = vadd.f32 %v2231, %v2472
      %v2543 = vadd.f32 %v2232, %v2477
      %v2544 = vadd.f32 %v2233, %v2480
      %v2545 = vadd.f32 %v2234, %v2485
      %v2546 = vadd.f32 %v2235, %v2488
      %v2547 = vadd.f32 %v2236, %v2493
      %v2548 = vadd.f32 %v2237, %v2496
      %v2549 = vadd.f32 %v2238, %v2501
      %v2550 = vadd.f32 %v2239, %v2504
      %v2551 = vadd.f32 %v2240, %v2509
      %v2552 = vadd.f32 %v2241, %v2512
      %v2553 = vadd.f32 %v2242, %v2517
      %v2554 = vadd.f32 %v2243, %v2520
      %v2555 = vld [vmem:[#allocation2 + $0x10] sm:$0xfc]
      %v2556 = vld [vmem:[#allocation2 + $0x18] sm:$0xff]
      %v2557 = vld [vmem:[#allocation2 + $0x20] sm:$0xff]
      %v2558 = vld [vmem:[#allocation2 + $0x28] sm:$0xff]
      %v2559 = vld [vmem:[#allocation2 + $0x30] sm:$0xff]
      %v2560 = vld [vmem:[#allocation2 + $0x38] sm:$0xff]
      %v2561 = vld [vmem:[#allocation2 + $0x40] sm:$0xff]
      %v2562 = vld [vmem:[#allocation2 + $0x48] sm:$0xff]
      %v2563 = vld [vmem:[#allocation2 + $0x50] sm:$0xff]
      %v2564 = vld [vmem:[#allocation2 + $0x58] sm:$0xff]
      %v2565 = vld [vmem:[#allocation2 + $0x60] sm:$0xff]
      %v2566 = vld [vmem:[#allocation2 + $0x68] sm:$0xff]
      %v2567 = vld [vmem:[#allocation2 + $0x70] sm:$0xff]
      %v2568 = vld [vmem:[#allocation2 + $0x78] sm:$0xff]
      %v2569 = vld [vmem:[#allocation2 + $0x80] sm:$0xff]
      %v2570 = vld [vmem:[#allocation2 + $0x88] sm:$0xff]
      %v2571 = vld [vmem:[#allocation2 + $0x90] sm:$0x3]
      %s2572 = scalar_lea.vmem %s2, 192
      %v2573 = vld [vmem:[%s2572] sm:$0xf]
      %v2574 = vld [vmem:[%s2572 + $0x4] sm:$0xf]
      %v2575 = vld [vmem:[%s2572 + $0x8] sm:$0xf]
      %v2576 = vld [vmem:[%s2572 + $0xc] sm:$0xf]
      %v2577 = vld [vmem:[%s2572 + $0x10] sm:$0xf]
      %v2578 = vld [vmem:[%s2572 + $0x14] sm:$0xf]
      %v2579 = vld [vmem:[%s2572 + $0x18] sm:$0xf]
      %v2580 = vld [vmem:[%s2572 + $0x1c] sm:$0xf]
      %v2598 = vrot.slane %v2555, 2
      %v2599 = vrot.slane %v2556, 2
      %v2600 = vsel %vm2256, %v2598, %v2599
      %v2601 = vrot.slane %v2557, 2
      %v2602 = vsel %vm2256, %v2599, %v2601
      %v2603 = vrot.slane %v2558, 2
      %v2604 = vsel %vm2256, %v2601, %v2603
      %v2605 = vrot.slane %v2559, 2
      %v2606 = vsel %vm2256, %v2603, %v2605
      %v2607 = vrot.slane %v2560, 2
      %v2608 = vsel %vm2256, %v2605, %v2607
      %v2609 = vrot.slane %v2561, 2
      %v2610 = vsel %vm2256, %v2607, %v2609
      %v2611 = vrot.slane %v2562, 2
      %v2612 = vsel %vm2256, %v2609, %v2611
      %v2613 = vrot.slane %v2563, 2
      %v2614 = vsel %vm2256, %v2611, %v2613
      %v2615 = vrot.slane %v2564, 2
      %v2616 = vsel %vm2256, %v2613, %v2615
      %v2617 = vrot.slane %v2565, 2
      %v2618 = vsel %vm2256, %v2615, %v2617
      %v2619 = vrot.slane %v2566, 2
      %v2620 = vsel %vm2256, %v2617, %v2619
      %v2621 = vrot.slane %v2567, 2
      %v2622 = vsel %vm2256, %v2619, %v2621
      %v2623 = vrot.slane %v2568, 2
      %v2624 = vsel %vm2256, %v2621, %v2623
      %v2625 = vrot.slane %v2569, 2
      %v2626 = vsel %vm2256, %v2623, %v2625
      %v2627 = vrot.slane %v2570, 2
      %v2628 = vsel %vm2256, %v2625, %v2627
      %v2629 = vrot.slane %v2571, 2
      %v2630 = vsel %vm2256, %v2627, %v2629
      %v2639 = vunpack.c.l.b16 %v2573
      %v2640 = vunpack.c.l.b16 %v2574
      %v2641 = vunpack.c.l.b16 %v2575
      %v2642 = vunpack.c.l.b16 %v2576
      %v2643 = vunpack.c.l.b16 %v2577
      %v2644 = vunpack.c.l.b16 %v2578
      %v2645 = vunpack.c.l.b16 %v2579
      %v2646 = vunpack.c.l.b16 %v2580
      %v2647 = vpack.c.b16 %v2640, %v2639
      %v2648 = vpack.c.b16 %v2642, %v2641
      %v2649 = vpack.c.b16 %v2644, %v2643
      %v2650 = vpack.c.b16 %v2646, %v2645
      %v2656 = vsel %vm479, %v2600, 0
      %v2659 = vsel %vm479, %v2602, 0
      %v2662 = vsel %vm479, %v2604, 0
      %v2665 = vsel %vm479, %v2606, 0
      %v2668 = vsel %vm479, %v2608, 0
      %v2671 = vsel %vm479, %v2610, 0
      %v2674 = vsel %vm479, %v2612, 0
      %v2677 = vsel %vm479, %v2614, 0
      %v2680 = vsel %vm479, %v2616, 0
      %v2683 = vsel %vm479, %v2618, 0
      %v2686 = vsel %vm479, %v2620, 0
      %v2689 = vsel %vm479, %v2622, 0
      %v2692 = vsel %vm479, %v2624, 0
      %v2695 = vsel %vm479, %v2626, 0
      %v2698 = vsel %vm479, %v2628, 0
      %v2701 = vsel %vm479, %v2630, 0
      %2703 = vmatprep.subr.bf16.mxu0 0
      %2704 = vmatpush1.bf16.msra.mxu0 %v2647
      %2705 = vmatprep.subr.bf16.mxu0 0
      %2706 = vmatpush1.bf16.msra.mxu0 %v2648
      %2707 = vmatprep.subr.bf16.mxu0 0
      %2708 = vmatpush1.bf16.msra.mxu0 %v2649
      %2709 = vmatprep.subr.bf16.mxu0 0
      %2710 = vmatpush1.bf16.msra.mxu0 %v2650
      %2711 = vmatprep.subr.bf16.mxu0 0
      %2712 = vmatpush1.bf16.msra.mxu0 0
      %2713 = vmatprep.subr.bf16.mxu0 0
      %2714 = vmatpush1.bf16.msra.mxu0 0
      %2715 = vmatprep.subr.bf16.mxu0 0
      %2716 = vmatpush1.bf16.msra.mxu0 0
      %2717 = vmatprep.subr.bf16.mxu0 0
      %2718 = vmatpush1.bf16.msra.mxu0 0
      %2719 = vmatprep.subr.bf16.mxu0 0
      %2720 = vmatpush1.bf16.msra.mxu0 0
      %2721 = vmatprep.subr.bf16.mxu0 0
      %2722 = vmatpush1.bf16.msra.mxu0 0
      %2723 = vmatprep.subr.bf16.mxu0 0
      %2724 = vmatpush1.bf16.msra.mxu0 0
      %2725 = vmatprep.subr.bf16.mxu0 0
      %2726 = vmatpush1.bf16.msra.mxu0 0
      %2727 = vmatprep.subr.bf16.mxu0 0
      %2728 = vmatpush1.bf16.msra.mxu0 0
      %2729 = vmatprep.subr.bf16.mxu0 0
      %2730 = vmatpush1.bf16.msra.mxu0 0
      %2731 = vmatprep.subr.bf16.mxu0 0
      %2732 = vmatpush1.bf16.msra.mxu0 0
      %2733 = vmatprep.subr.bf16.mxu0 0
      %2734 = vmatpush1.bf16.msra.mxu0 0
      %2735 = vmatprep.mubr.bf16.mxu0 0
      %2736 = vmatmul.mubr.bf16.gmra.mrb[0].mxu0 %v2656
      %v2737 = vpop.f32.mrb[0].mxu0
      %v2738 = vadd.f32 0.0, %v2737
      %v2739 = vpop.f32.mrb[0].mxu0
      %v2740 = vpop.f32.mrb[0].mxu0
      %v2741 = vadd.f32 0.0, %v2740
      %v2742 = vpop.f32.mrb[0].mxu0
      %2743 = vmatprep.mubr.bf16.mxu0 0
      %2744 = vmatmul.mubr.bf16.gmra.mrb[0].mxu0 %v2659
      %v2745 = vpop.f32.mrb[0].mxu0
      %v2746 = vadd.f32 0.0, %v2745
      %v2747 = vpop.f32.mrb[0].mxu0
      %v2748 = vpop.f32.mrb[0].mxu0
      %v2749 = vadd.f32 0.0, %v2748
      %v2750 = vpop.f32.mrb[0].mxu0
      %2751 = vmatprep.mubr.bf16.mxu0 0
      %2752 = vmatmul.mubr.bf16.gmra.mrb[0].mxu0 %v2662
      %v2753 = vpop.f32.mrb[0].mxu0
      %v2754 = vadd.f32 0.0, %v2753
      %v2755 = vpop.f32.mrb[0].mxu0
      %v2756 = vpop.f32.mrb[0].mxu0
      %v2757 = vadd.f32 0.0, %v2756
      %v2758 = vpop.f32.mrb[0].mxu0
      %2759 = vmatprep.mubr.bf16.mxu0 0
      %2760 = vmatmul.mubr.bf16.gmra.mrb[0].mxu0 %v2665
      %v2761 = vpop.f32.mrb[0].mxu0
      %v2762 = vadd.f32 0.0, %v2761
      %v2763 = vpop.f32.mrb[0].mxu0
      %v2764 = vpop.f32.mrb[0].mxu0
      %v2765 = vadd.f32 0.0, %v2764
      %v2766 = vpop.f32.mrb[0].mxu0
      %2767 = vmatprep.mubr.bf16.mxu0 0
      %2768 = vmatmul.mubr.bf16.gmra.mrb[0].mxu0 %v2668
      %v2769 = vpop.f32.mrb[0].mxu0
      %v2770 = vadd.f32 0.0, %v2769
      %v2771 = vpop.f32.mrb[0].mxu0
      %v2772 = vpop.f32.mrb[0].mxu0
      %v2773 = vadd.f32 0.0, %v2772
      %v2774 = vpop.f32.mrb[0].mxu0
      %2775 = vmatprep.mubr.bf16.mxu0 0
      %2776 = vmatmul.mubr.bf16.gmra.mrb[0].mxu0 %v2671
      %v2777 = vpop.f32.mrb[0].mxu0
      %v2778 = vadd.f32 0.0, %v2777
      %v2779 = vpop.f32.mrb[0].mxu0
      %v2780 = vpop.f32.mrb[0].mxu0
      %v2781 = vadd.f32 0.0, %v2780
      %v2782 = vpop.f32.mrb[0].mxu0
      %2783 = vmatprep.mubr.bf16.mxu0 0
      %2784 = vmatmul.mubr.bf16.gmra.mrb[0].mxu0 %v2674
      %v2785 = vpop.f32.mrb[0].mxu0
      %v2786 = vadd.f32 0.0, %v2785
      %v2787 = vpop.f32.mrb[0].mxu0
      %v2788 = vpop.f32.mrb[0].mxu0
      %v2789 = vadd.f32 0.0, %v2788
      %v2790 = vpop.f32.mrb[0].mxu0
      %2791 = vmatprep.mubr.bf16.mxu0 0
      %2792 = vmatmul.mubr.bf16.gmra.mrb[0].mxu0 %v2677
      %v2793 = vpop.f32.mrb[0].mxu0
      %v2794 = vadd.f32 0.0, %v2793
      %v2795 = vpop.f32.mrb[0].mxu0
      %v2796 = vpop.f32.mrb[0].mxu0
      %v2797 = vadd.f32 0.0, %v2796
      %v2798 = vpop.f32.mrb[0].mxu0
      %2799 = vmatprep.mubr.bf16.mxu0 0
      %2800 = vmatmul.mubr.bf16.gmra.mrb[0].mxu0 %v2680
      %v2801 = vpop.f32.mrb[0].mxu0
      %v2802 = vadd.f32 0.0, %v2801
      %v2803 = vpop.f32.mrb[0].mxu0
      %v2804 = vpop.f32.mrb[0].mxu0
      %v2805 = vadd.f32 0.0, %v2804
      %v2806 = vpop.f32.mrb[0].mxu0
      %2807 = vmatprep.mubr.bf16.mxu0 0
      %2808 = vmatmul.mubr.bf16.gmra.mrb[0].mxu0 %v2683
      %v2809 = vpop.f32.mrb[0].mxu0
      %v2810 = vadd.f32 0.0, %v2809
      %v2811 = vpop.f32.mrb[0].mxu0
      %v2812 = vpop.f32.mrb[0].mxu0
      %v2813 = vadd.f32 0.0, %v2812
      %v2814 = vpop.f32.mrb[0].mxu0
      %2815 = vmatprep.mubr.bf16.mxu0 0
      %2816 = vmatmul.mubr.bf16.gmra.mrb[0].mxu0 %v2686
      %v2817 = vpop.f32.mrb[0].mxu0
      %v2818 = vadd.f32 0.0, %v2817
      %v2819 = vpop.f32.mrb[0].mxu0
      %v2820 = vpop.f32.mrb[0].mxu0
      %v2821 = vadd.f32 0.0, %v2820
      %v2822 = vpop.f32.mrb[0].mxu0
      %2823 = vmatprep.mubr.bf16.mxu0 0
      %2824 = vmatmul.mubr.bf16.gmra.mrb[0].mxu0 %v2689
      %v2825 = vpop.f32.mrb[0].mxu0
      %v2826 = vadd.f32 0.0, %v2825
      %v2827 = vpop.f32.mrb[0].mxu0
      %v2828 = vpop.f32.mrb[0].mxu0
      %v2829 = vadd.f32 0.0, %v2828
      %v2830 = vpop.f32.mrb[0].mxu0
      %2831 = vmatprep.mubr.bf16.mxu0 0
      %2832 = vmatmul.mubr.bf16.gmra.mrb[0].mxu0 %v2692
      %v2833 = vpop.f32.mrb[0].mxu0
      %v2834 = vadd.f32 0.0, %v2833
      %v2835 = vpop.f32.mrb[0].mxu0
      %v2836 = vpop.f32.mrb[0].mxu0
      %v2837 = vadd.f32 0.0, %v2836
      %v2838 = vpop.f32.mrb[0].mxu0
      %2839 = vmatprep.mubr.bf16.mxu0 0
      %2840 = vmatmul.mubr.bf16.gmra.mrb[0].mxu0 %v2695
      %v2841 = vpop.f32.mrb[0].mxu0
      %v2842 = vadd.f32 0.0, %v2841
      %v2843 = vpop.f32.mrb[0].mxu0
      %v2844 = vpop.f32.mrb[0].mxu0
      %v2845 = vadd.f32 0.0, %v2844
      %v2846 = vpop.f32.mrb[0].mxu0
      %2847 = vmatprep.mubr.bf16.mxu0 0
      %2848 = vmatmul.mubr.bf16.gmra.mrb[0].mxu0 %v2698
      %v2849 = vpop.f32.mrb[0].mxu0
      %v2850 = vadd.f32 0.0, %v2849
      %v2851 = vpop.f32.mrb[0].mxu0
      %v2852 = vpop.f32.mrb[0].mxu0
      %v2853 = vadd.f32 0.0, %v2852
      %v2854 = vpop.f32.mrb[0].mxu0
      %2855 = vmatprep.mubr.bf16.mxu0 0
      %2856 = vmatmul.mubr.bf16.gmra.mrb[0].mxu0 %v2701
      %v2857 = vpop.f32.mrb[0].mxu0
      %v2858 = vadd.f32 0.0, %v2857
      %v2859 = vpop.f32.mrb[0].mxu0
      %v2860 = vpop.f32.mrb[0].mxu0
      %v2861 = vadd.f32 0.0, %v2860
      %v2862 = vpop.f32.mrb[0].mxu0
      %2863 = vdwg.mxu0
      %v2864 = vadd.f32 %v2523, %v2738
      %v2865 = vadd.f32 %v2524, %v2741
      %v2866 = vadd.f32 %v2525, %v2746
      %v2867 = vadd.f32 %v2526, %v2749
      %v2868 = vadd.f32 %v2527, %v2754
      %v2869 = vadd.f32 %v2528, %v2757
      %v2870 = vadd.f32 %v2529, %v2762
      %v2871 = vadd.f32 %v2530, %v2765
      %v2872 = vadd.f32 %v2531, %v2770
      %v2873 = vadd.f32 %v2532, %v2773
      %v2874 = vadd.f32 %v2533, %v2778
      %v2875 = vadd.f32 %v2534, %v2781
      %v2876 = vadd.f32 %v2535, %v2786
      %v2877 = vadd.f32 %v2536, %v2789
      %v2878 = vadd.f32 %v2537, %v2794
      %v2879 = vadd.f32 %v2538, %v2797
      %v2880 = vadd.f32 %v2539, %v2802
      %v2881 = vadd.f32 %v2540, %v2805
      %v2882 = vadd.f32 %v2541, %v2810
      %v2883 = vadd.f32 %v2542, %v2813
      %v2884 = vadd.f32 %v2543, %v2818
      %v2885 = vadd.f32 %v2544, %v2821
      %v2886 = vadd.f32 %v2545, %v2826
      %v2887 = vadd.f32 %v2546, %v2829
      %v2888 = vadd.f32 %v2547, %v2834
      %v2889 = vadd.f32 %v2548, %v2837
      %v2890 = vadd.f32 %v2549, %v2842
      %v2891 = vadd.f32 %v2550, %v2845
      %v2892 = vadd.f32 %v2551, %v2850
      %v2893 = vadd.f32 %v2552, %v2853
      %v2894 = vadd.f32 %v2553, %v2858
      %v2895 = vadd.f32 %v2554, %v2861
      %v2896 = vld [vmem:[#allocation2 + $0x90] sm:$0x7]
      %s2897 = scalar_lea.vmem %s2, 224
      %v2898 = vld [vmem:[%s2897] sm:$0xf]
      %v2899 = vld [vmem:[%s2897 + $0x4] sm:$0xf]
      %v2900 = vld [vmem:[%s2897 + $0x8] sm:$0xf]
      %v2901 = vld [vmem:[%s2897 + $0xc] sm:$0xf]
      %v2902 = vld [vmem:[%s2897 + $0x10] sm:$0xf]
      %v2903 = vld [vmem:[%s2897 + $0x14] sm:$0xf]
      %v2904 = vld [vmem:[%s2897 + $0x18] sm:$0xf]
      %v2905 = vld [vmem:[%s2897 + $0x1c] sm:$0xf]
      %vm2906 = vsmask.f32 5376
      %v2908 = vshrl.u32 %v2555, 16
      %v2910 = vrot.slane %v2908, 2
      %v2911 = vshll.u32 %v2555, 16
      %v2913 = vrot.slane %v2911, 3
      %v2914 = vor.u32 %v2910, %v2913
      %v2916 = vshrl.u32 %v2556, 16
      %v2918 = vrot.slane %v2916, 2
      %v2919 = vshll.u32 %v2556, 16
      %v2921 = vrot.slane %v2919, 3
      %v2922 = vor.u32 %v2918, %v2921
      %v2923 = vsel %vm2906, %v2914, %v2922
      %v2925 = vshrl.u32 %v2557, 16
      %v2927 = vrot.slane %v2925, 2
      %v2928 = vshll.u32 %v2557, 16
      %v2930 = vrot.slane %v2928, 3
      %v2931 = vor.u32 %v2927, %v2930
      %v2932 = vsel %vm2906, %v2922, %v2931
      %v2934 = vshrl.u32 %v2558, 16
      %v2936 = vrot.slane %v2934, 2
      %v2937 = vshll.u32 %v2558, 16
      %v2939 = vrot.slane %v2937, 3
      %v2940 = vor.u32 %v2936, %v2939
      %v2941 = vsel %vm2906, %v2931, %v2940
      %v2943 = vshrl.u32 %v2559, 16
      %v2945 = vrot.slane %v2943, 2
      %v2946 = vshll.u32 %v2559, 16
      %v2948 = vrot.slane %v2946, 3
      %v2949 = vor.u32 %v2945, %v2948
      %v2950 = vsel %vm2906, %v2940, %v2949
      %v2952 = vshrl.u32 %v2560, 16
      %v2954 = vrot.slane %v2952, 2
      %v2955 = vshll.u32 %v2560, 16
      %v2957 = vrot.slane %v2955, 3
      %v2958 = vor.u32 %v2954, %v2957
      %v2959 = vsel %vm2906, %v2949, %v2958
      %v2961 = vshrl.u32 %v2561, 16
      %v2963 = vrot.slane %v2961, 2
      %v2964 = vshll.u32 %v2561, 16
      %v2966 = vrot.slane %v2964, 3
      %v2967 = vor.u32 %v2963, %v2966
      %v2968 = vsel %vm2906, %v2958, %v2967
      %v2970 = vshrl.u32 %v2562, 16
      %v2972 = vrot.slane %v2970, 2
      %v2973 = vshll.u32 %v2562, 16
      %v2975 = vrot.slane %v2973, 3
      %v2976 = vor.u32 %v2972, %v2975
      %v2977 = vsel %vm2906, %v2967, %v2976
      %v2979 = vshrl.u32 %v2563, 16
      %v2981 = vrot.slane %v2979, 2
      %v2982 = vshll.u32 %v2563, 16
      %v2984 = vrot.slane %v2982, 3
      %v2985 = vor.u32 %v2981, %v2984
      %v2986 = vsel %vm2906, %v2976, %v2985
      %v2988 = vshrl.u32 %v2564, 16
      %v2990 = vrot.slane %v2988, 2
      %v2991 = vshll.u32 %v2564, 16
      %v2993 = vrot.slane %v2991, 3
      %v2994 = vor.u32 %v2990, %v2993
      %v2995 = vsel %vm2906, %v2985, %v2994
      %v2997 = vshrl.u32 %v2565, 16
      %v2999 = vrot.slane %v2997, 2
      %v3000 = vshll.u32 %v2565, 16
      %v3002 = vrot.slane %v3000, 3
      %v3003 = vor.u32 %v2999, %v3002
      %v3004 = vsel %vm2906, %v2994, %v3003
      %v3006 = vshrl.u32 %v2566, 16
      %v3008 = vrot.slane %v3006, 2
      %v3009 = vshll.u32 %v2566, 16
      %v3011 = vrot.slane %v3009, 3
      %v3012 = vor.u32 %v3008, %v3011
      %v3013 = vsel %vm2906, %v3003, %v3012
      %v3015 = vshrl.u32 %v2567, 16
      %v3017 = vrot.slane %v3015, 2
      %v3018 = vshll.u32 %v2567, 16
      %v3020 = vrot.slane %v3018, 3
      %v3021 = vor.u32 %v3017, %v3020
      %v3022 = vsel %vm2906, %v3012, %v3021
      %v3024 = vshrl.u32 %v2568, 16
      %v3026 = vrot.slane %v3024, 2
      %v3027 = vshll.u32 %v2568, 16
      %v3029 = vrot.slane %v3027, 3
      %v3030 = vor.u32 %v3026, %v3029
      %v3031 = vsel %vm2906, %v3021, %v3030
      %v3033 = vshrl.u32 %v2569, 16
      %v3035 = vrot.slane %v3033, 2
      %v3036 = vshll.u32 %v2569, 16
      %v3038 = vrot.slane %v3036, 3
      %v3039 = vor.u32 %v3035, %v3038
      %v3040 = vsel %vm2906, %v3030, %v3039
      %v3042 = vshrl.u32 %v2570, 16
      %v3044 = vrot.slane %v3042, 2
      %v3045 = vshll.u32 %v2570, 16
      %v3047 = vrot.slane %v3045, 3
      %v3048 = vor.u32 %v3044, %v3047
      %v3049 = vsel %vm2906, %v3039, %v3048
      %v3051 = vshrl.u32 %v2896, 16
      %v3053 = vrot.slane %v3051, 2
      %v3054 = vshll.u32 %v2896, 16
      %v3056 = vrot.slane %v3054, 3
      %v3057 = vor.u32 %v3053, %v3056
      %v3058 = vsel %vm2906, %v3048, %v3057
      %v3067 = vunpack.c.l.b16 %v2898
      %v3068 = vunpack.c.l.b16 %v2899
      %v3069 = vunpack.c.l.b16 %v2900
      %v3070 = vunpack.c.l.b16 %v2901
      %v3071 = vunpack.c.l.b16 %v2902
      %v3072 = vunpack.c.l.b16 %v2903
      %v3073 = vunpack.c.l.b16 %v2904
      %v3074 = vunpack.c.l.b16 %v2905
      %v3075 = vpack.c.b16 %v3068, %v3067
      %v3076 = vpack.c.b16 %v3070, %v3069
      %v3077 = vpack.c.b16 %v3072, %v3071
      %v3078 = vpack.c.b16 %v3074, %v3073
      %v3084 = vsel %vm479, %v2923, 0
      %v3087 = vsel %vm479, %v2932, 0
      %v3090 = vsel %vm479, %v2941, 0
      %v3093 = vsel %vm479, %v2950, 0
      %v3096 = vsel %vm479, %v2959, 0
      %v3099 = vsel %vm479, %v2968, 0
      %v3102 = vsel %vm479, %v2977, 0
      %v3105 = vsel %vm479, %v2986, 0
      %v3108 = vsel %vm479, %v2995, 0
      %v3111 = vsel %vm479, %v3004, 0
      %v3114 = vsel %vm479, %v3013, 0
      %v3117 = vsel %vm479, %v3022, 0
      %v3120 = vsel %vm479, %v3031, 0
      %v3123 = vsel %vm479, %v3040, 0
      %v3126 = vsel %vm479, %v3049, 0
      %v3129 = vsel %vm479, %v3058, 0
      %3131 = vmatprep.subr.bf16.mxu0 0
      %3132 = vmatpush1.bf16.msra.mxu0 %v3075
      %3133 = vmatprep.subr.bf16.mxu0 0
      %3134 = vmatpush1.bf16.msra.mxu0 %v3076
      %3135 = vmatprep.subr.bf16.mxu0 0
      %3136 = vmatpush1.bf16.msra.mxu0 %v3077
      %3137 = vmatprep.subr.bf16.mxu0 0
      %3138 = vmatpush1.bf16.msra.mxu0 %v3078
      %3139 = vmatprep.subr.bf16.mxu0 0
      %3140 = vmatpush1.bf16.msra.mxu0 0
      %3141 = vmatprep.subr.bf16.mxu0 0
      %3142 = vmatpush1.bf16.msra.mxu0 0
      %3143 = vmatprep.subr.bf16.mxu0 0
      %3144 = vmatpush1.bf16.msra.mxu0 0
      %3145 = vmatprep.subr.bf16.mxu0 0
      %3146 = vmatpush1.bf16.msra.mxu0 0
      %3147 = vmatprep.subr.bf16.mxu0 0
      %3148 = vmatpush1.bf16.msra.mxu0 0
      %3149 = vmatprep.subr.bf16.mxu0 0
      %3150 = vmatpush1.bf16.msra.mxu0 0
      %3151 = vmatprep.subr.bf16.mxu0 0
      %3152 = vmatpush1.bf16.msra.mxu0 0
      %3153 = vmatprep.subr.bf16.mxu0 0
      %3154 = vmatpush1.bf16.msra.mxu0 0
      %3155 = vmatprep.subr.bf16.mxu0 0
      %3156 = vmatpush1.bf16.msra.mxu0 0
      %3157 = vmatprep.subr.bf16.mxu0 0
      %3158 = vmatpush1.bf16.msra.mxu0 0
      %3159 = vmatprep.subr.bf16.mxu0 0
      %3160 = vmatpush1.bf16.msra.mxu0 0
      %3161 = vmatprep.subr.bf16.mxu0 0
      %3162 = vmatpush1.bf16.msra.mxu0 0
      %3163 = vmatprep.mubr.bf16.mxu0 0
      %3164 = vmatmul.mubr.bf16.gmra.mrb[0].mxu0 %v3084
      %v3165 = vpop.f32.mrb[0].mxu0
      %v3166 = vadd.f32 0.0, %v3165
      %v3167 = vpop.f32.mrb[0].mxu0
      %v3168 = vpop.f32.mrb[0].mxu0
      %v3169 = vadd.f32 0.0, %v3168
      %v3170 = vpop.f32.mrb[0].mxu0
      %3171 = vmatprep.mubr.bf16.mxu0 0
      %3172 = vmatmul.mubr.bf16.gmra.mrb[0].mxu0 %v3087
      %v3173 = vpop.f32.mrb[0].mxu0
      %v3174 = vadd.f32 0.0, %v3173
      %v3175 = vpop.f32.mrb[0].mxu0
      %v3176 = vpop.f32.mrb[0].mxu0
      %v3177 = vadd.f32 0.0, %v3176
      %v3178 = vpop.f32.mrb[0].mxu0
      %3179 = vmatprep.mubr.bf16.mxu0 0
      %3180 = vmatmul.mubr.bf16.gmra.mrb[0].mxu0 %v3090
      %v3181 = vpop.f32.mrb[0].mxu0
      %v3182 = vadd.f32 0.0, %v3181
      %v3183 = vpop.f32.mrb[0].mxu0
      %v3184 = vpop.f32.mrb[0].mxu0
      %v3185 = vadd.f32 0.0, %v3184
      %v3186 = vpop.f32.mrb[0].mxu0
      %3187 = vmatprep.mubr.bf16.mxu0 0
      %3188 = vmatmul.mubr.bf16.gmra.mrb[0].mxu0 %v3093
      %v3189 = vpop.f32.mrb[0].mxu0
      %v3190 = vadd.f32 0.0, %v3189
      %v3191 = vpop.f32.mrb[0].mxu0
      %v3192 = vpop.f32.mrb[0].mxu0
      %v3193 = vadd.f32 0.0, %v3192
      %v3194 = vpop.f32.mrb[0].mxu0
      %3195 = vmatprep.mubr.bf16.mxu0 0
      %3196 = vmatmul.mubr.bf16.gmra.mrb[0].mxu0 %v3096
      %v3197 = vpop.f32.mrb[0].mxu0
      %v3198 = vadd.f32 0.0, %v3197
      %v3199 = vpop.f32.mrb[0].mxu0
      %v3200 = vpop.f32.mrb[0].mxu0
      %v3201 = vadd.f32 0.0, %v3200
      %v3202 = vpop.f32.mrb[0].mxu0
      %3203 = vmatprep.mubr.bf16.mxu0 0
      %3204 = vmatmul.mubr.bf16.gmra.mrb[0].mxu0 %v3099
      %v3205 = vpop.f32.mrb[0].mxu0
      %v3206 = vadd.f32 0.0, %v3205
      %v3207 = vpop.f32.mrb[0].mxu0
      %v3208 = vpop.f32.mrb[0].mxu0
      %v3209 = vadd.f32 0.0, %v3208
      %v3210 = vpop.f32.mrb[0].mxu0
      %3211 = vmatprep.mubr.bf16.mxu0 0
      %3212 = vmatmul.mubr.bf16.gmra.mrb[0].mxu0 %v3102
      %v3213 = vpop.f32.mrb[0].mxu0
      %v3214 = vadd.f32 0.0, %v3213
      %v3215 = vpop.f32.mrb[0].mxu0
      %v3216 = vpop.f32.mrb[0].mxu0
      %v3217 = vadd.f32 0.0, %v3216
      %v3218 = vpop.f32.mrb[0].mxu0
      %3219 = vmatprep.mubr.bf16.mxu0 0
      %3220 = vmatmul.mubr.bf16.gmra.mrb[0].mxu0 %v3105
      %v3221 = vpop.f32.mrb[0].mxu0
      %v3222 = vadd.f32 0.0, %v3221
      %v3223 = vpop.f32.mrb[0].mxu0
      %v3224 = vpop.f32.mrb[0].mxu0
      %v3225 = vadd.f32 0.0, %v3224
      %v3226 = vpop.f32.mrb[0].mxu0
      %3227 = vmatprep.mubr.bf16.mxu0 0
      %3228 = vmatmul.mubr.bf16.gmra.mrb[0].mxu0 %v3108
      %v3229 = vpop.f32.mrb[0].mxu0
      %v3230 = vadd.f32 0.0, %v3229
      %v3231 = vpop.f32.mrb[0].mxu0
      %v3232 = vpop.f32.mrb[0].mxu0
      %v3233 = vadd.f32 0.0, %v3232
      %v3234 = vpop.f32.mrb[0].mxu0
      %3235 = vmatprep.mubr.bf16.mxu0 0
      %3236 = vmatmul.mubr.bf16.gmra.mrb[0].mxu0 %v3111
      %v3237 = vpop.f32.mrb[0].mxu0
      %v3238 = vadd.f32 0.0, %v3237
      %v3239 = vpop.f32.mrb[0].mxu0
      %v3240 = vpop.f32.mrb[0].mxu0
      %v3241 = vadd.f32 0.0, %v3240
      %v3242 = vpop.f32.mrb[0].mxu0
      %3243 = vmatprep.mubr.bf16.mxu0 0
      %3244 = vmatmul.mubr.bf16.gmra.mrb[0].mxu0 %v3114
      %v3245 = vpop.f32.mrb[0].mxu0
      %v3246 = vadd.f32 0.0, %v3245
      %v3247 = vpop.f32.mrb[0].mxu0
      %v3248 = vpop.f32.mrb[0].mxu0
      %v3249 = vadd.f32 0.0, %v3248
      %v3250 = vpop.f32.mrb[0].mxu0
      %3251 = vmatprep.mubr.bf16.mxu0 0
      %3252 = vmatmul.mubr.bf16.gmra.mrb[0].mxu0 %v3117
      %v3253 = vpop.f32.mrb[0].mxu0
      %v3254 = vadd.f32 0.0, %v3253
      %v3255 = vpop.f32.mrb[0].mxu0
      %v3256 = vpop.f32.mrb[0].mxu0
      %v3257 = vadd.f32 0.0, %v3256
      %v3258 = vpop.f32.mrb[0].mxu0
      %3259 = vmatprep.mubr.bf16.mxu0 0
      %3260 = vmatmul.mubr.bf16.gmra.mrb[0].mxu0 %v3120
      %v3261 = vpop.f32.mrb[0].mxu0
      %v3262 = vadd.f32 0.0, %v3261
      %v3263 = vpop.f32.mrb[0].mxu0
      %v3264 = vpop.f32.mrb[0].mxu0
      %v3265 = vadd.f32 0.0, %v3264
      %v3266 = vpop.f32.mrb[0].mxu0
      %3267 = vmatprep.mubr.bf16.mxu0 0
      %3268 = vmatmul.mubr.bf16.gmra.mrb[0].mxu0 %v3123
      %v3269 = vpop.f32.mrb[0].mxu0
      %v3270 = vadd.f32 0.0, %v3269
      %v3271 = vpop.f32.mrb[0].mxu0
      %v3272 = vpop.f32.mrb[0].mxu0
      %v3273 = vadd.f32 0.0, %v3272
      %v3274 = vpop.f32.mrb[0].mxu0
      %3275 = vmatprep.mubr.bf16.mxu0 0
      %3276 = vmatmul.mubr.bf16.gmra.mrb[0].mxu0 %v3126
      %v3277 = vpop.f32.mrb[0].mxu0
      %v3278 = vadd.f32 0.0, %v3277
      %v3279 = vpop.f32.mrb[0].mxu0
      %v3280 = vpop.f32.mrb[0].mxu0
      %v3281 = vadd.f32 0.0, %v3280
      %v3282 = vpop.f32.mrb[0].mxu0
      %3283 = vmatprep.mubr.bf16.mxu0 0
      %3284 = vmatmul.mubr.bf16.gmra.mrb[0].mxu0 %v3129
      %v3285 = vpop.f32.mrb[0].mxu0
      %v3286 = vadd.f32 0.0, %v3285
      %v3287 = vpop.f32.mrb[0].mxu0
      %v3288 = vpop.f32.mrb[0].mxu0
      %v3289 = vadd.f32 0.0, %v3288
      %v3290 = vpop.f32.mrb[0].mxu0
      %3291 = vdwg.mxu0
      %v3292 = vadd.f32 %v2864, %v3166
      %v3293 = vadd.f32 %v2865, %v3169
      %v3294 = vadd.f32 %v2866, %v3174
      %v3295 = vadd.f32 %v2867, %v3177
      %v3296 = vadd.f32 %v2868, %v3182
      %v3297 = vadd.f32 %v2869, %v3185
      %v3298 = vadd.f32 %v2870, %v3190
      %v3299 = vadd.f32 %v2871, %v3193
      %v3300 = vadd.f32 %v2872, %v3198
      %v3301 = vadd.f32 %v2873, %v3201
      %v3302 = vadd.f32 %v2874, %v3206
      %v3303 = vadd.f32 %v2875, %v3209
      %v3304 = vadd.f32 %v2876, %v3214
      %v3305 = vadd.f32 %v2877, %v3217
      %v3306 = vadd.f32 %v2878, %v3222
      %v3307 = vadd.f32 %v2879, %v3225
      %v3308 = vadd.f32 %v2880, %v3230
      %v3309 = vadd.f32 %v2881, %v3233
      %v3310 = vadd.f32 %v2882, %v3238
      %v3311 = vadd.f32 %v2883, %v3241
      %v3312 = vadd.f32 %v2884, %v3246
      %v3313 = vadd.f32 %v2885, %v3249
      %v3314 = vadd.f32 %v2886, %v3254
      %v3315 = vadd.f32 %v2887, %v3257
      %v3316 = vadd.f32 %v2888, %v3262
      %v3317 = vadd.f32 %v2889, %v3265
      %v3318 = vadd.f32 %v2890, %v3270
      %v3319 = vadd.f32 %v2891, %v3273
      %v3320 = vadd.f32 %v2892, %v3278
      %v3321 = vadd.f32 %v2893, %v3281
      %v3322 = vadd.f32 %v2894, %v3286
      %v3323 = vadd.f32 %v2895, %v3289
      %v3324 = vld [vmem:[#allocation2 + $0x10] sm:$0xf8]
      %s3325 = scalar_lea.vmem %s2, 256
      %v3326 = vld [vmem:[%s3325] sm:$0xf]
      %v3327 = vld [vmem:[%s3325 + $0x4] sm:$0xf]
      %v3328 = vld [vmem:[%s3325 + $0x8] sm:$0xf]
      %v3329 = vld [vmem:[%s3325 + $0xc] sm:$0xf]
      %v3330 = vld [vmem:[%s3325 + $0x10] sm:$0xf]
      %v3331 = vld [vmem:[%s3325 + $0x14] sm:$0xf]
      %v3332 = vld [vmem:[%s3325 + $0x18] sm:$0xf]
      %v3333 = vld [vmem:[%s3325 + $0x1c] sm:$0xf]
      %vm3336 = vcmask 1044480
      %v3337 = vrot.slane %v3324, 3
      %v3338 = vrot.slane %v2556, 3
      %v3339 = vsel %vm3336, %v3337, %v3338
      %v3340 = vrot.slane %v2557, 3
      %v3341 = vsel %vm3336, %v3338, %v3340
      %v3342 = vrot.slane %v2558, 3
      %v3343 = vsel %vm3336, %v3340, %v3342
      %v3344 = vrot.slane %v2559, 3
      %v3345 = vsel %vm3336, %v3342, %v3344
      %v3346 = vrot.slane %v2560, 3
      %v3347 = vsel %vm3336, %v3344, %v3346
      %v3348 = vrot.slane %v2561, 3
      %v3349 = vsel %vm3336, %v3346, %v3348
      %v3350 = vrot.slane %v2562, 3
      %v3351 = vsel %vm3336, %v3348, %v3350
      %v3352 = vrot.slane %v2563, 3
      %v3353 = vsel %vm3336, %v3350, %v3352
      %v3354 = vrot.slane %v2564, 3
      %v3355 = vsel %vm3336, %v3352, %v3354
      %v3356 = vrot.slane %v2565, 3
      %v3357 = vsel %vm3336, %v3354, %v3356
      %v3358 = vrot.slane %v2566, 3
      %v3359 = vsel %vm3336, %v3356, %v3358
      %v3360 = vrot.slane %v2567, 3
      %v3361 = vsel %vm3336, %v3358, %v3360
      %v3362 = vrot.slane %v2568, 3
      %v3363 = vsel %vm3336, %v3360, %v3362
      %v3364 = vrot.slane %v2569, 3
      %v3365 = vsel %vm3336, %v3362, %v3364
      %v3366 = vrot.slane %v2570, 3
      %v3367 = vsel %vm3336, %v3364, %v3366
      %v3368 = vrot.slane %v2896, 3
      %v3369 = vsel %vm3336, %v3366, %v3368
      %v3378 = vunpack.c.l.b16 %v3326
      %v3379 = vunpack.c.l.b16 %v3327
      %v3380 = vunpack.c.l.b16 %v3328
      %v3381 = vunpack.c.l.b16 %v3329
      %v3382 = vunpack.c.l.b16 %v3330
      %v3383 = vunpack.c.l.b16 %v3331
      %v3384 = vunpack.c.l.b16 %v3332
      %v3385 = vunpack.c.l.b16 %v3333
      %v3386 = vpack.c.b16 %v3379, %v3378
      %v3387 = vpack.c.b16 %v3381, %v3380
      %v3388 = vpack.c.b16 %v3383, %v3382
      %v3389 = vpack.c.b16 %v3385, %v3384
      %v3395 = vsel %vm479, %v3339, 0
      %v3398 = vsel %vm479, %v3341, 0
      %v3401 = vsel %vm479, %v3343, 0
      %v3404 = vsel %vm479, %v3345, 0
      %v3407 = vsel %vm479, %v3347, 0
      %v3410 = vsel %vm479, %v3349, 0
      %v3413 = vsel %vm479, %v3351, 0
      %v3416 = vsel %vm479, %v3353, 0
      %v3419 = vsel %vm479, %v3355, 0
      %v3422 = vsel %vm479, %v3357, 0
      %v3425 = vsel %vm479, %v3359, 0
      %v3428 = vsel %vm479, %v3361, 0
      %v3431 = vsel %vm479, %v3363, 0
      %v3434 = vsel %vm479, %v3365, 0
      %v3437 = vsel %vm479, %v3367, 0
      %v3440 = vsel %vm479, %v3369, 0
      %3442 = vmatprep.subr.bf16.mxu0 0
      %3443 = vmatpush1.bf16.msra.mxu0 %v3386
      %3444 = vmatprep.subr.bf16.mxu0 0
      %3445 = vmatpush1.bf16.msra.mxu0 %v3387
      %3446 = vmatprep.subr.bf16.mxu0 0
      %3447 = vmatpush1.bf16.msra.mxu0 %v3388
      %3448 = vmatprep.subr.bf16.mxu0 0
      %3449 = vmatpush1.bf16.msra.mxu0 %v3389
      %3450 = vmatprep.subr.bf16.mxu0 0
      %3451 = vmatpush1.bf16.msra.mxu0 0
      %3452 = vmatprep.subr.bf16.mxu0 0
      %3453 = vmatpush1.bf16.msra.mxu0 0
      %3454 = vmatprep.subr.bf16.mxu0 0
      %3455 = vmatpush1.bf16.msra.mxu0 0
      %3456 = vmatprep.subr.bf16.mxu0 0
      %3457 = vmatpush1.bf16.msra.mxu0 0
      %3458 = vmatprep.subr.bf16.mxu0 0
      %3459 = vmatpush1.bf16.msra.mxu0 0
      %3460 = vmatprep.subr.bf16.mxu0 0
      %3461 = vmatpush1.bf16.msra.mxu0 0
      %3462 = vmatprep.subr.bf16.mxu0 0
      %3463 = vmatpush1.bf16.msra.mxu0 0
      %3464 = vmatprep.subr.bf16.mxu0 0
      %3465 = vmatpush1.bf16.msra.mxu0 0
      %3466 = vmatprep.subr.bf16.mxu0 0
      %3467 = vmatpush1.bf16.msra.mxu0 0
      %3468 = vmatprep.subr.bf16.mxu0 0
      %3469 = vmatpush1.bf16.msra.mxu0 0
      %3470 = vmatprep.subr.bf16.mxu0 0
      %3471 = vmatpush1.bf16.msra.mxu0 0
      %3472 = vmatprep.subr.bf16.mxu0 0
      %3473 = vmatpush1.bf16.msra.mxu0 0
      %3474 = vmatprep.mubr.bf16.mxu0 0
      %3475 = vmatmul.mubr.bf16.gmra.mrb[0].mxu0 %v3395
      %v3476 = vpop.f32.mrb[0].mxu0
      %v3477 = vadd.f32 0.0, %v3476
      %v3478 = vpop.f32.mrb[0].mxu0
      %v3479 = vpop.f32.mrb[0].mxu0
      %v3480 = vadd.f32 0.0, %v3479
      %v3481 = vpop.f32.mrb[0].mxu0
      %3482 = vmatprep.mubr.bf16.mxu0 0
      %3483 = vmatmul.mubr.bf16.gmra.mrb[0].mxu0 %v3398
      %v3484 = vpop.f32.mrb[0].mxu0
      %v3485 = vadd.f32 0.0, %v3484
      %v3486 = vpop.f32.mrb[0].mxu0
      %v3487 = vpop.f32.mrb[0].mxu0
      %v3488 = vadd.f32 0.0, %v3487
      %v3489 = vpop.f32.mrb[0].mxu0
      %3490 = vmatprep.mubr.bf16.mxu0 0
      %3491 = vmatmul.mubr.bf16.gmra.mrb[0].mxu0 %v3401
      %v3492 = vpop.f32.mrb[0].mxu0
      %v3493 = vadd.f32 0.0, %v3492
      %v3494 = vpop.f32.mrb[0].mxu0
      %v3495 = vpop.f32.mrb[0].mxu0
      %v3496 = vadd.f32 0.0, %v3495
      %v3497 = vpop.f32.mrb[0].mxu0
      %3498 = vmatprep.mubr.bf16.mxu0 0
      %3499 = vmatmul.mubr.bf16.gmra.mrb[0].mxu0 %v3404
      %v3500 = vpop.f32.mrb[0].mxu0
      %v3501 = vadd.f32 0.0, %v3500
      %v3502 = vpop.f32.mrb[0].mxu0
      %v3503 = vpop.f32.mrb[0].mxu0
      %v3504 = vadd.f32 0.0, %v3503
      %v3505 = vpop.f32.mrb[0].mxu0
      %3506 = vmatprep.mubr.bf16.mxu0 0
      %3507 = vmatmul.mubr.bf16.gmra.mrb[0].mxu0 %v3407
      %v3508 = vpop.f32.mrb[0].mxu0
      %v3509 = vadd.f32 0.0, %v3508
      %v3510 = vpop.f32.mrb[0].mxu0
      %v3511 = vpop.f32.mrb[0].mxu0
      %v3512 = vadd.f32 0.0, %v3511
      %v3513 = vpop.f32.mrb[0].mxu0
      %3514 = vmatprep.mubr.bf16.mxu0 0
      %3515 = vmatmul.mubr.bf16.gmra.mrb[0].mxu0 %v3410
      %v3516 = vpop.f32.mrb[0].mxu0
      %v3517 = vadd.f32 0.0, %v3516
      %v3518 = vpop.f32.mrb[0].mxu0
      %v3519 = vpop.f32.mrb[0].mxu0
      %v3520 = vadd.f32 0.0, %v3519
      %v3521 = vpop.f32.mrb[0].mxu0
      %3522 = vmatprep.mubr.bf16.mxu0 0
      %3523 = vmatmul.mubr.bf16.gmra.mrb[0].mxu0 %v3413
      %v3524 = vpop.f32.mrb[0].mxu0
      %v3525 = vadd.f32 0.0, %v3524
      %v3526 = vpop.f32.mrb[0].mxu0
      %v3527 = vpop.f32.mrb[0].mxu0
      %v3528 = vadd.f32 0.0, %v3527
      %v3529 = vpop.f32.mrb[0].mxu0
      %3530 = vmatprep.mubr.bf16.mxu0 0
      %3531 = vmatmul.mubr.bf16.gmra.mrb[0].mxu0 %v3416
      %v3532 = vpop.f32.mrb[0].mxu0
      %v3533 = vadd.f32 0.0, %v3532
      %v3534 = vpop.f32.mrb[0].mxu0
      %v3535 = vpop.f32.mrb[0].mxu0
      %v3536 = vadd.f32 0.0, %v3535
      %v3537 = vpop.f32.mrb[0].mxu0
      %3538 = vmatprep.mubr.bf16.mxu0 0
      %3539 = vmatmul.mubr.bf16.gmra.mrb[0].mxu0 %v3419
      %v3540 = vpop.f32.mrb[0].mxu0
      %v3541 = vadd.f32 0.0, %v3540
      %v3542 = vpop.f32.mrb[0].mxu0
      %v3543 = vpop.f32.mrb[0].mxu0
      %v3544 = vadd.f32 0.0, %v3543
      %v3545 = vpop.f32.mrb[0].mxu0
      %3546 = vmatprep.mubr.bf16.mxu0 0
      %3547 = vmatmul.mubr.bf16.gmra.mrb[0].mxu0 %v3422
      %v3548 = vpop.f32.mrb[0].mxu0
      %v3549 = vadd.f32 0.0, %v3548
      %v3550 = vpop.f32.mrb[0].mxu0
      %v3551 = vpop.f32.mrb[0].mxu0
      %v3552 = vadd.f32 0.0, %v3551
      %v3553 = vpop.f32.mrb[0].mxu0
      %3554 = vmatprep.mubr.bf16.mxu0 0
      %3555 = vmatmul.mubr.bf16.gmra.mrb[0].mxu0 %v3425
      %v3556 = vpop.f32.mrb[0].mxu0
      %v3557 = vadd.f32 0.0, %v3556
      %v3558 = vpop.f32.mrb[0].mxu0
      %v3559 = vpop.f32.mrb[0].mxu0
      %v3560 = vadd.f32 0.0, %v3559
      %v3561 = vpop.f32.mrb[0].mxu0
      %3562 = vmatprep.mubr.bf16.mxu0 0
      %3563 = vmatmul.mubr.bf16.gmra.mrb[0].mxu0 %v3428
      %v3564 = vpop.f32.mrb[0].mxu0
      %v3565 = vadd.f32 0.0, %v3564
      %v3566 = vpop.f32.mrb[0].mxu0
      %v3567 = vpop.f32.mrb[0].mxu0
      %v3568 = vadd.f32 0.0, %v3567
      %v3569 = vpop.f32.mrb[0].mxu0
      %3570 = vmatprep.mubr.bf16.mxu0 0
      %3571 = vmatmul.mubr.bf16.gmra.mrb[0].mxu0 %v3431
      %v3572 = vpop.f32.mrb[0].mxu0
      %v3573 = vadd.f32 0.0, %v3572
      %v3574 = vpop.f32.mrb[0].mxu0
      %v3575 = vpop.f32.mrb[0].mxu0
      %v3576 = vadd.f32 0.0, %v3575
      %v3577 = vpop.f32.mrb[0].mxu0
      %3578 = vmatprep.mubr.bf16.mxu0 0
      %3579 = vmatmul.mubr.bf16.gmra.mrb[0].mxu0 %v3434
      %v3580 = vpop.f32.mrb[0].mxu0
      %v3581 = vadd.f32 0.0, %v3580
      %v3582 = vpop.f32.mrb[0].mxu0
      %v3583 = vpop.f32.mrb[0].mxu0
      %v3584 = vadd.f32 0.0, %v3583
      %v3585 = vpop.f32.mrb[0].mxu0
      %3586 = vmatprep.mubr.bf16.mxu0 0
      %3587 = vmatmul.mubr.bf16.gmra.mrb[0].mxu0 %v3437
      %v3588 = vpop.f32.mrb[0].mxu0
      %v3589 = vadd.f32 0.0, %v3588
      %v3590 = vpop.f32.mrb[0].mxu0
      %v3591 = vpop.f32.mrb[0].mxu0
      %v3592 = vadd.f32 0.0, %v3591
      %v3593 = vpop.f32.mrb[0].mxu0
      %3594 = vmatprep.mubr.bf16.mxu0 0
      %3595 = vmatmul.mubr.bf16.gmra.mrb[0].mxu0 %v3440
      %v3596 = vpop.f32.mrb[0].mxu0
      %v3597 = vadd.f32 0.0, %v3596
      %v3598 = vpop.f32.mrb[0].mxu0
      %v3599 = vpop.f32.mrb[0].mxu0
      %v3600 = vadd.f32 0.0, %v3599
      %v3601 = vpop.f32.mrb[0].mxu0
      %3602 = vdwg.mxu0
      %v3603 = vadd.f32 %v3292, %v3477
      %v3604 = vadd.f32 %v3293, %v3480
      %v3605 = vadd.f32 %v3294, %v3485
      %v3606 = vadd.f32 %v3295, %v3488
      %v3607 = vadd.f32 %v3296, %v3493
      %v3608 = vadd.f32 %v3297, %v3496
      %v3609 = vadd.f32 %v3298, %v3501
      %v3610 = vadd.f32 %v3299, %v3504
      %v3611 = vadd.f32 %v3300, %v3509
      %v3612 = vadd.f32 %v3301, %v3512
      %v3613 = vadd.f32 %v3302, %v3517
      %v3614 = vadd.f32 %v3303, %v3520
      %v3615 = vadd.f32 %v3304, %v3525
      %v3616 = vadd.f32 %v3305, %v3528
      %v3617 = vadd.f32 %v3306, %v3533
      %v3618 = vadd.f32 %v3307, %v3536
      %v3619 = vadd.f32 %v3308, %v3541
      %v3620 = vadd.f32 %v3309, %v3544
      %v3621 = vadd.f32 %v3310, %v3549
      %v3622 = vadd.f32 %v3311, %v3552
      %v3623 = vadd.f32 %v3312, %v3557
      %v3624 = vadd.f32 %v3313, %v3560
      %v3625 = vadd.f32 %v3314, %v3565
      %v3626 = vadd.f32 %v3315, %v3568
      %v3627 = vadd.f32 %v3316, %v3573
      %v3628 = vadd.f32 %v3317, %v3576
      %v3629 = vadd.f32 %v3318, %v3581
      %v3630 = vadd.f32 %v3319, %v3584
      %v3631 = vadd.f32 %v3320, %v3589
      %v3632 = vadd.f32 %v3321, %v3592
      %v3633 = vadd.f32 %v3322, %v3597
      %v3634 = vadd.f32 %v3323, %v3600
      %v3635 = vld [vmem:[%s3] sm:$0x1]
      %v3637 = vlaneseq
      %v3638 = vshrl.u32 %v3637, 7
      %v3639 = vsub.s32 0, %v3638
      %v3640 = vrot.slane %v3635, %v3639
      %v3642 = vadd.f32 %v3603, %v3640
      %v3643 = vadd.f32 %v3604, %v3640
      %v3644 = vadd.f32 %v3605, %v3640
      %v3645 = vadd.f32 %v3606, %v3640
      %v3646 = vadd.f32 %v3607, %v3640
      %v3647 = vadd.f32 %v3608, %v3640
      %v3648 = vadd.f32 %v3609, %v3640
      %v3649 = vadd.f32 %v3610, %v3640
      %v3650 = vadd.f32 %v3611, %v3640
      %v3651 = vadd.f32 %v3612, %v3640
      %v3652 = vadd.f32 %v3613, %v3640
      %v3653 = vadd.f32 %v3614, %v3640
      %v3654 = vadd.f32 %v3615, %v3640
      %v3655 = vadd.f32 %v3616, %v3640
      %v3656 = vadd.f32 %v3617, %v3640
      %v3657 = vadd.f32 %v3618, %v3640
      %v3658 = vadd.f32 %v3619, %v3640
      %v3659 = vadd.f32 %v3620, %v3640
      %v3660 = vadd.f32 %v3621, %v3640
      %v3661 = vadd.f32 %v3622, %v3640
      %v3662 = vadd.f32 %v3623, %v3640
      %v3663 = vadd.f32 %v3624, %v3640
      %v3664 = vadd.f32 %v3625, %v3640
      %v3665 = vadd.f32 %v3626, %v3640
      %v3666 = vadd.f32 %v3627, %v3640
      %v3667 = vadd.f32 %v3628, %v3640
      %v3668 = vadd.f32 %v3629, %v3640
      %v3669 = vadd.f32 %v3630, %v3640
      %v3670 = vadd.f32 %v3631, %v3640
      %v3671 = vadd.f32 %v3632, %v3640
      %v3672 = vadd.f32 %v3633, %v3640
      %v3673 = vadd.f32 %v3634, %v3640
      %v3674 = vld [vmem:[%s338] sm:$0xf]
      %v3675 = vld [vmem:[%s338 + $0x4] sm:$0xf]
      %v3676 = vld [vmem:[%s338 + $0x8] sm:$0xf]
      %v3677 = vld [vmem:[%s338 + $0xc] sm:$0xf]
      %v3678 = vld [vmem:[%s338 + $0x10] sm:$0xf]
      %v3679 = vld [vmem:[%s338 + $0x14] sm:$0xf]
      %v3680 = vld [vmem:[%s338 + $0x18] sm:$0xf]
      %v3681 = vld [vmem:[%s338 + $0x1c] sm:$0xf]
      %v3682 = vld [vmem:[%s338 + $0x20] sm:$0xf]
      %v3683 = vld [vmem:[%s338 + $0x24] sm:$0xf]
      %v3684 = vld [vmem:[%s338 + $0x28] sm:$0xf]
      %v3685 = vld [vmem:[%s338 + $0x2c] sm:$0xf]
      %v3686 = vld [vmem:[%s338 + $0x30] sm:$0xf]
      %v3687 = vld [vmem:[%s338 + $0x34] sm:$0xf]
      %v3688 = vld [vmem:[%s338 + $0x38] sm:$0xf]
      %v3689 = vld [vmem:[%s338 + $0x3c] sm:$0xf]
      %v3690 = vld [vmem:[%s338 + $0x40] sm:$0xf]
      %v3691 = vld [vmem:[%s338 + $0x44] sm:$0xf]
      %v3692 = vld [vmem:[%s338 + $0x48] sm:$0xf]
      %v3693 = vld [vmem:[%s338 + $0x4c] sm:$0xf]
      %v3694 = vld [vmem:[%s338 + $0x50] sm:$0xf]
      %v3695 = vld [vmem:[%s338 + $0x54] sm:$0xf]
      %v3696 = vld [vmem:[%s338 + $0x58] sm:$0xf]
      %v3697 = vld [vmem:[%s338 + $0x5c] sm:$0xf]
      %v3698 = vld [vmem:[%s338 + $0x60] sm:$0xf]
      %v3699 = vld [vmem:[%s338 + $0x64] sm:$0xf]
      %v3700 = vld [vmem:[%s338 + $0x68] sm:$0xf]
      %v3701 = vld [vmem:[%s338 + $0x6c] sm:$0xf]
      %v3702 = vld [vmem:[%s338 + $0x70] sm:$0xf]
      %v3703 = vld [vmem:[%s338 + $0x74] sm:$0xf]
      %v3704 = vld [vmem:[%s338 + $0x78] sm:$0xf]
      %v3705 = vld [vmem:[%s338 + $0x7c] sm:$0xf]
      %v3706 = vunpack.c.l.bf16 %v3674
      %v3707 = vunpack.c.l.bf16 %v3675
      %v3708 = vunpack.c.l.bf16 %v3676
      %v3709 = vunpack.c.l.bf16 %v3677
      %v3710 = vunpack.c.l.bf16 %v3678
      %v3711 = vunpack.c.l.bf16 %v3679
      %v3712 = vunpack.c.l.bf16 %v3680
      %v3713 = vunpack.c.l.bf16 %v3681
      %v3714 = vunpack.c.l.bf16 %v3682
      %v3715 = vunpack.c.l.bf16 %v3683
      %v3716 = vunpack.c.l.bf16 %v3684
      %v3717 = vunpack.c.l.bf16 %v3685
      %v3718 = vunpack.c.l.bf16 %v3686
      %v3719 = vunpack.c.l.bf16 %v3687
      %v3720 = vunpack.c.l.bf16 %v3688
      %v3721 = vunpack.c.l.bf16 %v3689
      %v3722 = vunpack.c.l.bf16 %v3690
      %v3723 = vunpack.c.l.bf16 %v3691
      %v3724 = vunpack.c.l.bf16 %v3692
      %v3725 = vunpack.c.l.bf16 %v3693
      %v3726 = vunpack.c.l.bf16 %v3694
      %v3727 = vunpack.c.l.bf16 %v3695
      %v3728 = vunpack.c.l.bf16 %v3696
      %v3729 = vunpack.c.l.bf16 %v3697
      %v3730 = vunpack.c.l.bf16 %v3698
      %v3731 = vunpack.c.l.bf16 %v3699
      %v3732 = vunpack.c.l.bf16 %v3700
      %v3733 = vunpack.c.l.bf16 %v3701
      %v3734 = vunpack.c.l.bf16 %v3702
      %v3735 = vunpack.c.l.bf16 %v3703
      %v3736 = vunpack.c.l.bf16 %v3704
      %v3737 = vunpack.c.l.bf16 %v3705
      %v3738 = vadd.f32 %v3642, %v3706
      %v3739 = vadd.f32 %v3643, %v3707
      %v3740 = vadd.f32 %v3644, %v3708
      %v3741 = vadd.f32 %v3645, %v3709
      %v3742 = vadd.f32 %v3646, %v3710
      %v3743 = vadd.f32 %v3647, %v3711
      %v3744 = vadd.f32 %v3648, %v3712
      %v3745 = vadd.f32 %v3649, %v3713
      %v3746 = vadd.f32 %v3650, %v3714
      %v3747 = vadd.f32 %v3651, %v3715
      %v3748 = vadd.f32 %v3652, %v3716
      %v3749 = vadd.f32 %v3653, %v3717
      %v3750 = vadd.f32 %v3654, %v3718
      %v3751 = vadd.f32 %v3655, %v3719
      %v3752 = vadd.f32 %v3656, %v3720
      %v3753 = vadd.f32 %v3657, %v3721
      %v3754 = vadd.f32 %v3658, %v3722
      %v3755 = vadd.f32 %v3659, %v3723
      %v3756 = vadd.f32 %v3660, %v3724
      %v3757 = vadd.f32 %v3661, %v3725
      %v3758 = vadd.f32 %v3662, %v3726
      %v3759 = vadd.f32 %v3663, %v3727
      %v3760 = vadd.f32 %v3664, %v3728
      %v3761 = vadd.f32 %v3665, %v3729
      %v3762 = vadd.f32 %v3666, %v3730
      %v3763 = vadd.f32 %v3667, %v3731
      %v3764 = vadd.f32 %v3668, %v3732
      %v3765 = vadd.f32 %v3669, %v3733
      %v3766 = vadd.f32 %v3670, %v3734
      %v3767 = vadd.f32 %v3671, %v3735
      %v3768 = vadd.f32 %v3672, %v3736
      %v3769 = vadd.f32 %v3673, %v3737
      %v3770 = vmax.f32 %v3738, 0.0
      %v3771 = vmax.f32 %v3739, 0.0
      %v3772 = vmax.f32 %v3740, 0.0
      %v3773 = vmax.f32 %v3741, 0.0
      %v3774 = vmax.f32 %v3742, 0.0
      %v3775 = vmax.f32 %v3743, 0.0
      %v3776 = vmax.f32 %v3744, 0.0
      %v3777 = vmax.f32 %v3745, 0.0
      %v3778 = vmax.f32 %v3746, 0.0
      %v3779 = vmax.f32 %v3747, 0.0
      %v3780 = vmax.f32 %v3748, 0.0
      %v3781 = vmax.f32 %v3749, 0.0
      %v3782 = vmax.f32 %v3750, 0.0
      %v3783 = vmax.f32 %v3751, 0.0
      %v3784 = vmax.f32 %v3752, 0.0
      %v3785 = vmax.f32 %v3753, 0.0
      %v3786 = vmax.f32 %v3754, 0.0
      %v3787 = vmax.f32 %v3755, 0.0
      %v3788 = vmax.f32 %v3756, 0.0
      %v3789 = vmax.f32 %v3757, 0.0
      %v3790 = vmax.f32 %v3758, 0.0
      %v3791 = vmax.f32 %v3759, 0.0
      %v3792 = vmax.f32 %v3760, 0.0
      %v3793 = vmax.f32 %v3761, 0.0
      %v3794 = vmax.f32 %v3762, 0.0
      %v3795 = vmax.f32 %v3763, 0.0
      %v3796 = vmax.f32 %v3764, 0.0
      %v3797 = vmax.f32 %v3765, 0.0
      %v3798 = vmax.f32 %v3766, 0.0
      %v3799 = vmax.f32 %v3767, 0.0
      %v3800 = vmax.f32 %v3768, 0.0
      %v3801 = vmax.f32 %v3769, 0.0
      %v3802 = vpack.c.bf16 %v3771, %v3770
      %v3803 = vpack.c.bf16 %v3773, %v3772
      %v3804 = vpack.c.bf16 %v3775, %v3774
      %v3805 = vpack.c.bf16 %v3777, %v3776
      %v3806 = vpack.c.bf16 %v3779, %v3778
      %v3807 = vpack.c.bf16 %v3781, %v3780
      %v3808 = vpack.c.bf16 %v3783, %v3782
      %v3809 = vpack.c.bf16 %v3785, %v3784
      %v3810 = vpack.c.bf16 %v3787, %v3786
      %v3811 = vpack.c.bf16 %v3789, %v3788
      %v3812 = vpack.c.bf16 %v3791, %v3790
      %v3813 = vpack.c.bf16 %v3793, %v3792
      %v3814 = vpack.c.bf16 %v3795, %v3794
      %v3815 = vpack.c.bf16 %v3797, %v3796
      %v3816 = vpack.c.bf16 %v3799, %v3798
      %v3817 = vpack.c.bf16 %v3801, %v3800
      %v3834 = vunpack.c.l.b16 %v3802
      %v3835 = vunpack.c.h.b16 %v3802
      %v3836 = vunpack.c.l.b16 %v3803
      %v3837 = vunpack.c.h.b16 %v3803
      %v3838 = vunpack.c.l.b16 %v3804
      %v3839 = vunpack.c.h.b16 %v3804
      %v3840 = vunpack.c.l.b16 %v3805
      %v3841 = vunpack.c.h.b16 %v3805
      %v3842 = vunpack.c.l.b16 %v3806
      %v3843 = vunpack.c.h.b16 %v3806
      %v3844 = vunpack.c.l.b16 %v3807
      %v3845 = vunpack.c.h.b16 %v3807
      %v3846 = vunpack.c.l.b16 %v3808
      %v3847 = vunpack.c.h.b16 %v3808
      %v3848 = vunpack.c.l.b16 %v3809
      %v3849 = vunpack.c.h.b16 %v3809
      %v3850 = vunpack.c.l.b16 %v3810
      %v3851 = vunpack.c.h.b16 %v3810
      %v3852 = vunpack.c.l.b16 %v3811
      %v3853 = vunpack.c.h.b16 %v3811
      %v3854 = vunpack.c.l.b16 %v3812
      %v3855 = vunpack.c.h.b16 %v3812
      %v3856 = vunpack.c.l.b16 %v3813
      %v3857 = vunpack.c.h.b16 %v3813
      %v3858 = vunpack.c.l.b16 %v3814
      %v3859 = vunpack.c.h.b16 %v3814
      %v3860 = vunpack.c.l.b16 %v3815
      %v3861 = vunpack.c.h.b16 %v3815
      %v3862 = vunpack.c.l.b16 %v3816
      %v3863 = vunpack.c.h.b16 %v3816
      %v3864 = vunpack.c.l.b16 %v3817
      %v3865 = vunpack.c.h.b16 %v3817
      %v3866 = vpack.c.b16 %v3834, %v3834
      %v3867 = vpack.c.b16 %v3835, %v3835
      %v3868 = vpack.c.b16 %v3836, %v3836
      %v3869 = vpack.c.b16 %v3837, %v3837
      %v3870 = vpack.c.b16 %v3838, %v3838
      %v3871 = vpack.c.b16 %v3839, %v3839
      %v3872 = vpack.c.b16 %v3840, %v3840
      %v3873 = vpack.c.b16 %v3841, %v3841
      %v3874 = vpack.c.b16 %v3842, %v3842
      %v3875 = vpack.c.b16 %v3843, %v3843
      %v3876 = vpack.c.b16 %v3844, %v3844
      %v3877 = vpack.c.b16 %v3845, %v3845
      %v3878 = vpack.c.b16 %v3846, %v3846
      %v3879 = vpack.c.b16 %v3847, %v3847
      %v3880 = vpack.c.b16 %v3848, %v3848
      %v3881 = vpack.c.b16 %v3849, %v3849
      %v3882 = vpack.c.b16 %v3850, %v3850
      %v3883 = vpack.c.b16 %v3851, %v3851
      %v3884 = vpack.c.b16 %v3852, %v3852
      %v3885 = vpack.c.b16 %v3853, %v3853
      %v3886 = vpack.c.b16 %v3854, %v3854
      %v3887 = vpack.c.b16 %v3855, %v3855
      %v3888 = vpack.c.b16 %v3856, %v3856
      %v3889 = vpack.c.b16 %v3857, %v3857
      %v3890 = vpack.c.b16 %v3858, %v3858
      %v3891 = vpack.c.b16 %v3859, %v3859
      %v3892 = vpack.c.b16 %v3860, %v3860
      %v3893 = vpack.c.b16 %v3861, %v3861
      %v3894 = vpack.c.b16 %v3862, %v3862
      %v3895 = vpack.c.b16 %v3863, %v3863
      %v3896 = vpack.c.b16 %v3864, %v3864
      %v3897 = vpack.c.b16 %v3865, %v3865
      %3930 = vst [vmem:[%s348] sm:$0xf] %v3866
      %3931 = vst [vmem:[%s348 + $0x4] sm:$0xf] %v3867
      %3932 = vst [vmem:[%s348 + $0x8] sm:$0xf] %v3868
      %3933 = vst [vmem:[%s348 + $0xc] sm:$0xf] %v3869
      %3934 = vst [vmem:[%s348 + $0x10] sm:$0xf] %v3870
      %3935 = vst [vmem:[%s348 + $0x14] sm:$0xf] %v3871
      %3936 = vst [vmem:[%s348 + $0x18] sm:$0xf] %v3872
      %3937 = vst [vmem:[%s348 + $0x1c] sm:$0xf] %v3873
      %3938 = vst [vmem:[%s348 + $0x20] sm:$0xf] %v3874
      %3939 = vst [vmem:[%s348 + $0x24] sm:$0xf] %v3875
      %3940 = vst [vmem:[%s348 + $0x28] sm:$0xf] %v3876
      %3941 = vst [vmem:[%s348 + $0x2c] sm:$0xf] %v3877
      %3942 = vst [vmem:[%s348 + $0x30] sm:$0xf] %v3878
      %3943 = vst [vmem:[%s348 + $0x34] sm:$0xf] %v3879
      %3944 = vst [vmem:[%s348 + $0x38] sm:$0xf] %v3880
      %3945 = vst [vmem:[%s348 + $0x3c] sm:$0xf] %v3881
      %3946 = vst [vmem:[%s348 + $0x40] sm:$0xf] %v3882
      %3947 = vst [vmem:[%s348 + $0x44] sm:$0xf] %v3883
      %3948 = vst [vmem:[%s348 + $0x48] sm:$0xf] %v3884
      %3949 = vst [vmem:[%s348 + $0x4c] sm:$0xf] %v3885
      %3950 = vst [vmem:[%s348 + $0x50] sm:$0xf] %v3886
      %3951 = vst [vmem:[%s348 + $0x54] sm:$0xf] %v3887
      %3952 = vst [vmem:[%s348 + $0x58] sm:$0xf] %v3888
      %3953 = vst [vmem:[%s348 + $0x5c] sm:$0xf] %v3889
      %3954 = vst [vmem:[%s348 + $0x60] sm:$0xf] %v3890
      %3955 = vst [vmem:[%s348 + $0x64] sm:$0xf] %v3891
      %3956 = vst [vmem:[%s348 + $0x68] sm:$0xf] %v3892
      %3957 = vst [vmem:[%s348 + $0x6c] sm:$0xf] %v3893
      %3958 = vst [vmem:[%s348 + $0x70] sm:$0xf] %v3894
      %3959 = vst [vmem:[%s348 + $0x74] sm:$0xf] %v3895
      %3960 = vst [vmem:[%s348 + $0x78] sm:$0xf] %v3896
      %3961 = vst [vmem:[%s348 + $0x7c] sm:$0xf] %v3897
      %s3962 = smul.u32 32, %s21
      %p3963 = scmp.lt.s32.totalorder %s20, 1
      %s3964 = scalar_select %p3963, %s20, 1
      %p3965 = scmp.lt.s32.totalorder %s3962, 63
      %s3966 = scalar_select %p3965, %s3962, 63
      %s3967 = smul.addr %s3964, 64
      %s3968 = sadd.s32 %s3966, %s3967
      %s3969 = smul.addr %s3968, 4
      %s3970 = scalar_lea.vmem %s5, %s3969
      // Predicated region
      $region41: #{basic_block_forward.3} parent=39 // pred_check
        %p3971 = pneg %p178
      $region42: #{basic_block_forward.3} parent=39 // pred_check_branch
        %3973 = sbr.rel (%p3971) target = $region44
      $region43: #{basic_block_forward.3} parent=39 // pred_region
        %s3974 = smul.u32 32, %s21
      $region44: #{basic_block_forward.3} parent=39 // pred_fallthru
        _
    $region40: #{basic_block_forward.3} parent=5 // pred_fallthru
      _
    %p3975 = scmp.le.s32.totalorder 2, %s11
    // Predicated region
    $region45: #{basic_block_forward.3} parent=5 // pred_check
      %p3976 = pneg %p3975
    $region46: #{basic_block_forward.3} parent=5 // pred_check_branch
      %3978 = sbr.rel (%p3976) target = $region48
    $region47: #{basic_block_forward.3} parent=5 // pred_region
      %s3979 = ssub.s32 %s11, 2
      // Predicated region
      $region49: #{basic_block_forward.3} parent=47 // pred_check
        %p3980 = pneg %p184
      $region50: #{basic_block_forward.3} parent=47 // pred_check_branch
        %3982 = sbr.rel (%p3980) target = $region52
      $region51: #{basic_block_forward.3} parent=47 // pred_region
        %s3983 = smul.u32 32, %s23
        %p3984 = scmp.lt.s32.totalorder %s22, 1
        %s3985 = scalar_select %p3984, %s22, 1
        %p3986 = scmp.lt.s32.totalorder %s3983, 63
        %s3987 = scalar_select %p3986, %s3983, 63
        %s3988 = smul.addr %s3985, 64
        %s3989 = sadd.s32 %s3987, %s3988
        %s3990 = smul.addr %s3989, 4
        %s3991 = scalar_lea.vmem %s5, %s3990
      $region52: #{basic_block_forward.3} parent=47 // pred_fallthru
        _
    $region48: #{basic_block_forward.3} parent=5 // pred_fallthru
      _
  $region6: #{basic_block_forward.3} parent=0 // loop_footer
    %s15 = sadd.s32 1, %s11
  $region7: #{basic_block_forward.3} parent=0 // loop_footer_branch
    %10 = sbr.rel target = $region3
  $region8: #{basic_block_forward.3} parent=0 // loop_exit
    _

</llo_original>
